<compile_context>
chip_gen: v7x
topology: tpu7x:2x2x1
jax: 0.10.0
libtpu: 0.0.40
codegen_flags: <defaults>
</compile_context>

<pallas_src>
import functools
import math

import jax
import jax.numpy as jnp
from jax import lax
from jax.experimental import pallas as pl
from jax.experimental.pallas import tpu as pltpu


# ---------------------------------------------------------------------------
# Small helpers
# ---------------------------------------------------------------------------

def _round_up(x, m):
    return (x + m - 1) // m * m


def _pad2(a, rows, cols):
    pr, pc = rows - a.shape[0], cols - a.shape[1]
    if pr == 0 and pc == 0:
        return a
    return jnp.pad(a, ((0, pr), (0, pc)))


def _erf_poly(x):
    """Abramowitz & Stegun 7.1.26 erf approximation (max abs err ~1.5e-7)."""
    a1, a2, a3, a4, a5 = (0.254829592, -0.284496736, 1.421413741,
                          -1.453152027, 1.061405429)
    p = 0.3275911
    sgn = jnp.where(x >= 0.0, 1.0, -1.0)
    ax = jnp.abs(x)
    t = 1.0 / (1.0 + p * ax)
    poly = ((((a5 * t + a4) * t + a3) * t + a2) * t + a1) * t
    return sgn * (1.0 - poly * jnp.exp(-ax * ax))


def _apply_act(y, act):
    if act == "relu":
        return jnp.maximum(y, 0.0)
    if act == "gelu":                       # exact (erf) GELU, torch nn.GELU default
        return 0.5 * y * (1.0 + _erf_poly(y * 0.7071067811865476))
    if act == "sigmoid":
        return 1.0 / (1.0 + jnp.exp(-y))
    return y


_VMEM_LIMIT = 32 * 1024 * 1024   # safe on v5e/v6e (128 MiB) and v7x (64 MiB physical)


# ---------------------------------------------------------------------------
# Pallas kernels
# ---------------------------------------------------------------------------

def _linear_kernel(x_ref, w_ref, b_ref, o_ref, acc_ref, *, act):
    """Tiled matmul: bf16 operands, f32 accumulate, bias+activation epilogue."""
    kk = pl.program_id(2)

    @pl.when(kk == 0)
    def _():
        acc_ref[...] = jnp.zeros_like(acc_ref)

    acc_ref[...] += jnp.dot(x_ref[...], w_ref[...],
                            preferred_element_type=jnp.float32)

    @pl.when(kk == pl.num_programs(2) - 1)
    def _():
        y = acc_ref[...] + b_ref[...]
        o_ref[...] = _apply_act(y, act)


def _mlp_chain_kernel(*refs, acts):
    """Fused chain of small linears: weights stay resident in VMEM."""
    x_ref, o_ref = refs[0], refs[-1]
    y = x_ref[...]                                    # bf16 (tm, K0)
    n = len(acts)
    for li in range(n):
        w = refs[1 + 2 * li][...]
        b = refs[2 + 2 * li][...]
        y = jnp.dot(y, w, preferred_element_type=jnp.float32) + b
        y = _apply_act(y, acts[li])
        if li + 1 < n:
            y = y.astype(jnp.bfloat16)
    o_ref[...] = y


def _add_ln_kernel(x_ref, y_ref, g_ref, b_ref, o_ref, *, eps):
    """LayerNorm(x + y) over the last dim (fused residual add), f32 math."""
    z = x_ref[...] + y_ref[...]
    mean = jnp.mean(z, axis=-1, keepdims=True)
    zc = z - mean
    var = jnp.mean(zc * zc, axis=-1, keepdims=True)
    o_ref[...] = zc * lax.rsqrt(var + eps) * g_ref[...] + b_ref[...]


def _mha_kernel(q_ref, k_ref, v_ref, o_ref, *, scale):
    """All heads of one batch element per grid step; no prob output."""
    q, k, v = q_ref[0], k_ref[0], v_ref[0]            # (nh, S, dk) bf16
    s = jnp.einsum('hqd,hkd->hqk', q, k,
                   preferred_element_type=jnp.float32) * scale
    m = jnp.max(s, axis=-1, keepdims=True)
    e = jnp.exp(s - m)
    l = jnp.sum(e, axis=-1, keepdims=True)
    p = e * pl.reciprocal(l, approx=True)
    o_ref[0] = jnp.einsum('hqk,hkd->hqd', p.astype(v.dtype), v,
                          preferred_element_type=jnp.float32)


def _mha_probs_kernel(q_ref, k_ref, v_ref, o_ref, p_ref, *, scale):
    """Same as _mha_kernel but also emits softmax probabilities (exact div)."""
    q, k, v = q_ref[0], k_ref[0], v_ref[0]
    s = jnp.einsum('hqd,hkd->hqk', q, k,
                   preferred_element_type=jnp.float32) * scale
    m = jnp.max(s, axis=-1, keepdims=True)
    e = jnp.exp(s - m)
    p = e / jnp.sum(e, axis=-1, keepdims=True)
    p_ref[0] = p
    o_ref[0] = jnp.einsum('hqk,hkd->hqd', p.astype(v.dtype), v,
                          preferred_element_type=jnp.float32)


# ---------------------------------------------------------------------------
# Pallas wrappers
# ---------------------------------------------------------------------------

def linear(x, w, b=None, act="none"):
    """y = act(x @ w + b); tiled/pipelined, bf16 MXU operands, f32 accumulate."""
    k_in, n_out = w.shape
    lead = x.shape[:-1]
    m = math.prod(lead) if lead else 1
    x2 = x.reshape(m, k_in)

    tm = min(128, _round_up(m, 8))
    tn = min(512, _round_up(n_out, 128))
    tk = min(512, _round_up(k_in, 128))
    mp, npad, kp = _round_up(m, tm), _round_up(n_out, tn), _round_up(k_in, tk)

    xb = _pad2(x2.astype(jnp.bfloat16), mp, kp)
    wb = _pad2(w.astype(jnp.bfloat16), kp, npad)
    if b is None:
        bb = jnp.zeros((1, npad), jnp.float32)
    else:
        bb = _pad2(b.reshape(1, n_out).astype(jnp.float32), 1, npad)

    gm, gn, gk = mp // tm, npad // tn, kp // tk
    out = pl.pallas_call(
        functools.partial(_linear_kernel, act=act),
        grid=(gm, gn, gk),
        in_specs=[pl.BlockSpec((tm, tk), lambda i, j, kk: (i, kk)),
                  pl.BlockSpec((tk, tn), lambda i, j, kk: (kk, j)),
                  pl.BlockSpec((1, tn), lambda i, j, kk: (0, j))],
        out_specs=pl.BlockSpec((tm, tn), lambda i, j, kk: (i, j)),
        out_shape=jax.ShapeDtypeStruct((mp, npad), jnp.float32),
        scratch_shapes=[pltpu.VMEM((tm, tn), jnp.float32)],
        compiler_params=pltpu.CompilerParams(
            dimension_semantics=("parallel", "parallel", "arbitrary"),
            vmem_limit_bytes=_VMEM_LIMIT),
    )(xb, wb, bb)
    return out[:m, :n_out].reshape(lead + (n_out,))


def mlp_chain(x, layers):
    """Fused stack of small linears (list of (w, b, act)); falls back to tiled
    `linear` calls when the weights / intermediates would not fit VMEM."""
    w_bytes = sum(w.size * 2 + b.size * 4 for w, b, _ in layers)
    max_width = max(w.shape[1] for w, _, _ in layers)
    lead = x.shape[:-1]
    m = math.prod(lead) if lead else 1
    tm = min(128, _round_up(m, 8))
    if w_bytes > 6 * 1024 * 1024 or max_width * tm * 4 > 4 * 1024 * 1024:
        y = x
        for w, b, act in layers:
            y = linear(y, w, b, act=act)
        return y

    k0 = x.shape[-1]
    n_last = layers[-1][0].shape[1]
    mp = _round_up(m, tm)
    xb = _pad2(x.reshape(m, k0).astype(jnp.bfloat16), mp, k0)

    ins = [xb]
    in_specs = [pl.BlockSpec((tm, k0), lambda i: (i, 0))]
    acts = []
    for w, b, act in layers:
        kk, nn = w.shape
        ins.append(w.astype(jnp.bfloat16))
        ins.append(b.reshape(1, nn).astype(jnp.float32))
        in_specs.append(pl.BlockSpec((kk, nn), lambda i: (0, 0)))
        in_specs.append(pl.BlockSpec((1, nn), lambda i: (0, 0)))
        acts.append(act)

    out = pl.pallas_call(
        functools.partial(_mlp_chain_kernel, acts=tuple(acts)),
        grid=(mp // tm,),
        in_specs=in_specs,
        out_specs=pl.BlockSpec((tm, n_last), lambda i: (i, 0)),
        out_shape=jax.ShapeDtypeStruct((mp, n_last), jnp.float32),
        compiler_params=pltpu.CompilerParams(
            dimension_semantics=("parallel",),
            vmem_limit_bytes=_VMEM_LIMIT),
    )(*ins)
    return out[:m].reshape(lead + (n_last,))


def add_layernorm(x, y, gamma, beta, eps=1e-5):
    h = x.shape[-1]
    lead = x.shape[:-1]
    m = math.prod(lead)
    tm = min(128, _round_up(m, 8))
    mp = _round_up(m, tm)
    xb = _pad2(x.reshape(m, h), mp, h)
    yb = _pad2(y.reshape(m, h), mp, h)
    out = pl.pallas_call(
        functools.partial(_add_ln_kernel, eps=eps),
        grid=(mp // tm,),
        in_specs=[pl.BlockSpec((tm, h), lambda i: (i, 0)),
                  pl.BlockSpec((tm, h), lambda i: (i, 0)),
                  pl.BlockSpec((1, h), lambda i: (0, 0)),
                  pl.BlockSpec((1, h), lambda i: (0, 0))],
        out_specs=pl.BlockSpec((tm, h), lambda i: (i, 0)),
        out_shape=jax.ShapeDtypeStruct((mp, h), jnp.float32),
        compiler_params=pltpu.CompilerParams(
            dimension_semantics=("parallel",)),
    )(xb, yb, gamma.reshape(1, h).astype(jnp.float32),
      beta.reshape(1, h).astype(jnp.float32))
    return out[:m].reshape(x.shape)


def attention_core(q, k, v, scale, need_probs):
    """q, k, v: (B, nh, S, dk).  Grid over batch; all heads per step."""
    b, nh, sq, dk = q.shape
    sk = k.shape[2]
    qb = q.astype(jnp.bfloat16)
    kb = k.astype(jnp.bfloat16)
    vb = v.astype(jnp.bfloat16)
    in_specs = [pl.BlockSpec((1, nh, sq, dk), lambda i: (i, 0, 0, 0)),
                pl.BlockSpec((1, nh, sk, dk), lambda i: (i, 0, 0, 0)),
                pl.BlockSpec((1, nh, sk, dk), lambda i: (i, 0, 0, 0))]
    cp = pltpu.CompilerParams(dimension_semantics=("parallel",))
    # TODO(synk): flash-style KV tiling for long sequences (full S resident here).
    if need_probs:
        o, probs = pl.pallas_call(
            functools.partial(_mha_probs_kernel, scale=scale),
            grid=(b,), in_specs=in_specs,
            out_specs=[pl.BlockSpec((1, nh, sq, dk), lambda i: (i, 0, 0, 0)),
                       pl.BlockSpec((1, nh, sq, sk), lambda i: (i, 0, 0, 0))],
            out_shape=(jax.ShapeDtypeStruct((b, nh, sq, dk), jnp.float32),
                       jax.ShapeDtypeStruct((b, nh, sq, sk), jnp.float32)),
            compiler_params=cp,
        )(qb, kb, vb)
        return o, probs
    o = pl.pallas_call(
        functools.partial(_mha_kernel, scale=scale),
        grid=(b,), in_specs=in_specs,
        out_specs=pl.BlockSpec((1, nh, sq, dk), lambda i: (i, 0, 0, 0)),
        out_shape=jax.ShapeDtypeStruct((b, nh, sq, dk), jnp.float32),
        compiler_params=cp,
    )(qb, kb, vb)
    return o, None


# ---------------------------------------------------------------------------
# Model blocks (compose the Pallas kernels)
# ---------------------------------------------------------------------------

def multi_head_attention(xq, xk, xv, p, num_heads, need_probs=False):
    b, sq, h = xq.shape
    dk = h // num_heads
    if (xq is xk) and (xq is xv):
        qkv = linear(xq, p["wqkv"], p.get("bqkv"))          # fused QKV projection
        q, k, v = jnp.split(qkv, 3, axis=-1)
        sk = sq
    else:  # not exercised by this model (all call sites are self-attention)
        wq, wk, wv = jnp.split(p["wqkv"], 3, axis=1)
        bq = bk = bv = None
        if "bqkv" in p:
            bq, bk, bv = jnp.split(p["bqkv"], 3)
        q, k, v = linear(xq, wq, bq), linear(xk, wk, bk), linear(xv, wv, bv)
        sk = xk.shape[1]

    def split_heads(t, s):
        return t.reshape(b, s, num_heads, dk).transpose(0, 2, 1, 3)

    o, probs = attention_core(split_heads(q, sq), split_heads(k, sk),
                              split_heads(v, sk), 1.0 / math.sqrt(dk),
                              need_probs)
    o = o.transpose(0, 2, 1, 3).reshape(b, sq, h)
    return linear(o, p["wo"], p.get("bo")), probs


def transformer_block_fwd(x, p, num_heads):
    attn, _ = multi_head_attention(x, x, x, p["attn"], num_heads)
    x = add_layernorm(x, attn, p["ln1_g"], p["ln1_b"])
    h = mlp_chain(x, [(p["ff_w1"], p["ff_b1"], "gelu"),
                      (p["ff_w2"], p["ff_b2"], "none")])
    return add_layernorm(x, h, p["ln2_g"], p["ln2_b"])


def encoder_layer_fwd(x, p, num_heads):
    # nn.TransformerEncoderLayer defaults: post-norm, ReLU FFN (d_ff=2048), biased attn.
    attn, _ = multi_head_attention(x, x, x, p["attn"], num_heads)
    x = add_layernorm(x, attn, p["ln1_g"], p["ln1_b"])
    h = mlp_chain(x, [(p["ff_w1"], p["ff_b1"], "relu"),
                      (p["ff_w2"], p["ff_b2"], "none")])
    return add_layernorm(x, h, p["ln2_g"], p["ln2_b"])


def conv2d_3x3_same(x, w, b):
    """3x3 SAME conv + bias + ReLU (NCHW).  Uses XLA's conv to avoid the 9x
    im2col HBM expansion.  # TODO(synk): native Pallas conv (patches in VMEM)."""
    y = lax.conv_general_dilated(x, w, window_strides=(1, 1), padding="SAME",
                                 dimension_numbers=("NCHW", "OIHW", "NCHW"))
    return jnp.maximum(y + b[None, :, None, None], 0.0)


def maxpool2(x):
    bsz, c, hh, ww = x.shape
    return x.reshape(bsz, c, hh // 2, 2, ww // 2, 2).max(axis=(3, 5))


def vision_network_fwd(x, p):
    h = conv2d_3x3_same(x, p["c1_w"], p["c1_b"])         # (B, 64, 16, 16)
    h = maxpool2(h)                                      # (B, 64, 8, 8)
    h = conv2d_3x3_same(h, p["c2_w"], p["c2_b"])         # (B, 128, 8, 8)
    h = maxpool2(h)                                      # (B, 128, 4, 4)
    h = conv2d_3x3_same(h, p["c3_w"], p["c3_b"])         # (B, 256, 4, 4)
    h = jnp.mean(h, axis=(2, 3))                         # AdaptiveAvgPool2d + Flatten
    return linear(h, p["fc_w"], p["fc_b"])               # (B, H)


def language_network_fwd(tokens, p, num_heads):
    emb = p["embedding"][tokens]                         # (B, S, H) gather (glue)
    # PyTorch TransformerEncoder default is seq-first (batch_first=False), so the
    # *batch* dim of the embedded tensor is the attended axis; transpose so our
    # batch-first attention reproduces that: batch'=S, seq'=B.
    x = emb.transpose(1, 0, 2)                           # (S, B, H)
    for lp in p["layers"]:
        x = encoder_layer_fwd(x, lp, num_heads)
    return x.transpose(1, 0, 2)                          # (B, S, H)


def advanced_neural_core_fwd(params, x, vision_input, language_input,
                             memory_state, *, num_heads):
    h = linear(x, params["in_emb_w"], params["in_emb_b"])                 # (B, S, H)

    vision_features = vision_network_fwd(vision_input, params["vision"])  # (B, H)
    language_features = language_network_fwd(language_input,
                                             params["language"], num_heads)  # (B, S, H)

    for lp in params["transformer"]:
        h = transformer_block_fwd(h, lp, num_heads)

    r = params["reasoning"]
    reasoning_output = mlp_chain(h, [(r["w1"], r["b1"], "relu"),
                                     (r["w2"], r["b2"], "relu"),
                                     (r["w3"], r["b3"], "none")])          # (B, S, H)

    mm = params["memory"]
    memory_output = mlp_chain(memory_state, [(mm["w1"], mm["b1"], "relu"),
                                             (mm["w2"], mm["b2"], "sigmoid")])  # (B, S, H)

    b, s, hd = h.shape
    # TODO(synk): in the reference, torch.cat([x(B,S,H), vision(B,H), ...], dim=-1)
    # is a rank mismatch; we broadcast the vision features over the sequence dim so
    # the 4*hidden integration path is exercised.
    vis = jnp.broadcast_to(vision_features[:, None, :], (b, s, hd))
    integrated_features = jnp.concatenate(
        [h, vis, language_features, memory_output], axis=-1)             # (B, S, 4H)

    g = params["integration"]
    integrated_output = mlp_chain(integrated_features,
                                  [(g["w1"], g["b1"], "relu"),
                                   (g["w2"], g["b2"], "relu"),
                                   (g["w3"], g["b3"], "none")])          # (B, S, H)

    global_output, attention_weights = multi_head_attention(
        integrated_output, integrated_output, integrated_output,
        params["global_attn"], num_heads, need_probs=True)
    output = linear(global_output, params["out_w"], params["out_b"])     # (B, S, in_dim)

    info = {"attention_weights": attention_weights,
            "reasoning_output": reasoning_output,
            "memory_output": memory_output,
            "integrated_features": integrated_output}
    return output, info


# ---------------------------------------------------------------------------
# Deterministic parameter initialization (synthetic; shapes from __init__)
# ---------------------------------------------------------------------------

def _fans(shape):
    if len(shape) == 2:
        return shape[0], shape[1]
    if len(shape) == 4:          # (Cout, Cin, kh, kw)
        rf = shape[2] * shape[3]
        return shape[1] * rf, shape[0] * rf
    return shape[-1], shape[-1]


def init_params(key, input_dim, hidden_dim, num_layers, num_heads, vocab_size=50000):
    keys = iter(jax.random.split(key, 128))

    def w(shape):
        fan_in, fan_out = _fans(shape)
        scale = math.sqrt(2.0 / (fan_in + fan_out))
        return scale * jax.random.normal(next(keys), shape, jnp.float32)

    z = lambda s: jnp.zeros(s, jnp.float32)
    o = lambda s: jnp.ones(s, jnp.float32)
    H = hidden_dim

    def mha(bias):
        p = {"wqkv": w((H, 3 * H)), "wo": w((H, H))}     # Q|K|V fused at init
        if bias:
            p.update(bqkv=z((3 * H,)), bo=z((H,)))
        return p

    def block(d_ff, bias):
        return {"attn": mha(bias),
                "ln1_g": o((H,)), "ln1_b": z((H,)),
                "ln2_g": o((H,)), "ln2_b": z((H,)),
                "ff_w1": w((H, d_ff)), "ff_b1": z((d_ff,)),
                "ff_w2": w((d_ff, H)), "ff_b2": z((H,))}

    return {
        "in_emb_w": w((input_dim, H)), "in_emb_b": z((H,)),
        "transformer": [block(4 * H, False) for _ in range(num_layers)],
        "vision": {"c1_w": w((64, 3, 3, 3)), "c1_b": z((64,)),
                   "c2_w": w((128, 64, 3, 3)), "c2_b": z((128,)),
                   "c3_w": w((256, 128, 3, 3)), "c3_b": z((256,)),
                   "fc_w": w((256, H)), "fc_b": z((H,))},
        "language": {"embedding": 0.02 * jax.random.normal(next(keys), (vocab_size, H),
                                                           jnp.float32),
                     "layers": [block(2048, True) for _ in range(3)]},
        "reasoning": {"w1": w((H, 2 * H)), "b1": z((2 * H,)),
                      "w2": w((2 * H, 4 * H)), "b2": z((4 * H,)),
                      "w3": w((4 * H, H)), "b3": z((H,))},
        "memory": {"w1": w((H, 2 * H)), "b1": z((2 * H,)),
                   "w2": w((2 * H, H)), "b2": z((H,))},
        "integration": {"w1": w((4 * H, 8 * H)), "b1": z((8 * H,)),
                        "w2": w((8 * H, 4 * H)), "b2": z((4 * H,)),
                        "w3": w((4 * H, H)), "b3": z((H,))},
        "global_attn": mha(False),
        "out_w": w((H, input_dim)), "out_b": z((input_dim,)),
    }


# ---------------------------------------------------------------------------
# Demo
# ---------------------------------------------------------------------------

if __name__ == "__main__":
    input_dim, hidden_dim, num_layers, num_heads = 16, 32, 2, 4
    B, S = 2, 8

    key = jax.random.PRNGKey(0)
    kp, kx, kv, kl, km = jax.random.split(key, 5)
    params = init_params(kp, input_dim, hidden_dim, num_layers, num_heads)

    x = jax.random.normal(kx, (B, S, input_dim), jnp.float32)
    vision_input = jax.random.normal(kv, (B, 3, 16, 16), jnp.float32)   # NCHW
    language_input = jax.random.randint(kl, (B, S), 0, 50000)
    memory_state = jax.random.normal(km, (B, S, hidden_dim), jnp.float32)

    fwd = jax.jit(functools.partial(advanced_neural_core_fwd, num_heads=num_heads))
    output, info = fwd(params, x, vision_input, language_input, memory_state)
    jax.block_until_ready((output, info))

    assert output.shape == (B, S, input_dim)
    assert info["attention_weights"].shape == (B, num_heads, S, S)
    assert info["reasoning_output"].shape == (B, S, hidden_dim)
    assert info["memory_output"].shape == (B, S, hidden_dim)
    assert info["integrated_features"].shape == (B, S, hidden_dim)
    assert bool(jnp.all(jnp.isfinite(output)))
    print("KERNEL_OK")
</pallas_src>

<mosaic_0001>
module attributes {stable_mosaic.version = 11 : i64} {
  func.func @_linear_kernel(%arg0: i32, %arg1: i32, %arg2: i32, %arg3: memref<16x128xbf16, #tpu.memory_space<vmem>>, %arg4: memref<128x128xbf16, #tpu.memory_space<vmem>>, %arg5: memref<1x128xf32, #tpu.memory_space<vmem>>, %arg6: memref<16x128xf32, #tpu.memory_space<vmem>>, %arg7: memref<16x128xf32, #tpu.memory_space<vmem>>) attributes {dimension_semantics = [#tpu.dimension_semantics<parallel>, #tpu.dimension_semantics<parallel>, #tpu.dimension_semantics<arbitrary>], iteration_bounds = array<i64: 1, 1, 1>, scalar_prefetch = 0 : i64, scratch_operands = 1 : i64, tpu.core_type = #tpu.core_type<tc>, window_params = [{transform_indices = @transform_0, window_bounds = array<i64: 16, 128>}, {transform_indices = @transform_1, window_bounds = array<i64: 128, 128>}, {transform_indices = @transform_2, window_bounds = array<i64: 1, 128>}, {transform_indices = @transform_3, window_bounds = array<i64: 16, 128>}]} {
    %c0_i32 = arith.constant 0 : i32
    %0 = arith.cmpi eq, %arg2, %c0_i32 : i32
    %1 = arith.extui %0 : i1 to i32
    %c0_i32_0 = arith.constant 0 : i32
    %2 = arith.cmpi ne, %1, %c0_i32_0 : i32
    scf.if %2 {
      %cst_10 = arith.constant 0.000000e+00 : f32
      %12 = vector.broadcast %cst_10 : f32 to vector<16x128xf32>
      %c0_11 = arith.constant 0 : index
      %c0_12 = arith.constant 0 : index
      %13 = vector.load %arg7[%c0_11, %c0_12] : memref<16x128xf32, #tpu.memory_space<vmem>>, vector<16x128xf32>
      tpu.vector_store %arg7[%c0_11, %c0_12], %12 {strides = array<i32>} : memref<16x128xf32, #tpu.memory_space<vmem>>, vector<16x128xf32>,
    } else {
    }
    %c0 = arith.constant 0 : index
    %c0_1 = arith.constant 0 : index
    %3 = vector.load %arg7[%c0, %c0_1] : memref<16x128xf32, #tpu.memory_space<vmem>>, vector<16x128xf32>
    %c0_2 = arith.constant 0 : index
    %c0_3 = arith.constant 0 : index
    %4 = vector.load %arg3[%c0_2, %c0_3] : memref<16x128xbf16, #tpu.memory_space<vmem>>, vector<16x128xbf16>
    %c0_4 = arith.constant 0 : index
    %c0_5 = arith.constant 0 : index
    %5 = vector.load %arg4[%c0_4, %c0_5] : memref<128x128xbf16, #tpu.memory_space<vmem>>, vector<128x128xbf16>
    %cst = arith.constant dense<0.000000e+00> : vector<16x128xf32>
    %6 = tpu.matmul %4, %5, %cst {dimension_numbers = #tpu.dot_dimension_numbers<[1], [0], [0], [1], [0, 0, 1, 1], [], []>} : vector<16x128xbf16>, vector<128x128xbf16>, vector<16x128xf32> -> vector<16x128xf32>
    %7 = arith.addf %3, %6 : vector<16x128xf32>
    %c0_6 = arith.constant 0 : index
    %c0_7 = arith.constant 0 : index
    %8 = vector.load %arg7[%c0_6, %c0_7] : memref<16x128xf32, #tpu.memory_space<vmem>>, vector<16x128xf32>
    tpu.vector_store %arg7[%c0_6, %c0_7], %7 {strides = array<i32>} : memref<16x128xf32, #tpu.memory_space<vmem>>, vector<16x128xf32>,
    %c0_i32_8 = arith.constant 0 : i32
    %9 = arith.cmpi eq, %arg2, %c0_i32_8 : i32
    %10 = arith.extui %9 : i1 to i32
    %c0_i32_9 = arith.constant 0 : i32
    %11 = arith.cmpi ne, %10, %c0_i32_9 : i32
    scf.if %11 {
      %c0_10 = arith.constant 0 : index
      %c0_11 = arith.constant 0 : index
      %12 = vector.load %arg7[%c0_10, %c0_11] : memref<16x128xf32, #tpu.memory_space<vmem>>, vector<16x128xf32>
      %c0_12 = arith.constant 0 : index
      %c0_13 = arith.constant 0 : index
      %13 = vector.load %arg5[%c0_12, %c0_13] : memref<1x128xf32, #tpu.memory_space<vmem>>, vector<1x128xf32>
      %14 = vector.broadcast %13 : vector<1x128xf32> to vector<16x128xf32>
      %15 = arith.addf %12, %14 : vector<16x128xf32>
      %c0_14 = arith.constant 0 : index
      %c0_15 = arith.constant 0 : index
      %16 = vector.load %arg6[%c0_14, %c0_15] : memref<16x128xf32, #tpu.memory_space<vmem>>, vector<16x128xf32>
      tpu.vector_store %arg6[%c0_14, %c0_15], %15 {strides = array<i32>} : memref<16x128xf32, #tpu.memory_space<vmem>>, vector<16x128xf32>,
    } else {
    }
    return
  }
  func.func @transform_0(%arg0: i32, %arg1: i32, %arg2: i32) -> (i32, i32) {
    %c0_i32 = arith.constant 0 : i32
    return %arg0, %arg2 : i32, i32
  }
  func.func @transform_1(%arg0: i32, %arg1: i32, %arg2: i32) -> (i32, i32) {
    %c0_i32 = arith.constant 0 : i32
    return %arg2, %arg1 : i32, i32
  }
  func.func @transform_2(%arg0: i32, %arg1: i32, %arg2: i32) -> (i32, i32) {
    %c0_i32 = arith.constant 0 : i32
    %c0_i32_0 = arith.constant 0 : i32
    return %c0_i32, %arg1 : i32, i32
  }
  func.func @transform_3(%arg0: i32, %arg1: i32, %arg2: i32) -> (i32, i32) {
    %c0_i32 = arith.constant 0 : i32
    return %arg0, %arg1 : i32, i32
  }
}

module attributes {stable_mosaic.version = 11 : i64} {
  func.func @_mha_kernel(%arg0: i32, %arg1: memref<1x4x2x8xbf16, #tpu.memory_space<vmem>>, %arg2: memref<1x4x2x8xbf16, #tpu.memory_space<vmem>>, %arg3: memref<1x4x2x8xbf16, #tpu.memory_space<vmem>>, %arg4: memref<1x4x2x8xf32, #tpu.memory_space<vmem>>) attributes {dimension_semantics = [#tpu.dimension_semantics<parallel>], iteration_bounds = array<i64: 8>, scalar_prefetch = 0 : i64, scratch_operands = 0 : i64, tpu.core_type = #tpu.core_type<tc>, window_params = [{transform_indices = @transform_0, window_bounds = array<i64: 1, 4, 2, 8>}, {transform_indices = @transform_1, window_bounds = array<i64: 1, 4, 2, 8>}, {transform_indices = @transform_2, window_bounds = array<i64: 1, 4, 2, 8>}, {transform_indices = @transform_3, window_bounds = array<i64: 1, 4, 2, 8>}]} {
    %c0 = arith.constant 0 : index
    %c0_0 = arith.constant 0 : index
    %c0_1 = arith.constant 0 : index
    %c0_2 = arith.constant 0 : index
    %0 = vector.load %arg1[%c0, %c0_0, %c0_1, %c0_2] : memref<1x4x2x8xbf16, #tpu.memory_space<vmem>>, vector<1x4x2x8xbf16>
    %1 = vector.shape_cast %0 : vector<1x4x2x8xbf16> to vector<4x2x8xbf16>
    %c0_3 = arith.constant 0 : index
    %c0_4 = arith.constant 0 : index
    %c0_5 = arith.constant 0 : index
    %c0_6 = arith.constant 0 : index
    %2 = vector.load %arg2[%c0_3, %c0_4, %c0_5, %c0_6] : memref<1x4x2x8xbf16, #tpu.memory_space<vmem>>, vector<1x4x2x8xbf16>
    %3 = vector.shape_cast %2 : vector<1x4x2x8xbf16> to vector<4x2x8xbf16>
    %c0_7 = arith.constant 0 : index
    %c0_8 = arith.constant 0 : index
    %c0_9 = arith.constant 0 : index
    %c0_10 = arith.constant 0 : index
    %4 = vector.load %arg3[%c0_7, %c0_8, %c0_9, %c0_10] : memref<1x4x2x8xbf16, #tpu.memory_space<vmem>>, vector<1x4x2x8xbf16>
    %5 = vector.shape_cast %4 : vector<1x4x2x8xbf16> to vector<4x2x8xbf16>
    "tpu.trace_start"() <{level = 10 : i32, message = "hqd,hkd->hqk"}> : () -> ()
    %cst = arith.constant dense<0.000000e+00> : vector<4x2x2xf32>
    %6 = tpu.matmul %1, %3, %cst {dimension_numbers = #tpu.dot_dimension_numbers<[2], [2], [1], [1], [0, 0, 0, 1, 1, 1], [0], [0]>} : vector<4x2x8xbf16>, vector<4x2x8xbf16>, vector<4x2x2xf32> -> vector<4x2x2xf32>
    "tpu.trace_stop"() : () -> ()
    %cst_11 = arith.constant 0.353553385 : f32
    %7 = vector.broadcast %cst_11 : f32 to vector<4x2x2xf32>
    %8 = arith.mulf %6, %7 : vector<4x2x2xf32>
    %cst_12 = arith.constant dense<0xFF800000> : vector<4x2xf32>
    %9 = vector.multi_reduction <maximumf>, %8, %cst_12 [2] : vector<4x2x2xf32> to vector<4x2xf32>
    %10 = vector.shape_cast %9 : vector<4x2xf32> to vector<4x2x1xf32>
    %11 = vector.broadcast %10 : vector<4x2x1xf32> to vector<4x2x2xf32>
    %12 = arith.subf %8, %11 : vector<4x2x2xf32>
    %13 = math.exp %12 : vector<4x2x2xf32>
    %cst_13 = arith.constant dense<0.000000e+00> : vector<4x2xf32>
    %14 = vector.multi_reduction <add>, %13, %cst_13 [2] : vector<4x2x2xf32> to vector<4x2xf32>
    %15 = vector.shape_cast %14 : vector<4x2xf32> to vector<4x2x1xf32>
    %16 = tpu.reciprocal %15 {approx = true} : vector<4x2x1xf32> -> vector<4x2x1xf32>
    %17 = vector.broadcast %16 : vector<4x2x1xf32> to vector<4x2x2xf32>
    %18 = arith.mulf %13, %17 : vector<4x2x2xf32>
    %19 = arith.truncf %18 : vector<4x2x2xf32> to vector<4x2x2xbf16>
    "tpu.trace_start"() <{level = 10 : i32, message = "hqk,hkd->hqd"}> : () -> ()
    %cst_14 = arith.constant dense<0.000000e+00> : vector<4x2x8xf32>
    %20 = tpu.matmul %19, %5, %cst_14 {dimension_numbers = #tpu.dot_dimension_numbers<[2], [1], [1], [2], [0, 0, 0, 1, 1, 2], [0], [0]>} : vector<4x2x2xbf16>, vector<4x2x8xbf16>, vector<4x2x8xf32> -> vector<4x2x8xf32>
    "tpu.trace_stop"() : () -> ()
    %c0_15 = arith.constant 0 : index
    %c0_16 = arith.constant 0 : index
    %c0_17 = arith.constant 0 : index
    %c0_18 = arith.constant 0 : index
    %21 = vector.load %arg4[%c0_15, %c0_16, %c0_17, %c0_18] : memref<1x4x2x8xf32, #tpu.memory_space<vmem>>, vector<1x4x2x8xf32>
    %22 = vector.shape_cast %21 : vector<1x4x2x8xf32> to vector<4x2x8xf32>
    %23 = vector.shape_cast %20 : vector<4x2x8xf32> to vector<1x4x2x8xf32>
    tpu.vector_store %arg4[%c0_15, %c0_16, %c0_17, %c0_18], %23 {strides = array<i32>} : memref<1x4x2x8xf32, #tpu.memory_space<vmem>>, vector<1x4x2x8xf32>,
    return
  }
  func.func @transform_0(%arg0: i32) -> (i32, i32, i32, i32) {
    %c0_i32 = arith.constant 0 : i32
    %c0_i32_0 = arith.constant 0 : i32
    %c0_i32_1 = arith.constant 0 : i32
    %c0_i32_2 = arith.constant 0 : i32
    return %arg0, %c0_i32, %c0_i32_0, %c0_i32_1 : i32, i32, i32, i32
  }
  func.func @transform_1(%arg0: i32) -> (i32, i32, i32, i32) {
    %c0_i32 = arith.constant 0 : i32
    %c0_i32_0 = arith.constant 0 : i32
    %c0_i32_1 = arith.constant 0 : i32
    %c0_i32_2 = arith.constant 0 : i32
    return %arg0, %c0_i32, %c0_i32_0, %c0_i32_1 : i32, i32, i32, i32
  }
  func.func @transform_2(%arg0: i32) -> (i32, i32, i32, i32) {
    %c0_i32 = arith.constant 0 : i32
    %c0_i32_0 = arith.constant 0 : i32
    %c0_i32_1 = arith.constant 0 : i32
    %c0_i32_2 = arith.constant 0 : i32
    return %arg0, %c0_i32, %c0_i32_0, %c0_i32_1 : i32, i32, i32, i32
  }
  func.func @transform_3(%arg0: i32) -> (i32, i32, i32, i32) {
    %c0_i32 = arith.constant 0 : i32
    %c0_i32_0 = arith.constant 0 : i32
    %c0_i32_1 = arith.constant 0 : i32
    %c0_i32_2 = arith.constant 0 : i32
    return %arg0, %c0_i32, %c0_i32_0, %c0_i32_1 : i32, i32, i32, i32
  }
}

module attributes {stable_mosaic.version = 11 : i64} {
  func.func @_add_ln_kernel(%arg0: i32, %arg1: memref<16x32xf32, #tpu.memory_space<vmem>>, %arg2: memref<16x32xf32, #tpu.memory_space<vmem>>, %arg3: memref<1x32xf32, #tpu.memory_space<vmem>>, %arg4: memref<1x32xf32, #tpu.memory_space<vmem>>, %arg5: memref<16x32xf32, #tpu.memory_space<vmem>>) attributes {dimension_semantics = [#tpu.dimension_semantics<parallel>], iteration_bounds = array<i64: 1>, scalar_prefetch = 0 : i64, scratch_operands = 0 : i64, tpu.core_type = #tpu.core_type<tc>, window_params = [{transform_indices = @transform_0, window_bounds = array<i64: 16, 32>}, {transform_indices = @transform_1, window_bounds = array<i64: 16, 32>}, {pipeline_mode = #tpu.pipeline_mode<synchronous>, transform_indices = @transform_2, window_bounds = array<i64: 1, 32>}, {pipeline_mode = #tpu.pipeline_mode<synchronous>, transform_indices = @transform_3, window_bounds = array<i64: 1, 32>}, {transform_indices = @transform_4, window_bounds = array<i64: 16, 32>}]} {
    %c0 = arith.constant 0 : index
    %c0_0 = arith.constant 0 : index
    %0 = vector.load %arg1[%c0, %c0_0] : memref<16x32xf32, #tpu.memory_space<vmem>>, vector<16x32xf32>
    %c0_1 = arith.constant 0 : index
    %c0_2 = arith.constant 0 : index
    %1 = vector.load %arg2[%c0_1, %c0_2] : memref<16x32xf32, #tpu.memory_space<vmem>>, vector<16x32xf32>
    %2 = arith.addf %0, %1 : vector<16x32xf32>
    %cst = arith.constant dense<0.000000e+00> : vector<16xf32>
    %3 = vector.multi_reduction <add>, %2, %cst [1] : vector<16x32xf32> to vector<16xf32>
    %4 = vector.shape_cast %3 : vector<16xf32> to vector<16x1xf32>
    %cst_3 = arith.constant 3.200000e+01 : f32
    %5 = vector.broadcast %cst_3 : f32 to vector<16x1xf32>
    %6 = arith.divf %4, %5 : vector<16x1xf32>
    %7 = vector.broadcast %6 : vector<16x1xf32> to vector<16x32xf32>
    %8 = arith.subf %2, %7 : vector<16x32xf32>
    %9 = arith.mulf %8, %8 : vector<16x32xf32>
    %cst_4 = arith.constant dense<0.000000e+00> : vector<16xf32>
    %10 = vector.multi_reduction <add>, %9, %cst_4 [1] : vector<16x32xf32> to vector<16xf32>
    %11 = vector.shape_cast %10 : vector<16xf32> to vector<16x1xf32>
    %cst_5 = arith.constant 3.200000e+01 : f32
    %12 = vector.broadcast %cst_5 : f32 to vector<16x1xf32>
    %13 = arith.divf %11, %12 : vector<16x1xf32>
    %cst_6 = arith.constant 9.99999974E-6 : f32
    %14 = vector.broadcast %cst_6 : f32 to vector<16x1xf32>
    %15 = arith.addf %13, %14 : vector<16x1xf32>
    %16 = math.rsqrt %15 : vector<16x1xf32>
    %17 = vector.broadcast %16 : vector<16x1xf32> to vector<16x32xf32>
    %18 = arith.mulf %8, %17 : vector<16x32xf32>
    %c0_7 = arith.constant 0 : index
    %c0_8 = arith.constant 0 : index
    %19 = vector.load %arg3[%c0_7, %c0_8] : memref<1x32xf32, #tpu.memory_space<vmem>>, vector<1x32xf32>
    %20 = vector.broadcast %19 : vector<1x32xf32> to vector<16x32xf32>
    %21 = arith.mulf %18, %20 : vector<16x32xf32>
    %c0_9 = arith.constant 0 : index
    %c0_10 = arith.constant 0 : index
    %22 = vector.load %arg4[%c0_9, %c0_10] : memref<1x32xf32, #tpu.memory_space<vmem>>, vector<1x32xf32>
    %23 = vector.broadcast %22 : vector<1x32xf32> to vector<16x32xf32>
    %24 = arith.addf %21, %23 : vector<16x32xf32>
    %c0_11 = arith.constant 0 : index
    %c0_12 = arith.constant 0 : index
    %25 = vector.load %arg5[%c0_11, %c0_12] : memref<16x32xf32, #tpu.memory_space<vmem>>, vector<16x32xf32>
    tpu.vector_store %arg5[%c0_11, %c0_12], %24 {strides = array<i32>} : memref<16x32xf32, #tpu.memory_space<vmem>>, vector<16x32xf32>,
    return
  }
  func.func @transform_0(%arg0: i32) -> (i32, i32) {
    %c0_i32 = arith.constant 0 : i32
    %c0_i32_0 = arith.constant 0 : i32
    return %arg0, %c0_i32 : i32, i32
  }
  func.func @transform_1(%arg0: i32) -> (i32, i32) {
    %c0_i32 = arith.constant 0 : i32
    %c0_i32_0 = arith.constant 0 : i32
    return %arg0, %c0_i32 : i32, i32
  }
  func.func @transform_2(%arg0: i32) -> (i32, i32) {
    %c0_i32 = arith.constant 0 : i32
    %c0_i32_0 = arith.constant 0 : i32
    %c0_i32_1 = arith.constant 0 : i32
    return %c0_i32, %c0_i32_0 : i32, i32
  }
  func.func @transform_3(%arg0: i32) -> (i32, i32) {
    %c0_i32 = arith.constant 0 : i32
    %c0_i32_0 = arith.constant 0 : i32
    %c0_i32_1 = arith.constant 0 : i32
    return %c0_i32, %c0_i32_0 : i32, i32
  }
  func.func @transform_4(%arg0: i32) -> (i32, i32) {
    %c0_i32 = arith.constant 0 : i32
    %c0_i32_0 = arith.constant 0 : i32
    return %arg0, %c0_i32 : i32, i32
  }
}

module attributes {stable_mosaic.version = 11 : i64} {
  func.func @_mlp_chain_kernel(%arg0: i32, %arg1: memref<16x32xbf16, #tpu.memory_space<vmem>>, %arg2: memref<32x2048xbf16, #tpu.memory_space<vmem>>, %arg3: memref<1x2048xf32, #tpu.memory_space<vmem>>, %arg4: memref<2048x32xbf16, #tpu.memory_space<vmem>>, %arg5: memref<1x32xf32, #tpu.memory_space<vmem>>, %arg6: memref<16x32xf32, #tpu.memory_space<vmem>>) attributes {dimension_semantics = [#tpu.dimension_semantics<parallel>], iteration_bounds = array<i64: 1>, scalar_prefetch = 0 : i64, scratch_operands = 0 : i64, tpu.core_type = #tpu.core_type<tc>, window_params = [{transform_indices = @transform_0, window_bounds = array<i64: 16, 32>}, {pipeline_mode = #tpu.pipeline_mode<synchronous>, transform_indices = @transform_1, window_bounds = array<i64: 32, 2048>}, {pipeline_mode = #tpu.pipeline_mode<synchronous>, transform_indices = @transform_2, window_bounds = array<i64: 1, 2048>}, {pipeline_mode = #tpu.pipeline_mode<synchronous>, transform_indices = @transform_3, window_bounds = array<i64: 2048, 32>}, {pipeline_mode = #tpu.pipeline_mode<synchronous>, transform_indices = @transform_4, window_bounds = array<i64: 1, 32>}, {transform_indices = @transform_5, window_bounds = array<i64: 16, 32>}]} {
    %c0 = arith.constant 0 : index
    %c0_0 = arith.constant 0 : index
    %0 = vector.load %arg1[%c0, %c0_0] : memref<16x32xbf16, #tpu.memory_space<vmem>>, vector<16x32xbf16>
    %c0_1 = arith.constant 0 : index
    %c0_2 = arith.constant 0 : index
    %1 = vector.load %arg2[%c0_1, %c0_2] : memref<32x2048xbf16, #tpu.memory_space<vmem>>, vector<32x2048xbf16>
    %c0_3 = arith.constant 0 : index
    %c0_4 = arith.constant 0 : index
    %2 = vector.load %arg3[%c0_3, %c0_4] : memref<1x2048xf32, #tpu.memory_space<vmem>>, vector<1x2048xf32>
    %cst = arith.constant dense<0.000000e+00> : vector<16x2048xf32>
    %3 = tpu.matmul %0, %1, %cst {dimension_numbers = #tpu.dot_dimension_numbers<[1], [0], [0], [1], [0, 0, 1, 1], [], []>} : vector<16x32xbf16>, vector<32x2048xbf16>, vector<16x2048xf32> -> vector<16x2048xf32>
    %4 = vector.broadcast %2 : vector<1x2048xf32> to vector<16x2048xf32>
    %5 = arith.addf %3, %4 : vector<16x2048xf32>
    %cst_5 = arith.constant 0.000000e+00 : f32
    %6 = vector.broadcast %cst_5 : f32 to vector<16x2048xf32>
    %7 = arith.maximumf %5, %6 : vector<16x2048xf32>
    %8 = arith.truncf %7 : vector<16x2048xf32> to vector<16x2048xbf16>
    %c0_6 = arith.constant 0 : index
    %c0_7 = arith.constant 0 : index
    %9 = vector.load %arg4[%c0_6, %c0_7] : memref<2048x32xbf16, #tpu.memory_space<vmem>>, vector<2048x32xbf16>
    %c0_8 = arith.constant 0 : index
    %c0_9 = arith.constant 0 : index
    %10 = vector.load %arg5[%c0_8, %c0_9] : memref<1x32xf32, #tpu.memory_space<vmem>>, vector<1x32xf32>
    %cst_10 = arith.constant dense<0.000000e+00> : vector<16x32xf32>
    %11 = tpu.matmul %8, %9, %cst_10 {dimension_numbers = #tpu.dot_dimension_numbers<[1], [0], [0], [1], [0, 0, 1, 1], [], []>} : vector<16x2048xbf16>, vector<2048x32xbf16>, vector<16x32xf32> -> vector<16x32xf32>
    %12 = vector.broadcast %10 : vector<1x32xf32> to vector<16x32xf32>
    %13 = arith.addf %11, %12 : vector<16x32xf32>
    %c0_11 = arith.constant 0 : index
    %c0_12 = arith.constant 0 : index
    %14 = vector.load %arg6[%c0_11, %c0_12] : memref<16x32xf32, #tpu.memory_space<vmem>>, vector<16x32xf32>
    tpu.vector_store %arg6[%c0_11, %c0_12], %13 {strides = array<i32>} : memref<16x32xf32, #tpu.memory_space<vmem>>, vector<16x32xf32>,
    return
  }
  func.func @transform_0(%arg0: i32) -> (i32, i32) {
    %c0_i32 = arith.constant 0 : i32
    %c0_i32_0 = arith.constant 0 : i32
    return %arg0, %c0_i32 : i32, i32
  }
  func.func @transform_1(%arg0: i32) -> (i32, i32) {
    %c0_i32 = arith.constant 0 : i32
    %c0_i32_0 = arith.constant 0 : i32
    %c0_i32_1 = arith.constant 0 : i32
    return %c0_i32, %c0_i32_0 : i32, i32
  }
  func.func @transform_2(%arg0: i32) -> (i32, i32) {
    %c0_i32 = arith.constant 0 : i32
    %c0_i32_0 = arith.constant 0 : i32
    %c0_i32_1 = arith.constant 0 : i32
    return %c0_i32, %c0_i32_0 : i32, i32
  }
  func.func @transform_3(%arg0: i32) -> (i32, i32) {
    %c0_i32 = arith.constant 0 : i32
    %c0_i32_0 = arith.constant 0 : i32
    %c0_i32_1 = arith.constant 0 : i32
    return %c0_i32, %c0_i32_0 : i32, i32
  }
  func.func @transform_4(%arg0: i32) -> (i32, i32) {
    %c0_i32 = arith.constant 0 : i32
    %c0_i32_0 = arith.constant 0 : i32
    %c0_i32_1 = arith.constant 0 : i32
    return %c0_i32, %c0_i32_0 : i32, i32
  }
  func.func @transform_5(%arg0: i32) -> (i32, i32) {
    %c0_i32 = arith.constant 0 : i32
    %c0_i32_0 = arith.constant 0 : i32
    return %arg0, %c0_i32 : i32, i32
  }
}

module attributes {stable_mosaic.version = 11 : i64} {
  func.func @_mha_kernel(%arg0: i32, %arg1: memref<1x4x8x8xbf16, #tpu.memory_space<vmem>>, %arg2: memref<1x4x8x8xbf16, #tpu.memory_space<vmem>>, %arg3: memref<1x4x8x8xbf16, #tpu.memory_space<vmem>>, %arg4: memref<1x4x8x8xf32, #tpu.memory_space<vmem>>) attributes {dimension_semantics = [#tpu.dimension_semantics<parallel>], iteration_bounds = array<i64: 2>, scalar_prefetch = 0 : i64, scratch_operands = 0 : i64, tpu.core_type = #tpu.core_type<tc>, window_params = [{transform_indices = @transform_0, window_bounds = array<i64: 1, 4, 8, 8>}, {transform_indices = @transform_1, window_bounds = array<i64: 1, 4, 8, 8>}, {transform_indices = @transform_2, window_bounds = array<i64: 1, 4, 8, 8>}, {transform_indices = @transform_3, window_bounds = array<i64: 1, 4, 8, 8>}]} {
    %c0 = arith.constant 0 : index
    %c0_0 = arith.constant 0 : index
    %c0_1 = arith.constant 0 : index
    %c0_2 = arith.constant 0 : index
    %0 = vector.load %arg1[%c0, %c0_0, %c0_1, %c0_2] : memref<1x4x8x8xbf16, #tpu.memory_space<vmem>>, vector<1x4x8x8xbf16>
    %1 = vector.shape_cast %0 : vector<1x4x8x8xbf16> to vector<4x8x8xbf16>
    %c0_3 = arith.constant 0 : index
    %c0_4 = arith.constant 0 : index
    %c0_5 = arith.constant 0 : index
    %c0_6 = arith.constant 0 : index
    %2 = vector.load %arg2[%c0_3, %c0_4, %c0_5, %c0_6] : memref<1x4x8x8xbf16, #tpu.memory_space<vmem>>, vector<1x4x8x8xbf16>
    %3 = vector.shape_cast %2 : vector<1x4x8x8xbf16> to vector<4x8x8xbf16>
    %c0_7 = arith.constant 0 : index
    %c0_8 = arith.constant 0 : index
    %c0_9 = arith.constant 0 : index
    %c0_10 = arith.constant 0 : index
    %4 = vector.load %arg3[%c0_7, %c0_8, %c0_9, %c0_10] : memref<1x4x8x8xbf16, #tpu.memory_space<vmem>>, vector<1x4x8x8xbf16>
    %5 = vector.shape_cast %4 : vector<1x4x8x8xbf16> to vector<4x8x8xbf16>
    "tpu.trace_start"() <{level = 10 : i32, message = "hqd,hkd->hqk"}> : () -> ()
    %cst = arith.constant dense<0.000000e+00> : vector<4x8x8xf32>
    %6 = tpu.matmul %1, %3, %cst {dimension_numbers = #tpu.dot_dimension_numbers<[2], [2], [1], [1], [0, 0, 0, 1, 1, 1], [0], [0]>} : vector<4x8x8xbf16>, vector<4x8x8xbf16>, vector<4x8x8xf32> -> vector<4x8x8xf32>
    "tpu.trace_stop"() : () -> ()
    %cst_11 = arith.constant 0.353553385 : f32
    %7 = vector.broadcast %cst_11 : f32 to vector<4x8x8xf32>
    %8 = arith.mulf %6, %7 : vector<4x8x8xf32>
    %cst_12 = arith.constant dense<0xFF800000> : vector<4x8xf32>
    %9 = vector.multi_reduction <maximumf>, %8, %cst_12 [2] : vector<4x8x8xf32> to vector<4x8xf32>
    %10 = vector.shape_cast %9 : vector<4x8xf32> to vector<4x8x1xf32>
    %11 = vector.broadcast %10 : vector<4x8x1xf32> to vector<4x8x8xf32>
    %12 = arith.subf %8, %11 : vector<4x8x8xf32>
    %13 = math.exp %12 : vector<4x8x8xf32>
    %cst_13 = arith.constant dense<0.000000e+00> : vector<4x8xf32>
    %14 = vector.multi_reduction <add>, %13, %cst_13 [2] : vector<4x8x8xf32> to vector<4x8xf32>
    %15 = vector.shape_cast %14 : vector<4x8xf32> to vector<4x8x1xf32>
    %16 = tpu.reciprocal %15 {approx = true} : vector<4x8x1xf32> -> vector<4x8x1xf32>
    %17 = vector.broadcast %16 : vector<4x8x1xf32> to vector<4x8x8xf32>
    %18 = arith.mulf %13, %17 : vector<4x8x8xf32>
    %19 = arith.truncf %18 : vector<4x8x8xf32> to vector<4x8x8xbf16>
    "tpu.trace_start"() <{level = 10 : i32, message = "hqk,hkd->hqd"}> : () -> ()
    %cst_14 = arith.constant dense<0.000000e+00> : vector<4x8x8xf32>
    %20 = tpu.matmul %19, %5, %cst_14 {dimension_numbers = #tpu.dot_dimension_numbers<[2], [1], [1], [2], [0, 0, 0, 1, 1, 2], [0], [0]>} : vector<4x8x8xbf16>, vector<4x8x8xbf16>, vector<4x8x8xf32> -> vector<4x8x8xf32>
    "tpu.trace_stop"() : () -> ()
    %c0_15 = arith.constant 0 : index
    %c0_16 = arith.constant 0 : index
    %c0_17 = arith.constant 0 : index
    %c0_18 = arith.constant 0 : index
    %21 = vector.load %arg4[%c0_15, %c0_16, %c0_17, %c0_18] : memref<1x4x8x8xf32, #tpu.memory_space<vmem>>, vector<1x4x8x8xf32>
    %22 = vector.shape_cast %21 : vector<1x4x8x8xf32> to vector<4x8x8xf32>
    %23 = vector.shape_cast %20 : vector<4x8x8xf32> to vector<1x4x8x8xf32>
    tpu.vector_store %arg4[%c0_15, %c0_16, %c0_17, %c0_18], %23 {strides = array<i32>} : memref<1x4x8x8xf32, #tpu.memory_space<vmem>>, vector<1x4x8x8xf32>,
    return
  }
  func.func @transform_0(%arg0: i32) -> (i32, i32, i32, i32) {
    %c0_i32 = arith.constant 0 : i32
    %c0_i32_0 = arith.constant 0 : i32
    %c0_i32_1 = arith.constant 0 : i32
    %c0_i32_2 = arith.constant 0 : i32
    return %arg0, %c0_i32, %c0_i32_0, %c0_i32_1 : i32, i32, i32, i32
  }
  func.func @transform_1(%arg0: i32) -> (i32, i32, i32, i32) {
    %c0_i32 = arith.constant 0 : i32
    %c0_i32_0 = arith.constant 0 : i32
    %c0_i32_1 = arith.constant 0 : i32
    %c0_i32_2 = arith.constant 0 : i32
    return %arg0, %c0_i32, %c0_i32_0, %c0_i32_1 : i32, i32, i32, i32
  }
  func.func @transform_2(%arg0: i32) -> (i32, i32, i32, i32) {
    %c0_i32 = arith.constant 0 : i32
    %c0_i32_0 = arith.constant 0 : i32
    %c0_i32_1 = arith.constant 0 : i32
    %c0_i32_2 = arith.constant 0 : i32
    return %arg0, %c0_i32, %c0_i32_0, %c0_i32_1 : i32, i32, i32, i32
  }
  func.func @transform_3(%arg0: i32) -> (i32, i32, i32, i32) {
    %c0_i32 = arith.constant 0 : i32
    %c0_i32_0 = arith.constant 0 : i32
    %c0_i32_1 = arith.constant 0 : i32
    %c0_i32_2 = arith.constant 0 : i32
    return %arg0, %c0_i32, %c0_i32_0, %c0_i32_1 : i32, i32, i32, i32
  }
}

module attributes {stable_mosaic.version = 11 : i64} {
  func.func @_mlp_chain_kernel(%arg0: i32, %arg1: memref<16x32xbf16, #tpu.memory_space<vmem>>, %arg2: memref<32x64xbf16, #tpu.memory_space<vmem>>, %arg3: memref<1x64xf32, #tpu.memory_space<vmem>>, %arg4: memref<64x32xbf16, #tpu.memory_space<vmem>>, %arg5: memref<1x32xf32, #tpu.memory_space<vmem>>, %arg6: memref<16x32xf32, #tpu.memory_space<vmem>>) attributes {dimension_semantics = [#tpu.dimension_semantics<parallel>], iteration_bounds = array<i64: 1>, scalar_prefetch = 0 : i64, scratch_operands = 0 : i64, tpu.core_type = #tpu.core_type<tc>, window_params = [{transform_indices = @transform_0, window_bounds = array<i64: 16, 32>}, {pipeline_mode = #tpu.pipeline_mode<synchronous>, transform_indices = @transform_1, window_bounds = array<i64: 32, 64>}, {pipeline_mode = #tpu.pipeline_mode<synchronous>, transform_indices = @transform_2, window_bounds = array<i64: 1, 64>}, {pipeline_mode = #tpu.pipeline_mode<synchronous>, transform_indices = @transform_3, window_bounds = array<i64: 64, 32>}, {pipeline_mode = #tpu.pipeline_mode<synchronous>, transform_indices = @transform_4, window_bounds = array<i64: 1, 32>}, {transform_indices = @transform_5, window_bounds = array<i64: 16, 32>}]} {
    %c0 = arith.constant 0 : index
    %c0_0 = arith.constant 0 : index
    %0 = vector.load %arg1[%c0, %c0_0] : memref<16x32xbf16, #tpu.memory_space<vmem>>, vector<16x32xbf16>
    %c0_1 = arith.constant 0 : index
    %c0_2 = arith.constant 0 : index
    %1 = vector.load %arg2[%c0_1, %c0_2] : memref<32x64xbf16, #tpu.memory_space<vmem>>, vector<32x64xbf16>
    %c0_3 = arith.constant 0 : index
    %c0_4 = arith.constant 0 : index
    %2 = vector.load %arg3[%c0_3, %c0_4] : memref<1x64xf32, #tpu.memory_space<vmem>>, vector<1x64xf32>
    %cst = arith.constant dense<0.000000e+00> : vector<16x64xf32>
    %3 = tpu.matmul %0, %1, %cst {dimension_numbers = #tpu.dot_dimension_numbers<[1], [0], [0], [1], [0, 0, 1, 1], [], []>} : vector<16x32xbf16>, vector<32x64xbf16>, vector<16x64xf32> -> vector<16x64xf32>
    %4 = vector.broadcast %2 : vector<1x64xf32> to vector<16x64xf32>
    %5 = arith.addf %3, %4 : vector<16x64xf32>
    %cst_5 = arith.constant 0.000000e+00 : f32
    %6 = vector.broadcast %cst_5 : f32 to vector<16x64xf32>
    %7 = arith.maximumf %5, %6 : vector<16x64xf32>
    %8 = arith.truncf %7 : vector<16x64xf32> to vector<16x64xbf16>
    %c0_6 = arith.constant 0 : index
    %c0_7 = arith.constant 0 : index
    %9 = vector.load %arg4[%c0_6, %c0_7] : memref<64x32xbf16, #tpu.memory_space<vmem>>, vector<64x32xbf16>
    %c0_8 = arith.constant 0 : index
    %c0_9 = arith.constant 0 : index
    %10 = vector.load %arg5[%c0_8, %c0_9] : memref<1x32xf32, #tpu.memory_space<vmem>>, vector<1x32xf32>
    %cst_10 = arith.constant dense<0.000000e+00> : vector<16x32xf32>
    %11 = tpu.matmul %8, %9, %cst_10 {dimension_numbers = #tpu.dot_dimension_numbers<[1], [0], [0], [1], [0, 0, 1, 1], [], []>} : vector<16x64xbf16>, vector<64x32xbf16>, vector<16x32xf32> -> vector<16x32xf32>
    %12 = vector.broadcast %10 : vector<1x32xf32> to vector<16x32xf32>
    %13 = arith.addf %11, %12 : vector<16x32xf32>
    %cst_11 = arith.constant 0.000000e+00 : f32
    %14 = vector.broadcast %cst_11 : f32 to vector<16x32xf32>
    %15 = arith.subf %14, %13 : vector<16x32xf32>
    %16 = math.exp %15 : vector<16x32xf32>
    %cst_12 = arith.constant 1.000000e+00 : f32
    %17 = vector.broadcast %cst_12 : f32 to vector<16x32xf32>
    %18 = arith.addf %17, %16 : vector<16x32xf32>
    %cst_13 = arith.constant 1.000000e+00 : f32
    %19 = vector.broadcast %cst_13 : f32 to vector<16x32xf32>
    %20 = arith.divf %19, %18 : vector<16x32xf32>
    %c0_14 = arith.constant 0 : index
    %c0_15 = arith.constant 0 : index
    %21 = vector.load %arg6[%c0_14, %c0_15] : memref<16x32xf32, #tpu.memory_space<vmem>>, vector<16x32xf32>
    tpu.vector_store %arg6[%c0_14, %c0_15], %20 {strides = array<i32>} : memref<16x32xf32, #tpu.memory_space<vmem>>, vector<16x32xf32>,
    return
  }
  func.func @transform_0(%arg0: i32) -> (i32, i32) {
    %c0_i32 = arith.constant 0 : i32
    %c0_i32_0 = arith.constant 0 : i32
    return %arg0, %c0_i32 : i32, i32
  }
  func.func @transform_1(%arg0: i32) -> (i32, i32) {
    %c0_i32 = arith.constant 0 : i32
    %c0_i32_0 = arith.constant 0 : i32
    %c0_i32_1 = arith.constant 0 : i32
    return %c0_i32, %c0_i32_0 : i32, i32
  }
  func.func @transform_2(%arg0: i32) -> (i32, i32) {
    %c0_i32 = arith.constant 0 : i32
    %c0_i32_0 = arith.constant 0 : i32
    %c0_i32_1 = arith.constant 0 : i32
    return %c0_i32, %c0_i32_0 : i32, i32
  }
  func.func @transform_3(%arg0: i32) -> (i32, i32) {
    %c0_i32 = arith.constant 0 : i32
    %c0_i32_0 = arith.constant 0 : i32
    %c0_i32_1 = arith.constant 0 : i32
    return %c0_i32, %c0_i32_0 : i32, i32
  }
  func.func @transform_4(%arg0: i32) -> (i32, i32) {
    %c0_i32 = arith.constant 0 : i32
    %c0_i32_0 = arith.constant 0 : i32
    %c0_i32_1 = arith.constant 0 : i32
    return %c0_i32, %c0_i32_0 : i32, i32
  }
  func.func @transform_5(%arg0: i32) -> (i32, i32) {
    %c0_i32 = arith.constant 0 : i32
    %c0_i32_0 = arith.constant 0 : i32
    return %arg0, %c0_i32 : i32, i32
  }
}

module attributes {stable_mosaic.version = 11 : i64} {
  func.func @_mlp_chain_kernel(%arg0: i32, %arg1: memref<16x32xbf16, #tpu.memory_space<vmem>>, %arg2: memref<32x128xbf16, #tpu.memory_space<vmem>>, %arg3: memref<1x128xf32, #tpu.memory_space<vmem>>, %arg4: memref<128x32xbf16, #tpu.memory_space<vmem>>, %arg5: memref<1x32xf32, #tpu.memory_space<vmem>>, %arg6: memref<16x32xf32, #tpu.memory_space<vmem>>) attributes {dimension_semantics = [#tpu.dimension_semantics<parallel>], iteration_bounds = array<i64: 1>, scalar_prefetch = 0 : i64, scratch_operands = 0 : i64, tpu.core_type = #tpu.core_type<tc>, window_params = [{transform_indices = @transform_0, window_bounds = array<i64: 16, 32>}, {pipeline_mode = #tpu.pipeline_mode<synchronous>, transform_indices = @transform_1, window_bounds = array<i64: 32, 128>}, {pipeline_mode = #tpu.pipeline_mode<synchronous>, transform_indices = @transform_2, window_bounds = array<i64: 1, 128>}, {pipeline_mode = #tpu.pipeline_mode<synchronous>, transform_indices = @transform_3, window_bounds = array<i64: 128, 32>}, {pipeline_mode = #tpu.pipeline_mode<synchronous>, transform_indices = @transform_4, window_bounds = array<i64: 1, 32>}, {transform_indices = @transform_5, window_bounds = array<i64: 16, 32>}]} {
    %c0 = arith.constant 0 : index
    %c0_0 = arith.constant 0 : index
    %0 = vector.load %arg1[%c0, %c0_0] : memref<16x32xbf16, #tpu.memory_space<vmem>>, vector<16x32xbf16>
    %c0_1 = arith.constant 0 : index
    %c0_2 = arith.constant 0 : index
    %1 = vector.load %arg2[%c0_1, %c0_2] : memref<32x128xbf16, #tpu.memory_space<vmem>>, vector<32x128xbf16>
    %c0_3 = arith.constant 0 : index
    %c0_4 = arith.constant 0 : index
    %2 = vector.load %arg3[%c0_3, %c0_4] : memref<1x128xf32, #tpu.memory_space<vmem>>, vector<1x128xf32>
    %cst = arith.constant dense<0.000000e+00> : vector<16x128xf32>
    %3 = tpu.matmul %0, %1, %cst {dimension_numbers = #tpu.dot_dimension_numbers<[1], [0], [0], [1], [0, 0, 1, 1], [], []>} : vector<16x32xbf16>, vector<32x128xbf16>, vector<16x128xf32> -> vector<16x128xf32>
    %4 = vector.broadcast %2 : vector<1x128xf32> to vector<16x128xf32>
    %5 = arith.addf %3, %4 : vector<16x128xf32>
    %cst_5 = arith.constant 5.000000e-01 : f32
    %6 = vector.broadcast %cst_5 : f32 to vector<16x128xf32>
    %7 = arith.mulf %6, %5 : vector<16x128xf32>
    %cst_6 = arith.constant 0.707106769 : f32
    %8 = vector.broadcast %cst_6 : f32 to vector<16x128xf32>
    %9 = arith.mulf %5, %8 : vector<16x128xf32>
    %cst_7 = arith.constant 0.000000e+00 : f32
    %10 = vector.broadcast %cst_7 : f32 to vector<16x128xf32>
    %11 = arith.cmpf oge, %9, %10 : vector<16x128xf32>
    %cst_8 = arith.constant 1.000000e+00 : f32
    %cst_9 = arith.constant -1.000000e+00 : f32
    %12 = vector.broadcast %cst_8 : f32 to vector<16x128xf32>
    %13 = vector.broadcast %cst_9 : f32 to vector<16x128xf32>
    %14 = arith.select %11, %12, %13 : vector<16x128xi1>, vector<16x128xf32>
    %15 = math.absf %9 : vector<16x128xf32>
    %cst_10 = arith.constant 0.327591091 : f32
    %16 = vector.broadcast %cst_10 : f32 to vector<16x128xf32>
    %17 = arith.mulf %16, %15 : vector<16x128xf32>
    %cst_11 = arith.constant 1.000000e+00 : f32
    %18 = vector.broadcast %cst_11 : f32 to vector<16x128xf32>
    %19 = arith.addf %18, %17 : vector<16x128xf32>
    %cst_12 = arith.constant 1.000000e+00 : f32
    %20 = vector.broadcast %cst_12 : f32 to vector<16x128xf32>
    %21 = arith.divf %20, %19 : vector<16x128xf32>
    %cst_13 = arith.constant 1.06140542 : f32
    %22 = vector.broadcast %cst_13 : f32 to vector<16x128xf32>
    %23 = arith.mulf %22, %21 : vector<16x128xf32>
    %cst_14 = arith.constant -1.45315206 : f32
    %24 = vector.broadcast %cst_14 : f32 to vector<16x128xf32>
    %25 = arith.addf %23, %24 : vector<16x128xf32>
    %26 = arith.mulf %25, %21 : vector<16x128xf32>
    %cst_15 = arith.constant 1.42141378 : f32
    %27 = vector.broadcast %cst_15 : f32 to vector<16x128xf32>
    %28 = arith.addf %26, %27 : vector<16x128xf32>
    %29 = arith.mulf %28, %21 : vector<16x128xf32>
    %cst_16 = arith.constant -0.284496725 : f32
    %30 = vector.broadcast %cst_16 : f32 to vector<16x128xf32>
    %31 = arith.addf %29, %30 : vector<16x128xf32>
    %32 = arith.mulf %31, %21 : vector<16x128xf32>
    %cst_17 = arith.constant 0.254829586 : f32
    %33 = vector.broadcast %cst_17 : f32 to vector<16x128xf32>
    %34 = arith.addf %32, %33 : vector<16x128xf32>
    %35 = arith.mulf %34, %21 : vector<16x128xf32>
    %cst_18 = arith.constant 0.000000e+00 : f32
    %36 = vector.broadcast %cst_18 : f32 to vector<16x128xf32>
    %37 = arith.subf %36, %15 : vector<16x128xf32>
    %38 = arith.mulf %37, %15 : vector<16x128xf32>
    %39 = math.exp %38 : vector<16x128xf32>
    %40 = arith.mulf %35, %39 : vector<16x128xf32>
    %cst_19 = arith.constant 1.000000e+00 : f32
    %41 = vector.broadcast %cst_19 : f32 to vector<16x128xf32>
    %42 = arith.subf %41, %40 : vector<16x128xf32>
    %43 = arith.mulf %14, %42 : vector<16x128xf32>
    %cst_20 = arith.constant 1.000000e+00 : f32
    %44 = vector.broadcast %cst_20 : f32 to vector<16x128xf32>
    %45 = arith.addf %44, %43 : vector<16x128xf32>
    %46 = arith.mulf %7, %45 : vector<16x128xf32>
    %47 = arith.truncf %46 : vector<16x128xf32> to vector<16x128xbf16>
    %c0_21 = arith.constant 0 : index
    %c0_22 = arith.constant 0 : index
    %48 = vector.load %arg4[%c0_21, %c0_22] : memref<128x32xbf16, #tpu.memory_space<vmem>>, vector<128x32xbf16>
    %c0_23 = arith.constant 0 : index
    %c0_24 = arith.constant 0 : index
    %49 = vector.load %arg5[%c0_23, %c0_24] : memref<1x32xf32, #tpu.memory_space<vmem>>, vector<1x32xf32>
    %cst_25 = arith.constant dense<0.000000e+00> : vector<16x32xf32>
    %50 = tpu.matmul %47, %48, %cst_25 {dimension_numbers = #tpu.dot_dimension_numbers<[1], [0], [0], [1], [0, 0, 1, 1], [], []>} : vector<16x128xbf16>, vector<128x32xbf16>, vector<16x32xf32> -> vector<16x32xf32>
    %51 = vector.broadcast %49 : vector<1x32xf32> to vector<16x32xf32>
    %52 = arith.addf %50, %51 : vector<16x32xf32>
    %c0_26 = arith.constant 0 : index
    %c0_27 = arith.constant 0 : index
    %53 = vector.load %arg6[%c0_26, %c0_27] : memref<16x32xf32, #tpu.memory_space<vmem>>, vector<16x32xf32>
    tpu.vector_store %arg6[%c0_26, %c0_27], %52 {strides = array<i32>} : memref<16x32xf32, #tpu.memory_space<vmem>>, vector<16x32xf32>,
    return
  }
  func.func @transform_0(%arg0: i32) -> (i32, i32) {
    %c0_i32 = arith.constant 0 : i32
    %c0_i32_0 = arith.constant 0 : i32
    return %arg0, %c0_i32 : i32, i32
  }
  func.func @transform_1(%arg0: i32) -> (i32, i32) {
    %c0_i32 = arith.constant 0 : i32
    %c0_i32_0 = arith.constant 0 : i32
    %c0_i32_1 = arith.constant 0 : i32
    return %c0_i32, %c0_i32_0 : i32, i32
  }
  func.func @transform_2(%arg0: i32) -> (i32, i32) {
    %c0_i32 = arith.constant 0 : i32
    %c0_i32_0 = arith.constant 0 : i32
    %c0_i32_1 = arith.constant 0 : i32
    return %c0_i32, %c0_i32_0 : i32, i32
  }
  func.func @transform_3(%arg0: i32) -> (i32, i32) {
    %c0_i32 = arith.constant 0 : i32
    %c0_i32_0 = arith.constant 0 : i32
    %c0_i32_1 = arith.constant 0 : i32
    return %c0_i32, %c0_i32_0 : i32, i32
  }
  func.func @transform_4(%arg0: i32) -> (i32, i32) {
    %c0_i32 = arith.constant 0 : i32
    %c0_i32_0 = arith.constant 0 : i32
    %c0_i32_1 = arith.constant 0 : i32
    return %c0_i32, %c0_i32_0 : i32, i32
  }
  func.func @transform_5(%arg0: i32) -> (i32, i32) {
    %c0_i32 = arith.constant 0 : i32
    %c0_i32_0 = arith.constant 0 : i32
    return %arg0, %c0_i32 : i32, i32
  }
}

module attributes {stable_mosaic.version = 11 : i64} {
  func.func @_mlp_chain_kernel(%arg0: i32, %arg1: memref<16x128xbf16, #tpu.memory_space<vmem>>, %arg2: memref<128x256xbf16, #tpu.memory_space<vmem>>, %arg3: memref<1x256xf32, #tpu.memory_space<vmem>>, %arg4: memref<256x128xbf16, #tpu.memory_space<vmem>>, %arg5: memref<1x128xf32, #tpu.memory_space<vmem>>, %arg6: memref<128x32xbf16, #tpu.memory_space<vmem>>, %arg7: memref<1x32xf32, #tpu.memory_space<vmem>>, %arg8: memref<16x32xf32, #tpu.memory_space<vmem>>) attributes {dimension_semantics = [#tpu.dimension_semantics<parallel>], iteration_bounds = array<i64: 1>, scalar_prefetch = 0 : i64, scratch_operands = 0 : i64, tpu.core_type = #tpu.core_type<tc>, window_params = [{transform_indices = @transform_0, window_bounds = array<i64: 16, 128>}, {pipeline_mode = #tpu.pipeline_mode<synchronous>, transform_indices = @transform_1, window_bounds = array<i64: 128, 256>}, {pipeline_mode = #tpu.pipeline_mode<synchronous>, transform_indices = @transform_2, window_bounds = array<i64: 1, 256>}, {pipeline_mode = #tpu.pipeline_mode<synchronous>, transform_indices = @transform_3, window_bounds = array<i64: 256, 128>}, {pipeline_mode = #tpu.pipeline_mode<synchronous>, transform_indices = @transform_4, window_bounds = array<i64: 1, 128>}, {pipeline_mode = #tpu.pipeline_mode<synchronous>, transform_indices = @transform_5, window_bounds = array<i64: 128, 32>}, {pipeline_mode = #tpu.pipeline_mode<synchronous>, transform_indices = @transform_6, window_bounds = array<i64: 1, 32>}, {transform_indices = @transform_7, window_bounds = array<i64: 16, 32>}]} {
    %c0 = arith.constant 0 : index
    %c0_0 = arith.constant 0 : index
    %0 = vector.load %arg1[%c0, %c0_0] : memref<16x128xbf16, #tpu.memory_space<vmem>>, vector<16x128xbf16>
    %c0_1 = arith.constant 0 : index
    %c0_2 = arith.constant 0 : index
    %1 = vector.load %arg2[%c0_1, %c0_2] : memref<128x256xbf16, #tpu.memory_space<vmem>>, vector<128x256xbf16>
    %c0_3 = arith.constant 0 : index
    %c0_4 = arith.constant 0 : index
    %2 = vector.load %arg3[%c0_3, %c0_4] : memref<1x256xf32, #tpu.memory_space<vmem>>, vector<1x256xf32>
    %cst = arith.constant dense<0.000000e+00> : vector<16x256xf32>
    %3 = tpu.matmul %0, %1, %cst {dimension_numbers = #tpu.dot_dimension_numbers<[1], [0], [0], [1], [0, 0, 1, 1], [], []>} : vector<16x128xbf16>, vector<128x256xbf16>, vector<16x256xf32> -> vector<16x256xf32>
    %4 = vector.broadcast %2 : vector<1x256xf32> to vector<16x256xf32>
    %5 = arith.addf %3, %4 : vector<16x256xf32>
    %cst_5 = arith.constant 0.000000e+00 : f32
    %6 = vector.broadcast %cst_5 : f32 to vector<16x256xf32>
    %7 = arith.maximumf %5, %6 : vector<16x256xf32>
    %8 = arith.truncf %7 : vector<16x256xf32> to vector<16x256xbf16>
    %c0_6 = arith.constant 0 : index
    %c0_7 = arith.constant 0 : index
    %9 = vector.load %arg4[%c0_6, %c0_7] : memref<256x128xbf16, #tpu.memory_space<vmem>>, vector<256x128xbf16>
    %c0_8 = arith.constant 0 : index
    %c0_9 = arith.constant 0 : index
    %10 = vector.load %arg5[%c0_8, %c0_9] : memref<1x128xf32, #tpu.memory_space<vmem>>, vector<1x128xf32>
    %cst_10 = arith.constant dense<0.000000e+00> : vector<16x128xf32>
    %11 = tpu.matmul %8, %9, %cst_10 {dimension_numbers = #tpu.dot_dimension_numbers<[1], [0], [0], [1], [0, 0, 1, 1], [], []>} : vector<16x256xbf16>, vector<256x128xbf16>, vector<16x128xf32> -> vector<16x128xf32>
    %12 = vector.broadcast %10 : vector<1x128xf32> to vector<16x128xf32>
    %13 = arith.addf %11, %12 : vector<16x128xf32>
    %cst_11 = arith.constant 0.000000e+00 : f32
    %14 = vector.broadcast %cst_11 : f32 to vector<16x128xf32>
    %15 = arith.maximumf %13, %14 : vector<16x128xf32>
    %16 = arith.truncf %15 : vector<16x128xf32> to vector<16x128xbf16>
    %c0_12 = arith.constant 0 : index
    %c0_13 = arith.constant 0 : index
    %17 = vector.load %arg6[%c0_12, %c0_13] : memref<128x32xbf16, #tpu.memory_space<vmem>>, vector<128x32xbf16>
    %c0_14 = arith.constant 0 : index
    %c0_15 = arith.constant 0 : index
    %18 = vector.load %arg7[%c0_14, %c0_15] : memref<1x32xf32, #tpu.memory_space<vmem>>, vector<1x32xf32>
    %cst_16 = arith.constant dense<0.000000e+00> : vector<16x32xf32>
    %19 = tpu.matmul %16, %17, %cst_16 {dimension_numbers = #tpu.dot_dimension_numbers<[1], [0], [0], [1], [0, 0, 1, 1], [], []>} : vector<16x128xbf16>, vector<128x32xbf16>, vector<16x32xf32> -> vector<16x32xf32>
    %20 = vector.broadcast %18 : vector<1x32xf32> to vector<16x32xf32>
    %21 = arith.addf %19, %20 : vector<16x32xf32>
    %c0_17 = arith.constant 0 : index
    %c0_18 = arith.constant 0 : index
    %22 = vector.load %arg8[%c0_17, %c0_18] : memref<16x32xf32, #tpu.memory_space<vmem>>, vector<16x32xf32>
    tpu.vector_store %arg8[%c0_17, %c0_18], %21 {strides = array<i32>} : memref<16x32xf32, #tpu.memory_space<vmem>>, vector<16x32xf32>,
    return
  }
  func.func @transform_0(%arg0: i32) -> (i32, i32) {
    %c0_i32 = arith.constant 0 : i32
    %c0_i32_0 = arith.constant 0 : i32
    return %arg0, %c0_i32 : i32, i32
  }
  func.func @transform_1(%arg0: i32) -> (i32, i32) {
    %c0_i32 = arith.constant 0 : i32
    %c0_i32_0 = arith.constant 0 : i32
    %c0_i32_1 = arith.constant 0 : i32
    return %c0_i32, %c0_i32_0 : i32, i32
  }
  func.func @transform_2(%arg0: i32) -> (i32, i32) {
    %c0_i32 = arith.constant 0 : i32
    %c0_i32_0 = arith.constant 0 : i32
    %c0_i32_1 = arith.constant 0 : i32
    return %c0_i32, %c0_i32_0 : i32, i32
  }
  func.func @transform_3(%arg0: i32) -> (i32, i32) {
    %c0_i32 = arith.constant 0 : i32
    %c0_i32_0 = arith.constant 0 : i32
    %c0_i32_1 = arith.constant 0 : i32
    return %c0_i32, %c0_i32_0 : i32, i32
  }
  func.func @transform_4(%arg0: i32) -> (i32, i32) {
    %c0_i32 = arith.constant 0 : i32
    %c0_i32_0 = arith.constant 0 : i32
    %c0_i32_1 = arith.constant 0 : i32
    return %c0_i32, %c0_i32_0 : i32, i32
  }
  func.func @transform_5(%arg0: i32) -> (i32, i32) {
    %c0_i32 = arith.constant 0 : i32
    %c0_i32_0 = arith.constant 0 : i32
    %c0_i32_1 = arith.constant 0 : i32
    return %c0_i32, %c0_i32_0 : i32, i32
  }
  func.func @transform_6(%arg0: i32) -> (i32, i32) {
    %c0_i32 = arith.constant 0 : i32
    %c0_i32_0 = arith.constant 0 : i32
    %c0_i32_1 = arith.constant 0 : i32
    return %c0_i32, %c0_i32_0 : i32, i32
  }
  func.func @transform_7(%arg0: i32) -> (i32, i32) {
    %c0_i32 = arith.constant 0 : i32
    %c0_i32_0 = arith.constant 0 : i32
    return %arg0, %c0_i32 : i32, i32
  }
}

module attributes {stable_mosaic.version = 11 : i64} {
  func.func @_linear_kernel(%arg0: i32, %arg1: i32, %arg2: i32, %arg3: memref<8x256xbf16, #tpu.memory_space<vmem>>, %arg4: memref<256x128xbf16, #tpu.memory_space<vmem>>, %arg5: memref<1x128xf32, #tpu.memory_space<vmem>>, %arg6: memref<8x128xf32, #tpu.memory_space<vmem>>, %arg7: memref<8x128xf32, #tpu.memory_space<vmem>>) attributes {dimension_semantics = [#tpu.dimension_semantics<parallel>, #tpu.dimension_semantics<parallel>, #tpu.dimension_semantics<arbitrary>], iteration_bounds = array<i64: 1, 1, 1>, scalar_prefetch = 0 : i64, scratch_operands = 1 : i64, tpu.core_type = #tpu.core_type<tc>, window_params = [{transform_indices = @transform_0, window_bounds = array<i64: 8, 256>}, {transform_indices = @transform_1, window_bounds = array<i64: 256, 128>}, {transform_indices = @transform_2, window_bounds = array<i64: 1, 128>}, {transform_indices = @transform_3, window_bounds = array<i64: 8, 128>}]} {
    %c0_i32 = arith.constant 0 : i32
    %0 = arith.cmpi eq, %arg2, %c0_i32 : i32
    %1 = arith.extui %0 : i1 to i32
    %c0_i32_0 = arith.constant 0 : i32
    %2 = arith.cmpi ne, %1, %c0_i32_0 : i32
    scf.if %2 {
      %cst_10 = arith.constant 0.000000e+00 : f32
      %12 = vector.broadcast %cst_10 : f32 to vector<8x128xf32>
      %c0_11 = arith.constant 0 : index
      %c0_12 = arith.constant 0 : index
      %13 = vector.load %arg7[%c0_11, %c0_12] : memref<8x128xf32, #tpu.memory_space<vmem>>, vector<8x128xf32>
      tpu.vector_store %arg7[%c0_11, %c0_12], %12 {strides = array<i32>} : memref<8x128xf32, #tpu.memory_space<vmem>>, vector<8x128xf32>,
    } else {
    }
    %c0 = arith.constant 0 : index
    %c0_1 = arith.constant 0 : index
    %3 = vector.load %arg7[%c0, %c0_1] : memref<8x128xf32, #tpu.memory_space<vmem>>, vector<8x128xf32>
    %c0_2 = arith.constant 0 : index
    %c0_3 = arith.constant 0 : index
    %4 = vector.load %arg3[%c0_2, %c0_3] : memref<8x256xbf16, #tpu.memory_space<vmem>>, vector<8x256xbf16>
    %c0_4 = arith.constant 0 : index
    %c0_5 = arith.constant 0 : index
    %5 = vector.load %arg4[%c0_4, %c0_5] : memref<256x128xbf16, #tpu.memory_space<vmem>>, vector<256x128xbf16>
    %cst = arith.constant dense<0.000000e+00> : vector<8x128xf32>
    %6 = tpu.matmul %4, %5, %cst {dimension_numbers = #tpu.dot_dimension_numbers<[1], [0], [0], [1], [0, 0, 1, 1], [], []>} : vector<8x256xbf16>, vector<256x128xbf16>, vector<8x128xf32> -> vector<8x128xf32>
    %7 = arith.addf %3, %6 : vector<8x128xf32>
    %c0_6 = arith.constant 0 : index
    %c0_7 = arith.constant 0 : index
    %8 = vector.load %arg7[%c0_6, %c0_7] : memref<8x128xf32, #tpu.memory_space<vmem>>, vector<8x128xf32>
    tpu.vector_store %arg7[%c0_6, %c0_7], %7 {strides = array<i32>} : memref<8x128xf32, #tpu.memory_space<vmem>>, vector<8x128xf32>,
    %c0_i32_8 = arith.constant 0 : i32
    %9 = arith.cmpi eq, %arg2, %c0_i32_8 : i32
    %10 = arith.extui %9 : i1 to i32
    %c0_i32_9 = arith.constant 0 : i32
    %11 = arith.cmpi ne, %10, %c0_i32_9 : i32
    scf.if %11 {
      %c0_10 = arith.constant 0 : index
      %c0_11 = arith.constant 0 : index
      %12 = vector.load %arg7[%c0_10, %c0_11] : memref<8x128xf32, #tpu.memory_space<vmem>>, vector<8x128xf32>
      %c0_12 = arith.constant 0 : index
      %c0_13 = arith.constant 0 : index
      %13 = vector.load %arg5[%c0_12, %c0_13] : memref<1x128xf32, #tpu.memory_space<vmem>>, vector<1x128xf32>
      %14 = vector.broadcast %13 : vector<1x128xf32> to vector<8x128xf32>
      %15 = arith.addf %12, %14 : vector<8x128xf32>
      %c0_14 = arith.constant 0 : index
      %c0_15 = arith.constant 0 : index
      %16 = vector.load %arg6[%c0_14, %c0_15] : memref<8x128xf32, #tpu.memory_space<vmem>>, vector<8x128xf32>
      tpu.vector_store %arg6[%c0_14, %c0_15], %15 {strides = array<i32>} : memref<8x128xf32, #tpu.memory_space<vmem>>, vector<8x128xf32>,
    } else {
    }
    return
  }
  func.func @transform_0(%arg0: i32, %arg1: i32, %arg2: i32) -> (i32, i32) {
    %c0_i32 = arith.constant 0 : i32
    return %arg0, %arg2 : i32, i32
  }
  func.func @transform_1(%arg0: i32, %arg1: i32, %arg2: i32) -> (i32, i32) {
    %c0_i32 = arith.constant 0 : i32
    return %arg2, %arg1 : i32, i32
  }
  func.func @transform_2(%arg0: i32, %arg1: i32, %arg2: i32) -> (i32, i32) {
    %c0_i32 = arith.constant 0 : i32
    %c0_i32_0 = arith.constant 0 : i32
    return %c0_i32, %arg1 : i32, i32
  }
  func.func @transform_3(%arg0: i32, %arg1: i32, %arg2: i32) -> (i32, i32) {
    %c0_i32 = arith.constant 0 : i32
    return %arg0, %arg1 : i32, i32
  }
}

module attributes {stable_mosaic.version = 11 : i64} {
  func.func @_mha_probs_kernel(%arg0: i32, %arg1: memref<1x4x8x8xbf16, #tpu.memory_space<vmem>>, %arg2: memref<1x4x8x8xbf16, #tpu.memory_space<vmem>>, %arg3: memref<1x4x8x8xbf16, #tpu.memory_space<vmem>>, %arg4: memref<1x4x8x8xf32, #tpu.memory_space<vmem>>, %arg5: memref<1x4x8x8xf32, #tpu.memory_space<vmem>>) attributes {dimension_semantics = [#tpu.dimension_semantics<parallel>], iteration_bounds = array<i64: 2>, scalar_prefetch = 0 : i64, scratch_operands = 0 : i64, tpu.core_type = #tpu.core_type<tc>, window_params = [{transform_indices = @transform_0, window_bounds = array<i64: 1, 4, 8, 8>}, {transform_indices = @transform_1, window_bounds = array<i64: 1, 4, 8, 8>}, {transform_indices = @transform_2, window_bounds = array<i64: 1, 4, 8, 8>}, {transform_indices = @transform_3, window_bounds = array<i64: 1, 4, 8, 8>}, {transform_indices = @transform_4, window_bounds = array<i64: 1, 4, 8, 8>}]} {
    %c0 = arith.constant 0 : index
    %c0_0 = arith.constant 0 : index
    %c0_1 = arith.constant 0 : index
    %c0_2 = arith.constant 0 : index
    %0 = vector.load %arg1[%c0, %c0_0, %c0_1, %c0_2] : memref<1x4x8x8xbf16, #tpu.memory_space<vmem>>, vector<1x4x8x8xbf16>
    %1 = vector.shape_cast %0 : vector<1x4x8x8xbf16> to vector<4x8x8xbf16>
    %c0_3 = arith.constant 0 : index
    %c0_4 = arith.constant 0 : index
    %c0_5 = arith.constant 0 : index
    %c0_6 = arith.constant 0 : index
    %2 = vector.load %arg2[%c0_3, %c0_4, %c0_5, %c0_6] : memref<1x4x8x8xbf16, #tpu.memory_space<vmem>>, vector<1x4x8x8xbf16>
    %3 = vector.shape_cast %2 : vector<1x4x8x8xbf16> to vector<4x8x8xbf16>
    %c0_7 = arith.constant 0 : index
    %c0_8 = arith.constant 0 : index
    %c0_9 = arith.constant 0 : index
    %c0_10 = arith.constant 0 : index
    %4 = vector.load %arg3[%c0_7, %c0_8, %c0_9, %c0_10] : memref<1x4x8x8xbf16, #tpu.memory_space<vmem>>, vector<1x4x8x8xbf16>
    %5 = vector.shape_cast %4 : vector<1x4x8x8xbf16> to vector<4x8x8xbf16>
    "tpu.trace_start"() <{level = 10 : i32, message = "hqd,hkd->hqk"}> : () -> ()
    %cst = arith.constant dense<0.000000e+00> : vector<4x8x8xf32>
    %6 = tpu.matmul %1, %3, %cst {dimension_numbers = #tpu.dot_dimension_numbers<[2], [2], [1], [1], [0, 0, 0, 1, 1, 1], [0], [0]>} : vector<4x8x8xbf16>, vector<4x8x8xbf16>, vector<4x8x8xf32> -> vector<4x8x8xf32>
    "tpu.trace_stop"() : () -> ()
    %cst_11 = arith.constant 0.353553385 : f32
    %7 = vector.broadcast %cst_11 : f32 to vector<4x8x8xf32>
    %8 = arith.mulf %6, %7 : vector<4x8x8xf32>
    %cst_12 = arith.constant dense<0xFF800000> : vector<4x8xf32>
    %9 = vector.multi_reduction <maximumf>, %8, %cst_12 [2] : vector<4x8x8xf32> to vector<4x8xf32>
    %10 = vector.shape_cast %9 : vector<4x8xf32> to vector<4x8x1xf32>
    %11 = vector.broadcast %10 : vector<4x8x1xf32> to vector<4x8x8xf32>
    %12 = arith.subf %8, %11 : vector<4x8x8xf32>
    %13 = math.exp %12 : vector<4x8x8xf32>
    %cst_13 = arith.constant dense<0.000000e+00> : vector<4x8xf32>
    %14 = vector.multi_reduction <add>, %13, %cst_13 [2] : vector<4x8x8xf32> to vector<4x8xf32>
    %15 = vector.shape_cast %14 : vector<4x8xf32> to vector<4x8x1xf32>
    %16 = vector.broadcast %15 : vector<4x8x1xf32> to vector<4x8x8xf32>
    %17 = arith.divf %13, %16 : vector<4x8x8xf32>
    %c0_14 = arith.constant 0 : index
    %c0_15 = arith.constant 0 : index
    %c0_16 = arith.constant 0 : index
    %c0_17 = arith.constant 0 : index
    %18 = vector.load %arg5[%c0_14, %c0_15, %c0_16, %c0_17] : memref<1x4x8x8xf32, #tpu.memory_space<vmem>>, vector<1x4x8x8xf32>
    %19 = vector.shape_cast %18 : vector<1x4x8x8xf32> to vector<4x8x8xf32>
    %20 = vector.shape_cast %17 : vector<4x8x8xf32> to vector<1x4x8x8xf32>
    tpu.vector_store %arg5[%c0_14, %c0_15, %c0_16, %c0_17], %20 {strides = array<i32>} : memref<1x4x8x8xf32, #tpu.memory_space<vmem>>, vector<1x4x8x8xf32>,
    %21 = arith.truncf %17 : vector<4x8x8xf32> to vector<4x8x8xbf16>
    "tpu.trace_start"() <{level = 10 : i32, message = "hqk,hkd->hqd"}> : () -> ()
    %cst_18 = arith.constant dense<0.000000e+00> : vector<4x8x8xf32>
    %22 = tpu.matmul %21, %5, %cst_18 {dimension_numbers = #tpu.dot_dimension_numbers<[2], [1], [1], [2], [0, 0, 0, 1, 1, 2], [0], [0]>} : vector<4x8x8xbf16>, vector<4x8x8xbf16>, vector<4x8x8xf32> -> vector<4x8x8xf32>
    "tpu.trace_stop"() : () -> ()
    %c0_19 = arith.constant 0 : index
    %c0_20 = arith.constant 0 : index
    %c0_21 = arith.constant 0 : index
    %c0_22 = arith.constant 0 : index
    %23 = vector.load %arg4[%c0_19, %c0_20, %c0_21, %c0_22] : memref<1x4x8x8xf32, #tpu.memory_space<vmem>>, vector<1x4x8x8xf32>
    %24 = vector.shape_cast %23 : vector<1x4x8x8xf32> to vector<4x8x8xf32>
    %25 = vector.shape_cast %22 : vector<4x8x8xf32> to vector<1x4x8x8xf32>
    tpu.vector_store %arg4[%c0_19, %c0_20, %c0_21, %c0_22], %25 {strides = array<i32>} : memref<1x4x8x8xf32, #tpu.memory_space<vmem>>, vector<1x4x8x8xf32>,
    return
  }
  func.func @transform_0(%arg0: i32) -> (i32, i32, i32, i32) {
    %c0_i32 = arith.constant 0 : i32
    %c0_i32_0 = arith.constant 0 : i32
    %c0_i32_1 = arith.constant 0 : i32
    %c0_i32_2 = arith.constant 0 : i32
    return %arg0, %c0_i32, %c0_i32_0, %c0_i32_1 : i32, i32, i32, i32
  }
  func.func @transform_1(%arg0: i32) -> (i32, i32, i32, i32) {
    %c0_i32 = arith.constant 0 : i32
    %c0_i32_0 = arith.constant 0 : i32
    %c0_i32_1 = arith.constant 0 : i32
    %c0_i32_2 = arith.constant 0 : i32
    return %arg0, %c0_i32, %c0_i32_0, %c0_i32_1 : i32, i32, i32, i32
  }
  func.func @transform_2(%arg0: i32) -> (i32, i32, i32, i32) {
    %c0_i32 = arith.constant 0 : i32
    %c0_i32_0 = arith.constant 0 : i32
    %c0_i32_1 = arith.constant 0 : i32
    %c0_i32_2 = arith.constant 0 : i32
    return %arg0, %c0_i32, %c0_i32_0, %c0_i32_1 : i32, i32, i32, i32
  }
  func.func @transform_3(%arg0: i32) -> (i32, i32, i32, i32) {
    %c0_i32 = arith.constant 0 : i32
    %c0_i32_0 = arith.constant 0 : i32
    %c0_i32_1 = arith.constant 0 : i32
    %c0_i32_2 = arith.constant 0 : i32
    return %arg0, %c0_i32, %c0_i32_0, %c0_i32_1 : i32, i32, i32, i32
  }
  func.func @transform_4(%arg0: i32) -> (i32, i32, i32, i32) {
    %c0_i32 = arith.constant 0 : i32
    %c0_i32_0 = arith.constant 0 : i32
    %c0_i32_1 = arith.constant 0 : i32
    %c0_i32_2 = arith.constant 0 : i32
    return %arg0, %c0_i32, %c0_i32_0, %c0_i32_1 : i32, i32, i32, i32
  }
}

module attributes {stable_mosaic.version = 11 : i64} {
  func.func @_mlp_chain_kernel(%arg0: i32, %arg1: memref<16x32xbf16, #tpu.memory_space<vmem>>, %arg2: memref<32x64xbf16, #tpu.memory_space<vmem>>, %arg3: memref<1x64xf32, #tpu.memory_space<vmem>>, %arg4: memref<64x128xbf16, #tpu.memory_space<vmem>>, %arg5: memref<1x128xf32, #tpu.memory_space<vmem>>, %arg6: memref<128x32xbf16, #tpu.memory_space<vmem>>, %arg7: memref<1x32xf32, #tpu.memory_space<vmem>>, %arg8: memref<16x32xf32, #tpu.memory_space<vmem>>) attributes {dimension_semantics = [#tpu.dimension_semantics<parallel>], iteration_bounds = array<i64: 1>, scalar_prefetch = 0 : i64, scratch_operands = 0 : i64, tpu.core_type = #tpu.core_type<tc>, window_params = [{transform_indices = @transform_0, window_bounds = array<i64: 16, 32>}, {pipeline_mode = #tpu.pipeline_mode<synchronous>, transform_indices = @transform_1, window_bounds = array<i64: 32, 64>}, {pipeline_mode = #tpu.pipeline_mode<synchronous>, transform_indices = @transform_2, window_bounds = array<i64: 1, 64>}, {pipeline_mode = #tpu.pipeline_mode<synchronous>, transform_indices = @transform_3, window_bounds = array<i64: 64, 128>}, {pipeline_mode = #tpu.pipeline_mode<synchronous>, transform_indices = @transform_4, window_bounds = array<i64: 1, 128>}, {pipeline_mode = #tpu.pipeline_mode<synchronous>, transform_indices = @transform_5, window_bounds = array<i64: 128, 32>}, {pipeline_mode = #tpu.pipeline_mode<synchronous>, transform_indices = @transform_6, window_bounds = array<i64: 1, 32>}, {transform_indices = @transform_7, window_bounds = array<i64: 16, 32>}]} {
    %c0 = arith.constant 0 : index
    %c0_0 = arith.constant 0 : index
    %0 = vector.load %arg1[%c0, %c0_0] : memref<16x32xbf16, #tpu.memory_space<vmem>>, vector<16x32xbf16>
    %c0_1 = arith.constant 0 : index
    %c0_2 = arith.constant 0 : index
    %1 = vector.load %arg2[%c0_1, %c0_2] : memref<32x64xbf16, #tpu.memory_space<vmem>>, vector<32x64xbf16>
    %c0_3 = arith.constant 0 : index
    %c0_4 = arith.constant 0 : index
    %2 = vector.load %arg3[%c0_3, %c0_4] : memref<1x64xf32, #tpu.memory_space<vmem>>, vector<1x64xf32>
    %cst = arith.constant dense<0.000000e+00> : vector<16x64xf32>
    %3 = tpu.matmul %0, %1, %cst {dimension_numbers = #tpu.dot_dimension_numbers<[1], [0], [0], [1], [0, 0, 1, 1], [], []>} : vector<16x32xbf16>, vector<32x64xbf16>, vector<16x64xf32> -> vector<16x64xf32>
    %4 = vector.broadcast %2 : vector<1x64xf32> to vector<16x64xf32>
    %5 = arith.addf %3, %4 : vector<16x64xf32>
    %cst_5 = arith.constant 0.000000e+00 : f32
    %6 = vector.broadcast %cst_5 : f32 to vector<16x64xf32>
    %7 = arith.maximumf %5, %6 : vector<16x64xf32>
    %8 = arith.truncf %7 : vector<16x64xf32> to vector<16x64xbf16>
    %c0_6 = arith.constant 0 : index
    %c0_7 = arith.constant 0 : index
    %9 = vector.load %arg4[%c0_6, %c0_7] : memref<64x128xbf16, #tpu.memory_space<vmem>>, vector<64x128xbf16>
    %c0_8 = arith.constant 0 : index
    %c0_9 = arith.constant 0 : index
    %10 = vector.load %arg5[%c0_8, %c0_9] : memref<1x128xf32, #tpu.memory_space<vmem>>, vector<1x128xf32>
    %cst_10 = arith.constant dense<0.000000e+00> : vector<16x128xf32>
    %11 = tpu.matmul %8, %9, %cst_10 {dimension_numbers = #tpu.dot_dimension_numbers<[1], [0], [0], [1], [0, 0, 1, 1], [], []>} : vector<16x64xbf16>, vector<64x128xbf16>, vector<16x128xf32> -> vector<16x128xf32>
    %12 = vector.broadcast %10 : vector<1x128xf32> to vector<16x128xf32>
    %13 = arith.addf %11, %12 : vector<16x128xf32>
    %cst_11 = arith.constant 0.000000e+00 : f32
    %14 = vector.broadcast %cst_11 : f32 to vector<16x128xf32>
    %15 = arith.maximumf %13, %14 : vector<16x128xf32>
    %16 = arith.truncf %15 : vector<16x128xf32> to vector<16x128xbf16>
    %c0_12 = arith.constant 0 : index
    %c0_13 = arith.constant 0 : index
    %17 = vector.load %arg6[%c0_12, %c0_13] : memref<128x32xbf16, #tpu.memory_space<vmem>>, vector<128x32xbf16>
    %c0_14 = arith.constant 0 : index
    %c0_15 = arith.constant 0 : index
    %18 = vector.load %arg7[%c0_14, %c0_15] : memref<1x32xf32, #tpu.memory_space<vmem>>, vector<1x32xf32>
    %cst_16 = arith.constant dense<0.000000e+00> : vector<16x32xf32>
    %19 = tpu.matmul %16, %17, %cst_16 {dimension_numbers = #tpu.dot_dimension_numbers<[1], [0], [0], [1], [0, 0, 1, 1], [], []>} : vector<16x128xbf16>, vector<128x32xbf16>, vector<16x32xf32> -> vector<16x32xf32>
    %20 = vector.broadcast %18 : vector<1x32xf32> to vector<16x32xf32>
    %21 = arith.addf %19, %20 : vector<16x32xf32>
    %c0_17 = arith.constant 0 : index
    %c0_18 = arith.constant 0 : index
    %22 = vector.load %arg8[%c0_17, %c0_18] : memref<16x32xf32, #tpu.memory_space<vmem>>, vector<16x32xf32>
    tpu.vector_store %arg8[%c0_17, %c0_18], %21 {strides = array<i32>} : memref<16x32xf32, #tpu.memory_space<vmem>>, vector<16x32xf32>,
    return
  }
  func.func @transform_0(%arg0: i32) -> (i32, i32) {
    %c0_i32 = arith.constant 0 : i32
    %c0_i32_0 = arith.constant 0 : i32
    return %arg0, %c0_i32 : i32, i32
  }
  func.func @transform_1(%arg0: i32) -> (i32, i32) {
    %c0_i32 = arith.constant 0 : i32
    %c0_i32_0 = arith.constant 0 : i32
    %c0_i32_1 = arith.constant 0 : i32
    return %c0_i32, %c0_i32_0 : i32, i32
  }
  func.func @transform_2(%arg0: i32) -> (i32, i32) {
    %c0_i32 = arith.constant 0 : i32
    %c0_i32_0 = arith.constant 0 : i32
    %c0_i32_1 = arith.constant 0 : i32
    return %c0_i32, %c0_i32_0 : i32, i32
  }
  func.func @transform_3(%arg0: i32) -> (i32, i32) {
    %c0_i32 = arith.constant 0 : i32
    %c0_i32_0 = arith.constant 0 : i32
    %c0_i32_1 = arith.constant 0 : i32
    return %c0_i32, %c0_i32_0 : i32, i32
  }
  func.func @transform_4(%arg0: i32) -> (i32, i32) {
    %c0_i32 = arith.constant 0 : i32
    %c0_i32_0 = arith.constant 0 : i32
    %c0_i32_1 = arith.constant 0 : i32
    return %c0_i32, %c0_i32_0 : i32, i32
  }
  func.func @transform_5(%arg0: i32) -> (i32, i32) {
    %c0_i32 = arith.constant 0 : i32
    %c0_i32_0 = arith.constant 0 : i32
    %c0_i32_1 = arith.constant 0 : i32
    return %c0_i32, %c0_i32_0 : i32, i32
  }
  func.func @transform_6(%arg0: i32) -> (i32, i32) {
    %c0_i32 = arith.constant 0 : i32
    %c0_i32_0 = arith.constant 0 : i32
    %c0_i32_1 = arith.constant 0 : i32
    return %c0_i32, %c0_i32_0 : i32, i32
  }
  func.func @transform_7(%arg0: i32) -> (i32, i32) {
    %c0_i32 = arith.constant 0 : i32
    %c0_i32_0 = arith.constant 0 : i32
    return %arg0, %c0_i32 : i32, i32
  }
}

</mosaic_0001>

<llo_original>
// kernel: advanced_neural_core_fwd.41
$region0: #{advanced_neural_core_fwd.41}
  #allocation0 [shape = 'u32[]', space=smem, size = 0x4, offset = 0x4, fixed_abs, tag = 'smem constant byte address 0x4 - core index']
  #allocation1 [shape = 'u32[144,128]{1,0:T(1,128)}', space=vmem, size = 0x12000, scoped, tag = 'internal scratch']
  #allocation2 [shape = 'f32[16,128]{1,0:T(8,128)}', space=vmem, size = 0x2000, scoped, tag = 'scratch operand']
  %s0 = inlined_call_operand.vmem [shape: bf16[16,128], index: 0, kind: input, shape index: {}]
  %s1 = inlined_call_operand.vmem [shape: bf16[128,128], index: 1, kind: input, shape index: {}]
  %s2 = inlined_call_operand.vmem [shape: f32[1,128], index: 2, kind: input, shape index: {}]
  %s3 = inlined_call_operand.vmem [shape: f32[16,128], index: 3, kind: output, shape index: {}]
  %s4 = sld [smem:[#allocation0]]
  $region30: #{advanced_neural_core_fwd.41} parent=0
    _
  %s6 = ssub.s32 1, %s4
  %s7 = scalar_select 0, %s6, %s4
  // Predicated region
  $region2: #{advanced_neural_core_fwd.41} parent=0 // pred_check
    _
  $region3: #{advanced_neural_core_fwd.41} parent=0 // pred_check_branch
    %9 = sbr.rel (0) target = $region5
  $region4: #{advanced_neural_core_fwd.41} parent=0 // pred_region
    _
  $region5: #{advanced_neural_core_fwd.41} parent=0 // pred_fallthru
    _
  // Predicated region
  $region6: #{advanced_neural_core_fwd.41} parent=0 // pred_check
    _
  $region7: #{advanced_neural_core_fwd.41} parent=0 // pred_check_branch
    %11 = sbr.rel (0) target = $region9
  $region8: #{advanced_neural_core_fwd.41} parent=0 // pred_region
    _
  $region9: #{advanced_neural_core_fwd.41} parent=0 // pred_fallthru
    _
  // Predicated region
  $region10: #{advanced_neural_core_fwd.41} parent=0 // pred_check
    _
  $region11: #{advanced_neural_core_fwd.41} parent=0 // pred_check_branch
    %13 = sbr.rel (0) target = $region13
  $region12: #{advanced_neural_core_fwd.41} parent=0 // pred_region
    _
  $region13: #{advanced_neural_core_fwd.41} parent=0 // pred_fallthru
    _
  %p15 = scmp.eq.s32.totalorder 0, 0
  // Predicated region
  $region14: #{advanced_neural_core_fwd.41} parent=0 // pred_check
    %p16 = pneg %p15
  $region15: #{advanced_neural_core_fwd.41} parent=0 // pred_check_branch
    %18 = sbr.rel (%p16) target = $region17
  $region16: #{advanced_neural_core_fwd.41} parent=0 // pred_region
    %19 = vst [vmem:[#allocation2] sm:$0xff] 0.0
    %20 = vst [vmem:[#allocation2 + $0x8] sm:$0xff] 0.0
  $region17: #{advanced_neural_core_fwd.41} parent=0 // pred_fallthru
    _
  %v21 = vld [vmem:[#allocation2] sm:$0xff]
  %v22 = vld [vmem:[#allocation2 + $0x8] sm:$0xff]
  %v23 = vld [vmem:[%s0] sm:$0xf]
  %v24 = vld [vmem:[%s0 + $0x4] sm:$0xf]
  %v25 = vld [vmem:[%s1] sm:$0xf]
  %v26 = vld [vmem:[%s1 + $0x4] sm:$0xf]
  %v27 = vld [vmem:[%s1 + $0x8] sm:$0xf]
  %v28 = vld [vmem:[%s1 + $0xc] sm:$0xf]
  %v29 = vld [vmem:[%s1 + $0x10] sm:$0xf]
  %v30 = vld [vmem:[%s1 + $0x14] sm:$0xf]
  %v31 = vld [vmem:[%s1 + $0x18] sm:$0xf]
  %v32 = vld [vmem:[%s1 + $0x1c] sm:$0xf]
  %v33 = vld [vmem:[%s1 + $0x20] sm:$0xf]
  %v34 = vld [vmem:[%s1 + $0x24] sm:$0xf]
  %v35 = vld [vmem:[%s1 + $0x28] sm:$0xf]
  %v36 = vld [vmem:[%s1 + $0x2c] sm:$0xf]
  %v37 = vld [vmem:[%s1 + $0x30] sm:$0xf]
  %v38 = vld [vmem:[%s1 + $0x34] sm:$0xf]
  %v39 = vld [vmem:[%s1 + $0x38] sm:$0xf]
  %v40 = vld [vmem:[%s1 + $0x3c] sm:$0xf]
  %v43 = vunpack.c.l.b16 %v23
  %v44 = vunpack.c.l.b16 %v24
  %v45 = vpack.c.b16 %v44, %v43
  %v63 = vunpack.c.l.b16 %v25
  %v64 = vunpack.c.l.b16 %v26
  %v65 = vunpack.c.l.b16 %v27
  %v66 = vunpack.c.l.b16 %v28
  %v67 = vunpack.c.l.b16 %v29
  %v68 = vunpack.c.l.b16 %v30
  %v69 = vunpack.c.l.b16 %v31
  %v70 = vunpack.c.l.b16 %v32
  %v71 = vunpack.c.l.b16 %v33
  %v72 = vunpack.c.l.b16 %v34
  %v73 = vunpack.c.l.b16 %v35
  %v74 = vunpack.c.l.b16 %v36
  %v75 = vunpack.c.l.b16 %v37
  %v76 = vunpack.c.l.b16 %v38
  %v77 = vunpack.c.l.b16 %v39
  %v78 = vunpack.c.l.b16 %v40
  %v79 = vpack.c.b16 %v64, %v63
  %v80 = vpack.c.b16 %v66, %v65
  %v81 = vpack.c.b16 %v68, %v67
  %v82 = vpack.c.b16 %v70, %v69
  %v83 = vpack.c.b16 %v72, %v71
  %v84 = vpack.c.b16 %v74, %v73
  %v85 = vpack.c.b16 %v76, %v75
  %v86 = vpack.c.b16 %v78, %v77
  %95 = vmatprep.subr.bf16.mxu0 0
  %96 = vmatpush1.bf16.msra.mxu0 %v79
  %97 = vmatprep.subr.bf16.mxu0 0
  %98 = vmatpush1.bf16.msra.mxu0 %v80
  %99 = vmatprep.subr.bf16.mxu0 0
  %100 = vmatpush1.bf16.msra.mxu0 %v81
  %101 = vmatprep.subr.bf16.mxu0 0
  %102 = vmatpush1.bf16.msra.mxu0 %v82
  %103 = vmatprep.subr.bf16.mxu0 0
  %104 = vmatpush1.bf16.msra.mxu0 %v83
  %105 = vmatprep.subr.bf16.mxu0 0
  %106 = vmatpush1.bf16.msra.mxu0 %v84
  %107 = vmatprep.subr.bf16.mxu0 0
  %108 = vmatpush1.bf16.msra.mxu0 %v85
  %109 = vmatprep.subr.bf16.mxu0 0
  %110 = vmatpush1.bf16.msra.mxu0 %v86
  %111 = vmatprep.subr.bf16.mxu0 0
  %112 = vmatpush1.bf16.msra.mxu0 0
  %113 = vmatprep.subr.bf16.mxu0 0
  %114 = vmatpush1.bf16.msra.mxu0 0
  %115 = vmatprep.subr.bf16.mxu0 0
  %116 = vmatpush1.bf16.msra.mxu0 0
  %117 = vmatprep.subr.bf16.mxu0 0
  %118 = vmatpush1.bf16.msra.mxu0 0
  %119 = vmatprep.subr.bf16.mxu0 0
  %120 = vmatpush1.bf16.msra.mxu0 0
  %121 = vmatprep.subr.bf16.mxu0 0
  %122 = vmatpush1.bf16.msra.mxu0 0
  %123 = vmatprep.subr.bf16.mxu0 0
  %124 = vmatpush1.bf16.msra.mxu0 0
  %125 = vmatprep.subr.bf16.mxu0 0
  %126 = vmatpush1.bf16.msra.mxu0 0
  %127 = vmatprep.mubr.bf16.mxu0 0
  %128 = vmatmul.mubr.bf16.gmra.mrb[0].mxu0 %v45
  %v129 = vpop.f32.mrb[0].mxu0
  %v130 = vadd.f32 0.0, %v129
  %v131 = vpop.f32.mrb[0].mxu0
  %v132 = vpop.f32.mrb[0].mxu0
  %v133 = vadd.f32 0.0, %v132
  %v134 = vpop.f32.mrb[0].mxu0
  %135 = vdwg.mxu0
  %v136 = vadd.f32 %v21, %v130
  %v137 = vadd.f32 %v22, %v133
  %138 = vst [vmem:[#allocation2] sm:$0xff] %v136
  %139 = vst [vmem:[#allocation2 + $0x8] sm:$0xff] %v137
  // Predicated region
  $region18: #{advanced_neural_core_fwd.41} parent=0 // pred_check
    %p140 = pneg %p15
  $region19: #{advanced_neural_core_fwd.41} parent=0 // pred_check_branch
    %142 = sbr.rel (%p140) target = $region21
  $region20: #{advanced_neural_core_fwd.41} parent=0 // pred_region
    %v143 = vld [vmem:[#allocation2] sm:$0xff]
    %v144 = vld [vmem:[#allocation2 + $0x8] sm:$0xff]
    %v145 = vld [vmem:[%s2] sm:$0x1]
    %v147 = vlaneseq
    %v148 = vshrl.u32 %v147, 7
    %v149 = vsub.s32 0, %v148
    %v150 = vrot.slane %v145, %v149
    %v152 = vadd.f32 %v143, %v150
    %v153 = vadd.f32 %v144, %v150
    %154 = vst [vmem:[%s3] sm:$0xff] %v152
    %155 = vst [vmem:[%s3 + $0x8] sm:$0xff] %v153
  $region21: #{advanced_neural_core_fwd.41} parent=0 // pred_fallthru
    _
  // Predicated region
  $region22: #{advanced_neural_core_fwd.41} parent=0 // pred_check
    _
  $region23: #{advanced_neural_core_fwd.41} parent=0 // pred_check_branch
    %157 = sbr.rel (0) target = $region25
  $region24: #{advanced_neural_core_fwd.41} parent=0 // pred_region
    _
  $region25: #{advanced_neural_core_fwd.41} parent=0 // pred_fallthru
    _
  // Predicated region
  $region26: #{advanced_neural_core_fwd.41} parent=0 // pred_check
    _
  $region27: #{advanced_neural_core_fwd.41} parent=0 // pred_check_branch
    %159 = sbr.rel (0) target = $region29
  $region28: #{advanced_neural_core_fwd.41} parent=0 // pred_region
    _
  $region29: #{advanced_neural_core_fwd.41} parent=0 // pred_fallthru
    _

// kernel: advanced_neural_core_fwd.42
$region0: #{advanced_neural_core_fwd.42}
  #allocation0 [shape = 'u32[]', space=smem, size = 0x4, offset = 0x4, fixed_abs, tag = 'smem constant byte address 0x4 - core index']
  #allocation1 [shape = 'u32[144,128]{1,0:T(1,128)}', space=vmem, size = 0x12000, scoped, tag = 'internal scratch']
  %s0 = inlined_call_operand.vmem [shape: bf16[8,4,2,8], index: 0, kind: input, shape index: {}]
  %s1 = inlined_call_operand.vmem [shape: bf16[8,4,2,8], index: 1, kind: input, shape index: {}]
  %s2 = inlined_call_operand.vmem [shape: bf16[8,4,2,8], index: 2, kind: input, shape index: {}]
  %s3 = inlined_call_operand.vmem [shape: f32[8,4,2,8], index: 3, kind: output, shape index: {}]
  %s4 = sld [smem:[#allocation0]]
  $region45: #{advanced_neural_core_fwd.42} parent=0
    _
  %s6 = ssub.s32 1, %s4
  %s7 = scalar_select 0, %s6, %s4
  loop: start=0, step=1, limit=10
  $region2: #{advanced_neural_core_fwd.42} parent=0 // loop_pre_header
    _
  $region3: #{advanced_neural_core_fwd.42} parent=0 // loop_header
    %s9 = sphi 0, %s13
    %p10 = scmp.ge.s32.totalorder %s9, 10
    %s19 = sphi 0, %s21
    %s22 = sphi 0, %s19
    %s23 = sphi 0, %s22
    %s39 = sphi 0, %s23
    %s45 = sphi 0, %s47
    %s48 = sphi 0, %s45
    %s49 = sphi 0, %s48
    %s65 = sphi 0, %s49
    %s71 = sphi 0, %s73
    %s74 = sphi 0, %s71
    %s75 = sphi 0, %s74
    %s91 = sphi 0, %s75
    %s97 = sphi 0, %s99
    %s100 = sphi 0, %s97
    %s101 = sphi 0, %s100
    %s117 = sphi 0, %s101
  $region4: #{advanced_neural_core_fwd.42} parent=0 // loop_header_branch
    %12 = sbr.rel (%p10) target = $region8
  $region5: #{advanced_neural_core_fwd.42} parent=0 // loop_body
    %s14 = ssub.s32 %s9, 1
    %s15 = ssub.s32 %s9, 2
    %s16 = sadd.s32 %s9, 1
    %s17 = ssub.s32 %s9, %s16
    %p18 = scmp.eq.s32.totalorder %s17, 0
    %s20 = sadd.s32 %s19, 1
    %s21 = scalar_select %p18, %s19, %s20
    %p24 = pneg %p18
    %p25 = scmp.eq.s32.totalorder %s9, 7
    %p26 = por %p24, %p25
    %p27 = scmp.ne.s32.totalorder %s19, %s22
    %p28 = scmp.eq.s32.totalorder %s9, 0
    %p29 = por %p27, %p28
    %p30 = scmp.ne.s32.totalorder %s19, %s22
    %p31 = scmp.eq.s32.totalorder %s14, 7
    %p32 = por %p30, %p31
    %p33 = scmp.ne.s32.totalorder %s22, %s23
    %p34 = scmp.eq.s32.totalorder %s14, 0
    %p35 = por %p33, %p34
    %p36 = scmp.ne.s32.totalorder %s22, %s23
    %p37 = scmp.eq.s32.totalorder %s15, 7
    %p38 = por %p36, %p37
    %p40 = scmp.ne.s32.totalorder %s23, %s39
    %p41 = scmp.eq.s32.totalorder %s15, 0
    %p42 = por %p40, %p41
    %s43 = ssub.s32 %s9, %s16
    %p44 = scmp.eq.s32.totalorder %s43, 0
    %s46 = sadd.s32 %s45, 1
    %s47 = scalar_select %p44, %s45, %s46
    %p50 = pneg %p44
    %p51 = scmp.eq.s32.totalorder %s9, 7
    %p52 = por %p50, %p51
    %p53 = scmp.ne.s32.totalorder %s45, %s48
    %p54 = scmp.eq.s32.totalorder %s9, 0
    %p55 = por %p53, %p54
    %p56 = scmp.ne.s32.totalorder %s45, %s48
    %p57 = scmp.eq.s32.totalorder %s14, 7
    %p58 = por %p56, %p57
    %p59 = scmp.ne.s32.totalorder %s48, %s49
    %p60 = scmp.eq.s32.totalorder %s14, 0
    %p61 = por %p59, %p60
    %p62 = scmp.ne.s32.totalorder %s48, %s49
    %p63 = scmp.eq.s32.totalorder %s15, 7
    %p64 = por %p62, %p63
    %p66 = scmp.ne.s32.totalorder %s49, %s65
    %p67 = scmp.eq.s32.totalorder %s15, 0
    %p68 = por %p66, %p67
    %s69 = ssub.s32 %s9, %s16
    %p70 = scmp.eq.s32.totalorder %s69, 0
    %s72 = sadd.s32 %s71, 1
    %s73 = scalar_select %p70, %s71, %s72
    %p76 = pneg %p70
    %p77 = scmp.eq.s32.totalorder %s9, 7
    %p78 = por %p76, %p77
    %p79 = scmp.ne.s32.totalorder %s71, %s74
    %p80 = scmp.eq.s32.totalorder %s9, 0
    %p81 = por %p79, %p80
    %p82 = scmp.ne.s32.totalorder %s71, %s74
    %p83 = scmp.eq.s32.totalorder %s14, 7
    %p84 = por %p82, %p83
    %p85 = scmp.ne.s32.totalorder %s74, %s75
    %p86 = scmp.eq.s32.totalorder %s14, 0
    %p87 = por %p85, %p86
    %p88 = scmp.ne.s32.totalorder %s74, %s75
    %p89 = scmp.eq.s32.totalorder %s15, 7
    %p90 = por %p88, %p89
    %p92 = scmp.ne.s32.totalorder %s75, %s91
    %p93 = scmp.eq.s32.totalorder %s15, 0
    %p94 = por %p92, %p93
    %s95 = ssub.s32 %s9, %s16
    %p96 = scmp.eq.s32.totalorder %s95, 0
    %s98 = sadd.s32 %s97, 1
    %s99 = scalar_select %p96, %s97, %s98
    %p102 = pneg %p96
    %p103 = scmp.eq.s32.totalorder %s9, 7
    %p104 = por %p102, %p103
    %p105 = scmp.ne.s32.totalorder %s97, %s100
    %p106 = scmp.eq.s32.totalorder %s9, 0
    %p107 = por %p105, %p106
    %p108 = scmp.ne.s32.totalorder %s97, %s100
    %p109 = scmp.eq.s32.totalorder %s14, 7
    %p110 = por %p108, %p109
    %p111 = scmp.ne.s32.totalorder %s100, %s101
    %p112 = scmp.eq.s32.totalorder %s14, 0
    %p113 = por %p111, %p112
    %p114 = scmp.ne.s32.totalorder %s100, %s101
    %p115 = scmp.eq.s32.totalorder %s15, 7
    %p116 = por %p114, %p115
    %p118 = scmp.ne.s32.totalorder %s101, %s117
    %p119 = scmp.eq.s32.totalorder %s15, 0
    %p120 = por %p118, %p119
    %p121 = scmp.le.s32.totalorder 1, %s9
    %p122 = scmp.lt.s32.totalorder %s9, 9
    %p123 = pnand %p121, %p122
    %p124 = pneg %p123
    // Predicated region
    $region9: #{advanced_neural_core_fwd.42} parent=5 // pred_check
      _
    $region10: #{advanced_neural_core_fwd.42} parent=5 // pred_check_branch
      %126 = sbr.rel (%p123) target = $region12
    $region11: #{advanced_neural_core_fwd.42} parent=5 // pred_region
      %s127 = ssub.s32 %s9, 1
    $region12: #{advanced_neural_core_fwd.42} parent=5 // pred_fallthru
      _
    %p128 = scmp.lt.s32.totalorder %s9, 8
    // Predicated region
    $region13: #{advanced_neural_core_fwd.42} parent=5 // pred_check
      %p129 = pneg %p128
    $region14: #{advanced_neural_core_fwd.42} parent=5 // pred_check_branch
      %131 = sbr.rel (%p129) target = $region16
    $region15: #{advanced_neural_core_fwd.42} parent=5 // pred_region
      // Predicated region
      $region17: #{advanced_neural_core_fwd.42} parent=15 // pred_check
        %p132 = pneg %p29
      $region18: #{advanced_neural_core_fwd.42} parent=15 // pred_check_branch
        %134 = sbr.rel (%p132) target = $region20
      $region19: #{advanced_neural_core_fwd.42} parent=15 // pred_region
        %p135 = scmp.lt.s32.totalorder %s9, 7
        %s136 = scalar_select %p135, %s9, 7
        %s137 = smul.addr %s136, 4
        %s138 = scalar_lea.vmem %s0, %s137
      $region20: #{advanced_neural_core_fwd.42} parent=15 // pred_fallthru
        _
      // Predicated region
      $region21: #{advanced_neural_core_fwd.42} parent=15 // pred_check
        %p139 = pneg %p55
      $region22: #{advanced_neural_core_fwd.42} parent=15 // pred_check_branch
        %141 = sbr.rel (%p139) target = $region24
      $region23: #{advanced_neural_core_fwd.42} parent=15 // pred_region
        %p142 = scmp.lt.s32.totalorder %s9, 7
        %s143 = scalar_select %p142, %s9, 7
        %s144 = smul.addr %s143, 4
        %s145 = scalar_lea.vmem %s1, %s144
      $region24: #{advanced_neural_core_fwd.42} parent=15 // pred_fallthru
        _
      // Predicated region
      $region25: #{advanced_neural_core_fwd.42} parent=15 // pred_check
        %p146 = pneg %p81
      $region26: #{advanced_neural_core_fwd.42} parent=15 // pred_check_branch
        %148 = sbr.rel (%p146) target = $region28
      $region27: #{advanced_neural_core_fwd.42} parent=15 // pred_region
        %p149 = scmp.lt.s32.totalorder %s9, 7
        %s150 = scalar_select %p149, %s9, 7
        %s151 = smul.addr %s150, 4
        %s152 = scalar_lea.vmem %s2, %s151
      $region28: #{advanced_neural_core_fwd.42} parent=15 // pred_fallthru
        _
    $region16: #{advanced_neural_core_fwd.42} parent=5 // pred_fallthru
      _
    %p153 = scmp.le.s32.totalorder 1, %s9
    %p154 = scmp.lt.s32.totalorder %s9, 9
    %p155 = pnand %p153, %p154
    %p156 = pneg %p155
    // Predicated region
    $region29: #{advanced_neural_core_fwd.42} parent=5 // pred_check
      _
    $region30: #{advanced_neural_core_fwd.42} parent=5 // pred_check_branch
      %158 = sbr.rel (%p155) target = $region32
    $region31: #{advanced_neural_core_fwd.42} parent=5 // pred_region
      %s159 = ssub.s32 %s9, 1
      %p160 = scmp.lt.s32.totalorder %s14, 7
      %s161 = scalar_select %p160, %s14, 7
      %s162 = smul.addr %s161, 4
      %s163 = scalar_lea.vmem %s0, %s162
      %p164 = pneg %p35
      %p165 = pneg %p32
      %p166 = scmp.lt.s32.totalorder %s14, 7
      %s167 = scalar_select %p166, %s14, 7
      %s168 = smul.addr %s167, 4
      %s169 = scalar_lea.vmem %s1, %s168
      %p170 = pneg %p61
      %p171 = pneg %p58
      %p172 = scmp.lt.s32.totalorder %s14, 7
      %s173 = scalar_select %p172, %s14, 7
      %s174 = smul.addr %s173, 4
      %s175 = scalar_lea.vmem %s2, %s174
      %p176 = pneg %p87
      %p177 = pneg %p84
      %p178 = pneg %p113
      %p179 = pneg %p110
      %p180 = scmp.lt.s32.totalorder %s14, 7
      %s181 = scalar_select %p180, %s14, 7
      %s182 = smul.addr %s181, 4
      %s183 = smul.addr %s182, 2
      %s184 = scalar_lea.vmem %s3, %s183
      %p185 = scmp.lt.s32.totalorder %s14, 7
      %s186 = scalar_select %p185, %s14, 7
      %s187 = smul.addr %s186, 4
      %s188 = scalar_lea.vmem %s0, %s187
      %p189 = scmp.lt.s32.totalorder %s14, 7
      %s190 = scalar_select %p189, %s14, 7
      %s191 = smul.addr %s190, 4
      %s192 = scalar_lea.vmem %s1, %s191
      %p193 = scmp.lt.s32.totalorder %s14, 7
      %s194 = scalar_select %p193, %s14, 7
      %s195 = smul.addr %s194, 4
      %s196 = scalar_lea.vmem %s2, %s195
      %p197 = scmp.lt.s32.totalorder %s14, 7
      %s198 = scalar_select %p197, %s14, 7
      %s199 = smul.addr %s198, 4
      %s200 = smul.addr %s199, 2
      %s201 = scalar_lea.vmem %s3, %s200
      %v203 = vld [vmem:[%s188] sm:$0x1]
      %v204 = vld [vmem:[%s188 + $0x1] sm:$0x1]
      %v205 = vld [vmem:[%s188 + $0x2] sm:$0x1]
      %v206 = vld [vmem:[%s188 + $0x3] sm:$0x1]
      %v207 = vld [vmem:[%s192] sm:$0x1]
      %v208 = vld [vmem:[%s192 + $0x1] sm:$0x1]
      %v209 = vld [vmem:[%s192 + $0x2] sm:$0x1]
      %v210 = vld [vmem:[%s192 + $0x3] sm:$0x1]
      %v211 = vld [vmem:[%s196] sm:$0x1]
      %v212 = vld [vmem:[%s196 + $0x1] sm:$0x1]
      %v213 = vld [vmem:[%s196 + $0x2] sm:$0x1]
      %v214 = vld [vmem:[%s196 + $0x3] sm:$0x1]
      %vm215 = vcmask 64512
      %v217 = vsel %vm215, %v203, 0
      %v220 = vsel %vm215, %v207, 0
      %222 = vmatprep.subr.bf16.mxu0 0
      %223 = vmatpush1.bf16.xpose.msra.mxu0 %v220
      %224 = vmatprep.subr.bf16.mxu0 0
      %225 = vmatpush1.bf16.xpose.msra.mxu0 0
      %226 = vmatprep.subr.bf16.mxu0 0
      %227 = vmatpush1.bf16.xpose.msra.mxu0 0
      %228 = vmatprep.subr.bf16.mxu0 0
      %229 = vmatpush1.bf16.xpose.msra.mxu0 0
      %230 = vmatprep.subr.bf16.mxu0 0
      %231 = vmatpush1.bf16.xpose.msra.mxu0 0
      %232 = vmatprep.subr.bf16.mxu0 0
      %233 = vmatpush1.bf16.xpose.msra.mxu0 0
      %234 = vmatprep.subr.bf16.mxu0 0
      %235 = vmatpush1.bf16.xpose.msra.mxu0 0
      %236 = vmatprep.subr.bf16.mxu0 0
      %237 = vmatpush1.bf16.xpose.msra.mxu0 0
      %238 = vmatprep.subr.bf16.mxu0 0
      %239 = vmatpush1.bf16.xpose.msra.mxu0 0
      %240 = vmatprep.subr.bf16.mxu0 0
      %241 = vmatpush1.bf16.xpose.msra.mxu0 0
      %242 = vmatprep.subr.bf16.mxu0 0
      %243 = vmatpush1.bf16.xpose.msra.mxu0 0
      %244 = vmatprep.subr.bf16.mxu0 0
      %245 = vmatpush1.bf16.xpose.msra.mxu0 0
      %246 = vmatprep.subr.bf16.mxu0 0
      %247 = vmatpush1.bf16.xpose.msra.mxu0 0
      %248 = vmatprep.subr.bf16.mxu0 0
      %249 = vmatpush1.bf16.xpose.msra.mxu0 0
      %250 = vmatprep.subr.bf16.mxu0 0
      %251 = vmatpush1.bf16.xpose.msra.mxu0 0
      %252 = vmatprep.subr.bf16.mxu0 0
      %253 = vmatpush1.bf16.xpose.msra.mxu0 0
      %254 = vmatprep.mubr.bf16.mxu0 0
      %255 = vmatmul.mubr.bf16.gmra.mrb[0].mxu0 %v217
      %v256 = vpop.f32.mrb[0].mxu0
      %v257 = vadd.f32 0.0, %v256
      %v258 = vpop.f32.mrb[0].mxu0
      %v259 = vpop.f32.mrb[0].mxu0
      %v260 = vpop.f32.mrb[0].mxu0
      %261 = vdwg.mxu0
      %v263 = vsel %vm215, %v204, 0
      %v266 = vsel %vm215, %v208, 0
      %268 = vmatprep.subr.bf16.mxu0 0
      %269 = vmatpush1.bf16.xpose.msra.mxu0 %v266
      %270 = vmatprep.subr.bf16.mxu0 0
      %271 = vmatpush1.bf16.xpose.msra.mxu0 0
      %272 = vmatprep.subr.bf16.mxu0 0
      %273 = vmatpush1.bf16.xpose.msra.mxu0 0
      %274 = vmatprep.subr.bf16.mxu0 0
      %275 = vmatpush1.bf16.xpose.msra.mxu0 0
      %276 = vmatprep.subr.bf16.mxu0 0
      %277 = vmatpush1.bf16.xpose.msra.mxu0 0
      %278 = vmatprep.subr.bf16.mxu0 0
      %279 = vmatpush1.bf16.xpose.msra.mxu0 0
      %280 = vmatprep.subr.bf16.mxu0 0
      %281 = vmatpush1.bf16.xpose.msra.mxu0 0
      %282 = vmatprep.subr.bf16.mxu0 0
      %283 = vmatpush1.bf16.xpose.msra.mxu0 0
      %284 = vmatprep.subr.bf16.mxu0 0
      %285 = vmatpush1.bf16.xpose.msra.mxu0 0
      %286 = vmatprep.subr.bf16.mxu0 0
      %287 = vmatpush1.bf16.xpose.msra.mxu0 0
      %288 = vmatprep.subr.bf16.mxu0 0
      %289 = vmatpush1.bf16.xpose.msra.mxu0 0
      %290 = vmatprep.subr.bf16.mxu0 0
      %291 = vmatpush1.bf16.xpose.msra.mxu0 0
      %292 = vmatprep.subr.bf16.mxu0 0
      %293 = vmatpush1.bf16.xpose.msra.mxu0 0
      %294 = vmatprep.subr.bf16.mxu0 0
      %295 = vmatpush1.bf16.xpose.msra.mxu0 0
      %296 = vmatprep.subr.bf16.mxu0 0
      %297 = vmatpush1.bf16.xpose.msra.mxu0 0
      %298 = vmatprep.subr.bf16.mxu0 0
      %299 = vmatpush1.bf16.xpose.msra.mxu0 0
      %300 = vmatprep.mubr.bf16.mxu0 0
      %301 = vmatmul.mubr.bf16.gmra.mrb[0].mxu0 %v263
      %v302 = vpop.f32.mrb[0].mxu0
      %v303 = vadd.f32 0.0, %v302
      %v304 = vpop.f32.mrb[0].mxu0
      %v305 = vpop.f32.mrb[0].mxu0
      %v306 = vpop.f32.mrb[0].mxu0
      %307 = vdwg.mxu0
      %v309 = vsel %vm215, %v205, 0
      %v312 = vsel %vm215, %v209, 0
      %314 = vmatprep.subr.bf16.mxu0 0
      %315 = vmatpush1.bf16.xpose.msra.mxu0 %v312
      %316 = vmatprep.subr.bf16.mxu0 0
      %317 = vmatpush1.bf16.xpose.msra.mxu0 0
      %318 = vmatprep.subr.bf16.mxu0 0
      %319 = vmatpush1.bf16.xpose.msra.mxu0 0
      %320 = vmatprep.subr.bf16.mxu0 0
      %321 = vmatpush1.bf16.xpose.msra.mxu0 0
      %322 = vmatprep.subr.bf16.mxu0 0
      %323 = vmatpush1.bf16.xpose.msra.mxu0 0
      %324 = vmatprep.subr.bf16.mxu0 0
      %325 = vmatpush1.bf16.xpose.msra.mxu0 0
      %326 = vmatprep.subr.bf16.mxu0 0
      %327 = vmatpush1.bf16.xpose.msra.mxu0 0
      %328 = vmatprep.subr.bf16.mxu0 0
      %329 = vmatpush1.bf16.xpose.msra.mxu0 0
      %330 = vmatprep.subr.bf16.mxu0 0
      %331 = vmatpush1.bf16.xpose.msra.mxu0 0
      %332 = vmatprep.subr.bf16.mxu0 0
      %333 = vmatpush1.bf16.xpose.msra.mxu0 0
      %334 = vmatprep.subr.bf16.mxu0 0
      %335 = vmatpush1.bf16.xpose.msra.mxu0 0
      %336 = vmatprep.subr.bf16.mxu0 0
      %337 = vmatpush1.bf16.xpose.msra.mxu0 0
      %338 = vmatprep.subr.bf16.mxu0 0
      %339 = vmatpush1.bf16.xpose.msra.mxu0 0
      %340 = vmatprep.subr.bf16.mxu0 0
      %341 = vmatpush1.bf16.xpose.msra.mxu0 0
      %342 = vmatprep.subr.bf16.mxu0 0
      %343 = vmatpush1.bf16.xpose.msra.mxu0 0
      %344 = vmatprep.subr.bf16.mxu0 0
      %345 = vmatpush1.bf16.xpose.msra.mxu0 0
      %346 = vmatprep.mubr.bf16.mxu0 0
      %347 = vmatmul.mubr.bf16.gmra.mrb[0].mxu0 %v309
      %v348 = vpop.f32.mrb[0].mxu0
      %v349 = vadd.f32 0.0, %v348
      %v350 = vpop.f32.mrb[0].mxu0
      %v351 = vpop.f32.mrb[0].mxu0
      %v352 = vpop.f32.mrb[0].mxu0
      %353 = vdwg.mxu0
      %v355 = vsel %vm215, %v206, 0
      %v358 = vsel %vm215, %v210, 0
      %360 = vmatprep.subr.bf16.mxu0 0
      %361 = vmatpush1.bf16.xpose.msra.mxu0 %v358
      %362 = vmatprep.subr.bf16.mxu0 0
      %363 = vmatpush1.bf16.xpose.msra.mxu0 0
      %364 = vmatprep.subr.bf16.mxu0 0
      %365 = vmatpush1.bf16.xpose.msra.mxu0 0
      %366 = vmatprep.subr.bf16.mxu0 0
      %367 = vmatpush1.bf16.xpose.msra.mxu0 0
      %368 = vmatprep.subr.bf16.mxu0 0
      %369 = vmatpush1.bf16.xpose.msra.mxu0 0
      %370 = vmatprep.subr.bf16.mxu0 0
      %371 = vmatpush1.bf16.xpose.msra.mxu0 0
      %372 = vmatprep.subr.bf16.mxu0 0
      %373 = vmatpush1.bf16.xpose.msra.mxu0 0
      %374 = vmatprep.subr.bf16.mxu0 0
      %375 = vmatpush1.bf16.xpose.msra.mxu0 0
      %376 = vmatprep.subr.bf16.mxu0 0
      %377 = vmatpush1.bf16.xpose.msra.mxu0 0
      %378 = vmatprep.subr.bf16.mxu0 0
      %379 = vmatpush1.bf16.xpose.msra.mxu0 0
      %380 = vmatprep.subr.bf16.mxu0 0
      %381 = vmatpush1.bf16.xpose.msra.mxu0 0
      %382 = vmatprep.subr.bf16.mxu0 0
      %383 = vmatpush1.bf16.xpose.msra.mxu0 0
      %384 = vmatprep.subr.bf16.mxu0 0
      %385 = vmatpush1.bf16.xpose.msra.mxu0 0
      %386 = vmatprep.subr.bf16.mxu0 0
      %387 = vmatpush1.bf16.xpose.msra.mxu0 0
      %388 = vmatprep.subr.bf16.mxu0 0
      %389 = vmatpush1.bf16.xpose.msra.mxu0 0
      %390 = vmatprep.subr.bf16.mxu0 0
      %391 = vmatpush1.bf16.xpose.msra.mxu0 0
      %392 = vmatprep.mubr.bf16.mxu0 0
      %393 = vmatmul.mubr.bf16.gmra.mrb[0].mxu0 %v355
      %v394 = vpop.f32.mrb[0].mxu0
      %v395 = vadd.f32 0.0, %v394
      %v396 = vpop.f32.mrb[0].mxu0
      %v397 = vpop.f32.mrb[0].mxu0
      %v398 = vpop.f32.mrb[0].mxu0
      %399 = vdwg.mxu0
      %v400 = vmul.f32 %v257, 0.35355338
      %v401 = vmul.f32 %v303, 0.35355338
      %v402 = vmul.f32 %v349, 0.35355338
      %v403 = vmul.f32 %v395, 0.35355338
      %vm404 = vcmask 9216
      %v405 = vsel %vm404, %v400, -inf
      %406 = vmax.xlane.f32.xlu0 %v405
      %v407 = vpop.xlane.xlu0 %406
      %v408 = vsel %vm404, %v401, -inf
      %409 = vmax.xlane.f32.xlu0 %v408
      %v410 = vpop.xlane.xlu0 %409
      %v411 = vsel %vm404, %v402, -inf
      %412 = vmax.xlane.f32.xlu0 %v411
      %v413 = vpop.xlane.xlu0 %412
      %v414 = vsel %vm404, %v403, -inf
      %415 = vmax.xlane.f32.xlu0 %v414
      %v416 = vpop.xlane.xlu0 %415
      %v417 = vsub.f32 %v400, %v407
      %v418 = vsub.f32 %v401, %v410
      %v419 = vsub.f32 %v402, %v413
      %v420 = vsub.f32 %v403, %v416
      %v421 = vmul.f32 %v417, 1.442695
      %v422 = vpow.pop %v421
      %v423 = vmul.f32 %v418, 1.442695
      %v424 = vpow.pop %v423
      %v425 = vmul.f32 %v419, 1.442695
      %v426 = vpow.pop %v425
      %v427 = vmul.f32 %v420, 1.442695
      %v428 = vpow.pop %v427
      %v429 = vsel %vm404, %v422, 0.0
      %430 = vadd.xlane.f32.xlu0 %v429
      %v431 = vpop.xlane.xlu0 %430
      %v432 = vsel %vm404, %v424, 0.0
      %433 = vadd.xlane.f32.xlu0 %v432
      %v434 = vpop.xlane.xlu0 %433
      %v435 = vsel %vm404, %v426, 0.0
      %436 = vadd.xlane.f32.xlu0 %v435
      %v437 = vpop.xlane.xlu0 %436
      %v438 = vsel %vm404, %v428, 0.0
      %439 = vadd.xlane.f32.xlu0 %v438
      %v440 = vpop.xlane.xlu0 %439
      %v441 = vrcp.pop %v431
      %v442 = vrcp.pop %v434
      %v443 = vrcp.pop %v437
      %v444 = vrcp.pop %v440
      %v445 = vmul.f32 %v422, %v441
      %v446 = vmul.f32 %v424, %v442
      %v447 = vmul.f32 %v426, %v443
      %v448 = vmul.f32 %v428, %v444
      %v449 = vpack.c.bf16 %v445, %v445
      %v450 = vpack.c.bf16 %v446, %v446
      %v451 = vpack.c.bf16 %v447, %v447
      %v452 = vpack.c.bf16 %v448, %v448
      %vm453 = vcmask 15360
      %v455 = vsel %vm453, %v449, 0
      %vm457 = vcmask 1040384
      %v459 = vsel %vm457, %v211, 0
      %461 = vmatprep.subr.bf16.mxu0 0
      %462 = vmatpush1.bf16.msra.mxu0 %v459
      %463 = vmatprep.subr.bf16.mxu0 0
      %464 = vmatpush1.bf16.msra.mxu0 0
      %465 = vmatprep.subr.bf16.mxu0 0
      %466 = vmatpush1.bf16.msra.mxu0 0
      %467 = vmatprep.subr.bf16.mxu0 0
      %468 = vmatpush1.bf16.msra.mxu0 0
      %469 = vmatprep.subr.bf16.mxu0 0
      %470 = vmatpush1.bf16.msra.mxu0 0
      %471 = vmatprep.subr.bf16.mxu0 0
      %472 = vmatpush1.bf16.msra.mxu0 0
      %473 = vmatprep.subr.bf16.mxu0 0
      %474 = vmatpush1.bf16.msra.mxu0 0
      %475 = vmatprep.subr.bf16.mxu0 0
      %476 = vmatpush1.bf16.msra.mxu0 0
      %477 = vmatprep.subr.bf16.mxu0 0
      %478 = vmatpush1.bf16.msra.mxu0 0
      %479 = vmatprep.subr.bf16.mxu0 0
      %480 = vmatpush1.bf16.msra.mxu0 0
      %481 = vmatprep.subr.bf16.mxu0 0
      %482 = vmatpush1.bf16.msra.mxu0 0
      %483 = vmatprep.subr.bf16.mxu0 0
      %484 = vmatpush1.bf16.msra.mxu0 0
      %485 = vmatprep.subr.bf16.mxu0 0
      %486 = vmatpush1.bf16.msra.mxu0 0
      %487 = vmatprep.subr.bf16.mxu0 0
      %488 = vmatpush1.bf16.msra.mxu0 0
      %489 = vmatprep.subr.bf16.mxu0 0
      %490 = vmatpush1.bf16.msra.mxu0 0
      %491 = vmatprep.subr.bf16.mxu0 0
      %492 = vmatpush1.bf16.msra.mxu0 0
      %493 = vmatprep.mubr.bf16.mxu0 0
      %494 = vmatmul.mubr.bf16.gmra.mrb[0].mxu0 %v455
      %v495 = vpop.f32.mrb[0].mxu0
      %v496 = vadd.f32 0.0, %v495
      %v497 = vpop.f32.mrb[0].mxu0
      %v498 = vpop.f32.mrb[0].mxu0
      %v499 = vpop.f32.mrb[0].mxu0
      %500 = vdwg.mxu0
      %v502 = vsel %vm453, %v450, 0
      %v505 = vsel %vm457, %v212, 0
      %507 = vmatprep.subr.bf16.mxu0 0
      %508 = vmatpush1.bf16.msra.mxu0 %v505
      %509 = vmatprep.subr.bf16.mxu0 0
      %510 = vmatpush1.bf16.msra.mxu0 0
      %511 = vmatprep.subr.bf16.mxu0 0
      %512 = vmatpush1.bf16.msra.mxu0 0
      %513 = vmatprep.subr.bf16.mxu0 0
      %514 = vmatpush1.bf16.msra.mxu0 0
      %515 = vmatprep.subr.bf16.mxu0 0
      %516 = vmatpush1.bf16.msra.mxu0 0
      %517 = vmatprep.subr.bf16.mxu0 0
      %518 = vmatpush1.bf16.msra.mxu0 0
      %519 = vmatprep.subr.bf16.mxu0 0
      %520 = vmatpush1.bf16.msra.mxu0 0
      %521 = vmatprep.subr.bf16.mxu0 0
      %522 = vmatpush1.bf16.msra.mxu0 0
      %523 = vmatprep.subr.bf16.mxu0 0
      %524 = vmatpush1.bf16.msra.mxu0 0
      %525 = vmatprep.subr.bf16.mxu0 0
      %526 = vmatpush1.bf16.msra.mxu0 0
      %527 = vmatprep.subr.bf16.mxu0 0
      %528 = vmatpush1.bf16.msra.mxu0 0
      %529 = vmatprep.subr.bf16.mxu0 0
      %530 = vmatpush1.bf16.msra.mxu0 0
      %531 = vmatprep.subr.bf16.mxu0 0
      %532 = vmatpush1.bf16.msra.mxu0 0
      %533 = vmatprep.subr.bf16.mxu0 0
      %534 = vmatpush1.bf16.msra.mxu0 0
      %535 = vmatprep.subr.bf16.mxu0 0
      %536 = vmatpush1.bf16.msra.mxu0 0
      %537 = vmatprep.subr.bf16.mxu0 0
      %538 = vmatpush1.bf16.msra.mxu0 0
      %539 = vmatprep.mubr.bf16.mxu0 0
      %540 = vmatmul.mubr.bf16.gmra.mrb[0].mxu0 %v502
      %v541 = vpop.f32.mrb[0].mxu0
      %v542 = vadd.f32 0.0, %v541
      %v543 = vpop.f32.mrb[0].mxu0
      %v544 = vpop.f32.mrb[0].mxu0
      %v545 = vpop.f32.mrb[0].mxu0
      %546 = vdwg.mxu0
      %v548 = vsel %vm453, %v451, 0
      %v551 = vsel %vm457, %v213, 0
      %553 = vmatprep.subr.bf16.mxu0 0
      %554 = vmatpush1.bf16.msra.mxu0 %v551
      %555 = vmatprep.subr.bf16.mxu0 0
      %556 = vmatpush1.bf16.msra.mxu0 0
      %557 = vmatprep.subr.bf16.mxu0 0
      %558 = vmatpush1.bf16.msra.mxu0 0
      %559 = vmatprep.subr.bf16.mxu0 0
      %560 = vmatpush1.bf16.msra.mxu0 0
      %561 = vmatprep.subr.bf16.mxu0 0
      %562 = vmatpush1.bf16.msra.mxu0 0
      %563 = vmatprep.subr.bf16.mxu0 0
      %564 = vmatpush1.bf16.msra.mxu0 0
      %565 = vmatprep.subr.bf16.mxu0 0
      %566 = vmatpush1.bf16.msra.mxu0 0
      %567 = vmatprep.subr.bf16.mxu0 0
      %568 = vmatpush1.bf16.msra.mxu0 0
      %569 = vmatprep.subr.bf16.mxu0 0
      %570 = vmatpush1.bf16.msra.mxu0 0
      %571 = vmatprep.subr.bf16.mxu0 0
      %572 = vmatpush1.bf16.msra.mxu0 0
      %573 = vmatprep.subr.bf16.mxu0 0
      %574 = vmatpush1.bf16.msra.mxu0 0
      %575 = vmatprep.subr.bf16.mxu0 0
      %576 = vmatpush1.bf16.msra.mxu0 0
      %577 = vmatprep.subr.bf16.mxu0 0
      %578 = vmatpush1.bf16.msra.mxu0 0
      %579 = vmatprep.subr.bf16.mxu0 0
      %580 = vmatpush1.bf16.msra.mxu0 0
      %581 = vmatprep.subr.bf16.mxu0 0
      %582 = vmatpush1.bf16.msra.mxu0 0
      %583 = vmatprep.subr.bf16.mxu0 0
      %584 = vmatpush1.bf16.msra.mxu0 0
      %585 = vmatprep.mubr.bf16.mxu0 0
      %586 = vmatmul.mubr.bf16.gmra.mrb[0].mxu0 %v548
      %v587 = vpop.f32.mrb[0].mxu0
      %v588 = vadd.f32 0.0, %v587
      %v589 = vpop.f32.mrb[0].mxu0
      %v590 = vpop.f32.mrb[0].mxu0
      %v591 = vpop.f32.mrb[0].mxu0
      %592 = vdwg.mxu0
      %v594 = vsel %vm453, %v452, 0
      %v597 = vsel %vm457, %v214, 0
      %599 = vmatprep.subr.bf16.mxu0 0
      %600 = vmatpush1.bf16.msra.mxu0 %v597
      %601 = vmatprep.subr.bf16.mxu0 0
      %602 = vmatpush1.bf16.msra.mxu0 0
      %603 = vmatprep.subr.bf16.mxu0 0
      %604 = vmatpush1.bf16.msra.mxu0 0
      %605 = vmatprep.subr.bf16.mxu0 0
      %606 = vmatpush1.bf16.msra.mxu0 0
      %607 = vmatprep.subr.bf16.mxu0 0
      %608 = vmatpush1.bf16.msra.mxu0 0
      %609 = vmatprep.subr.bf16.mxu0 0
      %610 = vmatpush1.bf16.msra.mxu0 0
      %611 = vmatprep.subr.bf16.mxu0 0
      %612 = vmatpush1.bf16.msra.mxu0 0
      %613 = vmatprep.subr.bf16.mxu0 0
      %614 = vmatpush1.bf16.msra.mxu0 0
      %615 = vmatprep.subr.bf16.mxu0 0
      %616 = vmatpush1.bf16.msra.mxu0 0
      %617 = vmatprep.subr.bf16.mxu0 0
      %618 = vmatpush1.bf16.msra.mxu0 0
      %619 = vmatprep.subr.bf16.mxu0 0
      %620 = vmatpush1.bf16.msra.mxu0 0
      %621 = vmatprep.subr.bf16.mxu0 0
      %622 = vmatpush1.bf16.msra.mxu0 0
      %623 = vmatprep.subr.bf16.mxu0 0
      %624 = vmatpush1.bf16.msra.mxu0 0
      %625 = vmatprep.subr.bf16.mxu0 0
      %626 = vmatpush1.bf16.msra.mxu0 0
      %627 = vmatprep.subr.bf16.mxu0 0
      %628 = vmatpush1.bf16.msra.mxu0 0
      %629 = vmatprep.subr.bf16.mxu0 0
      %630 = vmatpush1.bf16.msra.mxu0 0
      %631 = vmatprep.mubr.bf16.mxu0 0
      %632 = vmatmul.mubr.bf16.gmra.mrb[0].mxu0 %v594
      %v633 = vpop.f32.mrb[0].mxu0
      %v634 = vadd.f32 0.0, %v633
      %v635 = vpop.f32.mrb[0].mxu0
      %v636 = vpop.f32.mrb[0].mxu0
      %v637 = vpop.f32.mrb[0].mxu0
      %638 = vdwg.mxu0
      %vm639 = vcmask 58368
      %640 = vst.msk [vmem:[%s201] sm:$0x3] %vm639, %v496
      %641 = vst.msk [vmem:[%s201 + $0x2] sm:$0x3] %vm639, %v542
      %642 = vst.msk [vmem:[%s201 + $0x4] sm:$0x3] %vm639, %v588
      %643 = vst.msk [vmem:[%s201 + $0x6] sm:$0x3] %vm639, %v634
      %p644 = scmp.lt.s32.totalorder %s14, 7
      %s645 = scalar_select %p644, %s14, 7
      %s646 = smul.addr %s645, 4
      %s647 = smul.addr %s646, 2
      %s648 = scalar_lea.vmem %s3, %s647
      // Predicated region
      $region33: #{advanced_neural_core_fwd.42} parent=31 // pred_check
        %p649 = pneg %p110
      $region34: #{advanced_neural_core_fwd.42} parent=31 // pred_check_branch
        %651 = sbr.rel (%p649) target = $region36
      $region35: #{advanced_neural_core_fwd.42} parent=31 // pred_region
        _
      $region36: #{advanced_neural_core_fwd.42} parent=31 // pred_fallthru
        _
    $region32: #{advanced_neural_core_fwd.42} parent=5 // pred_fallthru
      _
    %p652 = scmp.le.s32.totalorder 2, %s9
    // Predicated region
    $region37: #{advanced_neural_core_fwd.42} parent=5 // pred_check
      %p653 = pneg %p652
    $region38: #{advanced_neural_core_fwd.42} parent=5 // pred_check_branch
      %655 = sbr.rel (%p653) target = $region40
    $region39: #{advanced_neural_core_fwd.42} parent=5 // pred_region
      %s656 = ssub.s32 %s9, 2
      // Predicated region
      $region41: #{advanced_neural_core_fwd.42} parent=39 // pred_check
        %p657 = pneg %p116
      $region42: #{advanced_neural_core_fwd.42} parent=39 // pred_check_branch
        %659 = sbr.rel (%p657) target = $region44
      $region43: #{advanced_neural_core_fwd.42} parent=39 // pred_region
        %p660 = scmp.lt.s32.totalorder %s15, 7
        %s661 = scalar_select %p660, %s15, 7
        %s662 = smul.addr %s661, 4
        %s663 = smul.addr %s662, 2
        %s664 = scalar_lea.vmem %s3, %s663
      $region44: #{advanced_neural_core_fwd.42} parent=39 // pred_fallthru
        _
    $region40: #{advanced_neural_core_fwd.42} parent=5 // pred_fallthru
      _
  $region6: #{advanced_neural_core_fwd.42} parent=0 // loop_footer
    %s13 = sadd.s32 1, %s9
  $region7: #{advanced_neural_core_fwd.42} parent=0 // loop_footer_branch
    %8 = sbr.rel target = $region3
  $region8: #{advanced_neural_core_fwd.42} parent=0 // loop_exit
    _

// kernel: advanced_neural_core_fwd.44
$region0: #{advanced_neural_core_fwd.44}
  #allocation0 [shape = 'u32[]', space=smem, size = 0x4, offset = 0x4, fixed_abs, tag = 'smem constant byte address 0x4 - core index']
  #allocation1 [shape = 'u32[144,128]{1,0:T(1,128)}', space=vmem, size = 0x12000, scoped, tag = 'internal scratch']
  %s0 = inlined_call_operand.vmem [shape: f32[16,32], index: 0, kind: input, shape index: {}]
  %s1 = inlined_call_operand.vmem [shape: f32[16,32], index: 1, kind: input, shape index: {}]
  %s2 = inlined_call_operand.vmem [shape: f32[1,32], index: 2, kind: input, shape index: {}]
  %s3 = inlined_call_operand.vmem [shape: f32[1,32], index: 3, kind: input, shape index: {}]
  %s4 = inlined_call_operand.vmem [shape: f32[16,32], index: 4, kind: output, shape index: {}]
  %s5 = sld [smem:[#allocation0]]
  $region26: #{advanced_neural_core_fwd.44} parent=0
    _
  %s7 = ssub.s32 1, %s5
  %s8 = scalar_select 0, %s7, %s5
  // Predicated region
  $region2: #{advanced_neural_core_fwd.44} parent=0 // pred_check
    _
  $region3: #{advanced_neural_core_fwd.44} parent=0 // pred_check_branch
    %10 = sbr.rel (0) target = $region5
  $region4: #{advanced_neural_core_fwd.44} parent=0 // pred_region
    _
  $region5: #{advanced_neural_core_fwd.44} parent=0 // pred_fallthru
    _
  // Predicated region
  $region6: #{advanced_neural_core_fwd.44} parent=0 // pred_check
    _
  $region7: #{advanced_neural_core_fwd.44} parent=0 // pred_check_branch
    %12 = sbr.rel (0) target = $region9
  $region8: #{advanced_neural_core_fwd.44} parent=0 // pred_region
    _
  $region9: #{advanced_neural_core_fwd.44} parent=0 // pred_fallthru
    _
  // Predicated region
  $region10: #{advanced_neural_core_fwd.44} parent=0 // pred_check
    _
  $region11: #{advanced_neural_core_fwd.44} parent=0 // pred_check_branch
    %14 = sbr.rel (0) target = $region13
  $region12: #{advanced_neural_core_fwd.44} parent=0 // pred_region
    _
  $region13: #{advanced_neural_core_fwd.44} parent=0 // pred_fallthru
    _
  // Predicated region
  $region14: #{advanced_neural_core_fwd.44} parent=0 // pred_check
    _
  $region15: #{advanced_neural_core_fwd.44} parent=0 // pred_check_branch
    %16 = sbr.rel (0) target = $region17
  $region16: #{advanced_neural_core_fwd.44} parent=0 // pred_region
    _
  $region17: #{advanced_neural_core_fwd.44} parent=0 // pred_fallthru
    _
  %v17 = vld [vmem:[%s0] sm:$0xff]
  %v18 = vld [vmem:[%s0 + $0x8] sm:$0xff]
  %v19 = vld [vmem:[%s1] sm:$0xff]
  %v20 = vld [vmem:[%s1 + $0x8] sm:$0xff]
  %v21 = vadd.f32 %v17, %v19
  %v22 = vadd.f32 %v18, %v20
  %vm23 = vcmask 261120
  %v24 = vsel %vm23, %v21, 0.0
  %25 = vadd.xlane.f32.xlu0 %v24
  %v26 = vpop.xlane.xlu0 %25
  %v27 = vsel %vm23, %v22, 0.0
  %28 = vadd.xlane.f32.xlu0 %v27
  %v29 = vpop.xlane.xlu0 %28
  %v30 = vrcp.pop 32.0
  %v31 = vmul.f32 %v26, %v30
  %v32 = vmul.f32 %v29, %v30
  %v33 = vsub.f32 %v21, %v31
  %v34 = vsub.f32 %v22, %v32
  %v35 = vmul.f32 %v33, %v33
  %v36 = vmul.f32 %v34, %v34
  %v37 = vsel %vm23, %v35, 0.0
  %38 = vadd.xlane.f32.xlu0 %v37
  %v39 = vpop.xlane.xlu0 %38
  %v40 = vsel %vm23, %v36, 0.0
  %41 = vadd.xlane.f32.xlu0 %v40
  %v42 = vpop.xlane.xlu0 %41
  %v43 = vmul.f32 %v39, %v30
  %v44 = vmul.f32 %v42, %v30
  %v45 = vadd.f32 %v43, 1e-05
  %v46 = vadd.f32 %v44, 1e-05
  %v47 = vrsqrt.pop %v45
  %v48 = vrsqrt.pop %v46
  %v49 = vmul.f32 %v33, %v47
  %v50 = vmul.f32 %v34, %v48
  %v51 = vld [vmem:[%s2] sm:$0x1]
  %v53 = vlaneseq
  %v54 = vshrl.u32 %v53, 7
  %v55 = vsub.s32 0, %v54
  %v56 = vrot.slane %v51, %v55
  %v58 = vmul.f32 %v49, %v56
  %v59 = vmul.f32 %v50, %v56
  %v60 = vld [vmem:[%s3] sm:$0x1]
  %v62 = vlaneseq
  %v63 = vshrl.u32 %v62, 7
  %v64 = vsub.s32 0, %v63
  %v65 = vrot.slane %v60, %v64
  %v67 = vadd.f32 %v58, %v65
  %v68 = vadd.f32 %v59, %v65
  %69 = vst.msk [vmem:[%s4] sm:$0xff] %vm23, %v67
  %70 = vst.msk [vmem:[%s4 + $0x8] sm:$0xff] %vm23, %v68
  // Predicated region
  $region18: #{advanced_neural_core_fwd.44} parent=0 // pred_check
    _
  $region19: #{advanced_neural_core_fwd.44} parent=0 // pred_check_branch
    %72 = sbr.rel (0) target = $region21
  $region20: #{advanced_neural_core_fwd.44} parent=0 // pred_region
    _
  $region21: #{advanced_neural_core_fwd.44} parent=0 // pred_fallthru
    _
  // Predicated region
  $region22: #{advanced_neural_core_fwd.44} parent=0 // pred_check
    _
  $region23: #{advanced_neural_core_fwd.44} parent=0 // pred_check_branch
    %74 = sbr.rel (0) target = $region25
  $region24: #{advanced_neural_core_fwd.44} parent=0 // pred_region
    _
  $region25: #{advanced_neural_core_fwd.44} parent=0 // pred_fallthru
    _

// kernel: advanced_neural_core_fwd.60
$region0: #{advanced_neural_core_fwd.60}
  #allocation0 [shape = 'u32[]', space=smem, size = 0x4, offset = 0x4, fixed_abs, tag = 'smem constant byte address 0x4 - core index']
  #allocation1 [shape = 'u32[144,128]{1,0:T(1,128)}', space=vmem, size = 0x12000, scoped, tag = 'internal scratch']
  %s0 = inlined_call_operand.vmem [shape: bf16[2,4,8,8], index: 0, kind: input, shape index: {}]
  %s1 = inlined_call_operand.vmem [shape: bf16[2,4,8,8], index: 1, kind: input, shape index: {}]
  %s2 = inlined_call_operand.vmem [shape: bf16[2,4,8,8], index: 2, kind: input, shape index: {}]
  %s3 = inlined_call_operand.vmem [shape: f32[2,4,8,8], index: 3, kind: output, shape index: {}]
  %s4 = sld [smem:[#allocation0]]
  $region45: #{advanced_neural_core_fwd.60} parent=0
    _
  %s6 = ssub.s32 1, %s4
  %s7 = scalar_select 0, %s6, %s4
  loop: start=0, step=1, limit=4
  $region2: #{advanced_neural_core_fwd.60} parent=0 // loop_pre_header
    _
  $region3: #{advanced_neural_core_fwd.60} parent=0 // loop_header
    %s9 = sphi 0, %s13
    %p10 = scmp.ge.s32.totalorder %s9, 4
    %s19 = sphi 0, %s21
    %s22 = sphi 0, %s19
    %s23 = sphi 0, %s22
    %s39 = sphi 0, %s23
    %s45 = sphi 0, %s47
    %s48 = sphi 0, %s45
    %s49 = sphi 0, %s48
    %s65 = sphi 0, %s49
    %s71 = sphi 0, %s73
    %s74 = sphi 0, %s71
    %s75 = sphi 0, %s74
    %s91 = sphi 0, %s75
    %s97 = sphi 0, %s99
    %s100 = sphi 0, %s97
    %s101 = sphi 0, %s100
    %s117 = sphi 0, %s101
  $region4: #{advanced_neural_core_fwd.60} parent=0 // loop_header_branch
    %12 = sbr.rel (%p10) target = $region8
  $region5: #{advanced_neural_core_fwd.60} parent=0 // loop_body
    %s14 = ssub.s32 %s9, 1
    %s15 = ssub.s32 %s9, 2
    %s16 = sadd.s32 %s9, 1
    %s17 = ssub.s32 %s9, %s16
    %p18 = scmp.eq.s32.totalorder %s17, 0
    %s20 = sadd.s32 %s19, 1
    %s21 = scalar_select %p18, %s19, %s20
    %p24 = pneg %p18
    %p25 = scmp.eq.s32.totalorder %s9, 1
    %p26 = por %p24, %p25
    %p27 = scmp.ne.s32.totalorder %s19, %s22
    %p28 = scmp.eq.s32.totalorder %s9, 0
    %p29 = por %p27, %p28
    %p30 = scmp.ne.s32.totalorder %s19, %s22
    %p31 = scmp.eq.s32.totalorder %s14, 1
    %p32 = por %p30, %p31
    %p33 = scmp.ne.s32.totalorder %s22, %s23
    %p34 = scmp.eq.s32.totalorder %s14, 0
    %p35 = por %p33, %p34
    %p36 = scmp.ne.s32.totalorder %s22, %s23
    %p37 = scmp.eq.s32.totalorder %s15, 1
    %p38 = por %p36, %p37
    %p40 = scmp.ne.s32.totalorder %s23, %s39
    %p41 = scmp.eq.s32.totalorder %s15, 0
    %p42 = por %p40, %p41
    %s43 = ssub.s32 %s9, %s16
    %p44 = scmp.eq.s32.totalorder %s43, 0
    %s46 = sadd.s32 %s45, 1
    %s47 = scalar_select %p44, %s45, %s46
    %p50 = pneg %p44
    %p51 = scmp.eq.s32.totalorder %s9, 1
    %p52 = por %p50, %p51
    %p53 = scmp.ne.s32.totalorder %s45, %s48
    %p54 = scmp.eq.s32.totalorder %s9, 0
    %p55 = por %p53, %p54
    %p56 = scmp.ne.s32.totalorder %s45, %s48
    %p57 = scmp.eq.s32.totalorder %s14, 1
    %p58 = por %p56, %p57
    %p59 = scmp.ne.s32.totalorder %s48, %s49
    %p60 = scmp.eq.s32.totalorder %s14, 0
    %p61 = por %p59, %p60
    %p62 = scmp.ne.s32.totalorder %s48, %s49
    %p63 = scmp.eq.s32.totalorder %s15, 1
    %p64 = por %p62, %p63
    %p66 = scmp.ne.s32.totalorder %s49, %s65
    %p67 = scmp.eq.s32.totalorder %s15, 0
    %p68 = por %p66, %p67
    %s69 = ssub.s32 %s9, %s16
    %p70 = scmp.eq.s32.totalorder %s69, 0
    %s72 = sadd.s32 %s71, 1
    %s73 = scalar_select %p70, %s71, %s72
    %p76 = pneg %p70
    %p77 = scmp.eq.s32.totalorder %s9, 1
    %p78 = por %p76, %p77
    %p79 = scmp.ne.s32.totalorder %s71, %s74
    %p80 = scmp.eq.s32.totalorder %s9, 0
    %p81 = por %p79, %p80
    %p82 = scmp.ne.s32.totalorder %s71, %s74
    %p83 = scmp.eq.s32.totalorder %s14, 1
    %p84 = por %p82, %p83
    %p85 = scmp.ne.s32.totalorder %s74, %s75
    %p86 = scmp.eq.s32.totalorder %s14, 0
    %p87 = por %p85, %p86
    %p88 = scmp.ne.s32.totalorder %s74, %s75
    %p89 = scmp.eq.s32.totalorder %s15, 1
    %p90 = por %p88, %p89
    %p92 = scmp.ne.s32.totalorder %s75, %s91
    %p93 = scmp.eq.s32.totalorder %s15, 0
    %p94 = por %p92, %p93
    %s95 = ssub.s32 %s9, %s16
    %p96 = scmp.eq.s32.totalorder %s95, 0
    %s98 = sadd.s32 %s97, 1
    %s99 = scalar_select %p96, %s97, %s98
    %p102 = pneg %p96
    %p103 = scmp.eq.s32.totalorder %s9, 1
    %p104 = por %p102, %p103
    %p105 = scmp.ne.s32.totalorder %s97, %s100
    %p106 = scmp.eq.s32.totalorder %s9, 0
    %p107 = por %p105, %p106
    %p108 = scmp.ne.s32.totalorder %s97, %s100
    %p109 = scmp.eq.s32.totalorder %s14, 1
    %p110 = por %p108, %p109
    %p111 = scmp.ne.s32.totalorder %s100, %s101
    %p112 = scmp.eq.s32.totalorder %s14, 0
    %p113 = por %p111, %p112
    %p114 = scmp.ne.s32.totalorder %s100, %s101
    %p115 = scmp.eq.s32.totalorder %s15, 1
    %p116 = por %p114, %p115
    %p118 = scmp.ne.s32.totalorder %s101, %s117
    %p119 = scmp.eq.s32.totalorder %s15, 0
    %p120 = por %p118, %p119
    %p121 = scmp.le.s32.totalorder 1, %s9
    %p122 = scmp.lt.s32.totalorder %s9, 3
    %p123 = pnand %p121, %p122
    %p124 = pneg %p123
    // Predicated region
    $region9: #{advanced_neural_core_fwd.60} parent=5 // pred_check
      _
    $region10: #{advanced_neural_core_fwd.60} parent=5 // pred_check_branch
      %126 = sbr.rel (%p123) target = $region12
    $region11: #{advanced_neural_core_fwd.60} parent=5 // pred_region
      %s127 = ssub.s32 %s9, 1
    $region12: #{advanced_neural_core_fwd.60} parent=5 // pred_fallthru
      _
    %p128 = scmp.lt.s32.totalorder %s9, 2
    // Predicated region
    $region13: #{advanced_neural_core_fwd.60} parent=5 // pred_check
      %p129 = pneg %p128
    $region14: #{advanced_neural_core_fwd.60} parent=5 // pred_check_branch
      %131 = sbr.rel (%p129) target = $region16
    $region15: #{advanced_neural_core_fwd.60} parent=5 // pred_region
      // Predicated region
      $region17: #{advanced_neural_core_fwd.60} parent=15 // pred_check
        %p132 = pneg %p29
      $region18: #{advanced_neural_core_fwd.60} parent=15 // pred_check_branch
        %134 = sbr.rel (%p132) target = $region20
      $region19: #{advanced_neural_core_fwd.60} parent=15 // pred_region
        %p135 = scmp.lt.s32.totalorder %s9, 1
        %s136 = scalar_select %p135, %s9, 1
        %s137 = smul.addr %s136, 4
        %s138 = smul.addr %s137, 4
        %s139 = scalar_lea.vmem %s0, %s138
      $region20: #{advanced_neural_core_fwd.60} parent=15 // pred_fallthru
        _
      // Predicated region
      $region21: #{advanced_neural_core_fwd.60} parent=15 // pred_check
        %p140 = pneg %p55
      $region22: #{advanced_neural_core_fwd.60} parent=15 // pred_check_branch
        %142 = sbr.rel (%p140) target = $region24
      $region23: #{advanced_neural_core_fwd.60} parent=15 // pred_region
        %p143 = scmp.lt.s32.totalorder %s9, 1
        %s144 = scalar_select %p143, %s9, 1
        %s145 = smul.addr %s144, 4
        %s146 = smul.addr %s145, 4
        %s147 = scalar_lea.vmem %s1, %s146
      $region24: #{advanced_neural_core_fwd.60} parent=15 // pred_fallthru
        _
      // Predicated region
      $region25: #{advanced_neural_core_fwd.60} parent=15 // pred_check
        %p148 = pneg %p81
      $region26: #{advanced_neural_core_fwd.60} parent=15 // pred_check_branch
        %150 = sbr.rel (%p148) target = $region28
      $region27: #{advanced_neural_core_fwd.60} parent=15 // pred_region
        %p151 = scmp.lt.s32.totalorder %s9, 1
        %s152 = scalar_select %p151, %s9, 1
        %s153 = smul.addr %s152, 4
        %s154 = smul.addr %s153, 4
        %s155 = scalar_lea.vmem %s2, %s154
      $region28: #{advanced_neural_core_fwd.60} parent=15 // pred_fallthru
        _
    $region16: #{advanced_neural_core_fwd.60} parent=5 // pred_fallthru
      _
    %p156 = scmp.le.s32.totalorder 1, %s9
    %p157 = scmp.lt.s32.totalorder %s9, 3
    %p158 = pnand %p156, %p157
    %p159 = pneg %p158
    // Predicated region
    $region29: #{advanced_neural_core_fwd.60} parent=5 // pred_check
      _
    $region30: #{advanced_neural_core_fwd.60} parent=5 // pred_check_branch
      %161 = sbr.rel (%p158) target = $region32
    $region31: #{advanced_neural_core_fwd.60} parent=5 // pred_region
      %s162 = ssub.s32 %s9, 1
      %p163 = scmp.lt.s32.totalorder %s14, 1
      %s164 = scalar_select %p163, %s14, 1
      %s165 = smul.addr %s164, 4
      %s166 = smul.addr %s165, 4
      %s167 = scalar_lea.vmem %s0, %s166
      %p168 = pneg %p35
      %p169 = pneg %p32
      %p170 = scmp.lt.s32.totalorder %s14, 1
      %s171 = scalar_select %p170, %s14, 1
      %s172 = smul.addr %s171, 4
      %s173 = smul.addr %s172, 4
      %s174 = scalar_lea.vmem %s1, %s173
      %p175 = pneg %p61
      %p176 = pneg %p58
      %p177 = scmp.lt.s32.totalorder %s14, 1
      %s178 = scalar_select %p177, %s14, 1
      %s179 = smul.addr %s178, 4
      %s180 = smul.addr %s179, 4
      %s181 = scalar_lea.vmem %s2, %s180
      %p182 = pneg %p87
      %p183 = pneg %p84
      %p184 = pneg %p113
      %p185 = pneg %p110
      %p186 = scmp.lt.s32.totalorder %s14, 1
      %s187 = scalar_select %p186, %s14, 1
      %s188 = smul.addr %s187, 4
      %s189 = smul.addr %s188, 8
      %s190 = scalar_lea.vmem %s3, %s189
      %p191 = scmp.lt.s32.totalorder %s14, 1
      %s192 = scalar_select %p191, %s14, 1
      %s193 = smul.addr %s192, 4
      %s194 = smul.addr %s193, 4
      %s195 = scalar_lea.vmem %s0, %s194
      %p196 = scmp.lt.s32.totalorder %s14, 1
      %s197 = scalar_select %p196, %s14, 1
      %s198 = smul.addr %s197, 4
      %s199 = smul.addr %s198, 4
      %s200 = scalar_lea.vmem %s1, %s199
      %p201 = scmp.lt.s32.totalorder %s14, 1
      %s202 = scalar_select %p201, %s14, 1
      %s203 = smul.addr %s202, 4
      %s204 = smul.addr %s203, 4
      %s205 = scalar_lea.vmem %s2, %s204
      %p206 = scmp.lt.s32.totalorder %s14, 1
      %s207 = scalar_select %p206, %s14, 1
      %s208 = smul.addr %s207, 4
      %s209 = smul.addr %s208, 8
      %s210 = scalar_lea.vmem %s3, %s209
      %v212 = vld [vmem:[%s195] sm:$0xf]
      %v213 = vld [vmem:[%s195 + $0x4] sm:$0xf]
      %v214 = vld [vmem:[%s195 + $0x8] sm:$0xf]
      %v215 = vld [vmem:[%s195 + $0xc] sm:$0xf]
      %v216 = vld [vmem:[%s200] sm:$0xf]
      %v217 = vld [vmem:[%s200 + $0x4] sm:$0xf]
      %v218 = vld [vmem:[%s200 + $0x8] sm:$0xf]
      %v219 = vld [vmem:[%s200 + $0xc] sm:$0xf]
      %v220 = vld [vmem:[%s205] sm:$0xf]
      %v221 = vld [vmem:[%s205 + $0x4] sm:$0xf]
      %v222 = vld [vmem:[%s205 + $0x8] sm:$0xf]
      %v223 = vld [vmem:[%s205 + $0xc] sm:$0xf]
      %vm224 = vcmask 64512
      %v226 = vsel %vm224, %v212, 0
      %v229 = vsel %vm224, %v216, 0
      %231 = vmatprep.subr.bf16.mxu0 0
      %232 = vmatpush1.bf16.xpose.msra.mxu0 %v229
      %233 = vmatprep.subr.bf16.mxu0 0
      %234 = vmatpush1.bf16.xpose.msra.mxu0 0
      %235 = vmatprep.subr.bf16.mxu0 0
      %236 = vmatpush1.bf16.xpose.msra.mxu0 0
      %237 = vmatprep.subr.bf16.mxu0 0
      %238 = vmatpush1.bf16.xpose.msra.mxu0 0
      %239 = vmatprep.subr.bf16.mxu0 0
      %240 = vmatpush1.bf16.xpose.msra.mxu0 0
      %241 = vmatprep.subr.bf16.mxu0 0
      %242 = vmatpush1.bf16.xpose.msra.mxu0 0
      %243 = vmatprep.subr.bf16.mxu0 0
      %244 = vmatpush1.bf16.xpose.msra.mxu0 0
      %245 = vmatprep.subr.bf16.mxu0 0
      %246 = vmatpush1.bf16.xpose.msra.mxu0 0
      %247 = vmatprep.subr.bf16.mxu0 0
      %248 = vmatpush1.bf16.xpose.msra.mxu0 0
      %249 = vmatprep.subr.bf16.mxu0 0
      %250 = vmatpush1.bf16.xpose.msra.mxu0 0
      %251 = vmatprep.subr.bf16.mxu0 0
      %252 = vmatpush1.bf16.xpose.msra.mxu0 0
      %253 = vmatprep.subr.bf16.mxu0 0
      %254 = vmatpush1.bf16.xpose.msra.mxu0 0
      %255 = vmatprep.subr.bf16.mxu0 0
      %256 = vmatpush1.bf16.xpose.msra.mxu0 0
      %257 = vmatprep.subr.bf16.mxu0 0
      %258 = vmatpush1.bf16.xpose.msra.mxu0 0
      %259 = vmatprep.subr.bf16.mxu0 0
      %260 = vmatpush1.bf16.xpose.msra.mxu0 0
      %261 = vmatprep.subr.bf16.mxu0 0
      %262 = vmatpush1.bf16.xpose.msra.mxu0 0
      %263 = vmatprep.mubr.bf16.mxu0 0
      %264 = vmatmul.mubr.bf16.gmra.mrb[0].mxu0 %v226
      %v265 = vpop.f32.mrb[0].mxu0
      %v266 = vadd.f32 0.0, %v265
      %v267 = vpop.f32.mrb[0].mxu0
      %v268 = vpop.f32.mrb[0].mxu0
      %v269 = vpop.f32.mrb[0].mxu0
      %270 = vdwg.mxu0
      %v272 = vsel %vm224, %v213, 0
      %v275 = vsel %vm224, %v217, 0
      %277 = vmatprep.subr.bf16.mxu0 0
      %278 = vmatpush1.bf16.xpose.msra.mxu0 %v275
      %279 = vmatprep.subr.bf16.mxu0 0
      %280 = vmatpush1.bf16.xpose.msra.mxu0 0
      %281 = vmatprep.subr.bf16.mxu0 0
      %282 = vmatpush1.bf16.xpose.msra.mxu0 0
      %283 = vmatprep.subr.bf16.mxu0 0
      %284 = vmatpush1.bf16.xpose.msra.mxu0 0
      %285 = vmatprep.subr.bf16.mxu0 0
      %286 = vmatpush1.bf16.xpose.msra.mxu0 0
      %287 = vmatprep.subr.bf16.mxu0 0
      %288 = vmatpush1.bf16.xpose.msra.mxu0 0
      %289 = vmatprep.subr.bf16.mxu0 0
      %290 = vmatpush1.bf16.xpose.msra.mxu0 0
      %291 = vmatprep.subr.bf16.mxu0 0
      %292 = vmatpush1.bf16.xpose.msra.mxu0 0
      %293 = vmatprep.subr.bf16.mxu0 0
      %294 = vmatpush1.bf16.xpose.msra.mxu0 0
      %295 = vmatprep.subr.bf16.mxu0 0
      %296 = vmatpush1.bf16.xpose.msra.mxu0 0
      %297 = vmatprep.subr.bf16.mxu0 0
      %298 = vmatpush1.bf16.xpose.msra.mxu0 0
      %299 = vmatprep.subr.bf16.mxu0 0
      %300 = vmatpush1.bf16.xpose.msra.mxu0 0
      %301 = vmatprep.subr.bf16.mxu0 0
      %302 = vmatpush1.bf16.xpose.msra.mxu0 0
      %303 = vmatprep.subr.bf16.mxu0 0
      %304 = vmatpush1.bf16.xpose.msra.mxu0 0
      %305 = vmatprep.subr.bf16.mxu0 0
      %306 = vmatpush1.bf16.xpose.msra.mxu0 0
      %307 = vmatprep.subr.bf16.mxu0 0
      %308 = vmatpush1.bf16.xpose.msra.mxu0 0
      %309 = vmatprep.mubr.bf16.mxu0 0
      %310 = vmatmul.mubr.bf16.gmra.mrb[0].mxu0 %v272
      %v311 = vpop.f32.mrb[0].mxu0
      %v312 = vadd.f32 0.0, %v311
      %v313 = vpop.f32.mrb[0].mxu0
      %v314 = vpop.f32.mrb[0].mxu0
      %v315 = vpop.f32.mrb[0].mxu0
      %316 = vdwg.mxu0
      %v318 = vsel %vm224, %v214, 0
      %v321 = vsel %vm224, %v218, 0
      %323 = vmatprep.subr.bf16.mxu0 0
      %324 = vmatpush1.bf16.xpose.msra.mxu0 %v321
      %325 = vmatprep.subr.bf16.mxu0 0
      %326 = vmatpush1.bf16.xpose.msra.mxu0 0
      %327 = vmatprep.subr.bf16.mxu0 0
      %328 = vmatpush1.bf16.xpose.msra.mxu0 0
      %329 = vmatprep.subr.bf16.mxu0 0
      %330 = vmatpush1.bf16.xpose.msra.mxu0 0
      %331 = vmatprep.subr.bf16.mxu0 0
      %332 = vmatpush1.bf16.xpose.msra.mxu0 0
      %333 = vmatprep.subr.bf16.mxu0 0
      %334 = vmatpush1.bf16.xpose.msra.mxu0 0
      %335 = vmatprep.subr.bf16.mxu0 0
      %336 = vmatpush1.bf16.xpose.msra.mxu0 0
      %337 = vmatprep.subr.bf16.mxu0 0
      %338 = vmatpush1.bf16.xpose.msra.mxu0 0
      %339 = vmatprep.subr.bf16.mxu0 0
      %340 = vmatpush1.bf16.xpose.msra.mxu0 0
      %341 = vmatprep.subr.bf16.mxu0 0
      %342 = vmatpush1.bf16.xpose.msra.mxu0 0
      %343 = vmatprep.subr.bf16.mxu0 0
      %344 = vmatpush1.bf16.xpose.msra.mxu0 0
      %345 = vmatprep.subr.bf16.mxu0 0
      %346 = vmatpush1.bf16.xpose.msra.mxu0 0
      %347 = vmatprep.subr.bf16.mxu0 0
      %348 = vmatpush1.bf16.xpose.msra.mxu0 0
      %349 = vmatprep.subr.bf16.mxu0 0
      %350 = vmatpush1.bf16.xpose.msra.mxu0 0
      %351 = vmatprep.subr.bf16.mxu0 0
      %352 = vmatpush1.bf16.xpose.msra.mxu0 0
      %353 = vmatprep.subr.bf16.mxu0 0
      %354 = vmatpush1.bf16.xpose.msra.mxu0 0
      %355 = vmatprep.mubr.bf16.mxu0 0
      %356 = vmatmul.mubr.bf16.gmra.mrb[0].mxu0 %v318
      %v357 = vpop.f32.mrb[0].mxu0
      %v358 = vadd.f32 0.0, %v357
      %v359 = vpop.f32.mrb[0].mxu0
      %v360 = vpop.f32.mrb[0].mxu0
      %v361 = vpop.f32.mrb[0].mxu0
      %362 = vdwg.mxu0
      %v364 = vsel %vm224, %v215, 0
      %v367 = vsel %vm224, %v219, 0
      %369 = vmatprep.subr.bf16.mxu0 0
      %370 = vmatpush1.bf16.xpose.msra.mxu0 %v367
      %371 = vmatprep.subr.bf16.mxu0 0
      %372 = vmatpush1.bf16.xpose.msra.mxu0 0
      %373 = vmatprep.subr.bf16.mxu0 0
      %374 = vmatpush1.bf16.xpose.msra.mxu0 0
      %375 = vmatprep.subr.bf16.mxu0 0
      %376 = vmatpush1.bf16.xpose.msra.mxu0 0
      %377 = vmatprep.subr.bf16.mxu0 0
      %378 = vmatpush1.bf16.xpose.msra.mxu0 0
      %379 = vmatprep.subr.bf16.mxu0 0
      %380 = vmatpush1.bf16.xpose.msra.mxu0 0
      %381 = vmatprep.subr.bf16.mxu0 0
      %382 = vmatpush1.bf16.xpose.msra.mxu0 0
      %383 = vmatprep.subr.bf16.mxu0 0
      %384 = vmatpush1.bf16.xpose.msra.mxu0 0
      %385 = vmatprep.subr.bf16.mxu0 0
      %386 = vmatpush1.bf16.xpose.msra.mxu0 0
      %387 = vmatprep.subr.bf16.mxu0 0
      %388 = vmatpush1.bf16.xpose.msra.mxu0 0
      %389 = vmatprep.subr.bf16.mxu0 0
      %390 = vmatpush1.bf16.xpose.msra.mxu0 0
      %391 = vmatprep.subr.bf16.mxu0 0
      %392 = vmatpush1.bf16.xpose.msra.mxu0 0
      %393 = vmatprep.subr.bf16.mxu0 0
      %394 = vmatpush1.bf16.xpose.msra.mxu0 0
      %395 = vmatprep.subr.bf16.mxu0 0
      %396 = vmatpush1.bf16.xpose.msra.mxu0 0
      %397 = vmatprep.subr.bf16.mxu0 0
      %398 = vmatpush1.bf16.xpose.msra.mxu0 0
      %399 = vmatprep.subr.bf16.mxu0 0
      %400 = vmatpush1.bf16.xpose.msra.mxu0 0
      %401 = vmatprep.mubr.bf16.mxu0 0
      %402 = vmatmul.mubr.bf16.gmra.mrb[0].mxu0 %v364
      %v403 = vpop.f32.mrb[0].mxu0
      %v404 = vadd.f32 0.0, %v403
      %v405 = vpop.f32.mrb[0].mxu0
      %v406 = vpop.f32.mrb[0].mxu0
      %v407 = vpop.f32.mrb[0].mxu0
      %408 = vdwg.mxu0
      %v409 = vmul.f32 %v266, 0.35355338
      %v410 = vmul.f32 %v312, 0.35355338
      %v411 = vmul.f32 %v358, 0.35355338
      %v412 = vmul.f32 %v404, 0.35355338
      %v413 = vsel %vm224, %v409, -inf
      %414 = vmax.xlane.f32.xlu0 %v413
      %v415 = vpop.xlane.xlu0 %414
      %v416 = vsel %vm224, %v410, -inf
      %417 = vmax.xlane.f32.xlu0 %v416
      %v418 = vpop.xlane.xlu0 %417
      %v419 = vsel %vm224, %v411, -inf
      %420 = vmax.xlane.f32.xlu0 %v419
      %v421 = vpop.xlane.xlu0 %420
      %v422 = vsel %vm224, %v412, -inf
      %423 = vmax.xlane.f32.xlu0 %v422
      %v424 = vpop.xlane.xlu0 %423
      %v425 = vsub.f32 %v409, %v415
      %v426 = vsub.f32 %v410, %v418
      %v427 = vsub.f32 %v411, %v421
      %v428 = vsub.f32 %v412, %v424
      %v429 = vmul.f32 %v425, 1.442695
      %v430 = vpow.pop %v429
      %v431 = vmul.f32 %v426, 1.442695
      %v432 = vpow.pop %v431
      %v433 = vmul.f32 %v427, 1.442695
      %v434 = vpow.pop %v433
      %v435 = vmul.f32 %v428, 1.442695
      %v436 = vpow.pop %v435
      %v437 = vsel %vm224, %v430, 0.0
      %438 = vadd.xlane.f32.xlu0 %v437
      %v439 = vpop.xlane.xlu0 %438
      %v440 = vsel %vm224, %v432, 0.0
      %441 = vadd.xlane.f32.xlu0 %v440
      %v442 = vpop.xlane.xlu0 %441
      %v443 = vsel %vm224, %v434, 0.0
      %444 = vadd.xlane.f32.xlu0 %v443
      %v445 = vpop.xlane.xlu0 %444
      %v446 = vsel %vm224, %v436, 0.0
      %447 = vadd.xlane.f32.xlu0 %v446
      %v448 = vpop.xlane.xlu0 %447
      %v449 = vrcp.pop %v439
      %v450 = vrcp.pop %v442
      %v451 = vrcp.pop %v445
      %v452 = vrcp.pop %v448
      %v453 = vmul.f32 %v430, %v449
      %v454 = vmul.f32 %v432, %v450
      %v455 = vmul.f32 %v434, %v451
      %v456 = vmul.f32 %v436, %v452
      %v457 = vpack.c.bf16 %v453, %v453
      %v458 = vpack.c.bf16 %v454, %v454
      %v459 = vpack.c.bf16 %v455, %v455
      %v460 = vpack.c.bf16 %v456, %v456
      %v462 = vsel %vm224, %v457, 0
      %vm464 = vcmask 1043456
      %v466 = vsel %vm464, %v220, 0
      %468 = vmatprep.subr.bf16.mxu0 0
      %469 = vmatpush1.bf16.msra.mxu0 %v466
      %470 = vmatprep.subr.bf16.mxu0 0
      %471 = vmatpush1.bf16.msra.mxu0 0
      %472 = vmatprep.subr.bf16.mxu0 0
      %473 = vmatpush1.bf16.msra.mxu0 0
      %474 = vmatprep.subr.bf16.mxu0 0
      %475 = vmatpush1.bf16.msra.mxu0 0
      %476 = vmatprep.subr.bf16.mxu0 0
      %477 = vmatpush1.bf16.msra.mxu0 0
      %478 = vmatprep.subr.bf16.mxu0 0
      %479 = vmatpush1.bf16.msra.mxu0 0
      %480 = vmatprep.subr.bf16.mxu0 0
      %481 = vmatpush1.bf16.msra.mxu0 0
      %482 = vmatprep.subr.bf16.mxu0 0
      %483 = vmatpush1.bf16.msra.mxu0 0
      %484 = vmatprep.subr.bf16.mxu0 0
      %485 = vmatpush1.bf16.msra.mxu0 0
      %486 = vmatprep.subr.bf16.mxu0 0
      %487 = vmatpush1.bf16.msra.mxu0 0
      %488 = vmatprep.subr.bf16.mxu0 0
      %489 = vmatpush1.bf16.msra.mxu0 0
      %490 = vmatprep.subr.bf16.mxu0 0
      %491 = vmatpush1.bf16.msra.mxu0 0
      %492 = vmatprep.subr.bf16.mxu0 0
      %493 = vmatpush1.bf16.msra.mxu0 0
      %494 = vmatprep.subr.bf16.mxu0 0
      %495 = vmatpush1.bf16.msra.mxu0 0
      %496 = vmatprep.subr.bf16.mxu0 0
      %497 = vmatpush1.bf16.msra.mxu0 0
      %498 = vmatprep.subr.bf16.mxu0 0
      %499 = vmatpush1.bf16.msra.mxu0 0
      %500 = vmatprep.mubr.bf16.mxu0 0
      %501 = vmatmul.mubr.bf16.gmra.mrb[0].mxu0 %v462
      %v502 = vpop.f32.mrb[0].mxu0
      %v503 = vadd.f32 0.0, %v502
      %v504 = vpop.f32.mrb[0].mxu0
      %v505 = vpop.f32.mrb[0].mxu0
      %v506 = vpop.f32.mrb[0].mxu0
      %507 = vdwg.mxu0
      %v509 = vsel %vm224, %v458, 0
      %v512 = vsel %vm464, %v221, 0
      %514 = vmatprep.subr.bf16.mxu0 0
      %515 = vmatpush1.bf16.msra.mxu0 %v512
      %516 = vmatprep.subr.bf16.mxu0 0
      %517 = vmatpush1.bf16.msra.mxu0 0
      %518 = vmatprep.subr.bf16.mxu0 0
      %519 = vmatpush1.bf16.msra.mxu0 0
      %520 = vmatprep.subr.bf16.mxu0 0
      %521 = vmatpush1.bf16.msra.mxu0 0
      %522 = vmatprep.subr.bf16.mxu0 0
      %523 = vmatpush1.bf16.msra.mxu0 0
      %524 = vmatprep.subr.bf16.mxu0 0
      %525 = vmatpush1.bf16.msra.mxu0 0
      %526 = vmatprep.subr.bf16.mxu0 0
      %527 = vmatpush1.bf16.msra.mxu0 0
      %528 = vmatprep.subr.bf16.mxu0 0
      %529 = vmatpush1.bf16.msra.mxu0 0
      %530 = vmatprep.subr.bf16.mxu0 0
      %531 = vmatpush1.bf16.msra.mxu0 0
      %532 = vmatprep.subr.bf16.mxu0 0
      %533 = vmatpush1.bf16.msra.mxu0 0
      %534 = vmatprep.subr.bf16.mxu0 0
      %535 = vmatpush1.bf16.msra.mxu0 0
      %536 = vmatprep.subr.bf16.mxu0 0
      %537 = vmatpush1.bf16.msra.mxu0 0
      %538 = vmatprep.subr.bf16.mxu0 0
      %539 = vmatpush1.bf16.msra.mxu0 0
      %540 = vmatprep.subr.bf16.mxu0 0
      %541 = vmatpush1.bf16.msra.mxu0 0
      %542 = vmatprep.subr.bf16.mxu0 0
      %543 = vmatpush1.bf16.msra.mxu0 0
      %544 = vmatprep.subr.bf16.mxu0 0
      %545 = vmatpush1.bf16.msra.mxu0 0
      %546 = vmatprep.mubr.bf16.mxu0 0
      %547 = vmatmul.mubr.bf16.gmra.mrb[0].mxu0 %v509
      %v548 = vpop.f32.mrb[0].mxu0
      %v549 = vadd.f32 0.0, %v548
      %v550 = vpop.f32.mrb[0].mxu0
      %v551 = vpop.f32.mrb[0].mxu0
      %v552 = vpop.f32.mrb[0].mxu0
      %553 = vdwg.mxu0
      %v555 = vsel %vm224, %v459, 0
      %v558 = vsel %vm464, %v222, 0
      %560 = vmatprep.subr.bf16.mxu0 0
      %561 = vmatpush1.bf16.msra.mxu0 %v558
      %562 = vmatprep.subr.bf16.mxu0 0
      %563 = vmatpush1.bf16.msra.mxu0 0
      %564 = vmatprep.subr.bf16.mxu0 0
      %565 = vmatpush1.bf16.msra.mxu0 0
      %566 = vmatprep.subr.bf16.mxu0 0
      %567 = vmatpush1.bf16.msra.mxu0 0
      %568 = vmatprep.subr.bf16.mxu0 0
      %569 = vmatpush1.bf16.msra.mxu0 0
      %570 = vmatprep.subr.bf16.mxu0 0
      %571 = vmatpush1.bf16.msra.mxu0 0
      %572 = vmatprep.subr.bf16.mxu0 0
      %573 = vmatpush1.bf16.msra.mxu0 0
      %574 = vmatprep.subr.bf16.mxu0 0
      %575 = vmatpush1.bf16.msra.mxu0 0
      %576 = vmatprep.subr.bf16.mxu0 0
      %577 = vmatpush1.bf16.msra.mxu0 0
      %578 = vmatprep.subr.bf16.mxu0 0
      %579 = vmatpush1.bf16.msra.mxu0 0
      %580 = vmatprep.subr.bf16.mxu0 0
      %581 = vmatpush1.bf16.msra.mxu0 0
      %582 = vmatprep.subr.bf16.mxu0 0
      %583 = vmatpush1.bf16.msra.mxu0 0
      %584 = vmatprep.subr.bf16.mxu0 0
      %585 = vmatpush1.bf16.msra.mxu0 0
      %586 = vmatprep.subr.bf16.mxu0 0
      %587 = vmatpush1.bf16.msra.mxu0 0
      %588 = vmatprep.subr.bf16.mxu0 0
      %589 = vmatpush1.bf16.msra.mxu0 0
      %590 = vmatprep.subr.bf16.mxu0 0
      %591 = vmatpush1.bf16.msra.mxu0 0
      %592 = vmatprep.mubr.bf16.mxu0 0
      %593 = vmatmul.mubr.bf16.gmra.mrb[0].mxu0 %v555
      %v594 = vpop.f32.mrb[0].mxu0
      %v595 = vadd.f32 0.0, %v594
      %v596 = vpop.f32.mrb[0].mxu0
      %v597 = vpop.f32.mrb[0].mxu0
      %v598 = vpop.f32.mrb[0].mxu0
      %599 = vdwg.mxu0
      %v601 = vsel %vm224, %v460, 0
      %v604 = vsel %vm464, %v223, 0
      %606 = vmatprep.subr.bf16.mxu0 0
      %607 = vmatpush1.bf16.msra.mxu0 %v604
      %608 = vmatprep.subr.bf16.mxu0 0
      %609 = vmatpush1.bf16.msra.mxu0 0
      %610 = vmatprep.subr.bf16.mxu0 0
      %611 = vmatpush1.bf16.msra.mxu0 0
      %612 = vmatprep.subr.bf16.mxu0 0
      %613 = vmatpush1.bf16.msra.mxu0 0
      %614 = vmatprep.subr.bf16.mxu0 0
      %615 = vmatpush1.bf16.msra.mxu0 0
      %616 = vmatprep.subr.bf16.mxu0 0
      %617 = vmatpush1.bf16.msra.mxu0 0
      %618 = vmatprep.subr.bf16.mxu0 0
      %619 = vmatpush1.bf16.msra.mxu0 0
      %620 = vmatprep.subr.bf16.mxu0 0
      %621 = vmatpush1.bf16.msra.mxu0 0
      %622 = vmatprep.subr.bf16.mxu0 0
      %623 = vmatpush1.bf16.msra.mxu0 0
      %624 = vmatprep.subr.bf16.mxu0 0
      %625 = vmatpush1.bf16.msra.mxu0 0
      %626 = vmatprep.subr.bf16.mxu0 0
      %627 = vmatpush1.bf16.msra.mxu0 0
      %628 = vmatprep.subr.bf16.mxu0 0
      %629 = vmatpush1.bf16.msra.mxu0 0
      %630 = vmatprep.subr.bf16.mxu0 0
      %631 = vmatpush1.bf16.msra.mxu0 0
      %632 = vmatprep.subr.bf16.mxu0 0
      %633 = vmatpush1.bf16.msra.mxu0 0
      %634 = vmatprep.subr.bf16.mxu0 0
      %635 = vmatpush1.bf16.msra.mxu0 0
      %636 = vmatprep.subr.bf16.mxu0 0
      %637 = vmatpush1.bf16.msra.mxu0 0
      %638 = vmatprep.mubr.bf16.mxu0 0
      %639 = vmatmul.mubr.bf16.gmra.mrb[0].mxu0 %v601
      %v640 = vpop.f32.mrb[0].mxu0
      %v641 = vadd.f32 0.0, %v640
      %v642 = vpop.f32.mrb[0].mxu0
      %v643 = vpop.f32.mrb[0].mxu0
      %v644 = vpop.f32.mrb[0].mxu0
      %645 = vdwg.mxu0
      %646 = vst.msk [vmem:[%s210] sm:$0xff] %vm224, %v503
      %647 = vst.msk [vmem:[%s210 + $0x8] sm:$0xff] %vm224, %v549
      %648 = vst.msk [vmem:[%s210 + $0x10] sm:$0xff] %vm224, %v595
      %649 = vst.msk [vmem:[%s210 + $0x18] sm:$0xff] %vm224, %v641
      %p650 = scmp.lt.s32.totalorder %s14, 1
      %s651 = scalar_select %p650, %s14, 1
      %s652 = smul.addr %s651, 4
      %s653 = smul.addr %s652, 8
      %s654 = scalar_lea.vmem %s3, %s653
      // Predicated region
      $region33: #{advanced_neural_core_fwd.60} parent=31 // pred_check
        %p655 = pneg %p110
      $region34: #{advanced_neural_core_fwd.60} parent=31 // pred_check_branch
        %657 = sbr.rel (%p655) target = $region36
      $region35: #{advanced_neural_core_fwd.60} parent=31 // pred_region
        _
      $region36: #{advanced_neural_core_fwd.60} parent=31 // pred_fallthru
        _
    $region32: #{advanced_neural_core_fwd.60} parent=5 // pred_fallthru
      _
    %p658 = scmp.le.s32.totalorder 2, %s9
    // Predicated region
    $region37: #{advanced_neural_core_fwd.60} parent=5 // pred_check
      %p659 = pneg %p658
    $region38: #{advanced_neural_core_fwd.60} parent=5 // pred_check_branch
      %661 = sbr.rel (%p659) target = $region40
    $region39: #{advanced_neural_core_fwd.60} parent=5 // pred_region
      %s662 = ssub.s32 %s9, 2
      // Predicated region
      $region41: #{advanced_neural_core_fwd.60} parent=39 // pred_check
        %p663 = pneg %p116
      $region42: #{advanced_neural_core_fwd.60} parent=39 // pred_check_branch
        %665 = sbr.rel (%p663) target = $region44
      $region43: #{advanced_neural_core_fwd.60} parent=39 // pred_region
        %p666 = scmp.lt.s32.totalorder %s15, 1
        %s667 = scalar_select %p666, %s15, 1
        %s668 = smul.addr %s667, 4
        %s669 = smul.addr %s668, 8
        %s670 = scalar_lea.vmem %s3, %s669
      $region44: #{advanced_neural_core_fwd.60} parent=39 // pred_fallthru
        _
    $region40: #{advanced_neural_core_fwd.60} parent=5 // pred_fallthru
      _
  $region6: #{advanced_neural_core_fwd.60} parent=0 // loop_footer
    %s13 = sadd.s32 1, %s9
  $region7: #{advanced_neural_core_fwd.60} parent=0 // loop_footer_branch
    %8 = sbr.rel target = $region3
  $region8: #{advanced_neural_core_fwd.60} parent=0 // loop_exit
    _

// kernel: advanced_neural_core_fwd.72
$region0: #{advanced_neural_core_fwd.72}
  #allocation0 [shape = 'u32[]', space=smem, size = 0x4, offset = 0x4, fixed_abs, tag = 'smem constant byte address 0x4 - core index']
  #allocation1 [shape = 'u32[144,128]{1,0:T(1,128)}', space=vmem, size = 0x12000, scoped, tag = 'internal scratch']
  %s0 = inlined_call_operand.vmem [shape: bf16[16,32], index: 0, kind: input, shape index: {}]
  %s1 = inlined_call_operand.vmem [shape: bf16[32,64], index: 1, kind: input, shape index: {}]
  %s2 = inlined_call_operand.vmem [shape: f32[1,64], index: 2, kind: input, shape index: {}]
  %s3 = inlined_call_operand.vmem [shape: bf16[64,32], index: 3, kind: input, shape index: {}]
  %s4 = inlined_call_operand.vmem [shape: f32[1,32], index: 4, kind: input, shape index: {}]
  %s5 = inlined_call_operand.vmem [shape: f32[16,32], index: 5, kind: output, shape index: {}]
  %s6 = sld [smem:[#allocation0]]
  $region30: #{advanced_neural_core_fwd.72} parent=0
    _
  %s8 = ssub.s32 1, %s6
  %s9 = scalar_select 0, %s8, %s6
  // Predicated region
  $region2: #{advanced_neural_core_fwd.72} parent=0 // pred_check
    _
  $region3: #{advanced_neural_core_fwd.72} parent=0 // pred_check_branch
    %11 = sbr.rel (0) target = $region5
  $region4: #{advanced_neural_core_fwd.72} parent=0 // pred_region
    _
  $region5: #{advanced_neural_core_fwd.72} parent=0 // pred_fallthru
    _
  // Predicated region
  $region6: #{advanced_neural_core_fwd.72} parent=0 // pred_check
    _
  $region7: #{advanced_neural_core_fwd.72} parent=0 // pred_check_branch
    %13 = sbr.rel (0) target = $region9
  $region8: #{advanced_neural_core_fwd.72} parent=0 // pred_region
    _
  $region9: #{advanced_neural_core_fwd.72} parent=0 // pred_fallthru
    _
  // Predicated region
  $region10: #{advanced_neural_core_fwd.72} parent=0 // pred_check
    _
  $region11: #{advanced_neural_core_fwd.72} parent=0 // pred_check_branch
    %15 = sbr.rel (0) target = $region13
  $region12: #{advanced_neural_core_fwd.72} parent=0 // pred_region
    _
  $region13: #{advanced_neural_core_fwd.72} parent=0 // pred_fallthru
    _
  // Predicated region
  $region14: #{advanced_neural_core_fwd.72} parent=0 // pred_check
    _
  $region15: #{advanced_neural_core_fwd.72} parent=0 // pred_check_branch
    %17 = sbr.rel (0) target = $region17
  $region16: #{advanced_neural_core_fwd.72} parent=0 // pred_region
    _
  $region17: #{advanced_neural_core_fwd.72} parent=0 // pred_fallthru
    _
  // Predicated region
  $region18: #{advanced_neural_core_fwd.72} parent=0 // pred_check
    _
  $region19: #{advanced_neural_core_fwd.72} parent=0 // pred_check_branch
    %19 = sbr.rel (0) target = $region21
  $region20: #{advanced_neural_core_fwd.72} parent=0 // pred_region
    _
  $region21: #{advanced_neural_core_fwd.72} parent=0 // pred_fallthru
    _
  %v21 = vld [vmem:[%s0] sm:$0xf]
  %v22 = vld [vmem:[%s0 + $0x4] sm:$0xf]
  %v23 = vld [vmem:[%s1] sm:$0xf]
  %v24 = vld [vmem:[%s1 + $0x4] sm:$0xf]
  %v25 = vld [vmem:[%s1 + $0x8] sm:$0xf]
  %v26 = vld [vmem:[%s1 + $0xc] sm:$0xf]
  %v27 = vld [vmem:[%s2] sm:$0x1]
  %v29 = vlaneseq
  %v30 = vshrl.u32 %v29, 7
  %v31 = vsub.s32 0, %v30
  %v32 = vrot.slane %v27, %v31
  %v36 = vunpack.c.l.b16 %v21
  %v37 = vunpack.c.l.b16 %v22
  %v38 = vpack.c.b16 %v37, %v36
  %v43 = vunpack.c.l.b16 %v23
  %v44 = vunpack.c.l.b16 %v24
  %v45 = vunpack.c.l.b16 %v25
  %v46 = vunpack.c.l.b16 %v26
  %v47 = vpack.c.b16 %v44, %v43
  %v48 = vpack.c.b16 %v46, %v45
  %vm51 = vcmask 261120
  %v53 = vsel %vm51, %v38, 0
  %55 = vmatprep.subr.bf16.mxu0 0
  %56 = vmatpush1.bf16.msra.mxu0 %v47
  %57 = vmatprep.subr.bf16.mxu0 0
  %58 = vmatpush1.bf16.msra.mxu0 %v48
  %59 = vmatprep.subr.bf16.mxu0 0
  %60 = vmatpush1.bf16.msra.mxu0 0
  %61 = vmatprep.subr.bf16.mxu0 0
  %62 = vmatpush1.bf16.msra.mxu0 0
  %63 = vmatprep.subr.bf16.mxu0 0
  %64 = vmatpush1.bf16.msra.mxu0 0
  %65 = vmatprep.subr.bf16.mxu0 0
  %66 = vmatpush1.bf16.msra.mxu0 0
  %67 = vmatprep.subr.bf16.mxu0 0
  %68 = vmatpush1.bf16.msra.mxu0 0
  %69 = vmatprep.subr.bf16.mxu0 0
  %70 = vmatpush1.bf16.msra.mxu0 0
  %71 = vmatprep.subr.bf16.mxu0 0
  %72 = vmatpush1.bf16.msra.mxu0 0
  %73 = vmatprep.subr.bf16.mxu0 0
  %74 = vmatpush1.bf16.msra.mxu0 0
  %75 = vmatprep.subr.bf16.mxu0 0
  %76 = vmatpush1.bf16.msra.mxu0 0
  %77 = vmatprep.subr.bf16.mxu0 0
  %78 = vmatpush1.bf16.msra.mxu0 0
  %79 = vmatprep.subr.bf16.mxu0 0
  %80 = vmatpush1.bf16.msra.mxu0 0
  %81 = vmatprep.subr.bf16.mxu0 0
  %82 = vmatpush1.bf16.msra.mxu0 0
  %83 = vmatprep.subr.bf16.mxu0 0
  %84 = vmatpush1.bf16.msra.mxu0 0
  %85 = vmatprep.subr.bf16.mxu0 0
  %86 = vmatpush1.bf16.msra.mxu0 0
  %87 = vmatprep.mubr.bf16.mxu0 0
  %88 = vmatmul.mubr.bf16.gmra.mrb[0].mxu0 %v53
  %v89 = vpop.f32.mrb[0].mxu0
  %v90 = vadd.f32 %v32, %v89
  %v91 = vpop.f32.mrb[0].mxu0
  %v92 = vpop.f32.mrb[0].mxu0
  %v93 = vadd.f32 %v32, %v92
  %v94 = vpop.f32.mrb[0].mxu0
  %95 = vdwg.mxu0
  %v96 = vmax.f32 %v90, 0.0
  %v97 = vmax.f32 %v93, 0.0
  %v98 = vpack.c.bf16 %v97, %v96
  %v99 = vld [vmem:[%s3] sm:$0xf]
  %v100 = vld [vmem:[%s3 + $0x4] sm:$0xf]
  %v101 = vld [vmem:[%s3 + $0x8] sm:$0xf]
  %v102 = vld [vmem:[%s3 + $0xc] sm:$0xf]
  %v103 = vld [vmem:[%s3 + $0x10] sm:$0xf]
  %v104 = vld [vmem:[%s3 + $0x14] sm:$0xf]
  %v105 = vld [vmem:[%s3 + $0x18] sm:$0xf]
  %v106 = vld [vmem:[%s3 + $0x1c] sm:$0xf]
  %v107 = vld [vmem:[%s4] sm:$0x1]
  %v109 = vlaneseq
  %v110 = vshrl.u32 %v109, 7
  %v111 = vsub.s32 0, %v110
  %v112 = vrot.slane %v107, %v111
  %v122 = vunpack.c.l.b16 %v99
  %v123 = vunpack.c.l.b16 %v100
  %v124 = vunpack.c.l.b16 %v101
  %v125 = vunpack.c.l.b16 %v102
  %v126 = vunpack.c.l.b16 %v103
  %v127 = vunpack.c.l.b16 %v104
  %v128 = vunpack.c.l.b16 %v105
  %v129 = vunpack.c.l.b16 %v106
  %v130 = vpack.c.b16 %v123, %v122
  %v131 = vpack.c.b16 %v125, %v124
  %v132 = vpack.c.b16 %v127, %v126
  %v133 = vpack.c.b16 %v129, %v128
  %vm138 = vcmask 523264
  %v140 = vsel %vm138, %v98, 0
  %142 = vmatprep.subr.bf16.mxu0 0
  %143 = vmatpush1.bf16.msra.mxu0 %v130
  %144 = vmatprep.subr.bf16.mxu0 0
  %145 = vmatpush1.bf16.msra.mxu0 %v131
  %146 = vmatprep.subr.bf16.mxu0 0
  %147 = vmatpush1.bf16.msra.mxu0 %v132
  %148 = vmatprep.subr.bf16.mxu0 0
  %149 = vmatpush1.bf16.msra.mxu0 %v133
  %150 = vmatprep.subr.bf16.mxu0 0
  %151 = vmatpush1.bf16.msra.mxu0 0
  %152 = vmatprep.subr.bf16.mxu0 0
  %153 = vmatpush1.bf16.msra.mxu0 0
  %154 = vmatprep.subr.bf16.mxu0 0
  %155 = vmatpush1.bf16.msra.mxu0 0
  %156 = vmatprep.subr.bf16.mxu0 0
  %157 = vmatpush1.bf16.msra.mxu0 0
  %158 = vmatprep.subr.bf16.mxu0 0
  %159 = vmatpush1.bf16.msra.mxu0 0
  %160 = vmatprep.subr.bf16.mxu0 0
  %161 = vmatpush1.bf16.msra.mxu0 0
  %162 = vmatprep.subr.bf16.mxu0 0
  %163 = vmatpush1.bf16.msra.mxu0 0
  %164 = vmatprep.subr.bf16.mxu0 0
  %165 = vmatpush1.bf16.msra.mxu0 0
  %166 = vmatprep.subr.bf16.mxu0 0
  %167 = vmatpush1.bf16.msra.mxu0 0
  %168 = vmatprep.subr.bf16.mxu0 0
  %169 = vmatpush1.bf16.msra.mxu0 0
  %170 = vmatprep.subr.bf16.mxu0 0
  %171 = vmatpush1.bf16.msra.mxu0 0
  %172 = vmatprep.subr.bf16.mxu0 0
  %173 = vmatpush1.bf16.msra.mxu0 0
  %174 = vmatprep.mubr.bf16.mxu0 0
  %175 = vmatmul.mubr.bf16.gmra.mrb[0].mxu0 %v140
  %v176 = vpop.f32.mrb[0].mxu0
  %v177 = vadd.f32 %v112, %v176
  %v178 = vpop.f32.mrb[0].mxu0
  %v179 = vpop.f32.mrb[0].mxu0
  %v180 = vadd.f32 %v112, %v179
  %v181 = vpop.f32.mrb[0].mxu0
  %182 = vdwg.mxu0
  %v183 = vsub.f32 0.0, %v177
  %v184 = vsub.f32 0.0, %v180
  %v185 = vmul.f32 %v183, 1.442695
  %v186 = vpow.pop %v185
  %v187 = vmul.f32 %v184, 1.442695
  %v188 = vpow.pop %v187
  %v189 = vadd.f32 %v186, 1.0
  %v190 = vadd.f32 %v188, 1.0
  %v191 = vrcp.pop %v189
  %v192 = vmul.f32 1.0, %v191
  %v193 = vrcp.pop %v190
  %v194 = vmul.f32 1.0, %v193
  %195 = vst.msk [vmem:[%s5] sm:$0xff] %vm51, %v192
  %196 = vst.msk [vmem:[%s5 + $0x8] sm:$0xff] %vm51, %v194
  // Predicated region
  $region22: #{advanced_neural_core_fwd.72} parent=0 // pred_check
    _
  $region23: #{advanced_neural_core_fwd.72} parent=0 // pred_check_branch
    %198 = sbr.rel (0) target = $region25
  $region24: #{advanced_neural_core_fwd.72} parent=0 // pred_region
    _
  $region25: #{advanced_neural_core_fwd.72} parent=0 // pred_fallthru
    _
  // Predicated region
  $region26: #{advanced_neural_core_fwd.72} parent=0 // pred_check
    _
  $region27: #{advanced_neural_core_fwd.72} parent=0 // pred_check_branch
    %200 = sbr.rel (0) target = $region29
  $region28: #{advanced_neural_core_fwd.72} parent=0 // pred_region
    _
  $region29: #{advanced_neural_core_fwd.72} parent=0 // pred_fallthru
    _

// kernel: advanced_neural_core_fwd.63
$region0: #{advanced_neural_core_fwd.63}
  #allocation0 [shape = 'u32[]', space=smem, size = 0x4, offset = 0x4, fixed_abs, tag = 'smem constant byte address 0x4 - core index']
  #allocation1 [shape = 'u32[144,128]{1,0:T(1,128)}', space=vmem, size = 0x12000, scoped, tag = 'internal scratch']
  %s0 = inlined_call_operand.vmem [shape: bf16[16,32], index: 0, kind: input, shape index: {}]
  %s1 = inlined_call_operand.vmem [shape: bf16[32,128], index: 1, kind: input, shape index: {}]
  %s2 = inlined_call_operand.vmem [shape: f32[1,128], index: 2, kind: input, shape index: {}]
  %s3 = inlined_call_operand.vmem [shape: bf16[128,32], index: 3, kind: input, shape index: {}]
  %s4 = inlined_call_operand.vmem [shape: f32[1,32], index: 4, kind: input, shape index: {}]
  %s5 = inlined_call_operand.vmem [shape: f32[16,32], index: 5, kind: output, shape index: {}]
  %s6 = sld [smem:[#allocation0]]
  $region30: #{advanced_neural_core_fwd.63} parent=0
    _
  %s8 = ssub.s32 1, %s6
  %s9 = scalar_select 0, %s8, %s6
  // Predicated region
  $region2: #{advanced_neural_core_fwd.63} parent=0 // pred_check
    _
  $region3: #{advanced_neural_core_fwd.63} parent=0 // pred_check_branch
    %11 = sbr.rel (0) target = $region5
  $region4: #{advanced_neural_core_fwd.63} parent=0 // pred_region
    _
  $region5: #{advanced_neural_core_fwd.63} parent=0 // pred_fallthru
    _
  // Predicated region
  $region6: #{advanced_neural_core_fwd.63} parent=0 // pred_check
    _
  $region7: #{advanced_neural_core_fwd.63} parent=0 // pred_check_branch
    %13 = sbr.rel (0) target = $region9
  $region8: #{advanced_neural_core_fwd.63} parent=0 // pred_region
    _
  $region9: #{advanced_neural_core_fwd.63} parent=0 // pred_fallthru
    _
  // Predicated region
  $region10: #{advanced_neural_core_fwd.63} parent=0 // pred_check
    _
  $region11: #{advanced_neural_core_fwd.63} parent=0 // pred_check_branch
    %15 = sbr.rel (0) target = $region13
  $region12: #{advanced_neural_core_fwd.63} parent=0 // pred_region
    _
  $region13: #{advanced_neural_core_fwd.63} parent=0 // pred_fallthru
    _
  // Predicated region
  $region14: #{advanced_neural_core_fwd.63} parent=0 // pred_check
    _
  $region15: #{advanced_neural_core_fwd.63} parent=0 // pred_check_branch
    %17 = sbr.rel (0) target = $region17
  $region16: #{advanced_neural_core_fwd.63} parent=0 // pred_region
    _
  $region17: #{advanced_neural_core_fwd.63} parent=0 // pred_fallthru
    _
  // Predicated region
  $region18: #{advanced_neural_core_fwd.63} parent=0 // pred_check
    _
  $region19: #{advanced_neural_core_fwd.63} parent=0 // pred_check_branch
    %19 = sbr.rel (0) target = $region21
  $region20: #{advanced_neural_core_fwd.63} parent=0 // pred_region
    _
  $region21: #{advanced_neural_core_fwd.63} parent=0 // pred_fallthru
    _
  %v21 = vld [vmem:[%s0] sm:$0xf]
  %v22 = vld [vmem:[%s0 + $0x4] sm:$0xf]
  %v23 = vld [vmem:[%s1] sm:$0xf]
  %v24 = vld [vmem:[%s1 + $0x4] sm:$0xf]
  %v25 = vld [vmem:[%s1 + $0x8] sm:$0xf]
  %v26 = vld [vmem:[%s1 + $0xc] sm:$0xf]
  %v27 = vld [vmem:[%s2] sm:$0x1]
  %v29 = vlaneseq
  %v30 = vshrl.u32 %v29, 7
  %v31 = vsub.s32 0, %v30
  %v32 = vrot.slane %v27, %v31
  %v36 = vunpack.c.l.b16 %v21
  %v37 = vunpack.c.l.b16 %v22
  %v38 = vpack.c.b16 %v37, %v36
  %v43 = vunpack.c.l.b16 %v23
  %v44 = vunpack.c.l.b16 %v24
  %v45 = vunpack.c.l.b16 %v25
  %v46 = vunpack.c.l.b16 %v26
  %v47 = vpack.c.b16 %v44, %v43
  %v48 = vpack.c.b16 %v46, %v45
  %vm51 = vcmask 261120
  %v53 = vsel %vm51, %v38, 0
  %55 = vmatprep.subr.bf16.mxu0 0
  %56 = vmatpush1.bf16.msra.mxu0 %v47
  %57 = vmatprep.subr.bf16.mxu0 0
  %58 = vmatpush1.bf16.msra.mxu0 %v48
  %59 = vmatprep.subr.bf16.mxu0 0
  %60 = vmatpush1.bf16.msra.mxu0 0
  %61 = vmatprep.subr.bf16.mxu0 0
  %62 = vmatpush1.bf16.msra.mxu0 0
  %63 = vmatprep.subr.bf16.mxu0 0
  %64 = vmatpush1.bf16.msra.mxu0 0
  %65 = vmatprep.subr.bf16.mxu0 0
  %66 = vmatpush1.bf16.msra.mxu0 0
  %67 = vmatprep.subr.bf16.mxu0 0
  %68 = vmatpush1.bf16.msra.mxu0 0
  %69 = vmatprep.subr.bf16.mxu0 0
  %70 = vmatpush1.bf16.msra.mxu0 0
  %71 = vmatprep.subr.bf16.mxu0 0
  %72 = vmatpush1.bf16.msra.mxu0 0
  %73 = vmatprep.subr.bf16.mxu0 0
  %74 = vmatpush1.bf16.msra.mxu0 0
  %75 = vmatprep.subr.bf16.mxu0 0
  %76 = vmatpush1.bf16.msra.mxu0 0
  %77 = vmatprep.subr.bf16.mxu0 0
  %78 = vmatpush1.bf16.msra.mxu0 0
  %79 = vmatprep.subr.bf16.mxu0 0
  %80 = vmatpush1.bf16.msra.mxu0 0
  %81 = vmatprep.subr.bf16.mxu0 0
  %82 = vmatpush1.bf16.msra.mxu0 0
  %83 = vmatprep.subr.bf16.mxu0 0
  %84 = vmatpush1.bf16.msra.mxu0 0
  %85 = vmatprep.subr.bf16.mxu0 0
  %86 = vmatpush1.bf16.msra.mxu0 0
  %87 = vmatprep.mubr.bf16.mxu0 0
  %88 = vmatmul.mubr.bf16.gmra.mrb[0].mxu0 %v53
  %v89 = vpop.f32.mrb[0].mxu0
  %v90 = vadd.f32 %v32, %v89
  %v91 = vpop.f32.mrb[0].mxu0
  %v92 = vpop.f32.mrb[0].mxu0
  %v93 = vadd.f32 %v32, %v92
  %v94 = vpop.f32.mrb[0].mxu0
  %95 = vdwg.mxu0
  %v96 = vmul.f32 %v90, 0.5
  %v97 = vmul.f32 %v93, 0.5
  %v98 = vmul.f32 %v90, 0.70710677
  %v99 = vmul.f32 %v93, 0.70710677
  %vm100 = vcmp.ge.f32.partialorder %v98, 0.0
  %vm101 = vcmp.ge.f32.partialorder %v99, 0.0
  %v102 = vsel %vm100, 1.0, -1.0
  %v103 = vsel %vm101, 1.0, -1.0
  %v104 = vand.u32 2147483647, %v98
  %v105 = vand.u32 2147483647, %v99
  %v106 = vmul.f32 %v104, 0.3275911
  %v107 = vmul.f32 %v105, 0.3275911
  %v108 = vadd.f32 %v106, 1.0
  %v109 = vadd.f32 %v107, 1.0
  %v110 = vrcp.pop %v108
  %v111 = vmul.f32 1.0, %v110
  %v112 = vrcp.pop %v109
  %v113 = vmul.f32 1.0, %v112
  %v114 = vmul.f32 %v111, 1.0614054
  %v115 = vmul.f32 %v113, 1.0614054
  %v116 = vadd.f32 %v114, -1.4531521
  %v117 = vadd.f32 %v115, -1.4531521
  %v118 = vmul.f32 %v116, %v111
  %v119 = vmul.f32 %v117, %v113
  %v120 = vadd.f32 %v118, 1.4214138
  %v121 = vadd.f32 %v119, 1.4214138
  %v122 = vmul.f32 %v120, %v111
  %v123 = vmul.f32 %v121, %v113
  %v124 = vadd.f32 %v122, -0.28449672
  %v125 = vadd.f32 %v123, -0.28449672
  %v126 = vmul.f32 %v124, %v111
  %v127 = vmul.f32 %v125, %v113
  %v128 = vadd.f32 %v126, 0.2548296
  %v129 = vadd.f32 %v127, 0.2548296
  %v130 = vmul.f32 %v128, %v111
  %v131 = vmul.f32 %v129, %v113
  %v132 = vsub.f32 0.0, %v104
  %v133 = vsub.f32 0.0, %v105
  %v134 = vmul.f32 %v132, %v104
  %v135 = vmul.f32 %v133, %v105
  %v136 = vmul.f32 %v134, 1.442695
  %v137 = vpow.pop %v136
  %v138 = vmul.f32 %v135, 1.442695
  %v139 = vpow.pop %v138
  %v140 = vmul.f32 %v130, %v137
  %v141 = vmul.f32 %v131, %v139
  %v142 = vsub.f32 1.0, %v140
  %v143 = vsub.f32 1.0, %v141
  %v144 = vmul.f32 %v102, %v142
  %v145 = vmul.f32 %v103, %v143
  %v146 = vadd.f32 %v144, 1.0
  %v147 = vadd.f32 %v145, 1.0
  %v148 = vmul.f32 %v96, %v146
  %v149 = vmul.f32 %v97, %v147
  %v150 = vpack.c.bf16 %v149, %v148
  %v151 = vld [vmem:[%s3] sm:$0xf]
  %v152 = vld [vmem:[%s3 + $0x4] sm:$0xf]
  %v153 = vld [vmem:[%s3 + $0x8] sm:$0xf]
  %v154 = vld [vmem:[%s3 + $0xc] sm:$0xf]
  %v155 = vld [vmem:[%s3 + $0x10] sm:$0xf]
  %v156 = vld [vmem:[%s3 + $0x14] sm:$0xf]
  %v157 = vld [vmem:[%s3 + $0x18] sm:$0xf]
  %v158 = vld [vmem:[%s3 + $0x1c] sm:$0xf]
  %v159 = vld [vmem:[%s3 + $0x20] sm:$0xf]
  %v160 = vld [vmem:[%s3 + $0x24] sm:$0xf]
  %v161 = vld [vmem:[%s3 + $0x28] sm:$0xf]
  %v162 = vld [vmem:[%s3 + $0x2c] sm:$0xf]
  %v163 = vld [vmem:[%s3 + $0x30] sm:$0xf]
  %v164 = vld [vmem:[%s3 + $0x34] sm:$0xf]
  %v165 = vld [vmem:[%s3 + $0x38] sm:$0xf]
  %v166 = vld [vmem:[%s3 + $0x3c] sm:$0xf]
  %v167 = vld [vmem:[%s4] sm:$0x1]
  %v169 = vlaneseq
  %v170 = vshrl.u32 %v169, 7
  %v171 = vsub.s32 0, %v170
  %v172 = vrot.slane %v167, %v171
  %v190 = vunpack.c.l.b16 %v151
  %v191 = vunpack.c.l.b16 %v152
  %v192 = vunpack.c.l.b16 %v153
  %v193 = vunpack.c.l.b16 %v154
  %v194 = vunpack.c.l.b16 %v155
  %v195 = vunpack.c.l.b16 %v156
  %v196 = vunpack.c.l.b16 %v157
  %v197 = vunpack.c.l.b16 %v158
  %v198 = vunpack.c.l.b16 %v159
  %v199 = vunpack.c.l.b16 %v160
  %v200 = vunpack.c.l.b16 %v161
  %v201 = vunpack.c.l.b16 %v162
  %v202 = vunpack.c.l.b16 %v163
  %v203 = vunpack.c.l.b16 %v164
  %v204 = vunpack.c.l.b16 %v165
  %v205 = vunpack.c.l.b16 %v166
  %v206 = vpack.c.b16 %v191, %v190
  %v207 = vpack.c.b16 %v193, %v192
  %v208 = vpack.c.b16 %v195, %v194
  %v209 = vpack.c.b16 %v197, %v196
  %v210 = vpack.c.b16 %v199, %v198
  %v211 = vpack.c.b16 %v201, %v200
  %v212 = vpack.c.b16 %v203, %v202
  %v213 = vpack.c.b16 %v205, %v204
  %222 = vmatprep.subr.bf16.mxu0 0
  %223 = vmatpush1.bf16.msra.mxu0 %v206
  %224 = vmatprep.subr.bf16.mxu0 0
  %225 = vmatpush1.bf16.msra.mxu0 %v207
  %226 = vmatprep.subr.bf16.mxu0 0
  %227 = vmatpush1.bf16.msra.mxu0 %v208
  %228 = vmatprep.subr.bf16.mxu0 0
  %229 = vmatpush1.bf16.msra.mxu0 %v209
  %230 = vmatprep.subr.bf16.mxu0 0
  %231 = vmatpush1.bf16.msra.mxu0 %v210
  %232 = vmatprep.subr.bf16.mxu0 0
  %233 = vmatpush1.bf16.msra.mxu0 %v211
  %234 = vmatprep.subr.bf16.mxu0 0
  %235 = vmatpush1.bf16.msra.mxu0 %v212
  %236 = vmatprep.subr.bf16.mxu0 0
  %237 = vmatpush1.bf16.msra.mxu0 %v213
  %238 = vmatprep.subr.bf16.mxu0 0
  %239 = vmatpush1.bf16.msra.mxu0 0
  %240 = vmatprep.subr.bf16.mxu0 0
  %241 = vmatpush1.bf16.msra.mxu0 0
  %242 = vmatprep.subr.bf16.mxu0 0
  %243 = vmatpush1.bf16.msra.mxu0 0
  %244 = vmatprep.subr.bf16.mxu0 0
  %245 = vmatpush1.bf16.msra.mxu0 0
  %246 = vmatprep.subr.bf16.mxu0 0
  %247 = vmatpush1.bf16.msra.mxu0 0
  %248 = vmatprep.subr.bf16.mxu0 0
  %249 = vmatpush1.bf16.msra.mxu0 0
  %250 = vmatprep.subr.bf16.mxu0 0
  %251 = vmatpush1.bf16.msra.mxu0 0
  %252 = vmatprep.subr.bf16.mxu0 0
  %253 = vmatpush1.bf16.msra.mxu0 0
  %254 = vmatprep.mubr.bf16.mxu0 0
  %255 = vmatmul.mubr.bf16.gmra.mrb[0].mxu0 %v150
  %v256 = vpop.f32.mrb[0].mxu0
  %v257 = vadd.f32 %v172, %v256
  %v258 = vpop.f32.mrb[0].mxu0
  %v259 = vpop.f32.mrb[0].mxu0
  %v260 = vadd.f32 %v172, %v259
  %v261 = vpop.f32.mrb[0].mxu0
  %262 = vdwg.mxu0
  %263 = vst.msk [vmem:[%s5] sm:$0xff] %vm51, %v257
  %264 = vst.msk [vmem:[%s5 + $0x8] sm:$0xff] %vm51, %v260
  // Predicated region
  $region22: #{advanced_neural_core_fwd.63} parent=0 // pred_check
    _
  $region23: #{advanced_neural_core_fwd.63} parent=0 // pred_check_branch
    %266 = sbr.rel (0) target = $region25
  $region24: #{advanced_neural_core_fwd.63} parent=0 // pred_region
    _
  $region25: #{advanced_neural_core_fwd.63} parent=0 // pred_fallthru
    _
  // Predicated region
  $region26: #{advanced_neural_core_fwd.63} parent=0 // pred_check
    _
  $region27: #{advanced_neural_core_fwd.63} parent=0 // pred_check_branch
    %268 = sbr.rel (0) target = $region29
  $region28: #{advanced_neural_core_fwd.63} parent=0 // pred_region
    _
  $region29: #{advanced_neural_core_fwd.63} parent=0 // pred_fallthru
    _

// kernel: advanced_neural_core_fwd.45
$region0: #{advanced_neural_core_fwd.45}
  #allocation0 [shape = 'u32[]', space=smem, size = 0x4, offset = 0x4, fixed_abs, tag = 'smem constant byte address 0x4 - core index']
  #allocation1 [shape = 'u32[144,128]{1,0:T(1,128)}', space=vmem, size = 0x12000, scoped, tag = 'internal scratch']
  %s0 = inlined_call_operand.vmem [shape: bf16[16,32], index: 0, kind: input, shape index: {}]
  %s1 = inlined_call_operand.vmem [shape: bf16[32,2048], index: 1, kind: input, shape index: {}]
  %s2 = inlined_call_operand.vmem [shape: f32[1,2048], index: 2, kind: input, shape index: {}]
  %s3 = inlined_call_operand.vmem [shape: bf16[2048,32], index: 3, kind: input, shape index: {}]
  %s4 = inlined_call_operand.vmem [shape: f32[1,32], index: 4, kind: input, shape index: {}]
  %s5 = inlined_call_operand.vmem [shape: f32[16,32], index: 5, kind: output, shape index: {}]
  %s6 = sld [smem:[#allocation0]]
  $region30: #{advanced_neural_core_fwd.45} parent=0
    _
  %s8 = ssub.s32 1, %s6
  %s9 = scalar_select 0, %s8, %s6
  // Predicated region
  $region2: #{advanced_neural_core_fwd.45} parent=0 // pred_check
    _
  $region3: #{advanced_neural_core_fwd.45} parent=0 // pred_check_branch
    %11 = sbr.rel (0) target = $region5
  $region4: #{advanced_neural_core_fwd.45} parent=0 // pred_region
    _
  $region5: #{advanced_neural_core_fwd.45} parent=0 // pred_fallthru
    _
  // Predicated region
  $region6: #{advanced_neural_core_fwd.45} parent=0 // pred_check
    _
  $region7: #{advanced_neural_core_fwd.45} parent=0 // pred_check_branch
    %13 = sbr.rel (0) target = $region9
  $region8: #{advanced_neural_core_fwd.45} parent=0 // pred_region
    _
  $region9: #{advanced_neural_core_fwd.45} parent=0 // pred_fallthru
    _
  // Predicated region
  $region10: #{advanced_neural_core_fwd.45} parent=0 // pred_check
    _
  $region11: #{advanced_neural_core_fwd.45} parent=0 // pred_check_branch
    %15 = sbr.rel (0) target = $region13
  $region12: #{advanced_neural_core_fwd.45} parent=0 // pred_region
    _
  $region13: #{advanced_neural_core_fwd.45} parent=0 // pred_fallthru
    _
  // Predicated region
  $region14: #{advanced_neural_core_fwd.45} parent=0 // pred_check
    _
  $region15: #{advanced_neural_core_fwd.45} parent=0 // pred_check_branch
    %17 = sbr.rel (0) target = $region17
  $region16: #{advanced_neural_core_fwd.45} parent=0 // pred_region
    _
  $region17: #{advanced_neural_core_fwd.45} parent=0 // pred_fallthru
    _
  // Predicated region
  $region18: #{advanced_neural_core_fwd.45} parent=0 // pred_check
    _
  $region19: #{advanced_neural_core_fwd.45} parent=0 // pred_check_branch
    %19 = sbr.rel (0) target = $region21
  $region20: #{advanced_neural_core_fwd.45} parent=0 // pred_region
    _
  $region21: #{advanced_neural_core_fwd.45} parent=0 // pred_fallthru
    _
  %v21 = vld [vmem:[%s0] sm:$0xf]
  %v22 = vld [vmem:[%s0 + $0x4] sm:$0xf]
  %v23 = vld [vmem:[%s1] sm:$0xff]
  %v24 = vld [vmem:[%s1 + $0x8] sm:$0xff]
  %v25 = vld [vmem:[%s1 + $0x10] sm:$0xff]
  %v26 = vld [vmem:[%s1 + $0x18] sm:$0xff]
  %v27 = vld [vmem:[%s1 + $0x20] sm:$0xff]
  %v28 = vld [vmem:[%s1 + $0x28] sm:$0xff]
  %v29 = vld [vmem:[%s1 + $0x30] sm:$0xff]
  %v30 = vld [vmem:[%s1 + $0x38] sm:$0xff]
  %v31 = vld [vmem:[%s1 + $0x40] sm:$0xff]
  %v32 = vld [vmem:[%s1 + $0x48] sm:$0xff]
  %v33 = vld [vmem:[%s1 + $0x50] sm:$0xff]
  %v34 = vld [vmem:[%s1 + $0x58] sm:$0xff]
  %v35 = vld [vmem:[%s1 + $0x60] sm:$0xff]
  %v36 = vld [vmem:[%s1 + $0x68] sm:$0xff]
  %v37 = vld [vmem:[%s1 + $0x70] sm:$0xff]
  %v38 = vld [vmem:[%s1 + $0x78] sm:$0xff]
  %v39 = vld [vmem:[%s1 + $0x80] sm:$0xff]
  %v40 = vld [vmem:[%s1 + $0x88] sm:$0xff]
  %v41 = vld [vmem:[%s1 + $0x90] sm:$0xff]
  %v42 = vld [vmem:[%s1 + $0x98] sm:$0xff]
  %v43 = vld [vmem:[%s1 + $0xa0] sm:$0xff]
  %v44 = vld [vmem:[%s1 + $0xa8] sm:$0xff]
  %v45 = vld [vmem:[%s1 + $0xb0] sm:$0xff]
  %v46 = vld [vmem:[%s1 + $0xb8] sm:$0xff]
  %v47 = vld [vmem:[%s1 + $0xc0] sm:$0xff]
  %v48 = vld [vmem:[%s1 + $0xc8] sm:$0xff]
  %v49 = vld [vmem:[%s1 + $0xd0] sm:$0xff]
  %v50 = vld [vmem:[%s1 + $0xd8] sm:$0xff]
  %v51 = vld [vmem:[%s1 + $0xe0] sm:$0xff]
  %v52 = vld [vmem:[%s1 + $0xe8] sm:$0xff]
  %v53 = vld [vmem:[%s1 + $0xf0] sm:$0xff]
  %v54 = vld [vmem:[%s1 + $0xf8] sm:$0xff]
  %v55 = vld [vmem:[%s2] sm:$0xff]
  %v56 = vld [vmem:[%s2 + $0x8] sm:$0xff]
  %v59 = vlaneseq
  %v60 = vshrl.u32 %v59, 7
  %v61 = vsub.s32 0, %v60
  %v62 = vrot.slane %v55, %v61
  %v63 = vlaneseq
  %v64 = vshrl.u32 %v63, 7
  %v65 = vsub.s32 1, %v64
  %v66 = vrot.slane %v55, %v65
  %v67 = vlaneseq
  %v68 = vshrl.u32 %v67, 7
  %v69 = vsub.s32 2, %v68
  %v70 = vrot.slane %v55, %v69
  %v71 = vlaneseq
  %v72 = vshrl.u32 %v71, 7
  %v73 = vsub.s32 3, %v72
  %v74 = vrot.slane %v55, %v73
  %v75 = vlaneseq
  %v76 = vshrl.u32 %v75, 7
  %v77 = vsub.s32 4, %v76
  %v78 = vrot.slane %v55, %v77
  %v79 = vlaneseq
  %v80 = vshrl.u32 %v79, 7
  %v81 = vsub.s32 5, %v80
  %v82 = vrot.slane %v55, %v81
  %v83 = vlaneseq
  %v84 = vshrl.u32 %v83, 7
  %v85 = vsub.s32 6, %v84
  %v86 = vrot.slane %v55, %v85
  %v87 = vlaneseq
  %v88 = vshrl.u32 %v87, 7
  %v89 = vsub.s32 7, %v88
  %v90 = vrot.slane %v55, %v89
  %v91 = vlaneseq
  %v92 = vshrl.u32 %v91, 7
  %v93 = vsub.s32 0, %v92
  %v94 = vrot.slane %v56, %v93
  %v95 = vlaneseq
  %v96 = vshrl.u32 %v95, 7
  %v97 = vsub.s32 1, %v96
  %v98 = vrot.slane %v56, %v97
  %v99 = vlaneseq
  %v100 = vshrl.u32 %v99, 7
  %v101 = vsub.s32 2, %v100
  %v102 = vrot.slane %v56, %v101
  %v103 = vlaneseq
  %v104 = vshrl.u32 %v103, 7
  %v105 = vsub.s32 3, %v104
  %v106 = vrot.slane %v56, %v105
  %v107 = vlaneseq
  %v108 = vshrl.u32 %v107, 7
  %v109 = vsub.s32 4, %v108
  %v110 = vrot.slane %v56, %v109
  %v111 = vlaneseq
  %v112 = vshrl.u32 %v111, 7
  %v113 = vsub.s32 5, %v112
  %v114 = vrot.slane %v56, %v113
  %v115 = vlaneseq
  %v116 = vshrl.u32 %v115, 7
  %v117 = vsub.s32 6, %v116
  %v118 = vrot.slane %v56, %v117
  %v119 = vlaneseq
  %v120 = vshrl.u32 %v119, 7
  %v121 = vsub.s32 7, %v120
  %v122 = vrot.slane %v56, %v121
  %v141 = vunpack.c.l.b16 %v21
  %v142 = vunpack.c.l.b16 %v22
  %v143 = vpack.c.b16 %v142, %v141
  %v176 = vunpack.c.l.b16 %v23
  %v177 = vunpack.c.h.b16 %v23
  %v178 = vunpack.c.l.b16 %v24
  %v179 = vunpack.c.h.b16 %v24
  %v180 = vunpack.c.l.b16 %v25
  %v181 = vunpack.c.h.b16 %v25
  %v182 = vunpack.c.l.b16 %v26
  %v183 = vunpack.c.h.b16 %v26
  %v184 = vunpack.c.l.b16 %v27
  %v185 = vunpack.c.h.b16 %v27
  %v186 = vunpack.c.l.b16 %v28
  %v187 = vunpack.c.h.b16 %v28
  %v188 = vunpack.c.l.b16 %v29
  %v189 = vunpack.c.h.b16 %v29
  %v190 = vunpack.c.l.b16 %v30
  %v191 = vunpack.c.h.b16 %v30
  %v192 = vunpack.c.l.b16 %v31
  %v193 = vunpack.c.h.b16 %v31
  %v194 = vunpack.c.l.b16 %v32
  %v195 = vunpack.c.h.b16 %v32
  %v196 = vunpack.c.l.b16 %v33
  %v197 = vunpack.c.h.b16 %v33
  %v198 = vunpack.c.l.b16 %v34
  %v199 = vunpack.c.h.b16 %v34
  %v200 = vunpack.c.l.b16 %v35
  %v201 = vunpack.c.h.b16 %v35
  %v202 = vunpack.c.l.b16 %v36
  %v203 = vunpack.c.h.b16 %v36
  %v204 = vunpack.c.l.b16 %v37
  %v205 = vunpack.c.h.b16 %v37
  %v206 = vunpack.c.l.b16 %v38
  %v207 = vunpack.c.h.b16 %v38
  %v208 = vunpack.c.l.b16 %v39
  %v209 = vunpack.c.h.b16 %v39
  %v210 = vunpack.c.l.b16 %v40
  %v211 = vunpack.c.h.b16 %v40
  %v212 = vunpack.c.l.b16 %v41
  %v213 = vunpack.c.h.b16 %v41
  %v214 = vunpack.c.l.b16 %v42
  %v215 = vunpack.c.h.b16 %v42
  %v216 = vunpack.c.l.b16 %v43
  %v217 = vunpack.c.h.b16 %v43
  %v218 = vunpack.c.l.b16 %v44
  %v219 = vunpack.c.h.b16 %v44
  %v220 = vunpack.c.l.b16 %v45
  %v221 = vunpack.c.h.b16 %v45
  %v222 = vunpack.c.l.b16 %v46
  %v223 = vunpack.c.h.b16 %v46
  %v224 = vunpack.c.l.b16 %v47
  %v225 = vunpack.c.h.b16 %v47
  %v226 = vunpack.c.l.b16 %v48
  %v227 = vunpack.c.h.b16 %v48
  %v228 = vunpack.c.l.b16 %v49
  %v229 = vunpack.c.h.b16 %v49
  %v230 = vunpack.c.l.b16 %v50
  %v231 = vunpack.c.h.b16 %v50
  %v232 = vunpack.c.l.b16 %v51
  %v233 = vunpack.c.h.b16 %v51
  %v234 = vunpack.c.l.b16 %v52
  %v235 = vunpack.c.h.b16 %v52
  %v236 = vunpack.c.l.b16 %v53
  %v237 = vunpack.c.h.b16 %v53
  %v238 = vunpack.c.l.b16 %v54
  %v239 = vunpack.c.h.b16 %v54
  %v240 = vpack.c.b16 %v192, %v176
  %v241 = vpack.c.b16 %v193, %v177
  %v242 = vpack.c.b16 %v194, %v178
  %v243 = vpack.c.b16 %v195, %v179
  %v244 = vpack.c.b16 %v196, %v180
  %v245 = vpack.c.b16 %v197, %v181
  %v246 = vpack.c.b16 %v198, %v182
  %v247 = vpack.c.b16 %v199, %v183
  %v248 = vpack.c.b16 %v200, %v184
  %v249 = vpack.c.b16 %v201, %v185
  %v250 = vpack.c.b16 %v202, %v186
  %v251 = vpack.c.b16 %v203, %v187
  %v252 = vpack.c.b16 %v204, %v188
  %v253 = vpack.c.b16 %v205, %v189
  %v254 = vpack.c.b16 %v206, %v190
  %v255 = vpack.c.b16 %v207, %v191
  %v256 = vpack.c.b16 %v224, %v208
  %v257 = vpack.c.b16 %v225, %v209
  %v258 = vpack.c.b16 %v226, %v210
  %v259 = vpack.c.b16 %v227, %v211
  %v260 = vpack.c.b16 %v228, %v212
  %v261 = vpack.c.b16 %v229, %v213
  %v262 = vpack.c.b16 %v230, %v214
  %v263 = vpack.c.b16 %v231, %v215
  %v264 = vpack.c.b16 %v232, %v216
  %v265 = vpack.c.b16 %v233, %v217
  %v266 = vpack.c.b16 %v234, %v218
  %v267 = vpack.c.b16 %v235, %v219
  %v268 = vpack.c.b16 %v236, %v220
  %v269 = vpack.c.b16 %v237, %v221
  %v270 = vpack.c.b16 %v238, %v222
  %v271 = vpack.c.b16 %v239, %v223
  %vm304 = vcmask 261120
  %v306 = vsel %vm304, %v143, 0
  %308 = vmatprep.subr.bf16.mxu0 %v241
  %309 = vmatpush1.bf16.msra.mxu0 %v240
  %310 = vmatprep.subr.bf16.mxu0 %v257
  %311 = vmatpush1.bf16.msra.mxu0 %v256
  %312 = vmatprep.subr.bf16.mxu0 0
  %313 = vmatpush1.bf16.msra.mxu0 0
  %314 = vmatprep.subr.bf16.mxu0 0
  %315 = vmatpush1.bf16.msra.mxu0 0
  %316 = vmatprep.subr.bf16.mxu0 0
  %317 = vmatpush1.bf16.msra.mxu0 0
  %318 = vmatprep.subr.bf16.mxu0 0
  %319 = vmatpush1.bf16.msra.mxu0 0
  %320 = vmatprep.subr.bf16.mxu0 0
  %321 = vmatpush1.bf16.msra.mxu0 0
  %322 = vmatprep.subr.bf16.mxu0 0
  %323 = vmatpush1.bf16.msra.mxu0 0
  %324 = vmatprep.subr.bf16.mxu0 0
  %325 = vmatpush1.bf16.msra.mxu0 0
  %326 = vmatprep.subr.bf16.mxu0 0
  %327 = vmatpush1.bf16.msra.mxu0 0
  %328 = vmatprep.subr.bf16.mxu0 0
  %329 = vmatpush1.bf16.msra.mxu0 0
  %330 = vmatprep.subr.bf16.mxu0 0
  %331 = vmatpush1.bf16.msra.mxu0 0
  %332 = vmatprep.subr.bf16.mxu0 0
  %333 = vmatpush1.bf16.msra.mxu0 0
  %334 = vmatprep.subr.bf16.mxu0 0
  %335 = vmatpush1.bf16.msra.mxu0 0
  %336 = vmatprep.subr.bf16.mxu0 0
  %337 = vmatpush1.bf16.msra.mxu0 0
  %338 = vmatprep.subr.bf16.mxu0 0
  %339 = vmatpush1.bf16.msra.mxu0 0
  %340 = vmatprep.mubr.bf16.mxu0 0
  %341 = vmatmul.mubr.bf16.gmra.mrb[0].mxu0 %v306
  %v342 = vpop.f32.mrb[0].mxu0
  %v343 = vadd.f32 %v62, %v342
  %v344 = vpop.f32.mrb[0].mxu0
  %v345 = vadd.f32 %v66, %v344
  %v346 = vpop.f32.mrb[0].mxu0
  %v347 = vadd.f32 %v62, %v346
  %v348 = vpop.f32.mrb[0].mxu0
  %v349 = vadd.f32 %v66, %v348
  %350 = vdwg.mxu0
  %351 = vmatprep.subr.bf16.mxu0 %v243
  %352 = vmatpush1.bf16.msra.mxu0 %v242
  %353 = vmatprep.subr.bf16.mxu0 %v259
  %354 = vmatpush1.bf16.msra.mxu0 %v258
  %355 = vmatprep.subr.bf16.mxu0 0
  %356 = vmatpush1.bf16.msra.mxu0 0
  %357 = vmatprep.subr.bf16.mxu0 0
  %358 = vmatpush1.bf16.msra.mxu0 0
  %359 = vmatprep.subr.bf16.mxu0 0
  %360 = vmatpush1.bf16.msra.mxu0 0
  %361 = vmatprep.subr.bf16.mxu0 0
  %362 = vmatpush1.bf16.msra.mxu0 0
  %363 = vmatprep.subr.bf16.mxu0 0
  %364 = vmatpush1.bf16.msra.mxu0 0
  %365 = vmatprep.subr.bf16.mxu0 0
  %366 = vmatpush1.bf16.msra.mxu0 0
  %367 = vmatprep.subr.bf16.mxu0 0
  %368 = vmatpush1.bf16.msra.mxu0 0
  %369 = vmatprep.subr.bf16.mxu0 0
  %370 = vmatpush1.bf16.msra.mxu0 0
  %371 = vmatprep.subr.bf16.mxu0 0
  %372 = vmatpush1.bf16.msra.mxu0 0
  %373 = vmatprep.subr.bf16.mxu0 0
  %374 = vmatpush1.bf16.msra.mxu0 0
  %375 = vmatprep.subr.bf16.mxu0 0
  %376 = vmatpush1.bf16.msra.mxu0 0
  %377 = vmatprep.subr.bf16.mxu0 0
  %378 = vmatpush1.bf16.msra.mxu0 0
  %379 = vmatprep.subr.bf16.mxu0 0
  %380 = vmatpush1.bf16.msra.mxu0 0
  %381 = vmatprep.subr.bf16.mxu0 0
  %382 = vmatpush1.bf16.msra.mxu0 0
  %383 = vmatprep.mubr.bf16.mxu0 0
  %384 = vmatmul.mubr.bf16.gmra.mrb[0].mxu0 %v306
  %v385 = vpop.f32.mrb[0].mxu0
  %v386 = vadd.f32 %v70, %v385
  %v387 = vpop.f32.mrb[0].mxu0
  %v388 = vadd.f32 %v74, %v387
  %v389 = vpop.f32.mrb[0].mxu0
  %v390 = vadd.f32 %v70, %v389
  %v391 = vpop.f32.mrb[0].mxu0
  %v392 = vadd.f32 %v74, %v391
  %393 = vdwg.mxu0
  %394 = vmatprep.subr.bf16.mxu0 %v245
  %395 = vmatpush1.bf16.msra.mxu0 %v244
  %396 = vmatprep.subr.bf16.mxu0 %v261
  %397 = vmatpush1.bf16.msra.mxu0 %v260
  %398 = vmatprep.subr.bf16.mxu0 0
  %399 = vmatpush1.bf16.msra.mxu0 0
  %400 = vmatprep.subr.bf16.mxu0 0
  %401 = vmatpush1.bf16.msra.mxu0 0
  %402 = vmatprep.subr.bf16.mxu0 0
  %403 = vmatpush1.bf16.msra.mxu0 0
  %404 = vmatprep.subr.bf16.mxu0 0
  %405 = vmatpush1.bf16.msra.mxu0 0
  %406 = vmatprep.subr.bf16.mxu0 0
  %407 = vmatpush1.bf16.msra.mxu0 0
  %408 = vmatprep.subr.bf16.mxu0 0
  %409 = vmatpush1.bf16.msra.mxu0 0
  %410 = vmatprep.subr.bf16.mxu0 0
  %411 = vmatpush1.bf16.msra.mxu0 0
  %412 = vmatprep.subr.bf16.mxu0 0
  %413 = vmatpush1.bf16.msra.mxu0 0
  %414 = vmatprep.subr.bf16.mxu0 0
  %415 = vmatpush1.bf16.msra.mxu0 0
  %416 = vmatprep.subr.bf16.mxu0 0
  %417 = vmatpush1.bf16.msra.mxu0 0
  %418 = vmatprep.subr.bf16.mxu0 0
  %419 = vmatpush1.bf16.msra.mxu0 0
  %420 = vmatprep.subr.bf16.mxu0 0
  %421 = vmatpush1.bf16.msra.mxu0 0
  %422 = vmatprep.subr.bf16.mxu0 0
  %423 = vmatpush1.bf16.msra.mxu0 0
  %424 = vmatprep.subr.bf16.mxu0 0
  %425 = vmatpush1.bf16.msra.mxu0 0
  %426 = vmatprep.mubr.bf16.mxu0 0
  %427 = vmatmul.mubr.bf16.gmra.mrb[0].mxu0 %v306
  %v428 = vpop.f32.mrb[0].mxu0
  %v429 = vadd.f32 %v78, %v428
  %v430 = vpop.f32.mrb[0].mxu0
  %v431 = vadd.f32 %v82, %v430
  %v432 = vpop.f32.mrb[0].mxu0
  %v433 = vadd.f32 %v78, %v432
  %v434 = vpop.f32.mrb[0].mxu0
  %v435 = vadd.f32 %v82, %v434
  %436 = vdwg.mxu0
  %437 = vmatprep.subr.bf16.mxu0 %v247
  %438 = vmatpush1.bf16.msra.mxu0 %v246
  %439 = vmatprep.subr.bf16.mxu0 %v263
  %440 = vmatpush1.bf16.msra.mxu0 %v262
  %441 = vmatprep.subr.bf16.mxu0 0
  %442 = vmatpush1.bf16.msra.mxu0 0
  %443 = vmatprep.subr.bf16.mxu0 0
  %444 = vmatpush1.bf16.msra.mxu0 0
  %445 = vmatprep.subr.bf16.mxu0 0
  %446 = vmatpush1.bf16.msra.mxu0 0
  %447 = vmatprep.subr.bf16.mxu0 0
  %448 = vmatpush1.bf16.msra.mxu0 0
  %449 = vmatprep.subr.bf16.mxu0 0
  %450 = vmatpush1.bf16.msra.mxu0 0
  %451 = vmatprep.subr.bf16.mxu0 0
  %452 = vmatpush1.bf16.msra.mxu0 0
  %453 = vmatprep.subr.bf16.mxu0 0
  %454 = vmatpush1.bf16.msra.mxu0 0
  %455 = vmatprep.subr.bf16.mxu0 0
  %456 = vmatpush1.bf16.msra.mxu0 0
  %457 = vmatprep.subr.bf16.mxu0 0
  %458 = vmatpush1.bf16.msra.mxu0 0
  %459 = vmatprep.subr.bf16.mxu0 0
  %460 = vmatpush1.bf16.msra.mxu0 0
  %461 = vmatprep.subr.bf16.mxu0 0
  %462 = vmatpush1.bf16.msra.mxu0 0
  %463 = vmatprep.subr.bf16.mxu0 0
  %464 = vmatpush1.bf16.msra.mxu0 0
  %465 = vmatprep.subr.bf16.mxu0 0
  %466 = vmatpush1.bf16.msra.mxu0 0
  %467 = vmatprep.subr.bf16.mxu0 0
  %468 = vmatpush1.bf16.msra.mxu0 0
  %469 = vmatprep.mubr.bf16.mxu0 0
  %470 = vmatmul.mubr.bf16.gmra.mrb[0].mxu0 %v306
  %v471 = vpop.f32.mrb[0].mxu0
  %v472 = vadd.f32 %v86, %v471
  %v473 = vpop.f32.mrb[0].mxu0
  %v474 = vadd.f32 %v90, %v473
  %v475 = vpop.f32.mrb[0].mxu0
  %v476 = vadd.f32 %v86, %v475
  %v477 = vpop.f32.mrb[0].mxu0
  %v478 = vadd.f32 %v90, %v477
  %479 = vdwg.mxu0
  %480 = vmatprep.subr.bf16.mxu0 %v249
  %481 = vmatpush1.bf16.msra.mxu0 %v248
  %482 = vmatprep.subr.bf16.mxu0 %v265
  %483 = vmatpush1.bf16.msra.mxu0 %v264
  %484 = vmatprep.subr.bf16.mxu0 0
  %485 = vmatpush1.bf16.msra.mxu0 0
  %486 = vmatprep.subr.bf16.mxu0 0
  %487 = vmatpush1.bf16.msra.mxu0 0
  %488 = vmatprep.subr.bf16.mxu0 0
  %489 = vmatpush1.bf16.msra.mxu0 0
  %490 = vmatprep.subr.bf16.mxu0 0
  %491 = vmatpush1.bf16.msra.mxu0 0
  %492 = vmatprep.subr.bf16.mxu0 0
  %493 = vmatpush1.bf16.msra.mxu0 0
  %494 = vmatprep.subr.bf16.mxu0 0
  %495 = vmatpush1.bf16.msra.mxu0 0
  %496 = vmatprep.subr.bf16.mxu0 0
  %497 = vmatpush1.bf16.msra.mxu0 0
  %498 = vmatprep.subr.bf16.mxu0 0
  %499 = vmatpush1.bf16.msra.mxu0 0
  %500 = vmatprep.subr.bf16.mxu0 0
  %501 = vmatpush1.bf16.msra.mxu0 0
  %502 = vmatprep.subr.bf16.mxu0 0
  %503 = vmatpush1.bf16.msra.mxu0 0
  %504 = vmatprep.subr.bf16.mxu0 0
  %505 = vmatpush1.bf16.msra.mxu0 0
  %506 = vmatprep.subr.bf16.mxu0 0
  %507 = vmatpush1.bf16.msra.mxu0 0
  %508 = vmatprep.subr.bf16.mxu0 0
  %509 = vmatpush1.bf16.msra.mxu0 0
  %510 = vmatprep.subr.bf16.mxu0 0
  %511 = vmatpush1.bf16.msra.mxu0 0
  %512 = vmatprep.mubr.bf16.mxu0 0
  %513 = vmatmul.mubr.bf16.gmra.mrb[0].mxu0 %v306
  %v514 = vpop.f32.mrb[0].mxu0
  %v515 = vadd.f32 %v94, %v514
  %v516 = vpop.f32.mrb[0].mxu0
  %v517 = vadd.f32 %v98, %v516
  %v518 = vpop.f32.mrb[0].mxu0
  %v519 = vadd.f32 %v94, %v518
  %v520 = vpop.f32.mrb[0].mxu0
  %v521 = vadd.f32 %v98, %v520
  %522 = vdwg.mxu0
  %523 = vmatprep.subr.bf16.mxu0 %v251
  %524 = vmatpush1.bf16.msra.mxu0 %v250
  %525 = vmatprep.subr.bf16.mxu0 %v267
  %526 = vmatpush1.bf16.msra.mxu0 %v266
  %527 = vmatprep.subr.bf16.mxu0 0
  %528 = vmatpush1.bf16.msra.mxu0 0
  %529 = vmatprep.subr.bf16.mxu0 0
  %530 = vmatpush1.bf16.msra.mxu0 0
  %531 = vmatprep.subr.bf16.mxu0 0
  %532 = vmatpush1.bf16.msra.mxu0 0
  %533 = vmatprep.subr.bf16.mxu0 0
  %534 = vmatpush1.bf16.msra.mxu0 0
  %535 = vmatprep.subr.bf16.mxu0 0
  %536 = vmatpush1.bf16.msra.mxu0 0
  %537 = vmatprep.subr.bf16.mxu0 0
  %538 = vmatpush1.bf16.msra.mxu0 0
  %539 = vmatprep.subr.bf16.mxu0 0
  %540 = vmatpush1.bf16.msra.mxu0 0
  %541 = vmatprep.subr.bf16.mxu0 0
  %542 = vmatpush1.bf16.msra.mxu0 0
  %543 = vmatprep.subr.bf16.mxu0 0
  %544 = vmatpush1.bf16.msra.mxu0 0
  %545 = vmatprep.subr.bf16.mxu0 0
  %546 = vmatpush1.bf16.msra.mxu0 0
  %547 = vmatprep.subr.bf16.mxu0 0
  %548 = vmatpush1.bf16.msra.mxu0 0
  %549 = vmatprep.subr.bf16.mxu0 0
  %550 = vmatpush1.bf16.msra.mxu0 0
  %551 = vmatprep.subr.bf16.mxu0 0
  %552 = vmatpush1.bf16.msra.mxu0 0
  %553 = vmatprep.subr.bf16.mxu0 0
  %554 = vmatpush1.bf16.msra.mxu0 0
  %555 = vmatprep.mubr.bf16.mxu0 0
  %556 = vmatmul.mubr.bf16.gmra.mrb[0].mxu0 %v306
  %v557 = vpop.f32.mrb[0].mxu0
  %v558 = vadd.f32 %v102, %v557
  %v559 = vpop.f32.mrb[0].mxu0
  %v560 = vadd.f32 %v106, %v559
  %v561 = vpop.f32.mrb[0].mxu0
  %v562 = vadd.f32 %v102, %v561
  %v563 = vpop.f32.mrb[0].mxu0
  %v564 = vadd.f32 %v106, %v563
  %565 = vdwg.mxu0
  %566 = vmatprep.subr.bf16.mxu0 %v253
  %567 = vmatpush1.bf16.msra.mxu0 %v252
  %568 = vmatprep.subr.bf16.mxu0 %v269
  %569 = vmatpush1.bf16.msra.mxu0 %v268
  %570 = vmatprep.subr.bf16.mxu0 0
  %571 = vmatpush1.bf16.msra.mxu0 0
  %572 = vmatprep.subr.bf16.mxu0 0
  %573 = vmatpush1.bf16.msra.mxu0 0
  %574 = vmatprep.subr.bf16.mxu0 0
  %575 = vmatpush1.bf16.msra.mxu0 0
  %576 = vmatprep.subr.bf16.mxu0 0
  %577 = vmatpush1.bf16.msra.mxu0 0
  %578 = vmatprep.subr.bf16.mxu0 0
  %579 = vmatpush1.bf16.msra.mxu0 0
  %580 = vmatprep.subr.bf16.mxu0 0
  %581 = vmatpush1.bf16.msra.mxu0 0
  %582 = vmatprep.subr.bf16.mxu0 0
  %583 = vmatpush1.bf16.msra.mxu0 0
  %584 = vmatprep.subr.bf16.mxu0 0
  %585 = vmatpush1.bf16.msra.mxu0 0
  %586 = vmatprep.subr.bf16.mxu0 0
  %587 = vmatpush1.bf16.msra.mxu0 0
  %588 = vmatprep.subr.bf16.mxu0 0
  %589 = vmatpush1.bf16.msra.mxu0 0
  %590 = vmatprep.subr.bf16.mxu0 0
  %591 = vmatpush1.bf16.msra.mxu0 0
  %592 = vmatprep.subr.bf16.mxu0 0
  %593 = vmatpush1.bf16.msra.mxu0 0
  %594 = vmatprep.subr.bf16.mxu0 0
  %595 = vmatpush1.bf16.msra.mxu0 0
  %596 = vmatprep.subr.bf16.mxu0 0
  %597 = vmatpush1.bf16.msra.mxu0 0
  %598 = vmatprep.mubr.bf16.mxu0 0
  %599 = vmatmul.mubr.bf16.gmra.mrb[0].mxu0 %v306
  %v600 = vpop.f32.mrb[0].mxu0
  %v601 = vadd.f32 %v110, %v600
  %v602 = vpop.f32.mrb[0].mxu0
  %v603 = vadd.f32 %v114, %v602
  %v604 = vpop.f32.mrb[0].mxu0
  %v605 = vadd.f32 %v110, %v604
  %v606 = vpop.f32.mrb[0].mxu0
  %v607 = vadd.f32 %v114, %v606
  %608 = vdwg.mxu0
  %609 = vmatprep.subr.bf16.mxu0 %v255
  %610 = vmatpush1.bf16.msra.mxu0 %v254
  %611 = vmatprep.subr.bf16.mxu0 %v271
  %612 = vmatpush1.bf16.msra.mxu0 %v270
  %613 = vmatprep.subr.bf16.mxu0 0
  %614 = vmatpush1.bf16.msra.mxu0 0
  %615 = vmatprep.subr.bf16.mxu0 0
  %616 = vmatpush1.bf16.msra.mxu0 0
  %617 = vmatprep.subr.bf16.mxu0 0
  %618 = vmatpush1.bf16.msra.mxu0 0
  %619 = vmatprep.subr.bf16.mxu0 0
  %620 = vmatpush1.bf16.msra.mxu0 0
  %621 = vmatprep.subr.bf16.mxu0 0
  %622 = vmatpush1.bf16.msra.mxu0 0
  %623 = vmatprep.subr.bf16.mxu0 0
  %624 = vmatpush1.bf16.msra.mxu0 0
  %625 = vmatprep.subr.bf16.mxu0 0
  %626 = vmatpush1.bf16.msra.mxu0 0
  %627 = vmatprep.subr.bf16.mxu0 0
  %628 = vmatpush1.bf16.msra.mxu0 0
  %629 = vmatprep.subr.bf16.mxu0 0
  %630 = vmatpush1.bf16.msra.mxu0 0
  %631 = vmatprep.subr.bf16.mxu0 0
  %632 = vmatpush1.bf16.msra.mxu0 0
  %633 = vmatprep.subr.bf16.mxu0 0
  %634 = vmatpush1.bf16.msra.mxu0 0
  %635 = vmatprep.subr.bf16.mxu0 0
  %636 = vmatpush1.bf16.msra.mxu0 0
  %637 = vmatprep.subr.bf16.mxu0 0
  %638 = vmatpush1.bf16.msra.mxu0 0
  %639 = vmatprep.subr.bf16.mxu0 0
  %640 = vmatpush1.bf16.msra.mxu0 0
  %641 = vmatprep.mubr.bf16.mxu0 0
  %642 = vmatmul.mubr.bf16.gmra.mrb[0].mxu0 %v306
  %v643 = vpop.f32.mrb[0].mxu0
  %v644 = vadd.f32 %v118, %v643
  %v645 = vpop.f32.mrb[0].mxu0
  %v646 = vadd.f32 %v122, %v645
  %v647 = vpop.f32.mrb[0].mxu0
  %v648 = vadd.f32 %v118, %v647
  %v649 = vpop.f32.mrb[0].mxu0
  %v650 = vadd.f32 %v122, %v649
  %651 = vdwg.mxu0
  %v652 = vmax.f32 %v343, 0.0
  %v653 = vmax.f32 %v345, 0.0
  %v654 = vmax.f32 %v386, 0.0
  %v655 = vmax.f32 %v388, 0.0
  %v656 = vmax.f32 %v429, 0.0
  %v657 = vmax.f32 %v431, 0.0
  %v658 = vmax.f32 %v472, 0.0
  %v659 = vmax.f32 %v474, 0.0
  %v660 = vmax.f32 %v515, 0.0
  %v661 = vmax.f32 %v517, 0.0
  %v662 = vmax.f32 %v558, 0.0
  %v663 = vmax.f32 %v560, 0.0
  %v664 = vmax.f32 %v601, 0.0
  %v665 = vmax.f32 %v603, 0.0
  %v666 = vmax.f32 %v644, 0.0
  %v667 = vmax.f32 %v646, 0.0
  %v668 = vmax.f32 %v347, 0.0
  %v669 = vmax.f32 %v349, 0.0
  %v670 = vmax.f32 %v390, 0.0
  %v671 = vmax.f32 %v392, 0.0
  %v672 = vmax.f32 %v433, 0.0
  %v673 = vmax.f32 %v435, 0.0
  %v674 = vmax.f32 %v476, 0.0
  %v675 = vmax.f32 %v478, 0.0
  %v676 = vmax.f32 %v519, 0.0
  %v677 = vmax.f32 %v521, 0.0
  %v678 = vmax.f32 %v562, 0.0
  %v679 = vmax.f32 %v564, 0.0
  %v680 = vmax.f32 %v605, 0.0
  %v681 = vmax.f32 %v607, 0.0
  %v682 = vmax.f32 %v648, 0.0
  %v683 = vmax.f32 %v650, 0.0
  %v684 = vpack.c.bf16 %v668, %v652
  %v685 = vpack.c.bf16 %v669, %v653
  %v686 = vpack.c.bf16 %v670, %v654
  %v687 = vpack.c.bf16 %v671, %v655
  %v688 = vpack.c.bf16 %v672, %v656
  %v689 = vpack.c.bf16 %v673, %v657
  %v690 = vpack.c.bf16 %v674, %v658
  %v691 = vpack.c.bf16 %v675, %v659
  %v692 = vpack.c.bf16 %v676, %v660
  %v693 = vpack.c.bf16 %v677, %v661
  %v694 = vpack.c.bf16 %v678, %v662
  %v695 = vpack.c.bf16 %v679, %v663
  %v696 = vpack.c.bf16 %v680, %v664
  %v697 = vpack.c.bf16 %v681, %v665
  %v698 = vpack.c.bf16 %v682, %v666
  %v699 = vpack.c.bf16 %v683, %v667
  %v700 = vld [vmem:[%s3] sm:$0xf]
  %v701 = vld [vmem:[%s3 + $0x4] sm:$0xf]
  %v702 = vld [vmem:[%s3 + $0x8] sm:$0xf]
  %v703 = vld [vmem:[%s3 + $0xc] sm:$0xf]
  %v704 = vld [vmem:[%s3 + $0x10] sm:$0xf]
  %v705 = vld [vmem:[%s3 + $0x14] sm:$0xf]
  %v706 = vld [vmem:[%s3 + $0x18] sm:$0xf]
  %v707 = vld [vmem:[%s3 + $0x1c] sm:$0xf]
  %v708 = vld [vmem:[%s3 + $0x20] sm:$0xf]
  %v709 = vld [vmem:[%s3 + $0x24] sm:$0xf]
  %v710 = vld [vmem:[%s3 + $0x28] sm:$0xf]
  %v711 = vld [vmem:[%s3 + $0x2c] sm:$0xf]
  %v712 = vld [vmem:[%s3 + $0x30] sm:$0xf]
  %v713 = vld [vmem:[%s3 + $0x34] sm:$0xf]
  %v714 = vld [vmem:[%s3 + $0x38] sm:$0xf]
  %v715 = vld [vmem:[%s3 + $0x3c] sm:$0xf]
  %v716 = vld [vmem:[%s3 + $0x40] sm:$0xf]
  %v717 = vld [vmem:[%s3 + $0x44] sm:$0xf]
  %v718 = vld [vmem:[%s3 + $0x48] sm:$0xf]
  %v719 = vld [vmem:[%s3 + $0x4c] sm:$0xf]
  %v720 = vld [vmem:[%s3 + $0x50] sm:$0xf]
  %v721 = vld [vmem:[%s3 + $0x54] sm:$0xf]
  %v722 = vld [vmem:[%s3 + $0x58] sm:$0xf]
  %v723 = vld [vmem:[%s3 + $0x5c] sm:$0xf]
  %v724 = vld [vmem:[%s3 + $0x60] sm:$0xf]
  %v725 = vld [vmem:[%s3 + $0x64] sm:$0xf]
  %v726 = vld [vmem:[%s3 + $0x68] sm:$0xf]
  %v727 = vld [vmem:[%s3 + $0x6c] sm:$0xf]
  %v728 = vld [vmem:[%s3 + $0x70] sm:$0xf]
  %v729 = vld [vmem:[%s3 + $0x74] sm:$0xf]
  %v730 = vld [vmem:[%s3 + $0x78] sm:$0xf]
  %v731 = vld [vmem:[%s3 + $0x7c] sm:$0xf]
  %v732 = vld [vmem:[%s3 + $0x80] sm:$0xf]
  %v733 = vld [vmem:[%s3 + $0x84] sm:$0xf]
  %v734 = vld [vmem:[%s3 + $0x88] sm:$0xf]
  %v735 = vld [vmem:[%s3 + $0x8c] sm:$0xf]
  %v736 = vld [vmem:[%s3 + $0x90] sm:$0xf]
  %v737 = vld [vmem:[%s3 + $0x94] sm:$0xf]
  %v738 = vld [vmem:[%s3 + $0x98] sm:$0xf]
  %v739 = vld [vmem:[%s3 + $0x9c] sm:$0xf]
  %v740 = vld [vmem:[%s3 + $0xa0] sm:$0xf]
  %v741 = vld [vmem:[%s3 + $0xa4] sm:$0xf]
  %v742 = vld [vmem:[%s3 + $0xa8] sm:$0xf]
  %v743 = vld [vmem:[%s3 + $0xac] sm:$0xf]
  %v744 = vld [vmem:[%s3 + $0xb0] sm:$0xf]
  %v745 = vld [vmem:[%s3 + $0xb4] sm:$0xf]
  %v746 = vld [vmem:[%s3 + $0xb8] sm:$0xf]
  %v747 = vld [vmem:[%s3 + $0xbc] sm:$0xf]
  %v748 = vld [vmem:[%s3 + $0xc0] sm:$0xf]
  %v749 = vld [vmem:[%s3 + $0xc4] sm:$0xf]
  %v750 = vld [vmem:[%s3 + $0xc8] sm:$0xf]
  %v751 = vld [vmem:[%s3 + $0xcc] sm:$0xf]
  %v752 = vld [vmem:[%s3 + $0xd0] sm:$0xf]
  %v753 = vld [vmem:[%s3 + $0xd4] sm:$0xf]
  %v754 = vld [vmem:[%s3 + $0xd8] sm:$0xf]
  %v755 = vld [vmem:[%s3 + $0xdc] sm:$0xf]
  %v756 = vld [vmem:[%s3 + $0xe0] sm:$0xf]
  %v757 = vld [vmem:[%s3 + $0xe4] sm:$0xf]
  %v758 = vld [vmem:[%s3 + $0xe8] sm:$0xf]
  %v759 = vld [vmem:[%s3 + $0xec] sm:$0xf]
  %v760 = vld [vmem:[%s3 + $0xf0] sm:$0xf]
  %v761 = vld [vmem:[%s3 + $0xf4] sm:$0xf]
  %v762 = vld [vmem:[%s3 + $0xf8] sm:$0xf]
  %v763 = vld [vmem:[%s3 + $0xfc] sm:$0xf]
  %v764 = vld [vmem:[%s3 + $0x100] sm:$0xf]
  %v765 = vld [vmem:[%s3 + $0x104] sm:$0xf]
  %v766 = vld [vmem:[%s3 + $0x108] sm:$0xf]
  %v767 = vld [vmem:[%s3 + $0x10c] sm:$0xf]
  %v768 = vld [vmem:[%s3 + $0x110] sm:$0xf]
  %v769 = vld [vmem:[%s3 + $0x114] sm:$0xf]
  %v770 = vld [vmem:[%s3 + $0x118] sm:$0xf]
  %v771 = vld [vmem:[%s3 + $0x11c] sm:$0xf]
  %v772 = vld [vmem:[%s3 + $0x120] sm:$0xf]
  %v773 = vld [vmem:[%s3 + $0x124] sm:$0xf]
  %v774 = vld [vmem:[%s3 + $0x128] sm:$0xf]
  %v775 = vld [vmem:[%s3 + $0x12c] sm:$0xf]
  %v776 = vld [vmem:[%s3 + $0x130] sm:$0xf]
  %v777 = vld [vmem:[%s3 + $0x134] sm:$0xf]
  %v778 = vld [vmem:[%s3 + $0x138] sm:$0xf]
  %v779 = vld [vmem:[%s3 + $0x13c] sm:$0xf]
  %v780 = vld [vmem:[%s3 + $0x140] sm:$0xf]
  %v781 = vld [vmem:[%s3 + $0x144] sm:$0xf]
  %v782 = vld [vmem:[%s3 + $0x148] sm:$0xf]
  %v783 = vld [vmem:[%s3 + $0x14c] sm:$0xf]
  %v784 = vld [vmem:[%s3 + $0x150] sm:$0xf]
  %v785 = vld [vmem:[%s3 + $0x154] sm:$0xf]
  %v786 = vld [vmem:[%s3 + $0x158] sm:$0xf]
  %v787 = vld [vmem:[%s3 + $0x15c] sm:$0xf]
  %v788 = vld [vmem:[%s3 + $0x160] sm:$0xf]
  %v789 = vld [vmem:[%s3 + $0x164] sm:$0xf]
  %v790 = vld [vmem:[%s3 + $0x168] sm:$0xf]
  %v791 = vld [vmem:[%s3 + $0x16c] sm:$0xf]
  %v792 = vld [vmem:[%s3 + $0x170] sm:$0xf]
  %v793 = vld [vmem:[%s3 + $0x174] sm:$0xf]
  %v794 = vld [vmem:[%s3 + $0x178] sm:$0xf]
  %v795 = vld [vmem:[%s3 + $0x17c] sm:$0xf]
  %v796 = vld [vmem:[%s3 + $0x180] sm:$0xf]
  %v797 = vld [vmem:[%s3 + $0x184] sm:$0xf]
  %v798 = vld [vmem:[%s3 + $0x188] sm:$0xf]
  %v799 = vld [vmem:[%s3 + $0x18c] sm:$0xf]
  %v800 = vld [vmem:[%s3 + $0x190] sm:$0xf]
  %v801 = vld [vmem:[%s3 + $0x194] sm:$0xf]
  %v802 = vld [vmem:[%s3 + $0x198] sm:$0xf]
  %v803 = vld [vmem:[%s3 + $0x19c] sm:$0xf]
  %v804 = vld [vmem:[%s3 + $0x1a0] sm:$0xf]
  %v805 = vld [vmem:[%s3 + $0x1a4] sm:$0xf]
  %v806 = vld [vmem:[%s3 + $0x1a8] sm:$0xf]
  %v807 = vld [vmem:[%s3 + $0x1ac] sm:$0xf]
  %v808 = vld [vmem:[%s3 + $0x1b0] sm:$0xf]
  %v809 = vld [vmem:[%s3 + $0x1b4] sm:$0xf]
  %v810 = vld [vmem:[%s3 + $0x1b8] sm:$0xf]
  %v811 = vld [vmem:[%s3 + $0x1bc] sm:$0xf]
  %v812 = vld [vmem:[%s3 + $0x1c0] sm:$0xf]
  %v813 = vld [vmem:[%s3 + $0x1c4] sm:$0xf]
  %v814 = vld [vmem:[%s3 + $0x1c8] sm:$0xf]
  %v815 = vld [vmem:[%s3 + $0x1cc] sm:$0xf]
  %v816 = vld [vmem:[%s3 + $0x1d0] sm:$0xf]
  %v817 = vld [vmem:[%s3 + $0x1d4] sm:$0xf]
  %v818 = vld [vmem:[%s3 + $0x1d8] sm:$0xf]
  %v819 = vld [vmem:[%s3 + $0x1dc] sm:$0xf]
  %v820 = vld [vmem:[%s3 + $0x1e0] sm:$0xf]
  %v821 = vld [vmem:[%s3 + $0x1e4] sm:$0xf]
  %v822 = vld [vmem:[%s3 + $0x1e8] sm:$0xf]
  %v823 = vld [vmem:[%s3 + $0x1ec] sm:$0xf]
  %v824 = vld [vmem:[%s3 + $0x1f0] sm:$0xf]
  %v825 = vld [vmem:[%s3 + $0x1f4] sm:$0xf]
  %v826 = vld [vmem:[%s3 + $0x1f8] sm:$0xf]
  %v827 = vld [vmem:[%s3 + $0x1fc] sm:$0xf]
  %v828 = vld [vmem:[%s3 + $0x200] sm:$0xf]
  %v829 = vld [vmem:[%s3 + $0x204] sm:$0xf]
  %v830 = vld [vmem:[%s3 + $0x208] sm:$0xf]
  %v831 = vld [vmem:[%s3 + $0x20c] sm:$0xf]
  %v832 = vld [vmem:[%s3 + $0x210] sm:$0xf]
  %v833 = vld [vmem:[%s3 + $0x214] sm:$0xf]
  %v834 = vld [vmem:[%s3 + $0x218] sm:$0xf]
  %v835 = vld [vmem:[%s3 + $0x21c] sm:$0xf]
  %v836 = vld [vmem:[%s3 + $0x220] sm:$0xf]
  %v837 = vld [vmem:[%s3 + $0x224] sm:$0xf]
  %v838 = vld [vmem:[%s3 + $0x228] sm:$0xf]
  %v839 = vld [vmem:[%s3 + $0x22c] sm:$0xf]
  %v840 = vld [vmem:[%s3 + $0x230] sm:$0xf]
  %v841 = vld [vmem:[%s3 + $0x234] sm:$0xf]
  %v842 = vld [vmem:[%s3 + $0x238] sm:$0xf]
  %v843 = vld [vmem:[%s3 + $0x23c] sm:$0xf]
  %v844 = vld [vmem:[%s3 + $0x240] sm:$0xf]
  %v845 = vld [vmem:[%s3 + $0x244] sm:$0xf]
  %v846 = vld [vmem:[%s3 + $0x248] sm:$0xf]
  %v847 = vld [vmem:[%s3 + $0x24c] sm:$0xf]
  %v848 = vld [vmem:[%s3 + $0x250] sm:$0xf]
  %v849 = vld [vmem:[%s3 + $0x254] sm:$0xf]
  %v850 = vld [vmem:[%s3 + $0x258] sm:$0xf]
  %v851 = vld [vmem:[%s3 + $0x25c] sm:$0xf]
  %v852 = vld [vmem:[%s3 + $0x260] sm:$0xf]
  %v853 = vld [vmem:[%s3 + $0x264] sm:$0xf]
  %v854 = vld [vmem:[%s3 + $0x268] sm:$0xf]
  %v855 = vld [vmem:[%s3 + $0x26c] sm:$0xf]
  %v856 = vld [vmem:[%s3 + $0x270] sm:$0xf]
  %v857 = vld [vmem:[%s3 + $0x274] sm:$0xf]
  %v858 = vld [vmem:[%s3 + $0x278] sm:$0xf]
  %v859 = vld [vmem:[%s3 + $0x27c] sm:$0xf]
  %v860 = vld [vmem:[%s3 + $0x280] sm:$0xf]
  %v861 = vld [vmem:[%s3 + $0x284] sm:$0xf]
  %v862 = vld [vmem:[%s3 + $0x288] sm:$0xf]
  %v863 = vld [vmem:[%s3 + $0x28c] sm:$0xf]
  %v864 = vld [vmem:[%s3 + $0x290] sm:$0xf]
  %v865 = vld [vmem:[%s3 + $0x294] sm:$0xf]
  %v866 = vld [vmem:[%s3 + $0x298] sm:$0xf]
  %v867 = vld [vmem:[%s3 + $0x29c] sm:$0xf]
  %v868 = vld [vmem:[%s3 + $0x2a0] sm:$0xf]
  %v869 = vld [vmem:[%s3 + $0x2a4] sm:$0xf]
  %v870 = vld [vmem:[%s3 + $0x2a8] sm:$0xf]
  %v871 = vld [vmem:[%s3 + $0x2ac] sm:$0xf]
  %v872 = vld [vmem:[%s3 + $0x2b0] sm:$0xf]
  %v873 = vld [vmem:[%s3 + $0x2b4] sm:$0xf]
  %v874 = vld [vmem:[%s3 + $0x2b8] sm:$0xf]
  %v875 = vld [vmem:[%s3 + $0x2bc] sm:$0xf]
  %v876 = vld [vmem:[%s3 + $0x2c0] sm:$0xf]
  %v877 = vld [vmem:[%s3 + $0x2c4] sm:$0xf]
  %v878 = vld [vmem:[%s3 + $0x2c8] sm:$0xf]
  %v879 = vld [vmem:[%s3 + $0x2cc] sm:$0xf]
  %v880 = vld [vmem:[%s3 + $0x2d0] sm:$0xf]
  %v881 = vld [vmem:[%s3 + $0x2d4] sm:$0xf]
  %v882 = vld [vmem:[%s3 + $0x2d8] sm:$0xf]
  %v883 = vld [vmem:[%s3 + $0x2dc] sm:$0xf]
  %v884 = vld [vmem:[%s3 + $0x2e0] sm:$0xf]
  %v885 = vld [vmem:[%s3 + $0x2e4] sm:$0xf]
  %v886 = vld [vmem:[%s3 + $0x2e8] sm:$0xf]
  %v887 = vld [vmem:[%s3 + $0x2ec] sm:$0xf]
  %v888 = vld [vmem:[%s3 + $0x2f0] sm:$0xf]
  %v889 = vld [vmem:[%s3 + $0x2f4] sm:$0xf]
  %v890 = vld [vmem:[%s3 + $0x2f8] sm:$0xf]
  %v891 = vld [vmem:[%s3 + $0x2fc] sm:$0xf]
  %v892 = vld [vmem:[%s3 + $0x300] sm:$0xf]
  %v893 = vld [vmem:[%s3 + $0x304] sm:$0xf]
  %v894 = vld [vmem:[%s3 + $0x308] sm:$0xf]
  %v895 = vld [vmem:[%s3 + $0x30c] sm:$0xf]
  %v896 = vld [vmem:[%s3 + $0x310] sm:$0xf]
  %v897 = vld [vmem:[%s3 + $0x314] sm:$0xf]
  %v898 = vld [vmem:[%s3 + $0x318] sm:$0xf]
  %v899 = vld [vmem:[%s3 + $0x31c] sm:$0xf]
  %v900 = vld [vmem:[%s3 + $0x320] sm:$0xf]
  %v901 = vld [vmem:[%s3 + $0x324] sm:$0xf]
  %v902 = vld [vmem:[%s3 + $0x328] sm:$0xf]
  %v903 = vld [vmem:[%s3 + $0x32c] sm:$0xf]
  %v904 = vld [vmem:[%s3 + $0x330] sm:$0xf]
  %v905 = vld [vmem:[%s3 + $0x334] sm:$0xf]
  %v906 = vld [vmem:[%s3 + $0x338] sm:$0xf]
  %v907 = vld [vmem:[%s3 + $0x33c] sm:$0xf]
  %v908 = vld [vmem:[%s3 + $0x340] sm:$0xf]
  %v909 = vld [vmem:[%s3 + $0x344] sm:$0xf]
  %v910 = vld [vmem:[%s3 + $0x348] sm:$0xf]
  %v911 = vld [vmem:[%s3 + $0x34c] sm:$0xf]
  %v912 = vld [vmem:[%s3 + $0x350] sm:$0xf]
  %v913 = vld [vmem:[%s3 + $0x354] sm:$0xf]
  %v914 = vld [vmem:[%s3 + $0x358] sm:$0xf]
  %v915 = vld [vmem:[%s3 + $0x35c] sm:$0xf]
  %v916 = vld [vmem:[%s3 + $0x360] sm:$0xf]
  %v917 = vld [vmem:[%s3 + $0x364] sm:$0xf]
  %v918 = vld [vmem:[%s3 + $0x368] sm:$0xf]
  %v919 = vld [vmem:[%s3 + $0x36c] sm:$0xf]
  %v920 = vld [vmem:[%s3 + $0x370] sm:$0xf]
  %v921 = vld [vmem:[%s3 + $0x374] sm:$0xf]
  %v922 = vld [vmem:[%s3 + $0x378] sm:$0xf]
  %v923 = vld [vmem:[%s3 + $0x37c] sm:$0xf]
  %v924 = vld [vmem:[%s3 + $0x380] sm:$0xf]
  %v925 = vld [vmem:[%s3 + $0x384] sm:$0xf]
  %v926 = vld [vmem:[%s3 + $0x388] sm:$0xf]
  %v927 = vld [vmem:[%s3 + $0x38c] sm:$0xf]
  %v928 = vld [vmem:[%s3 + $0x390] sm:$0xf]
  %v929 = vld [vmem:[%s3 + $0x394] sm:$0xf]
  %v930 = vld [vmem:[%s3 + $0x398] sm:$0xf]
  %v931 = vld [vmem:[%s3 + $0x39c] sm:$0xf]
  %v932 = vld [vmem:[%s3 + $0x3a0] sm:$0xf]
  %v933 = vld [vmem:[%s3 + $0x3a4] sm:$0xf]
  %v934 = vld [vmem:[%s3 + $0x3a8] sm:$0xf]
  %v935 = vld [vmem:[%s3 + $0x3ac] sm:$0xf]
  %v936 = vld [vmem:[%s3 + $0x3b0] sm:$0xf]
  %v937 = vld [vmem:[%s3 + $0x3b4] sm:$0xf]
  %v938 = vld [vmem:[%s3 + $0x3b8] sm:$0xf]
  %v939 = vld [vmem:[%s3 + $0x3bc] sm:$0xf]
  %v940 = vld [vmem:[%s3 + $0x3c0] sm:$0xf]
  %v941 = vld [vmem:[%s3 + $0x3c4] sm:$0xf]
  %v942 = vld [vmem:[%s3 + $0x3c8] sm:$0xf]
  %v943 = vld [vmem:[%s3 + $0x3cc] sm:$0xf]
  %v944 = vld [vmem:[%s3 + $0x3d0] sm:$0xf]
  %v945 = vld [vmem:[%s3 + $0x3d4] sm:$0xf]
  %v946 = vld [vmem:[%s3 + $0x3d8] sm:$0xf]
  %v947 = vld [vmem:[%s3 + $0x3dc] sm:$0xf]
  %v948 = vld [vmem:[%s3 + $0x3e0] sm:$0xf]
  %v949 = vld [vmem:[%s3 + $0x3e4] sm:$0xf]
  %v950 = vld [vmem:[%s3 + $0x3e8] sm:$0xf]
  %v951 = vld [vmem:[%s3 + $0x3ec] sm:$0xf]
  %v952 = vld [vmem:[%s3 + $0x3f0] sm:$0xf]
  %v953 = vld [vmem:[%s3 + $0x3f4] sm:$0xf]
  %v954 = vld [vmem:[%s3 + $0x3f8] sm:$0xf]
  %v955 = vld [vmem:[%s3 + $0x3fc] sm:$0xf]
  %v956 = vld [vmem:[%s4] sm:$0x1]
  %v958 = vlaneseq
  %v959 = vshrl.u32 %v958, 7
  %v960 = vsub.s32 0, %v959
  %v961 = vrot.slane %v956, %v960
  %v1219 = vunpack.c.l.b16 %v700
  %v1220 = vunpack.c.l.b16 %v701
  %v1221 = vunpack.c.l.b16 %v702
  %v1222 = vunpack.c.l.b16 %v703
  %v1223 = vunpack.c.l.b16 %v704
  %v1224 = vunpack.c.l.b16 %v705
  %v1225 = vunpack.c.l.b16 %v706
  %v1226 = vunpack.c.l.b16 %v707
  %v1227 = vunpack.c.l.b16 %v708
  %v1228 = vunpack.c.l.b16 %v709
  %v1229 = vunpack.c.l.b16 %v710
  %v1230 = vunpack.c.l.b16 %v711
  %v1231 = vunpack.c.l.b16 %v712
  %v1232 = vunpack.c.l.b16 %v713
  %v1233 = vunpack.c.l.b16 %v714
  %v1234 = vunpack.c.l.b16 %v715
  %v1235 = vunpack.c.l.b16 %v716
  %v1236 = vunpack.c.l.b16 %v717
  %v1237 = vunpack.c.l.b16 %v718
  %v1238 = vunpack.c.l.b16 %v719
  %v1239 = vunpack.c.l.b16 %v720
  %v1240 = vunpack.c.l.b16 %v721
  %v1241 = vunpack.c.l.b16 %v722
  %v1242 = vunpack.c.l.b16 %v723
  %v1243 = vunpack.c.l.b16 %v724
  %v1244 = vunpack.c.l.b16 %v725
  %v1245 = vunpack.c.l.b16 %v726
  %v1246 = vunpack.c.l.b16 %v727
  %v1247 = vunpack.c.l.b16 %v728
  %v1248 = vunpack.c.l.b16 %v729
  %v1249 = vunpack.c.l.b16 %v730
  %v1250 = vunpack.c.l.b16 %v731
  %v1251 = vunpack.c.l.b16 %v732
  %v1252 = vunpack.c.l.b16 %v733
  %v1253 = vunpack.c.l.b16 %v734
  %v1254 = vunpack.c.l.b16 %v735
  %v1255 = vunpack.c.l.b16 %v736
  %v1256 = vunpack.c.l.b16 %v737
  %v1257 = vunpack.c.l.b16 %v738
  %v1258 = vunpack.c.l.b16 %v739
  %v1259 = vunpack.c.l.b16 %v740
  %v1260 = vunpack.c.l.b16 %v741
  %v1261 = vunpack.c.l.b16 %v742
  %v1262 = vunpack.c.l.b16 %v743
  %v1263 = vunpack.c.l.b16 %v744
  %v1264 = vunpack.c.l.b16 %v745
  %v1265 = vunpack.c.l.b16 %v746
  %v1266 = vunpack.c.l.b16 %v747
  %v1267 = vunpack.c.l.b16 %v748
  %v1268 = vunpack.c.l.b16 %v749
  %v1269 = vunpack.c.l.b16 %v750
  %v1270 = vunpack.c.l.b16 %v751
  %v1271 = vunpack.c.l.b16 %v752
  %v1272 = vunpack.c.l.b16 %v753
  %v1273 = vunpack.c.l.b16 %v754
  %v1274 = vunpack.c.l.b16 %v755
  %v1275 = vunpack.c.l.b16 %v756
  %v1276 = vunpack.c.l.b16 %v757
  %v1277 = vunpack.c.l.b16 %v758
  %v1278 = vunpack.c.l.b16 %v759
  %v1279 = vunpack.c.l.b16 %v760
  %v1280 = vunpack.c.l.b16 %v761
  %v1281 = vunpack.c.l.b16 %v762
  %v1282 = vunpack.c.l.b16 %v763
  %v1283 = vunpack.c.l.b16 %v764
  %v1284 = vunpack.c.l.b16 %v765
  %v1285 = vunpack.c.l.b16 %v766
  %v1286 = vunpack.c.l.b16 %v767
  %v1287 = vunpack.c.l.b16 %v768
  %v1288 = vunpack.c.l.b16 %v769
  %v1289 = vunpack.c.l.b16 %v770
  %v1290 = vunpack.c.l.b16 %v771
  %v1291 = vunpack.c.l.b16 %v772
  %v1292 = vunpack.c.l.b16 %v773
  %v1293 = vunpack.c.l.b16 %v774
  %v1294 = vunpack.c.l.b16 %v775
  %v1295 = vunpack.c.l.b16 %v776
  %v1296 = vunpack.c.l.b16 %v777
  %v1297 = vunpack.c.l.b16 %v778
  %v1298 = vunpack.c.l.b16 %v779
  %v1299 = vunpack.c.l.b16 %v780
  %v1300 = vunpack.c.l.b16 %v781
  %v1301 = vunpack.c.l.b16 %v782
  %v1302 = vunpack.c.l.b16 %v783
  %v1303 = vunpack.c.l.b16 %v784
  %v1304 = vunpack.c.l.b16 %v785
  %v1305 = vunpack.c.l.b16 %v786
  %v1306 = vunpack.c.l.b16 %v787
  %v1307 = vunpack.c.l.b16 %v788
  %v1308 = vunpack.c.l.b16 %v789
  %v1309 = vunpack.c.l.b16 %v790
  %v1310 = vunpack.c.l.b16 %v791
  %v1311 = vunpack.c.l.b16 %v792
  %v1312 = vunpack.c.l.b16 %v793
  %v1313 = vunpack.c.l.b16 %v794
  %v1314 = vunpack.c.l.b16 %v795
  %v1315 = vunpack.c.l.b16 %v796
  %v1316 = vunpack.c.l.b16 %v797
  %v1317 = vunpack.c.l.b16 %v798
  %v1318 = vunpack.c.l.b16 %v799
  %v1319 = vunpack.c.l.b16 %v800
  %v1320 = vunpack.c.l.b16 %v801
  %v1321 = vunpack.c.l.b16 %v802
  %v1322 = vunpack.c.l.b16 %v803
  %v1323 = vunpack.c.l.b16 %v804
  %v1324 = vunpack.c.l.b16 %v805
  %v1325 = vunpack.c.l.b16 %v806
  %v1326 = vunpack.c.l.b16 %v807
  %v1327 = vunpack.c.l.b16 %v808
  %v1328 = vunpack.c.l.b16 %v809
  %v1329 = vunpack.c.l.b16 %v810
  %v1330 = vunpack.c.l.b16 %v811
  %v1331 = vunpack.c.l.b16 %v812
  %v1332 = vunpack.c.l.b16 %v813
  %v1333 = vunpack.c.l.b16 %v814
  %v1334 = vunpack.c.l.b16 %v815
  %v1335 = vunpack.c.l.b16 %v816
  %v1336 = vunpack.c.l.b16 %v817
  %v1337 = vunpack.c.l.b16 %v818
  %v1338 = vunpack.c.l.b16 %v819
  %v1339 = vunpack.c.l.b16 %v820
  %v1340 = vunpack.c.l.b16 %v821
  %v1341 = vunpack.c.l.b16 %v822
  %v1342 = vunpack.c.l.b16 %v823
  %v1343 = vunpack.c.l.b16 %v824
  %v1344 = vunpack.c.l.b16 %v825
  %v1345 = vunpack.c.l.b16 %v826
  %v1346 = vunpack.c.l.b16 %v827
  %v1347 = vunpack.c.l.b16 %v828
  %v1348 = vunpack.c.l.b16 %v829
  %v1349 = vunpack.c.l.b16 %v830
  %v1350 = vunpack.c.l.b16 %v831
  %v1351 = vunpack.c.l.b16 %v832
  %v1352 = vunpack.c.l.b16 %v833
  %v1353 = vunpack.c.l.b16 %v834
  %v1354 = vunpack.c.l.b16 %v835
  %v1355 = vunpack.c.l.b16 %v836
  %v1356 = vunpack.c.l.b16 %v837
  %v1357 = vunpack.c.l.b16 %v838
  %v1358 = vunpack.c.l.b16 %v839
  %v1359 = vunpack.c.l.b16 %v840
  %v1360 = vunpack.c.l.b16 %v841
  %v1361 = vunpack.c.l.b16 %v842
  %v1362 = vunpack.c.l.b16 %v843
  %v1363 = vunpack.c.l.b16 %v844
  %v1364 = vunpack.c.l.b16 %v845
  %v1365 = vunpack.c.l.b16 %v846
  %v1366 = vunpack.c.l.b16 %v847
  %v1367 = vunpack.c.l.b16 %v848
  %v1368 = vunpack.c.l.b16 %v849
  %v1369 = vunpack.c.l.b16 %v850
  %v1370 = vunpack.c.l.b16 %v851
  %v1371 = vunpack.c.l.b16 %v852
  %v1372 = vunpack.c.l.b16 %v853
  %v1373 = vunpack.c.l.b16 %v854
  %v1374 = vunpack.c.l.b16 %v855
  %v1375 = vunpack.c.l.b16 %v856
  %v1376 = vunpack.c.l.b16 %v857
  %v1377 = vunpack.c.l.b16 %v858
  %v1378 = vunpack.c.l.b16 %v859
  %v1379 = vunpack.c.l.b16 %v860
  %v1380 = vunpack.c.l.b16 %v861
  %v1381 = vunpack.c.l.b16 %v862
  %v1382 = vunpack.c.l.b16 %v863
  %v1383 = vunpack.c.l.b16 %v864
  %v1384 = vunpack.c.l.b16 %v865
  %v1385 = vunpack.c.l.b16 %v866
  %v1386 = vunpack.c.l.b16 %v867
  %v1387 = vunpack.c.l.b16 %v868
  %v1388 = vunpack.c.l.b16 %v869
  %v1389 = vunpack.c.l.b16 %v870
  %v1390 = vunpack.c.l.b16 %v871
  %v1391 = vunpack.c.l.b16 %v872
  %v1392 = vunpack.c.l.b16 %v873
  %v1393 = vunpack.c.l.b16 %v874
  %v1394 = vunpack.c.l.b16 %v875
  %v1395 = vunpack.c.l.b16 %v876
  %v1396 = vunpack.c.l.b16 %v877
  %v1397 = vunpack.c.l.b16 %v878
  %v1398 = vunpack.c.l.b16 %v879
  %v1399 = vunpack.c.l.b16 %v880
  %v1400 = vunpack.c.l.b16 %v881
  %v1401 = vunpack.c.l.b16 %v882
  %v1402 = vunpack.c.l.b16 %v883
  %v1403 = vunpack.c.l.b16 %v884
  %v1404 = vunpack.c.l.b16 %v885
  %v1405 = vunpack.c.l.b16 %v886
  %v1406 = vunpack.c.l.b16 %v887
  %v1407 = vunpack.c.l.b16 %v888
  %v1408 = vunpack.c.l.b16 %v889
  %v1409 = vunpack.c.l.b16 %v890
  %v1410 = vunpack.c.l.b16 %v891
  %v1411 = vunpack.c.l.b16 %v892
  %v1412 = vunpack.c.l.b16 %v893
  %v1413 = vunpack.c.l.b16 %v894
  %v1414 = vunpack.c.l.b16 %v895
  %v1415 = vunpack.c.l.b16 %v896
  %v1416 = vunpack.c.l.b16 %v897
  %v1417 = vunpack.c.l.b16 %v898
  %v1418 = vunpack.c.l.b16 %v899
  %v1419 = vunpack.c.l.b16 %v900
  %v1420 = vunpack.c.l.b16 %v901
  %v1421 = vunpack.c.l.b16 %v902
  %v1422 = vunpack.c.l.b16 %v903
  %v1423 = vunpack.c.l.b16 %v904
  %v1424 = vunpack.c.l.b16 %v905
  %v1425 = vunpack.c.l.b16 %v906
  %v1426 = vunpack.c.l.b16 %v907
  %v1427 = vunpack.c.l.b16 %v908
  %v1428 = vunpack.c.l.b16 %v909
  %v1429 = vunpack.c.l.b16 %v910
  %v1430 = vunpack.c.l.b16 %v911
  %v1431 = vunpack.c.l.b16 %v912
  %v1432 = vunpack.c.l.b16 %v913
  %v1433 = vunpack.c.l.b16 %v914
  %v1434 = vunpack.c.l.b16 %v915
  %v1435 = vunpack.c.l.b16 %v916
  %v1436 = vunpack.c.l.b16 %v917
  %v1437 = vunpack.c.l.b16 %v918
  %v1438 = vunpack.c.l.b16 %v919
  %v1439 = vunpack.c.l.b16 %v920
  %v1440 = vunpack.c.l.b16 %v921
  %v1441 = vunpack.c.l.b16 %v922
  %v1442 = vunpack.c.l.b16 %v923
  %v1443 = vunpack.c.l.b16 %v924
  %v1444 = vunpack.c.l.b16 %v925
  %v1445 = vunpack.c.l.b16 %v926
  %v1446 = vunpack.c.l.b16 %v927
  %v1447 = vunpack.c.l.b16 %v928
  %v1448 = vunpack.c.l.b16 %v929
  %v1449 = vunpack.c.l.b16 %v930
  %v1450 = vunpack.c.l.b16 %v931
  %v1451 = vunpack.c.l.b16 %v932
  %v1452 = vunpack.c.l.b16 %v933
  %v1453 = vunpack.c.l.b16 %v934
  %v1454 = vunpack.c.l.b16 %v935
  %v1455 = vunpack.c.l.b16 %v936
  %v1456 = vunpack.c.l.b16 %v937
  %v1457 = vunpack.c.l.b16 %v938
  %v1458 = vunpack.c.l.b16 %v939
  %v1459 = vunpack.c.l.b16 %v940
  %v1460 = vunpack.c.l.b16 %v941
  %v1461 = vunpack.c.l.b16 %v942
  %v1462 = vunpack.c.l.b16 %v943
  %v1463 = vunpack.c.l.b16 %v944
  %v1464 = vunpack.c.l.b16 %v945
  %v1465 = vunpack.c.l.b16 %v946
  %v1466 = vunpack.c.l.b16 %v947
  %v1467 = vunpack.c.l.b16 %v948
  %v1468 = vunpack.c.l.b16 %v949
  %v1469 = vunpack.c.l.b16 %v950
  %v1470 = vunpack.c.l.b16 %v951
  %v1471 = vunpack.c.l.b16 %v952
  %v1472 = vunpack.c.l.b16 %v953
  %v1473 = vunpack.c.l.b16 %v954
  %v1474 = vunpack.c.l.b16 %v955
  %v1475 = vpack.c.b16 %v1220, %v1219
  %v1476 = vpack.c.b16 %v1222, %v1221
  %v1477 = vpack.c.b16 %v1224, %v1223
  %v1478 = vpack.c.b16 %v1226, %v1225
  %v1479 = vpack.c.b16 %v1228, %v1227
  %v1480 = vpack.c.b16 %v1230, %v1229
  %v1481 = vpack.c.b16 %v1232, %v1231
  %v1482 = vpack.c.b16 %v1234, %v1233
  %v1483 = vpack.c.b16 %v1236, %v1235
  %v1484 = vpack.c.b16 %v1238, %v1237
  %v1485 = vpack.c.b16 %v1240, %v1239
  %v1486 = vpack.c.b16 %v1242, %v1241
  %v1487 = vpack.c.b16 %v1244, %v1243
  %v1488 = vpack.c.b16 %v1246, %v1245
  %v1489 = vpack.c.b16 %v1248, %v1247
  %v1490 = vpack.c.b16 %v1250, %v1249
  %v1491 = vpack.c.b16 %v1252, %v1251
  %v1492 = vpack.c.b16 %v1254, %v1253
  %v1493 = vpack.c.b16 %v1256, %v1255
  %v1494 = vpack.c.b16 %v1258, %v1257
  %v1495 = vpack.c.b16 %v1260, %v1259
  %v1496 = vpack.c.b16 %v1262, %v1261
  %v1497 = vpack.c.b16 %v1264, %v1263
  %v1498 = vpack.c.b16 %v1266, %v1265
  %v1499 = vpack.c.b16 %v1268, %v1267
  %v1500 = vpack.c.b16 %v1270, %v1269
  %v1501 = vpack.c.b16 %v1272, %v1271
  %v1502 = vpack.c.b16 %v1274, %v1273
  %v1503 = vpack.c.b16 %v1276, %v1275
  %v1504 = vpack.c.b16 %v1278, %v1277
  %v1505 = vpack.c.b16 %v1280, %v1279
  %v1506 = vpack.c.b16 %v1282, %v1281
  %v1507 = vpack.c.b16 %v1284, %v1283
  %v1508 = vpack.c.b16 %v1286, %v1285
  %v1509 = vpack.c.b16 %v1288, %v1287
  %v1510 = vpack.c.b16 %v1290, %v1289
  %v1511 = vpack.c.b16 %v1292, %v1291
  %v1512 = vpack.c.b16 %v1294, %v1293
  %v1513 = vpack.c.b16 %v1296, %v1295
  %v1514 = vpack.c.b16 %v1298, %v1297
  %v1515 = vpack.c.b16 %v1300, %v1299
  %v1516 = vpack.c.b16 %v1302, %v1301
  %v1517 = vpack.c.b16 %v1304, %v1303
  %v1518 = vpack.c.b16 %v1306, %v1305
  %v1519 = vpack.c.b16 %v1308, %v1307
  %v1520 = vpack.c.b16 %v1310, %v1309
  %v1521 = vpack.c.b16 %v1312, %v1311
  %v1522 = vpack.c.b16 %v1314, %v1313
  %v1523 = vpack.c.b16 %v1316, %v1315
  %v1524 = vpack.c.b16 %v1318, %v1317
  %v1525 = vpack.c.b16 %v1320, %v1319
  %v1526 = vpack.c.b16 %v1322, %v1321
  %v1527 = vpack.c.b16 %v1324, %v1323
  %v1528 = vpack.c.b16 %v1326, %v1325
  %v1529 = vpack.c.b16 %v1328, %v1327
  %v1530 = vpack.c.b16 %v1330, %v1329
  %v1531 = vpack.c.b16 %v1332, %v1331
  %v1532 = vpack.c.b16 %v1334, %v1333
  %v1533 = vpack.c.b16 %v1336, %v1335
  %v1534 = vpack.c.b16 %v1338, %v1337
  %v1535 = vpack.c.b16 %v1340, %v1339
  %v1536 = vpack.c.b16 %v1342, %v1341
  %v1537 = vpack.c.b16 %v1344, %v1343
  %v1538 = vpack.c.b16 %v1346, %v1345
  %v1539 = vpack.c.b16 %v1348, %v1347
  %v1540 = vpack.c.b16 %v1350, %v1349
  %v1541 = vpack.c.b16 %v1352, %v1351
  %v1542 = vpack.c.b16 %v1354, %v1353
  %v1543 = vpack.c.b16 %v1356, %v1355
  %v1544 = vpack.c.b16 %v1358, %v1357
  %v1545 = vpack.c.b16 %v1360, %v1359
  %v1546 = vpack.c.b16 %v1362, %v1361
  %v1547 = vpack.c.b16 %v1364, %v1363
  %v1548 = vpack.c.b16 %v1366, %v1365
  %v1549 = vpack.c.b16 %v1368, %v1367
  %v1550 = vpack.c.b16 %v1370, %v1369
  %v1551 = vpack.c.b16 %v1372, %v1371
  %v1552 = vpack.c.b16 %v1374, %v1373
  %v1553 = vpack.c.b16 %v1376, %v1375
  %v1554 = vpack.c.b16 %v1378, %v1377
  %v1555 = vpack.c.b16 %v1380, %v1379
  %v1556 = vpack.c.b16 %v1382, %v1381
  %v1557 = vpack.c.b16 %v1384, %v1383
  %v1558 = vpack.c.b16 %v1386, %v1385
  %v1559 = vpack.c.b16 %v1388, %v1387
  %v1560 = vpack.c.b16 %v1390, %v1389
  %v1561 = vpack.c.b16 %v1392, %v1391
  %v1562 = vpack.c.b16 %v1394, %v1393
  %v1563 = vpack.c.b16 %v1396, %v1395
  %v1564 = vpack.c.b16 %v1398, %v1397
  %v1565 = vpack.c.b16 %v1400, %v1399
  %v1566 = vpack.c.b16 %v1402, %v1401
  %v1567 = vpack.c.b16 %v1404, %v1403
  %v1568 = vpack.c.b16 %v1406, %v1405
  %v1569 = vpack.c.b16 %v1408, %v1407
  %v1570 = vpack.c.b16 %v1410, %v1409
  %v1571 = vpack.c.b16 %v1412, %v1411
  %v1572 = vpack.c.b16 %v1414, %v1413
  %v1573 = vpack.c.b16 %v1416, %v1415
  %v1574 = vpack.c.b16 %v1418, %v1417
  %v1575 = vpack.c.b16 %v1420, %v1419
  %v1576 = vpack.c.b16 %v1422, %v1421
  %v1577 = vpack.c.b16 %v1424, %v1423
  %v1578 = vpack.c.b16 %v1426, %v1425
  %v1579 = vpack.c.b16 %v1428, %v1427
  %v1580 = vpack.c.b16 %v1430, %v1429
  %v1581 = vpack.c.b16 %v1432, %v1431
  %v1582 = vpack.c.b16 %v1434, %v1433
  %v1583 = vpack.c.b16 %v1436, %v1435
  %v1584 = vpack.c.b16 %v1438, %v1437
  %v1585 = vpack.c.b16 %v1440, %v1439
  %v1586 = vpack.c.b16 %v1442, %v1441
  %v1587 = vpack.c.b16 %v1444, %v1443
  %v1588 = vpack.c.b16 %v1446, %v1445
  %v1589 = vpack.c.b16 %v1448, %v1447
  %v1590 = vpack.c.b16 %v1450, %v1449
  %v1591 = vpack.c.b16 %v1452, %v1451
  %v1592 = vpack.c.b16 %v1454, %v1453
  %v1593 = vpack.c.b16 %v1456, %v1455
  %v1594 = vpack.c.b16 %v1458, %v1457
  %v1595 = vpack.c.b16 %v1460, %v1459
  %v1596 = vpack.c.b16 %v1462, %v1461
  %v1597 = vpack.c.b16 %v1464, %v1463
  %v1598 = vpack.c.b16 %v1466, %v1465
  %v1599 = vpack.c.b16 %v1468, %v1467
  %v1600 = vpack.c.b16 %v1470, %v1469
  %v1601 = vpack.c.b16 %v1472, %v1471
  %v1602 = vpack.c.b16 %v1474, %v1473
  %1731 = vmatprep.subr.bf16.mxu0 0
  %1732 = vmatpush1.bf16.msra.mxu0 %v1475
  %1733 = vmatprep.subr.bf16.mxu0 0
  %1734 = vmatpush1.bf16.msra.mxu0 %v1476
  %1735 = vmatprep.subr.bf16.mxu0 0
  %1736 = vmatpush1.bf16.msra.mxu0 %v1477
  %1737 = vmatprep.subr.bf16.mxu0 0
  %1738 = vmatpush1.bf16.msra.mxu0 %v1478
  %1739 = vmatprep.subr.bf16.mxu0 0
  %1740 = vmatpush1.bf16.msra.mxu0 %v1479
  %1741 = vmatprep.subr.bf16.mxu0 0
  %1742 = vmatpush1.bf16.msra.mxu0 %v1480
  %1743 = vmatprep.subr.bf16.mxu0 0
  %1744 = vmatpush1.bf16.msra.mxu0 %v1481
  %1745 = vmatprep.subr.bf16.mxu0 0
  %1746 = vmatpush1.bf16.msra.mxu0 %v1482
  %1747 = vmatprep.subr.bf16.mxu0 0
  %1748 = vmatpush1.bf16.msra.mxu0 %v1483
  %1749 = vmatprep.subr.bf16.mxu0 0
  %1750 = vmatpush1.bf16.msra.mxu0 %v1484
  %1751 = vmatprep.subr.bf16.mxu0 0
  %1752 = vmatpush1.bf16.msra.mxu0 %v1485
  %1753 = vmatprep.subr.bf16.mxu0 0
  %1754 = vmatpush1.bf16.msra.mxu0 %v1486
  %1755 = vmatprep.subr.bf16.mxu0 0
  %1756 = vmatpush1.bf16.msra.mxu0 %v1487
  %1757 = vmatprep.subr.bf16.mxu0 0
  %1758 = vmatpush1.bf16.msra.mxu0 %v1488
  %1759 = vmatprep.subr.bf16.mxu0 0
  %1760 = vmatpush1.bf16.msra.mxu0 %v1489
  %1761 = vmatprep.subr.bf16.mxu0 0
  %1762 = vmatpush1.bf16.msra.mxu0 %v1490
  %1763 = vmatprep.mubr.bf16.mxu0 %v685
  %1764 = vmatmul.mubr.bf16.gmra.mrb[0].mxu0 %v684
  %v1765 = vpop.f32.mrb[0].mxu0
  %v1766 = vadd.f32 %v961, %v1765
  %v1767 = vpop.f32.mrb[0].mxu0
  %v1768 = vpop.f32.mrb[0].mxu0
  %v1769 = vadd.f32 %v961, %v1768
  %v1770 = vpop.f32.mrb[0].mxu0
  %1771 = vdwg.mxu0
  %1772 = vmatprep.subr.bf16.mxu0 0
  %1773 = vmatpush1.bf16.msra.mxu0 %v1491
  %1774 = vmatprep.subr.bf16.mxu0 0
  %1775 = vmatpush1.bf16.msra.mxu0 %v1492
  %1776 = vmatprep.subr.bf16.mxu0 0
  %1777 = vmatpush1.bf16.msra.mxu0 %v1493
  %1778 = vmatprep.subr.bf16.mxu0 0
  %1779 = vmatpush1.bf16.msra.mxu0 %v1494
  %1780 = vmatprep.subr.bf16.mxu0 0
  %1781 = vmatpush1.bf16.msra.mxu0 %v1495
  %1782 = vmatprep.subr.bf16.mxu0 0
  %1783 = vmatpush1.bf16.msra.mxu0 %v1496
  %1784 = vmatprep.subr.bf16.mxu0 0
  %1785 = vmatpush1.bf16.msra.mxu0 %v1497
  %1786 = vmatprep.subr.bf16.mxu0 0
  %1787 = vmatpush1.bf16.msra.mxu0 %v1498
  %1788 = vmatprep.subr.bf16.mxu0 0
  %1789 = vmatpush1.bf16.msra.mxu0 %v1499
  %1790 = vmatprep.subr.bf16.mxu0 0
  %1791 = vmatpush1.bf16.msra.mxu0 %v1500
  %1792 = vmatprep.subr.bf16.mxu0 0
  %1793 = vmatpush1.bf16.msra.mxu0 %v1501
  %1794 = vmatprep.subr.bf16.mxu0 0
  %1795 = vmatpush1.bf16.msra.mxu0 %v1502
  %1796 = vmatprep.subr.bf16.mxu0 0
  %1797 = vmatpush1.bf16.msra.mxu0 %v1503
  %1798 = vmatprep.subr.bf16.mxu0 0
  %1799 = vmatpush1.bf16.msra.mxu0 %v1504
  %1800 = vmatprep.subr.bf16.mxu0 0
  %1801 = vmatpush1.bf16.msra.mxu0 %v1505
  %1802 = vmatprep.subr.bf16.mxu0 0
  %1803 = vmatpush1.bf16.msra.mxu0 %v1506
  %1804 = vmatprep.mubr.bf16.mxu0 %v687
  %1805 = vmatmul.mubr.bf16.gmra.mrb[0].mxu0 %v686
  %v1806 = vpop.f32.mrb[0].mxu0
  %v1807 = vadd.f32 %v1766, %v1806
  %v1808 = vpop.f32.mrb[0].mxu0
  %v1809 = vpop.f32.mrb[0].mxu0
  %v1810 = vadd.f32 %v1769, %v1809
  %v1811 = vpop.f32.mrb[0].mxu0
  %1812 = vdwg.mxu0
  %1813 = vmatprep.subr.bf16.mxu0 0
  %1814 = vmatpush1.bf16.msra.mxu0 %v1507
  %1815 = vmatprep.subr.bf16.mxu0 0
  %1816 = vmatpush1.bf16.msra.mxu0 %v1508
  %1817 = vmatprep.subr.bf16.mxu0 0
  %1818 = vmatpush1.bf16.msra.mxu0 %v1509
  %1819 = vmatprep.subr.bf16.mxu0 0
  %1820 = vmatpush1.bf16.msra.mxu0 %v1510
  %1821 = vmatprep.subr.bf16.mxu0 0
  %1822 = vmatpush1.bf16.msra.mxu0 %v1511
  %1823 = vmatprep.subr.bf16.mxu0 0
  %1824 = vmatpush1.bf16.msra.mxu0 %v1512
  %1825 = vmatprep.subr.bf16.mxu0 0
  %1826 = vmatpush1.bf16.msra.mxu0 %v1513
  %1827 = vmatprep.subr.bf16.mxu0 0
  %1828 = vmatpush1.bf16.msra.mxu0 %v1514
  %1829 = vmatprep.subr.bf16.mxu0 0
  %1830 = vmatpush1.bf16.msra.mxu0 %v1515
  %1831 = vmatprep.subr.bf16.mxu0 0
  %1832 = vmatpush1.bf16.msra.mxu0 %v1516
  %1833 = vmatprep.subr.bf16.mxu0 0
  %1834 = vmatpush1.bf16.msra.mxu0 %v1517
  %1835 = vmatprep.subr.bf16.mxu0 0
  %1836 = vmatpush1.bf16.msra.mxu0 %v1518
  %1837 = vmatprep.subr.bf16.mxu0 0
  %1838 = vmatpush1.bf16.msra.mxu0 %v1519
  %1839 = vmatprep.subr.bf16.mxu0 0
  %1840 = vmatpush1.bf16.msra.mxu0 %v1520
  %1841 = vmatprep.subr.bf16.mxu0 0
  %1842 = vmatpush1.bf16.msra.mxu0 %v1521
  %1843 = vmatprep.subr.bf16.mxu0 0
  %1844 = vmatpush1.bf16.msra.mxu0 %v1522
  %1845 = vmatprep.mubr.bf16.mxu0 %v689
  %1846 = vmatmul.mubr.bf16.gmra.mrb[0].mxu0 %v688
  %v1847 = vpop.f32.mrb[0].mxu0
  %v1848 = vadd.f32 %v1807, %v1847
  %v1849 = vpop.f32.mrb[0].mxu0
  %v1850 = vpop.f32.mrb[0].mxu0
  %v1851 = vadd.f32 %v1810, %v1850
  %v1852 = vpop.f32.mrb[0].mxu0
  %1853 = vdwg.mxu0
  %1854 = vmatprep.subr.bf16.mxu0 0
  %1855 = vmatpush1.bf16.msra.mxu0 %v1523
  %1856 = vmatprep.subr.bf16.mxu0 0
  %1857 = vmatpush1.bf16.msra.mxu0 %v1524
  %1858 = vmatprep.subr.bf16.mxu0 0
  %1859 = vmatpush1.bf16.msra.mxu0 %v1525
  %1860 = vmatprep.subr.bf16.mxu0 0
  %1861 = vmatpush1.bf16.msra.mxu0 %v1526
  %1862 = vmatprep.subr.bf16.mxu0 0
  %1863 = vmatpush1.bf16.msra.mxu0 %v1527
  %1864 = vmatprep.subr.bf16.mxu0 0
  %1865 = vmatpush1.bf16.msra.mxu0 %v1528
  %1866 = vmatprep.subr.bf16.mxu0 0
  %1867 = vmatpush1.bf16.msra.mxu0 %v1529
  %1868 = vmatprep.subr.bf16.mxu0 0
  %1869 = vmatpush1.bf16.msra.mxu0 %v1530
  %1870 = vmatprep.subr.bf16.mxu0 0
  %1871 = vmatpush1.bf16.msra.mxu0 %v1531
  %1872 = vmatprep.subr.bf16.mxu0 0
  %1873 = vmatpush1.bf16.msra.mxu0 %v1532
  %1874 = vmatprep.subr.bf16.mxu0 0
  %1875 = vmatpush1.bf16.msra.mxu0 %v1533
  %1876 = vmatprep.subr.bf16.mxu0 0
  %1877 = vmatpush1.bf16.msra.mxu0 %v1534
  %1878 = vmatprep.subr.bf16.mxu0 0
  %1879 = vmatpush1.bf16.msra.mxu0 %v1535
  %1880 = vmatprep.subr.bf16.mxu0 0
  %1881 = vmatpush1.bf16.msra.mxu0 %v1536
  %1882 = vmatprep.subr.bf16.mxu0 0
  %1883 = vmatpush1.bf16.msra.mxu0 %v1537
  %1884 = vmatprep.subr.bf16.mxu0 0
  %1885 = vmatpush1.bf16.msra.mxu0 %v1538
  %1886 = vmatprep.mubr.bf16.mxu0 %v691
  %1887 = vmatmul.mubr.bf16.gmra.mrb[0].mxu0 %v690
  %v1888 = vpop.f32.mrb[0].mxu0
  %v1889 = vadd.f32 %v1848, %v1888
  %v1890 = vpop.f32.mrb[0].mxu0
  %v1891 = vpop.f32.mrb[0].mxu0
  %v1892 = vadd.f32 %v1851, %v1891
  %v1893 = vpop.f32.mrb[0].mxu0
  %1894 = vdwg.mxu0
  %1895 = vmatprep.subr.bf16.mxu0 0
  %1896 = vmatpush1.bf16.msra.mxu0 %v1539
  %1897 = vmatprep.subr.bf16.mxu0 0
  %1898 = vmatpush1.bf16.msra.mxu0 %v1540
  %1899 = vmatprep.subr.bf16.mxu0 0
  %1900 = vmatpush1.bf16.msra.mxu0 %v1541
  %1901 = vmatprep.subr.bf16.mxu0 0
  %1902 = vmatpush1.bf16.msra.mxu0 %v1542
  %1903 = vmatprep.subr.bf16.mxu0 0
  %1904 = vmatpush1.bf16.msra.mxu0 %v1543
  %1905 = vmatprep.subr.bf16.mxu0 0
  %1906 = vmatpush1.bf16.msra.mxu0 %v1544
  %1907 = vmatprep.subr.bf16.mxu0 0
  %1908 = vmatpush1.bf16.msra.mxu0 %v1545
  %1909 = vmatprep.subr.bf16.mxu0 0
  %1910 = vmatpush1.bf16.msra.mxu0 %v1546
  %1911 = vmatprep.subr.bf16.mxu0 0
  %1912 = vmatpush1.bf16.msra.mxu0 %v1547
  %1913 = vmatprep.subr.bf16.mxu0 0
  %1914 = vmatpush1.bf16.msra.mxu0 %v1548
  %1915 = vmatprep.subr.bf16.mxu0 0
  %1916 = vmatpush1.bf16.msra.mxu0 %v1549
  %1917 = vmatprep.subr.bf16.mxu0 0
  %1918 = vmatpush1.bf16.msra.mxu0 %v1550
  %1919 = vmatprep.subr.bf16.mxu0 0
  %1920 = vmatpush1.bf16.msra.mxu0 %v1551
  %1921 = vmatprep.subr.bf16.mxu0 0
  %1922 = vmatpush1.bf16.msra.mxu0 %v1552
  %1923 = vmatprep.subr.bf16.mxu0 0
  %1924 = vmatpush1.bf16.msra.mxu0 %v1553
  %1925 = vmatprep.subr.bf16.mxu0 0
  %1926 = vmatpush1.bf16.msra.mxu0 %v1554
  %1927 = vmatprep.mubr.bf16.mxu0 %v693
  %1928 = vmatmul.mubr.bf16.gmra.mrb[0].mxu0 %v692
  %v1929 = vpop.f32.mrb[0].mxu0
  %v1930 = vadd.f32 %v1889, %v1929
  %v1931 = vpop.f32.mrb[0].mxu0
  %v1932 = vpop.f32.mrb[0].mxu0
  %v1933 = vadd.f32 %v1892, %v1932
  %v1934 = vpop.f32.mrb[0].mxu0
  %1935 = vdwg.mxu0
  %1936 = vmatprep.subr.bf16.mxu0 0
  %1937 = vmatpush1.bf16.msra.mxu0 %v1555
  %1938 = vmatprep.subr.bf16.mxu0 0
  %1939 = vmatpush1.bf16.msra.mxu0 %v1556
  %1940 = vmatprep.subr.bf16.mxu0 0
  %1941 = vmatpush1.bf16.msra.mxu0 %v1557
  %1942 = vmatprep.subr.bf16.mxu0 0
  %1943 = vmatpush1.bf16.msra.mxu0 %v1558
  %1944 = vmatprep.subr.bf16.mxu0 0
  %1945 = vmatpush1.bf16.msra.mxu0 %v1559
  %1946 = vmatprep.subr.bf16.mxu0 0
  %1947 = vmatpush1.bf16.msra.mxu0 %v1560
  %1948 = vmatprep.subr.bf16.mxu0 0
  %1949 = vmatpush1.bf16.msra.mxu0 %v1561
  %1950 = vmatprep.subr.bf16.mxu0 0
  %1951 = vmatpush1.bf16.msra.mxu0 %v1562
  %1952 = vmatprep.subr.bf16.mxu0 0
  %1953 = vmatpush1.bf16.msra.mxu0 %v1563
  %1954 = vmatprep.subr.bf16.mxu0 0
  %1955 = vmatpush1.bf16.msra.mxu0 %v1564
  %1956 = vmatprep.subr.bf16.mxu0 0
  %1957 = vmatpush1.bf16.msra.mxu0 %v1565
  %1958 = vmatprep.subr.bf16.mxu0 0
  %1959 = vmatpush1.bf16.msra.mxu0 %v1566
  %1960 = vmatprep.subr.bf16.mxu0 0
  %1961 = vmatpush1.bf16.msra.mxu0 %v1567
  %1962 = vmatprep.subr.bf16.mxu0 0
  %1963 = vmatpush1.bf16.msra.mxu0 %v1568
  %1964 = vmatprep.subr.bf16.mxu0 0
  %1965 = vmatpush1.bf16.msra.mxu0 %v1569
  %1966 = vmatprep.subr.bf16.mxu0 0
  %1967 = vmatpush1.bf16.msra.mxu0 %v1570
  %1968 = vmatprep.mubr.bf16.mxu0 %v695
  %1969 = vmatmul.mubr.bf16.gmra.mrb[0].mxu0 %v694
  %v1970 = vpop.f32.mrb[0].mxu0
  %v1971 = vadd.f32 %v1930, %v1970
  %v1972 = vpop.f32.mrb[0].mxu0
  %v1973 = vpop.f32.mrb[0].mxu0
  %v1974 = vadd.f32 %v1933, %v1973
  %v1975 = vpop.f32.mrb[0].mxu0
  %1976 = vdwg.mxu0
  %1977 = vmatprep.subr.bf16.mxu0 0
  %1978 = vmatpush1.bf16.msra.mxu0 %v1571
  %1979 = vmatprep.subr.bf16.mxu0 0
  %1980 = vmatpush1.bf16.msra.mxu0 %v1572
  %1981 = vmatprep.subr.bf16.mxu0 0
  %1982 = vmatpush1.bf16.msra.mxu0 %v1573
  %1983 = vmatprep.subr.bf16.mxu0 0
  %1984 = vmatpush1.bf16.msra.mxu0 %v1574
  %1985 = vmatprep.subr.bf16.mxu0 0
  %1986 = vmatpush1.bf16.msra.mxu0 %v1575
  %1987 = vmatprep.subr.bf16.mxu0 0
  %1988 = vmatpush1.bf16.msra.mxu0 %v1576
  %1989 = vmatprep.subr.bf16.mxu0 0
  %1990 = vmatpush1.bf16.msra.mxu0 %v1577
  %1991 = vmatprep.subr.bf16.mxu0 0
  %1992 = vmatpush1.bf16.msra.mxu0 %v1578
  %1993 = vmatprep.subr.bf16.mxu0 0
  %1994 = vmatpush1.bf16.msra.mxu0 %v1579
  %1995 = vmatprep.subr.bf16.mxu0 0
  %1996 = vmatpush1.bf16.msra.mxu0 %v1580
  %1997 = vmatprep.subr.bf16.mxu0 0
  %1998 = vmatpush1.bf16.msra.mxu0 %v1581
  %1999 = vmatprep.subr.bf16.mxu0 0
  %2000 = vmatpush1.bf16.msra.mxu0 %v1582
  %2001 = vmatprep.subr.bf16.mxu0 0
  %2002 = vmatpush1.bf16.msra.mxu0 %v1583
  %2003 = vmatprep.subr.bf16.mxu0 0
  %2004 = vmatpush1.bf16.msra.mxu0 %v1584
  %2005 = vmatprep.subr.bf16.mxu0 0
  %2006 = vmatpush1.bf16.msra.mxu0 %v1585
  %2007 = vmatprep.subr.bf16.mxu0 0
  %2008 = vmatpush1.bf16.msra.mxu0 %v1586
  %2009 = vmatprep.mubr.bf16.mxu0 %v697
  %2010 = vmatmul.mubr.bf16.gmra.mrb[0].mxu0 %v696
  %v2011 = vpop.f32.mrb[0].mxu0
  %v2012 = vadd.f32 %v1971, %v2011
  %v2013 = vpop.f32.mrb[0].mxu0
  %v2014 = vpop.f32.mrb[0].mxu0
  %v2015 = vadd.f32 %v1974, %v2014
  %v2016 = vpop.f32.mrb[0].mxu0
  %2017 = vdwg.mxu0
  %2018 = vmatprep.subr.bf16.mxu0 0
  %2019 = vmatpush1.bf16.msra.mxu0 %v1587
  %2020 = vmatprep.subr.bf16.mxu0 0
  %2021 = vmatpush1.bf16.msra.mxu0 %v1588
  %2022 = vmatprep.subr.bf16.mxu0 0
  %2023 = vmatpush1.bf16.msra.mxu0 %v1589
  %2024 = vmatprep.subr.bf16.mxu0 0
  %2025 = vmatpush1.bf16.msra.mxu0 %v1590
  %2026 = vmatprep.subr.bf16.mxu0 0
  %2027 = vmatpush1.bf16.msra.mxu0 %v1591
  %2028 = vmatprep.subr.bf16.mxu0 0
  %2029 = vmatpush1.bf16.msra.mxu0 %v1592
  %2030 = vmatprep.subr.bf16.mxu0 0
  %2031 = vmatpush1.bf16.msra.mxu0 %v1593
  %2032 = vmatprep.subr.bf16.mxu0 0
  %2033 = vmatpush1.bf16.msra.mxu0 %v1594
  %2034 = vmatprep.subr.bf16.mxu0 0
  %2035 = vmatpush1.bf16.msra.mxu0 %v1595
  %2036 = vmatprep.subr.bf16.mxu0 0
  %2037 = vmatpush1.bf16.msra.mxu0 %v1596
  %2038 = vmatprep.subr.bf16.mxu0 0
  %2039 = vmatpush1.bf16.msra.mxu0 %v1597
  %2040 = vmatprep.subr.bf16.mxu0 0
  %2041 = vmatpush1.bf16.msra.mxu0 %v1598
  %2042 = vmatprep.subr.bf16.mxu0 0
  %2043 = vmatpush1.bf16.msra.mxu0 %v1599
  %2044 = vmatprep.subr.bf16.mxu0 0
  %2045 = vmatpush1.bf16.msra.mxu0 %v1600
  %2046 = vmatprep.subr.bf16.mxu0 0
  %2047 = vmatpush1.bf16.msra.mxu0 %v1601
  %2048 = vmatprep.subr.bf16.mxu0 0
  %2049 = vmatpush1.bf16.msra.mxu0 %v1602
  %2050 = vmatprep.mubr.bf16.mxu0 %v699
  %2051 = vmatmul.mubr.bf16.gmra.mrb[0].mxu0 %v698
  %v2052 = vpop.f32.mrb[0].mxu0
  %v2053 = vadd.f32 %v2012, %v2052
  %v2054 = vpop.f32.mrb[0].mxu0
  %v2055 = vpop.f32.mrb[0].mxu0
  %v2056 = vadd.f32 %v2015, %v2055
  %v2057 = vpop.f32.mrb[0].mxu0
  %2058 = vdwg.mxu0
  %2059 = vst.msk [vmem:[%s5] sm:$0xff] %vm304, %v2053
  %2060 = vst.msk [vmem:[%s5 + $0x8] sm:$0xff] %vm304, %v2056
  // Predicated region
  $region22: #{advanced_neural_core_fwd.45} parent=0 // pred_check
    _
  $region23: #{advanced_neural_core_fwd.45} parent=0 // pred_check_branch
    %2062 = sbr.rel (0) target = $region25
  $region24: #{advanced_neural_core_fwd.45} parent=0 // pred_region
    _
  $region25: #{advanced_neural_core_fwd.45} parent=0 // pred_fallthru
    _
  // Predicated region
  $region26: #{advanced_neural_core_fwd.45} parent=0 // pred_check
    _
  $region27: #{advanced_neural_core_fwd.45} parent=0 // pred_check_branch
    %2064 = sbr.rel (0) target = $region29
  $region28: #{advanced_neural_core_fwd.45} parent=0 // pred_region
    _
  $region29: #{advanced_neural_core_fwd.45} parent=0 // pred_fallthru
    _

// kernel: advanced_neural_core_fwd.73
$region0: #{advanced_neural_core_fwd.73}
  #allocation0 [shape = 'u32[]', space=smem, size = 0x4, offset = 0x4, fixed_abs, tag = 'smem constant byte address 0x4 - core index']
  #allocation1 [shape = 'u32[144,128]{1,0:T(1,128)}', space=vmem, size = 0x12000, scoped, tag = 'internal scratch']
  %s0 = inlined_call_operand.vmem [shape: bf16[16,128], index: 0, kind: input, shape index: {}]
  %s1 = inlined_call_operand.vmem [shape: bf16[128,256], index: 1, kind: input, shape index: {}]
  %s2 = inlined_call_operand.vmem [shape: f32[1,256], index: 2, kind: input, shape index: {}]
  %s3 = inlined_call_operand.vmem [shape: bf16[256,128], index: 3, kind: input, shape index: {}]
  %s4 = inlined_call_operand.vmem [shape: f32[1,128], index: 4, kind: input, shape index: {}]
  %s5 = inlined_call_operand.vmem [shape: bf16[128,32], index: 5, kind: input, shape index: {}]
  %s6 = inlined_call_operand.vmem [shape: f32[1,32], index: 6, kind: input, shape index: {}]
  %s7 = inlined_call_operand.vmem [shape: f32[16,32], index: 7, kind: output, shape index: {}]
  %s8 = sld [smem:[#allocation0]]
  $region38: #{advanced_neural_core_fwd.73} parent=0
    _
  %s10 = ssub.s32 1, %s8
  %s11 = scalar_select 0, %s10, %s8
  // Predicated region
  $region2: #{advanced_neural_core_fwd.73} parent=0 // pred_check
    _
  $region3: #{advanced_neural_core_fwd.73} parent=0 // pred_check_branch
    %13 = sbr.rel (0) target = $region5
  $region4: #{advanced_neural_core_fwd.73} parent=0 // pred_region
    _
  $region5: #{advanced_neural_core_fwd.73} parent=0 // pred_fallthru
    _
  // Predicated region
  $region6: #{advanced_neural_core_fwd.73} parent=0 // pred_check
    _
  $region7: #{advanced_neural_core_fwd.73} parent=0 // pred_check_branch
    %15 = sbr.rel (0) target = $region9
  $region8: #{advanced_neural_core_fwd.73} parent=0 // pred_region
    _
  $region9: #{advanced_neural_core_fwd.73} parent=0 // pred_fallthru
    _
  // Predicated region
  $region10: #{advanced_neural_core_fwd.73} parent=0 // pred_check
    _
  $region11: #{advanced_neural_core_fwd.73} parent=0 // pred_check_branch
    %17 = sbr.rel (0) target = $region13
  $region12: #{advanced_neural_core_fwd.73} parent=0 // pred_region
    _
  $region13: #{advanced_neural_core_fwd.73} parent=0 // pred_fallthru
    _
  // Predicated region
  $region14: #{advanced_neural_core_fwd.73} parent=0 // pred_check
    _
  $region15: #{advanced_neural_core_fwd.73} parent=0 // pred_check_branch
    %19 = sbr.rel (0) target = $region17
  $region16: #{advanced_neural_core_fwd.73} parent=0 // pred_region
    _
  $region17: #{advanced_neural_core_fwd.73} parent=0 // pred_fallthru
    _
  // Predicated region
  $region18: #{advanced_neural_core_fwd.73} parent=0 // pred_check
    _
  $region19: #{advanced_neural_core_fwd.73} parent=0 // pred_check_branch
    %21 = sbr.rel (0) target = $region21
  $region20: #{advanced_neural_core_fwd.73} parent=0 // pred_region
    _
  $region21: #{advanced_neural_core_fwd.73} parent=0 // pred_fallthru
    _
  // Predicated region
  $region22: #{advanced_neural_core_fwd.73} parent=0 // pred_check
    _
  $region23: #{advanced_neural_core_fwd.73} parent=0 // pred_check_branch
    %23 = sbr.rel (0) target = $region25
  $region24: #{advanced_neural_core_fwd.73} parent=0 // pred_region
    _
  $region25: #{advanced_neural_core_fwd.73} parent=0 // pred_fallthru
    _
  // Predicated region
  $region26: #{advanced_neural_core_fwd.73} parent=0 // pred_check
    _
  $region27: #{advanced_neural_core_fwd.73} parent=0 // pred_check_branch
    %25 = sbr.rel (0) target = $region29
  $region28: #{advanced_neural_core_fwd.73} parent=0 // pred_region
    _
  $region29: #{advanced_neural_core_fwd.73} parent=0 // pred_fallthru
    _
  %v27 = vld [vmem:[%s0] sm:$0xf]
  %v28 = vld [vmem:[%s0 + $0x4] sm:$0xf]
  %v29 = vld [vmem:[%s1] sm:$0xff]
  %v30 = vld [vmem:[%s1 + $0x8] sm:$0xff]
  %v31 = vld [vmem:[%s1 + $0x10] sm:$0xff]
  %v32 = vld [vmem:[%s1 + $0x18] sm:$0xff]
  %v33 = vld [vmem:[%s1 + $0x20] sm:$0xff]
  %v34 = vld [vmem:[%s1 + $0x28] sm:$0xff]
  %v35 = vld [vmem:[%s1 + $0x30] sm:$0xff]
  %v36 = vld [vmem:[%s1 + $0x38] sm:$0xff]
  %v37 = vld [vmem:[%s1 + $0x40] sm:$0xff]
  %v38 = vld [vmem:[%s1 + $0x48] sm:$0xff]
  %v39 = vld [vmem:[%s1 + $0x50] sm:$0xff]
  %v40 = vld [vmem:[%s1 + $0x58] sm:$0xff]
  %v41 = vld [vmem:[%s1 + $0x60] sm:$0xff]
  %v42 = vld [vmem:[%s1 + $0x68] sm:$0xff]
  %v43 = vld [vmem:[%s1 + $0x70] sm:$0xff]
  %v44 = vld [vmem:[%s1 + $0x78] sm:$0xff]
  %v45 = vld [vmem:[%s2] sm:$0x3]
  %v47 = vlaneseq
  %v48 = vshrl.u32 %v47, 7
  %v49 = vsub.s32 0, %v48
  %v50 = vrot.slane %v45, %v49
  %v51 = vlaneseq
  %v52 = vshrl.u32 %v51, 7
  %v53 = vsub.s32 1, %v52
  %v54 = vrot.slane %v45, %v53
  %v59 = vunpack.c.l.b16 %v27
  %v60 = vunpack.c.l.b16 %v28
  %v61 = vpack.c.b16 %v60, %v59
  %v79 = vunpack.c.l.b16 %v29
  %v80 = vunpack.c.h.b16 %v29
  %v81 = vunpack.c.l.b16 %v30
  %v82 = vunpack.c.h.b16 %v30
  %v83 = vunpack.c.l.b16 %v31
  %v84 = vunpack.c.h.b16 %v31
  %v85 = vunpack.c.l.b16 %v32
  %v86 = vunpack.c.h.b16 %v32
  %v87 = vunpack.c.l.b16 %v33
  %v88 = vunpack.c.h.b16 %v33
  %v89 = vunpack.c.l.b16 %v34
  %v90 = vunpack.c.h.b16 %v34
  %v91 = vunpack.c.l.b16 %v35
  %v92 = vunpack.c.h.b16 %v35
  %v93 = vunpack.c.l.b16 %v36
  %v94 = vunpack.c.h.b16 %v36
  %v95 = vunpack.c.l.b16 %v37
  %v96 = vunpack.c.h.b16 %v37
  %v97 = vunpack.c.l.b16 %v38
  %v98 = vunpack.c.h.b16 %v38
  %v99 = vunpack.c.l.b16 %v39
  %v100 = vunpack.c.h.b16 %v39
  %v101 = vunpack.c.l.b16 %v40
  %v102 = vunpack.c.h.b16 %v40
  %v103 = vunpack.c.l.b16 %v41
  %v104 = vunpack.c.h.b16 %v41
  %v105 = vunpack.c.l.b16 %v42
  %v106 = vunpack.c.h.b16 %v42
  %v107 = vunpack.c.l.b16 %v43
  %v108 = vunpack.c.h.b16 %v43
  %v109 = vunpack.c.l.b16 %v44
  %v110 = vunpack.c.h.b16 %v44
  %v111 = vpack.c.b16 %v81, %v79
  %v112 = vpack.c.b16 %v82, %v80
  %v113 = vpack.c.b16 %v85, %v83
  %v114 = vpack.c.b16 %v86, %v84
  %v115 = vpack.c.b16 %v89, %v87
  %v116 = vpack.c.b16 %v90, %v88
  %v117 = vpack.c.b16 %v93, %v91
  %v118 = vpack.c.b16 %v94, %v92
  %v119 = vpack.c.b16 %v97, %v95
  %v120 = vpack.c.b16 %v98, %v96
  %v121 = vpack.c.b16 %v101, %v99
  %v122 = vpack.c.b16 %v102, %v100
  %v123 = vpack.c.b16 %v105, %v103
  %v124 = vpack.c.b16 %v106, %v104
  %v125 = vpack.c.b16 %v109, %v107
  %v126 = vpack.c.b16 %v110, %v108
  %143 = vmatprep.subr.bf16.mxu0 %v112
  %144 = vmatpush1.bf16.msra.mxu0 %v111
  %145 = vmatprep.subr.bf16.mxu0 %v114
  %146 = vmatpush1.bf16.msra.mxu0 %v113
  %147 = vmatprep.subr.bf16.mxu0 %v116
  %148 = vmatpush1.bf16.msra.mxu0 %v115
  %149 = vmatprep.subr.bf16.mxu0 %v118
  %150 = vmatpush1.bf16.msra.mxu0 %v117
  %151 = vmatprep.subr.bf16.mxu0 %v120
  %152 = vmatpush1.bf16.msra.mxu0 %v119
  %153 = vmatprep.subr.bf16.mxu0 %v122
  %154 = vmatpush1.bf16.msra.mxu0 %v121
  %155 = vmatprep.subr.bf16.mxu0 %v124
  %156 = vmatpush1.bf16.msra.mxu0 %v123
  %157 = vmatprep.subr.bf16.mxu0 %v126
  %158 = vmatpush1.bf16.msra.mxu0 %v125
  %159 = vmatprep.subr.bf16.mxu0 0
  %160 = vmatpush1.bf16.msra.mxu0 0
  %161 = vmatprep.subr.bf16.mxu0 0
  %162 = vmatpush1.bf16.msra.mxu0 0
  %163 = vmatprep.subr.bf16.mxu0 0
  %164 = vmatpush1.bf16.msra.mxu0 0
  %165 = vmatprep.subr.bf16.mxu0 0
  %166 = vmatpush1.bf16.msra.mxu0 0
  %167 = vmatprep.subr.bf16.mxu0 0
  %168 = vmatpush1.bf16.msra.mxu0 0
  %169 = vmatprep.subr.bf16.mxu0 0
  %170 = vmatpush1.bf16.msra.mxu0 0
  %171 = vmatprep.subr.bf16.mxu0 0
  %172 = vmatpush1.bf16.msra.mxu0 0
  %173 = vmatprep.subr.bf16.mxu0 0
  %174 = vmatpush1.bf16.msra.mxu0 0
  %175 = vmatprep.mubr.bf16.mxu0 0
  %176 = vmatmul.mubr.bf16.gmra.mrb[0].mxu0 %v61
  %v177 = vpop.f32.mrb[0].mxu0
  %v178 = vadd.f32 %v50, %v177
  %v179 = vpop.f32.mrb[0].mxu0
  %v180 = vadd.f32 %v54, %v179
  %v181 = vpop.f32.mrb[0].mxu0
  %v182 = vadd.f32 %v50, %v181
  %v183 = vpop.f32.mrb[0].mxu0
  %v184 = vadd.f32 %v54, %v183
  %185 = vdwg.mxu0
  %v186 = vmax.f32 %v178, 0.0
  %v187 = vmax.f32 %v180, 0.0
  %v188 = vmax.f32 %v182, 0.0
  %v189 = vmax.f32 %v184, 0.0
  %v190 = vpack.c.bf16 %v188, %v186
  %v191 = vpack.c.bf16 %v189, %v187
  %v192 = vld [vmem:[%s3] sm:$0xf]
  %v193 = vld [vmem:[%s3 + $0x4] sm:$0xf]
  %v194 = vld [vmem:[%s3 + $0x8] sm:$0xf]
  %v195 = vld [vmem:[%s3 + $0xc] sm:$0xf]
  %v196 = vld [vmem:[%s3 + $0x10] sm:$0xf]
  %v197 = vld [vmem:[%s3 + $0x14] sm:$0xf]
  %v198 = vld [vmem:[%s3 + $0x18] sm:$0xf]
  %v199 = vld [vmem:[%s3 + $0x1c] sm:$0xf]
  %v200 = vld [vmem:[%s3 + $0x20] sm:$0xf]
  %v201 = vld [vmem:[%s3 + $0x24] sm:$0xf]
  %v202 = vld [vmem:[%s3 + $0x28] sm:$0xf]
  %v203 = vld [vmem:[%s3 + $0x2c] sm:$0xf]
  %v204 = vld [vmem:[%s3 + $0x30] sm:$0xf]
  %v205 = vld [vmem:[%s3 + $0x34] sm:$0xf]
  %v206 = vld [vmem:[%s3 + $0x38] sm:$0xf]
  %v207 = vld [vmem:[%s3 + $0x3c] sm:$0xf]
  %v208 = vld [vmem:[%s3 + $0x40] sm:$0xf]
  %v209 = vld [vmem:[%s3 + $0x44] sm:$0xf]
  %v210 = vld [vmem:[%s3 + $0x48] sm:$0xf]
  %v211 = vld [vmem:[%s3 + $0x4c] sm:$0xf]
  %v212 = vld [vmem:[%s3 + $0x50] sm:$0xf]
  %v213 = vld [vmem:[%s3 + $0x54] sm:$0xf]
  %v214 = vld [vmem:[%s3 + $0x58] sm:$0xf]
  %v215 = vld [vmem:[%s3 + $0x5c] sm:$0xf]
  %v216 = vld [vmem:[%s3 + $0x60] sm:$0xf]
  %v217 = vld [vmem:[%s3 + $0x64] sm:$0xf]
  %v218 = vld [vmem:[%s3 + $0x68] sm:$0xf]
  %v219 = vld [vmem:[%s3 + $0x6c] sm:$0xf]
  %v220 = vld [vmem:[%s3 + $0x70] sm:$0xf]
  %v221 = vld [vmem:[%s3 + $0x74] sm:$0xf]
  %v222 = vld [vmem:[%s3 + $0x78] sm:$0xf]
  %v223 = vld [vmem:[%s3 + $0x7c] sm:$0xf]
  %v224 = vld [vmem:[%s4] sm:$0x1]
  %v226 = vlaneseq
  %v227 = vshrl.u32 %v226, 7
  %v228 = vsub.s32 0, %v227
  %v229 = vrot.slane %v224, %v228
  %v263 = vunpack.c.l.b16 %v192
  %v264 = vunpack.c.l.b16 %v193
  %v265 = vunpack.c.l.b16 %v194
  %v266 = vunpack.c.l.b16 %v195
  %v267 = vunpack.c.l.b16 %v196
  %v268 = vunpack.c.l.b16 %v197
  %v269 = vunpack.c.l.b16 %v198
  %v270 = vunpack.c.l.b16 %v199
  %v271 = vunpack.c.l.b16 %v200
  %v272 = vunpack.c.l.b16 %v201
  %v273 = vunpack.c.l.b16 %v202
  %v274 = vunpack.c.l.b16 %v203
  %v275 = vunpack.c.l.b16 %v204
  %v276 = vunpack.c.l.b16 %v205
  %v277 = vunpack.c.l.b16 %v206
  %v278 = vunpack.c.l.b16 %v207
  %v279 = vunpack.c.l.b16 %v208
  %v280 = vunpack.c.l.b16 %v209
  %v281 = vunpack.c.l.b16 %v210
  %v282 = vunpack.c.l.b16 %v211
  %v283 = vunpack.c.l.b16 %v212
  %v284 = vunpack.c.l.b16 %v213
  %v285 = vunpack.c.l.b16 %v214
  %v286 = vunpack.c.l.b16 %v215
  %v287 = vunpack.c.l.b16 %v216
  %v288 = vunpack.c.l.b16 %v217
  %v289 = vunpack.c.l.b16 %v218
  %v290 = vunpack.c.l.b16 %v219
  %v291 = vunpack.c.l.b16 %v220
  %v292 = vunpack.c.l.b16 %v221
  %v293 = vunpack.c.l.b16 %v222
  %v294 = vunpack.c.l.b16 %v223
  %v295 = vpack.c.b16 %v264, %v263
  %v296 = vpack.c.b16 %v266, %v265
  %v297 = vpack.c.b16 %v268, %v267
  %v298 = vpack.c.b16 %v270, %v269
  %v299 = vpack.c.b16 %v272, %v271
  %v300 = vpack.c.b16 %v274, %v273
  %v301 = vpack.c.b16 %v276, %v275
  %v302 = vpack.c.b16 %v278, %v277
  %v303 = vpack.c.b16 %v280, %v279
  %v304 = vpack.c.b16 %v282, %v281
  %v305 = vpack.c.b16 %v284, %v283
  %v306 = vpack.c.b16 %v286, %v285
  %v307 = vpack.c.b16 %v288, %v287
  %v308 = vpack.c.b16 %v290, %v289
  %v309 = vpack.c.b16 %v292, %v291
  %v310 = vpack.c.b16 %v294, %v293
  %327 = vmatprep.subr.bf16.mxu0 0
  %328 = vmatpush1.bf16.msra.mxu0 %v295
  %329 = vmatprep.subr.bf16.mxu0 0
  %330 = vmatpush1.bf16.msra.mxu0 %v296
  %331 = vmatprep.subr.bf16.mxu0 0
  %332 = vmatpush1.bf16.msra.mxu0 %v297
  %333 = vmatprep.subr.bf16.mxu0 0
  %334 = vmatpush1.bf16.msra.mxu0 %v298
  %335 = vmatprep.subr.bf16.mxu0 0
  %336 = vmatpush1.bf16.msra.mxu0 %v299
  %337 = vmatprep.subr.bf16.mxu0 0
  %338 = vmatpush1.bf16.msra.mxu0 %v300
  %339 = vmatprep.subr.bf16.mxu0 0
  %340 = vmatpush1.bf16.msra.mxu0 %v301
  %341 = vmatprep.subr.bf16.mxu0 0
  %342 = vmatpush1.bf16.msra.mxu0 %v302
  %343 = vmatprep.subr.bf16.mxu0 0
  %344 = vmatpush1.bf16.msra.mxu0 %v303
  %345 = vmatprep.subr.bf16.mxu0 0
  %346 = vmatpush1.bf16.msra.mxu0 %v304
  %347 = vmatprep.subr.bf16.mxu0 0
  %348 = vmatpush1.bf16.msra.mxu0 %v305
  %349 = vmatprep.subr.bf16.mxu0 0
  %350 = vmatpush1.bf16.msra.mxu0 %v306
  %351 = vmatprep.subr.bf16.mxu0 0
  %352 = vmatpush1.bf16.msra.mxu0 %v307
  %353 = vmatprep.subr.bf16.mxu0 0
  %354 = vmatpush1.bf16.msra.mxu0 %v308
  %355 = vmatprep.subr.bf16.mxu0 0
  %356 = vmatpush1.bf16.msra.mxu0 %v309
  %357 = vmatprep.subr.bf16.mxu0 0
  %358 = vmatpush1.bf16.msra.mxu0 %v310
  %359 = vmatprep.mubr.bf16.mxu0 %v191
  %360 = vmatmul.mubr.bf16.gmra.mrb[0].mxu0 %v190
  %v361 = vpop.f32.mrb[0].mxu0
  %v362 = vadd.f32 %v229, %v361
  %v363 = vpop.f32.mrb[0].mxu0
  %v364 = vpop.f32.mrb[0].mxu0
  %v365 = vadd.f32 %v229, %v364
  %v366 = vpop.f32.mrb[0].mxu0
  %367 = vdwg.mxu0
  %v368 = vmax.f32 %v362, 0.0
  %v369 = vmax.f32 %v365, 0.0
  %v370 = vpack.c.bf16 %v369, %v368
  %v371 = vld [vmem:[%s5] sm:$0xf]
  %v372 = vld [vmem:[%s5 + $0x4] sm:$0xf]
  %v373 = vld [vmem:[%s5 + $0x8] sm:$0xf]
  %v374 = vld [vmem:[%s5 + $0xc] sm:$0xf]
  %v375 = vld [vmem:[%s5 + $0x10] sm:$0xf]
  %v376 = vld [vmem:[%s5 + $0x14] sm:$0xf]
  %v377 = vld [vmem:[%s5 + $0x18] sm:$0xf]
  %v378 = vld [vmem:[%s5 + $0x1c] sm:$0xf]
  %v379 = vld [vmem:[%s5 + $0x20] sm:$0xf]
  %v380 = vld [vmem:[%s5 + $0x24] sm:$0xf]
  %v381 = vld [vmem:[%s5 + $0x28] sm:$0xf]
  %v382 = vld [vmem:[%s5 + $0x2c] sm:$0xf]
  %v383 = vld [vmem:[%s5 + $0x30] sm:$0xf]
  %v384 = vld [vmem:[%s5 + $0x34] sm:$0xf]
  %v385 = vld [vmem:[%s5 + $0x38] sm:$0xf]
  %v386 = vld [vmem:[%s5 + $0x3c] sm:$0xf]
  %v387 = vld [vmem:[%s6] sm:$0x1]
  %v389 = vlaneseq
  %v390 = vshrl.u32 %v389, 7
  %v391 = vsub.s32 0, %v390
  %v392 = vrot.slane %v387, %v391
  %v410 = vunpack.c.l.b16 %v371
  %v411 = vunpack.c.l.b16 %v372
  %v412 = vunpack.c.l.b16 %v373
  %v413 = vunpack.c.l.b16 %v374
  %v414 = vunpack.c.l.b16 %v375
  %v415 = vunpack.c.l.b16 %v376
  %v416 = vunpack.c.l.b16 %v377
  %v417 = vunpack.c.l.b16 %v378
  %v418 = vunpack.c.l.b16 %v379
  %v419 = vunpack.c.l.b16 %v380
  %v420 = vunpack.c.l.b16 %v381
  %v421 = vunpack.c.l.b16 %v382
  %v422 = vunpack.c.l.b16 %v383
  %v423 = vunpack.c.l.b16 %v384
  %v424 = vunpack.c.l.b16 %v385
  %v425 = vunpack.c.l.b16 %v386
  %v426 = vpack.c.b16 %v411, %v410
  %v427 = vpack.c.b16 %v413, %v412
  %v428 = vpack.c.b16 %v415, %v414
  %v429 = vpack.c.b16 %v417, %v416
  %v430 = vpack.c.b16 %v419, %v418
  %v431 = vpack.c.b16 %v421, %v420
  %v432 = vpack.c.b16 %v423, %v422
  %v433 = vpack.c.b16 %v425, %v424
  %442 = vmatprep.subr.bf16.mxu0 0
  %443 = vmatpush1.bf16.msra.mxu0 %v426
  %444 = vmatprep.subr.bf16.mxu0 0
  %445 = vmatpush1.bf16.msra.mxu0 %v427
  %446 = vmatprep.subr.bf16.mxu0 0
  %447 = vmatpush1.bf16.msra.mxu0 %v428
  %448 = vmatprep.subr.bf16.mxu0 0
  %449 = vmatpush1.bf16.msra.mxu0 %v429
  %450 = vmatprep.subr.bf16.mxu0 0
  %451 = vmatpush1.bf16.msra.mxu0 %v430
  %452 = vmatprep.subr.bf16.mxu0 0
  %453 = vmatpush1.bf16.msra.mxu0 %v431
  %454 = vmatprep.subr.bf16.mxu0 0
  %455 = vmatpush1.bf16.msra.mxu0 %v432
  %456 = vmatprep.subr.bf16.mxu0 0
  %457 = vmatpush1.bf16.msra.mxu0 %v433
  %458 = vmatprep.subr.bf16.mxu0 0
  %459 = vmatpush1.bf16.msra.mxu0 0
  %460 = vmatprep.subr.bf16.mxu0 0
  %461 = vmatpush1.bf16.msra.mxu0 0
  %462 = vmatprep.subr.bf16.mxu0 0
  %463 = vmatpush1.bf16.msra.mxu0 0
  %464 = vmatprep.subr.bf16.mxu0 0
  %465 = vmatpush1.bf16.msra.mxu0 0
  %466 = vmatprep.subr.bf16.mxu0 0
  %467 = vmatpush1.bf16.msra.mxu0 0
  %468 = vmatprep.subr.bf16.mxu0 0
  %469 = vmatpush1.bf16.msra.mxu0 0
  %470 = vmatprep.subr.bf16.mxu0 0
  %471 = vmatpush1.bf16.msra.mxu0 0
  %472 = vmatprep.subr.bf16.mxu0 0
  %473 = vmatpush1.bf16.msra.mxu0 0
  %474 = vmatprep.mubr.bf16.mxu0 0
  %475 = vmatmul.mubr.bf16.gmra.mrb[0].mxu0 %v370
  %v476 = vpop.f32.mrb[0].mxu0
  %v477 = vadd.f32 %v392, %v476
  %v478 = vpop.f32.mrb[0].mxu0
  %v479 = vpop.f32.mrb[0].mxu0
  %v480 = vadd.f32 %v392, %v479
  %v481 = vpop.f32.mrb[0].mxu0
  %482 = vdwg.mxu0
  %vm483 = vcmask 261120
  %484 = vst.msk [vmem:[%s7] sm:$0xff] %vm483, %v477
  %485 = vst.msk [vmem:[%s7 + $0x8] sm:$0xff] %vm483, %v480
  // Predicated region
  $region30: #{advanced_neural_core_fwd.73} parent=0 // pred_check
    _
  $region31: #{advanced_neural_core_fwd.73} parent=0 // pred_check_branch
    %487 = sbr.rel (0) target = $region33
  $region32: #{advanced_neural_core_fwd.73} parent=0 // pred_region
    _
  $region33: #{advanced_neural_core_fwd.73} parent=0 // pred_fallthru
    _
  // Predicated region
  $region34: #{advanced_neural_core_fwd.73} parent=0 // pred_check
    _
  $region35: #{advanced_neural_core_fwd.73} parent=0 // pred_check_branch
    %489 = sbr.rel (0) target = $region37
  $region36: #{advanced_neural_core_fwd.73} parent=0 // pred_region
    _
  $region37: #{advanced_neural_core_fwd.73} parent=0 // pred_fallthru
    _

// kernel: advanced_neural_core_fwd.40
$region0: #{advanced_neural_core_fwd.40}
  #allocation0 [shape = 'u32[]', space=smem, size = 0x4, offset = 0x4, fixed_abs, tag = 'smem constant byte address 0x4 - core index']
  #allocation1 [shape = 'u32[144,128]{1,0:T(1,128)}', space=vmem, size = 0x12000, scoped, tag = 'internal scratch']
  #allocation2 [shape = 'f32[8,128]{1,0:T(8,128)}', space=vmem, size = 0x1000, scoped, tag = 'scratch operand']
  %s0 = inlined_call_operand.vmem [shape: bf16[8,256], index: 0, kind: input, shape index: {}]
  %s1 = inlined_call_operand.vmem [shape: bf16[256,128], index: 1, kind: input, shape index: {}]
  %s2 = inlined_call_operand.vmem [shape: f32[1,128], index: 2, kind: input, shape index: {}]
  %s3 = inlined_call_operand.vmem [shape: f32[8,128], index: 3, kind: output, shape index: {}]
  %s4 = sld [smem:[#allocation0]]
  $region30: #{advanced_neural_core_fwd.40} parent=0
    _
  %s6 = ssub.s32 1, %s4
  %s7 = scalar_select 0, %s6, %s4
  // Predicated region
  $region2: #{advanced_neural_core_fwd.40} parent=0 // pred_check
    _
  $region3: #{advanced_neural_core_fwd.40} parent=0 // pred_check_branch
    %9 = sbr.rel (0) target = $region5
  $region4: #{advanced_neural_core_fwd.40} parent=0 // pred_region
    _
  $region5: #{advanced_neural_core_fwd.40} parent=0 // pred_fallthru
    _
  // Predicated region
  $region6: #{advanced_neural_core_fwd.40} parent=0 // pred_check
    _
  $region7: #{advanced_neural_core_fwd.40} parent=0 // pred_check_branch
    %11 = sbr.rel (0) target = $region9
  $region8: #{advanced_neural_core_fwd.40} parent=0 // pred_region
    _
  $region9: #{advanced_neural_core_fwd.40} parent=0 // pred_fallthru
    _
  // Predicated region
  $region10: #{advanced_neural_core_fwd.40} parent=0 // pred_check
    _
  $region11: #{advanced_neural_core_fwd.40} parent=0 // pred_check_branch
    %13 = sbr.rel (0) target = $region13
  $region12: #{advanced_neural_core_fwd.40} parent=0 // pred_region
    _
  $region13: #{advanced_neural_core_fwd.40} parent=0 // pred_fallthru
    _
  %p15 = scmp.eq.s32.totalorder 0, 0
  // Predicated region
  $region14: #{advanced_neural_core_fwd.40} parent=0 // pred_check
    %p16 = pneg %p15
  $region15: #{advanced_neural_core_fwd.40} parent=0 // pred_check_branch
    %18 = sbr.rel (%p16) target = $region17
  $region16: #{advanced_neural_core_fwd.40} parent=0 // pred_region
    %19 = vst [vmem:[#allocation2] sm:$0xff] 0.0
  $region17: #{advanced_neural_core_fwd.40} parent=0 // pred_fallthru
    _
  %v20 = vld [vmem:[#allocation2] sm:$0xff]
  %v21 = vld [vmem:[%s0] sm:$0xff]
  %v22 = vld [vmem:[%s1] sm:$0xf]
  %v23 = vld [vmem:[%s1 + $0x4] sm:$0xf]
  %v24 = vld [vmem:[%s1 + $0x8] sm:$0xf]
  %v25 = vld [vmem:[%s1 + $0xc] sm:$0xf]
  %v26 = vld [vmem:[%s1 + $0x10] sm:$0xf]
  %v27 = vld [vmem:[%s1 + $0x14] sm:$0xf]
  %v28 = vld [vmem:[%s1 + $0x18] sm:$0xf]
  %v29 = vld [vmem:[%s1 + $0x1c] sm:$0xf]
  %v30 = vld [vmem:[%s1 + $0x20] sm:$0xf]
  %v31 = vld [vmem:[%s1 + $0x24] sm:$0xf]
  %v32 = vld [vmem:[%s1 + $0x28] sm:$0xf]
  %v33 = vld [vmem:[%s1 + $0x2c] sm:$0xf]
  %v34 = vld [vmem:[%s1 + $0x30] sm:$0xf]
  %v35 = vld [vmem:[%s1 + $0x34] sm:$0xf]
  %v36 = vld [vmem:[%s1 + $0x38] sm:$0xf]
  %v37 = vld [vmem:[%s1 + $0x3c] sm:$0xf]
  %v38 = vld [vmem:[%s1 + $0x40] sm:$0xf]
  %v39 = vld [vmem:[%s1 + $0x44] sm:$0xf]
  %v40 = vld [vmem:[%s1 + $0x48] sm:$0xf]
  %v41 = vld [vmem:[%s1 + $0x4c] sm:$0xf]
  %v42 = vld [vmem:[%s1 + $0x50] sm:$0xf]
  %v43 = vld [vmem:[%s1 + $0x54] sm:$0xf]
  %v44 = vld [vmem:[%s1 + $0x58] sm:$0xf]
  %v45 = vld [vmem:[%s1 + $0x5c] sm:$0xf]
  %v46 = vld [vmem:[%s1 + $0x60] sm:$0xf]
  %v47 = vld [vmem:[%s1 + $0x64] sm:$0xf]
  %v48 = vld [vmem:[%s1 + $0x68] sm:$0xf]
  %v49 = vld [vmem:[%s1 + $0x6c] sm:$0xf]
  %v50 = vld [vmem:[%s1 + $0x70] sm:$0xf]
  %v51 = vld [vmem:[%s1 + $0x74] sm:$0xf]
  %v52 = vld [vmem:[%s1 + $0x78] sm:$0xf]
  %v53 = vld [vmem:[%s1 + $0x7c] sm:$0xf]
  %v55 = vunpack.c.l.b16 %v21
  %v56 = vunpack.c.h.b16 %v21
  %v57 = vpack.c.b16 %v55, %v55
  %v58 = vpack.c.b16 %v56, %v56
  %v93 = vunpack.c.l.b16 %v22
  %v94 = vunpack.c.l.b16 %v23
  %v95 = vunpack.c.l.b16 %v24
  %v96 = vunpack.c.l.b16 %v25
  %v97 = vunpack.c.l.b16 %v26
  %v98 = vunpack.c.l.b16 %v27
  %v99 = vunpack.c.l.b16 %v28
  %v100 = vunpack.c.l.b16 %v29
  %v101 = vunpack.c.l.b16 %v30
  %v102 = vunpack.c.l.b16 %v31
  %v103 = vunpack.c.l.b16 %v32
  %v104 = vunpack.c.l.b16 %v33
  %v105 = vunpack.c.l.b16 %v34
  %v106 = vunpack.c.l.b16 %v35
  %v107 = vunpack.c.l.b16 %v36
  %v108 = vunpack.c.l.b16 %v37
  %v109 = vunpack.c.l.b16 %v38
  %v110 = vunpack.c.l.b16 %v39
  %v111 = vunpack.c.l.b16 %v40
  %v112 = vunpack.c.l.b16 %v41
  %v113 = vunpack.c.l.b16 %v42
  %v114 = vunpack.c.l.b16 %v43
  %v115 = vunpack.c.l.b16 %v44
  %v116 = vunpack.c.l.b16 %v45
  %v117 = vunpack.c.l.b16 %v46
  %v118 = vunpack.c.l.b16 %v47
  %v119 = vunpack.c.l.b16 %v48
  %v120 = vunpack.c.l.b16 %v49
  %v121 = vunpack.c.l.b16 %v50
  %v122 = vunpack.c.l.b16 %v51
  %v123 = vunpack.c.l.b16 %v52
  %v124 = vunpack.c.l.b16 %v53
  %v125 = vpack.c.b16 %v94, %v93
  %v126 = vpack.c.b16 %v96, %v95
  %v127 = vpack.c.b16 %v98, %v97
  %v128 = vpack.c.b16 %v100, %v99
  %v129 = vpack.c.b16 %v102, %v101
  %v130 = vpack.c.b16 %v104, %v103
  %v131 = vpack.c.b16 %v106, %v105
  %v132 = vpack.c.b16 %v108, %v107
  %v133 = vpack.c.b16 %v110, %v109
  %v134 = vpack.c.b16 %v112, %v111
  %v135 = vpack.c.b16 %v114, %v113
  %v136 = vpack.c.b16 %v116, %v115
  %v137 = vpack.c.b16 %v118, %v117
  %v138 = vpack.c.b16 %v120, %v119
  %v139 = vpack.c.b16 %v122, %v121
  %v140 = vpack.c.b16 %v124, %v123
  %157 = vmatprep.subr.bf16.mxu0 0
  %158 = vmatpush1.bf16.msra.mxu0 %v125
  %159 = vmatprep.subr.bf16.mxu0 0
  %160 = vmatpush1.bf16.msra.mxu0 %v126
  %161 = vmatprep.subr.bf16.mxu0 0
  %162 = vmatpush1.bf16.msra.mxu0 %v127
  %163 = vmatprep.subr.bf16.mxu0 0
  %164 = vmatpush1.bf16.msra.mxu0 %v128
  %165 = vmatprep.subr.bf16.mxu0 0
  %166 = vmatpush1.bf16.msra.mxu0 %v129
  %167 = vmatprep.subr.bf16.mxu0 0
  %168 = vmatpush1.bf16.msra.mxu0 %v130
  %169 = vmatprep.subr.bf16.mxu0 0
  %170 = vmatpush1.bf16.msra.mxu0 %v131
  %171 = vmatprep.subr.bf16.mxu0 0
  %172 = vmatpush1.bf16.msra.mxu0 %v132
  %173 = vmatprep.subr.bf16.mxu0 0
  %174 = vmatpush1.bf16.msra.mxu0 %v133
  %175 = vmatprep.subr.bf16.mxu0 0
  %176 = vmatpush1.bf16.msra.mxu0 %v134
  %177 = vmatprep.subr.bf16.mxu0 0
  %178 = vmatpush1.bf16.msra.mxu0 %v135
  %179 = vmatprep.subr.bf16.mxu0 0
  %180 = vmatpush1.bf16.msra.mxu0 %v136
  %181 = vmatprep.subr.bf16.mxu0 0
  %182 = vmatpush1.bf16.msra.mxu0 %v137
  %183 = vmatprep.subr.bf16.mxu0 0
  %184 = vmatpush1.bf16.msra.mxu0 %v138
  %185 = vmatprep.subr.bf16.mxu0 0
  %186 = vmatpush1.bf16.msra.mxu0 %v139
  %187 = vmatprep.subr.bf16.mxu0 0
  %188 = vmatpush1.bf16.msra.mxu0 %v140
  %189 = vmatprep.mubr.bf16.mxu0 %v58
  %190 = vmatmul.mubr.bf16.gmra.mrb[0].mxu0 %v57
  %v191 = vpop.f32.mrb[0].mxu0
  %v192 = vadd.f32 0.0, %v191
  %v193 = vpop.f32.mrb[0].mxu0
  %v194 = vpop.f32.mrb[0].mxu0
  %v195 = vpop.f32.mrb[0].mxu0
  %196 = vdwg.mxu0
  %v197 = vadd.f32 %v20, %v192
  %198 = vst [vmem:[#allocation2] sm:$0xff] %v197
  // Predicated region
  $region18: #{advanced_neural_core_fwd.40} parent=0 // pred_check
    %p199 = pneg %p15
  $region19: #{advanced_neural_core_fwd.40} parent=0 // pred_check_branch
    %201 = sbr.rel (%p199) target = $region21
  $region20: #{advanced_neural_core_fwd.40} parent=0 // pred_region
    %v202 = vld [vmem:[#allocation2] sm:$0xff]
    %v203 = vld [vmem:[%s2] sm:$0x1]
    %v205 = vlaneseq
    %v206 = vshrl.u32 %v205, 7
    %v207 = vsub.s32 0, %v206
    %v208 = vrot.slane %v203, %v207
    %v210 = vadd.f32 %v202, %v208
    %211 = vst [vmem:[%s3] sm:$0xff] %v210
  $region21: #{advanced_neural_core_fwd.40} parent=0 // pred_fallthru
    _
  // Predicated region
  $region22: #{advanced_neural_core_fwd.40} parent=0 // pred_check
    _
  $region23: #{advanced_neural_core_fwd.40} parent=0 // pred_check_branch
    %213 = sbr.rel (0) target = $region25
  $region24: #{advanced_neural_core_fwd.40} parent=0 // pred_region
    _
  $region25: #{advanced_neural_core_fwd.40} parent=0 // pred_fallthru
    _
  // Predicated region
  $region26: #{advanced_neural_core_fwd.40} parent=0 // pred_check
    _
  $region27: #{advanced_neural_core_fwd.40} parent=0 // pred_check_branch
    %215 = sbr.rel (0) target = $region29
  $region28: #{advanced_neural_core_fwd.40} parent=0 // pred_region
    _
  $region29: #{advanced_neural_core_fwd.40} parent=0 // pred_fallthru
    _

// kernel: advanced_neural_core_fwd.75
$region0: #{advanced_neural_core_fwd.75}
  #allocation0 [shape = 'u32[]', space=smem, size = 0x4, offset = 0x4, fixed_abs, tag = 'smem constant byte address 0x4 - core index']
  #allocation1 [shape = 'u32[144,128]{1,0:T(1,128)}', space=vmem, size = 0x12000, scoped, tag = 'internal scratch']
  %s0 = inlined_call_operand.vmem [shape: bf16[2,4,8,8], index: 0, kind: input, shape index: {}]
  %s1 = inlined_call_operand.vmem [shape: bf16[2,4,8,8], index: 1, kind: input, shape index: {}]
  %s2 = inlined_call_operand.vmem [shape: bf16[2,4,8,8], index: 2, kind: input, shape index: {}]
  %s3 = inlined_call_operand.vmem [shape: f32[2,4,8,8], index: 3, kind: output, shape index: {0}]
  %s4 = inlined_call_operand.hbm [shape: f32[2,4,8,8], index: 4, kind: output, shape index: {1}]
  %5 = xla_tuple %s3, %s4
  %s6 = sld [smem:[#allocation0]]
  $region53: #{advanced_neural_core_fwd.75} parent=0
    _
  %s8 = ssub.s32 1, %s6
  %s9 = scalar_select 0, %s8, %s6
  $region1: #{advanced_neural_core_fwd.75} parent=0
    #allocation2 [shape = 'u8[32768]{0}', space=vmem, size = 0x8000, scoped, tag = 'output window, operand 1']
    #allocation3 [shape = 's32[2]{0}', space=sflag, size = 0x8, scoped, tag = 'scoped memory for advanced_neural_core_fwd.75']
    %10 = vsyncpa [#allocation3], 0
    %s11 = scalar_lea.sflag [#allocation3], 1
    %12 = vsyncpa %s11, 0
    loop: start=0, step=1, limit=4
    $region2: #{advanced_neural_core_fwd.75} parent=1 // loop_pre_header
      _
    $region3: #{advanced_neural_core_fwd.75} parent=1 // loop_header
      %s14 = sphi 0, %s18
      %p15 = scmp.ge.s32.totalorder %s14, 4
      %s24 = sphi 0, %s26
      %s27 = sphi 0, %s24
      %s28 = sphi 0, %s27
      %s44 = sphi 0, %s28
      %s50 = sphi 0, %s52
      %s53 = sphi 0, %s50
      %s54 = sphi 0, %s53
      %s70 = sphi 0, %s54
      %s76 = sphi 0, %s78
      %s79 = sphi 0, %s76
      %s80 = sphi 0, %s79
      %s96 = sphi 0, %s80
      %s102 = sphi 0, %s104
      %s105 = sphi 0, %s102
      %s106 = sphi 0, %s105
      %s122 = sphi 0, %s106
      %s128 = sphi 0, %s130
      %s131 = sphi 0, %s128
      %s132 = sphi 0, %s131
      %s148 = sphi 0, %s132
    $region4: #{advanced_neural_core_fwd.75} parent=1 // loop_header_branch
      %17 = sbr.rel (%p15) target = $region8
    $region5: #{advanced_neural_core_fwd.75} parent=1 // loop_body
      %s19 = ssub.s32 %s14, 1
      %s20 = ssub.s32 %s14, 2
      %s21 = sadd.s32 %s14, 1
      %s22 = ssub.s32 %s14, %s21
      %p23 = scmp.eq.s32.totalorder %s22, 0
      %s25 = sadd.s32 %s24, 1
      %s26 = scalar_select %p23, %s24, %s25
      %p29 = pneg %p23
      %p30 = scmp.eq.s32.totalorder %s14, 1
      %p31 = por %p29, %p30
      %p32 = scmp.ne.s32.totalorder %s24, %s27
      %p33 = scmp.eq.s32.totalorder %s14, 0
      %p34 = por %p32, %p33
      %p35 = scmp.ne.s32.totalorder %s24, %s27
      %p36 = scmp.eq.s32.totalorder %s19, 1
      %p37 = por %p35, %p36
      %p38 = scmp.ne.s32.totalorder %s27, %s28
      %p39 = scmp.eq.s32.totalorder %s19, 0
      %p40 = por %p38, %p39
      %p41 = scmp.ne.s32.totalorder %s27, %s28
      %p42 = scmp.eq.s32.totalorder %s20, 1
      %p43 = por %p41, %p42
      %p45 = scmp.ne.s32.totalorder %s28, %s44
      %p46 = scmp.eq.s32.totalorder %s20, 0
      %p47 = por %p45, %p46
      %s48 = ssub.s32 %s14, %s21
      %p49 = scmp.eq.s32.totalorder %s48, 0
      %s51 = sadd.s32 %s50, 1
      %s52 = scalar_select %p49, %s50, %s51
      %p55 = pneg %p49
      %p56 = scmp.eq.s32.totalorder %s14, 1
      %p57 = por %p55, %p56
      %p58 = scmp.ne.s32.totalorder %s50, %s53
      %p59 = scmp.eq.s32.totalorder %s14, 0
      %p60 = por %p58, %p59
      %p61 = scmp.ne.s32.totalorder %s50, %s53
      %p62 = scmp.eq.s32.totalorder %s19, 1
      %p63 = por %p61, %p62
      %p64 = scmp.ne.s32.totalorder %s53, %s54
      %p65 = scmp.eq.s32.totalorder %s19, 0
      %p66 = por %p64, %p65
      %p67 = scmp.ne.s32.totalorder %s53, %s54
      %p68 = scmp.eq.s32.totalorder %s20, 1
      %p69 = por %p67, %p68
      %p71 = scmp.ne.s32.totalorder %s54, %s70
      %p72 = scmp.eq.s32.totalorder %s20, 0
      %p73 = por %p71, %p72
      %s74 = ssub.s32 %s14, %s21
      %p75 = scmp.eq.s32.totalorder %s74, 0
      %s77 = sadd.s32 %s76, 1
      %s78 = scalar_select %p75, %s76, %s77
      %p81 = pneg %p75
      %p82 = scmp.eq.s32.totalorder %s14, 1
      %p83 = por %p81, %p82
      %p84 = scmp.ne.s32.totalorder %s76, %s79
      %p85 = scmp.eq.s32.totalorder %s14, 0
      %p86 = por %p84, %p85
      %p87 = scmp.ne.s32.totalorder %s76, %s79
      %p88 = scmp.eq.s32.totalorder %s19, 1
      %p89 = por %p87, %p88
      %p90 = scmp.ne.s32.totalorder %s79, %s80
      %p91 = scmp.eq.s32.totalorder %s19, 0
      %p92 = por %p90, %p91
      %p93 = scmp.ne.s32.totalorder %s79, %s80
      %p94 = scmp.eq.s32.totalorder %s20, 1
      %p95 = por %p93, %p94
      %p97 = scmp.ne.s32.totalorder %s80, %s96
      %p98 = scmp.eq.s32.totalorder %s20, 0
      %p99 = por %p97, %p98
      %s100 = ssub.s32 %s14, %s21
      %p101 = scmp.eq.s32.totalorder %s100, 0
      %s103 = sadd.s32 %s102, 1
      %s104 = scalar_select %p101, %s102, %s103
      %p107 = pneg %p101
      %p108 = scmp.eq.s32.totalorder %s14, 1
      %p109 = por %p107, %p108
      %p110 = scmp.ne.s32.totalorder %s102, %s105
      %p111 = scmp.eq.s32.totalorder %s14, 0
      %p112 = por %p110, %p111
      %p113 = scmp.ne.s32.totalorder %s102, %s105
      %p114 = scmp.eq.s32.totalorder %s19, 1
      %p115 = por %p113, %p114
      %p116 = scmp.ne.s32.totalorder %s105, %s106
      %p117 = scmp.eq.s32.totalorder %s19, 0
      %p118 = por %p116, %p117
      %p119 = scmp.ne.s32.totalorder %s105, %s106
      %p120 = scmp.eq.s32.totalorder %s20, 1
      %p121 = por %p119, %p120
      %p123 = scmp.ne.s32.totalorder %s106, %s122
      %p124 = scmp.eq.s32.totalorder %s20, 0
      %p125 = por %p123, %p124
      %s126 = ssub.s32 %s14, %s21
      %p127 = scmp.eq.s32.totalorder %s126, 0
      %s129 = sadd.s32 %s128, 1
      %s130 = scalar_select %p127, %s128, %s129
      %p133 = pneg %p127
      %p134 = scmp.eq.s32.totalorder %s14, 1
      %p135 = por %p133, %p134
      %p136 = scmp.ne.s32.totalorder %s128, %s131
      %p137 = scmp.eq.s32.totalorder %s14, 0
      %p138 = por %p136, %p137
      %p139 = scmp.ne.s32.totalorder %s128, %s131
      %p140 = scmp.eq.s32.totalorder %s19, 1
      %p141 = por %p139, %p140
      %p142 = scmp.ne.s32.totalorder %s131, %s132
      %p143 = scmp.eq.s32.totalorder %s19, 0
      %p144 = por %p142, %p143
      %p145 = scmp.ne.s32.totalorder %s131, %s132
      %p146 = scmp.eq.s32.totalorder %s20, 1
      %p147 = por %p145, %p146
      %p149 = scmp.ne.s32.totalorder %s132, %s148
      %p150 = scmp.eq.s32.totalorder %s20, 0
      %p151 = por %p149, %p150
      %p152 = scmp.le.s32.totalorder 1, %s14
      %p153 = scmp.lt.s32.totalorder %s14, 3
      %p154 = pnand %p152, %p153
      %p155 = pneg %p154
      // Predicated region
      $region9: #{advanced_neural_core_fwd.75} parent=5 // pred_check
        _
      $region10: #{advanced_neural_core_fwd.75} parent=5 // pred_check_branch
        %157 = sbr.rel (%p154) target = $region12
      $region11: #{advanced_neural_core_fwd.75} parent=5 // pred_region
        %s158 = ssub.s32 %s14, 1
      $region12: #{advanced_neural_core_fwd.75} parent=5 // pred_fallthru
        _
      %p159 = scmp.lt.s32.totalorder %s14, 2
      // Predicated region
      $region13: #{advanced_neural_core_fwd.75} parent=5 // pred_check
        %p160 = pneg %p159
      $region14: #{advanced_neural_core_fwd.75} parent=5 // pred_check_branch
        %162 = sbr.rel (%p160) target = $region16
      $region15: #{advanced_neural_core_fwd.75} parent=5 // pred_region
        // Predicated region
        $region17: #{advanced_neural_core_fwd.75} parent=15 // pred_check
          %p163 = pneg %p34
        $region18: #{advanced_neural_core_fwd.75} parent=15 // pred_check_branch
          %165 = sbr.rel (%p163) target = $region20
        $region19: #{advanced_neural_core_fwd.75} parent=15 // pred_region
          %p166 = scmp.lt.s32.totalorder %s14, 1
          %s167 = scalar_select %p166, %s14, 1
          %s168 = smul.addr %s167, 4
          %s169 = smul.addr %s168, 4
          %s170 = scalar_lea.vmem %s0, %s169
        $region20: #{advanced_neural_core_fwd.75} parent=15 // pred_fallthru
          _
        // Predicated region
        $region21: #{advanced_neural_core_fwd.75} parent=15 // pred_check
          %p171 = pneg %p60
        $region22: #{advanced_neural_core_fwd.75} parent=15 // pred_check_branch
          %173 = sbr.rel (%p171) target = $region24
        $region23: #{advanced_neural_core_fwd.75} parent=15 // pred_region
          %p174 = scmp.lt.s32.totalorder %s14, 1
          %s175 = scalar_select %p174, %s14, 1
          %s176 = smul.addr %s175, 4
          %s177 = smul.addr %s176, 4
          %s178 = scalar_lea.vmem %s1, %s177
        $region24: #{advanced_neural_core_fwd.75} parent=15 // pred_fallthru
          _
        // Predicated region
        $region25: #{advanced_neural_core_fwd.75} parent=15 // pred_check
          %p179 = pneg %p86
        $region26: #{advanced_neural_core_fwd.75} parent=15 // pred_check_branch
          %181 = sbr.rel (%p179) target = $region28
        $region27: #{advanced_neural_core_fwd.75} parent=15 // pred_region
          %p182 = scmp.lt.s32.totalorder %s14, 1
          %s183 = scalar_select %p182, %s14, 1
          %s184 = smul.addr %s183, 4
          %s185 = smul.addr %s184, 4
          %s186 = scalar_lea.vmem %s2, %s185
        $region28: #{advanced_neural_core_fwd.75} parent=15 // pred_fallthru
          _
      $region16: #{advanced_neural_core_fwd.75} parent=5 // pred_fallthru
        _
      %p187 = scmp.le.s32.totalorder 1, %s14
      %p188 = scmp.lt.s32.totalorder %s14, 3
      %p189 = pnand %p187, %p188
      %p190 = pneg %p189
      // Predicated region
      $region29: #{advanced_neural_core_fwd.75} parent=5 // pred_check
        _
      $region30: #{advanced_neural_core_fwd.75} parent=5 // pred_check_branch
        %192 = sbr.rel (%p189) target = $region32
      $region31: #{advanced_neural_core_fwd.75} parent=5 // pred_region
        %s193 = ssub.s32 %s14, 1
        %p194 = scmp.lt.s32.totalorder %s19, 1
        %s195 = scalar_select %p194, %s19, 1
        %s196 = smul.addr %s195, 4
        %s197 = smul.addr %s196, 4
        %s198 = scalar_lea.vmem %s0, %s197
        %p199 = pneg %p40
        %p200 = pneg %p37
        %p201 = scmp.lt.s32.totalorder %s19, 1
        %s202 = scalar_select %p201, %s19, 1
        %s203 = smul.addr %s202, 4
        %s204 = smul.addr %s203, 4
        %s205 = scalar_lea.vmem %s1, %s204
        %p206 = pneg %p66
        %p207 = pneg %p63
        %p208 = scmp.lt.s32.totalorder %s19, 1
        %s209 = scalar_select %p208, %s19, 1
        %s210 = smul.addr %s209, 4
        %s211 = smul.addr %s210, 4
        %s212 = scalar_lea.vmem %s2, %s211
        %p213 = pneg %p92
        %p214 = pneg %p89
        %p215 = pneg %p118
        %p216 = pneg %p115
        %p217 = scmp.lt.s32.totalorder %s19, 1
        %s218 = scalar_select %p217, %s19, 1
        %s219 = smul.addr %s218, 4
        %s220 = smul.addr %s219, 8
        %s221 = scalar_lea.vmem %s3, %s220
        %p222 = pneg %p144
        %p223 = pneg %p141
        %s224 = sand.u32 %s131, 1
        %s225 = scalar_lea.sflag [#allocation3], %s224
        %s226 = sand.u32 %s131, 1
        %s227 = smul.addr %s226, 32
        %s228 = scalar_lea.vmem [#allocation2], %s227
        %p229 = scmp.lt.s32.totalorder %s19, 1
        %s230 = scalar_select %p229, %s19, 1
        %s231 = smul.addr %s230, 4
        %s232 = smul.addr %s231, 4
        %s233 = scalar_lea.vmem %s0, %s232
        %p234 = scmp.lt.s32.totalorder %s19, 1
        %s235 = scalar_select %p234, %s19, 1
        %s236 = smul.addr %s235, 4
        %s237 = smul.addr %s236, 4
        %s238 = scalar_lea.vmem %s1, %s237
        %p239 = scmp.lt.s32.totalorder %s19, 1
        %s240 = scalar_select %p239, %s19, 1
        %s241 = smul.addr %s240, 4
        %s242 = smul.addr %s241, 4
        %s243 = scalar_lea.vmem %s2, %s242
        %p244 = scmp.lt.s32.totalorder %s19, 1
        %s245 = scalar_select %p244, %s19, 1
        %s246 = smul.addr %s245, 4
        %s247 = smul.addr %s246, 8
        %s248 = scalar_lea.vmem %s3, %s247
        %v250 = vld [vmem:[%s233] sm:$0xf]
        %v251 = vld [vmem:[%s233 + $0x4] sm:$0xf]
        %v252 = vld [vmem:[%s233 + $0x8] sm:$0xf]
        %v253 = vld [vmem:[%s233 + $0xc] sm:$0xf]
        %v254 = vld [vmem:[%s238] sm:$0xf]
        %v255 = vld [vmem:[%s238 + $0x4] sm:$0xf]
        %v256 = vld [vmem:[%s238 + $0x8] sm:$0xf]
        %v257 = vld [vmem:[%s238 + $0xc] sm:$0xf]
        %v258 = vld [vmem:[%s243] sm:$0xf]
        %v259 = vld [vmem:[%s243 + $0x4] sm:$0xf]
        %v260 = vld [vmem:[%s243 + $0x8] sm:$0xf]
        %v261 = vld [vmem:[%s243 + $0xc] sm:$0xf]
        %vm262 = vcmask 64512
        %v264 = vsel %vm262, %v250, 0
        %v267 = vsel %vm262, %v254, 0
        %269 = vmatprep.subr.bf16.mxu0 0
        %270 = vmatpush1.bf16.xpose.msra.mxu0 %v267
        %271 = vmatprep.subr.bf16.mxu0 0
        %272 = vmatpush1.bf16.xpose.msra.mxu0 0
        %273 = vmatprep.subr.bf16.mxu0 0
        %274 = vmatpush1.bf16.xpose.msra.mxu0 0
        %275 = vmatprep.subr.bf16.mxu0 0
        %276 = vmatpush1.bf16.xpose.msra.mxu0 0
        %277 = vmatprep.subr.bf16.mxu0 0
        %278 = vmatpush1.bf16.xpose.msra.mxu0 0
        %279 = vmatprep.subr.bf16.mxu0 0
        %280 = vmatpush1.bf16.xpose.msra.mxu0 0
        %281 = vmatprep.subr.bf16.mxu0 0
        %282 = vmatpush1.bf16.xpose.msra.mxu0 0
        %283 = vmatprep.subr.bf16.mxu0 0
        %284 = vmatpush1.bf16.xpose.msra.mxu0 0
        %285 = vmatprep.subr.bf16.mxu0 0
        %286 = vmatpush1.bf16.xpose.msra.mxu0 0
        %287 = vmatprep.subr.bf16.mxu0 0
        %288 = vmatpush1.bf16.xpose.msra.mxu0 0
        %289 = vmatprep.subr.bf16.mxu0 0
        %290 = vmatpush1.bf16.xpose.msra.mxu0 0
        %291 = vmatprep.subr.bf16.mxu0 0
        %292 = vmatpush1.bf16.xpose.msra.mxu0 0
        %293 = vmatprep.subr.bf16.mxu0 0
        %294 = vmatpush1.bf16.xpose.msra.mxu0 0
        %295 = vmatprep.subr.bf16.mxu0 0
        %296 = vmatpush1.bf16.xpose.msra.mxu0 0
        %297 = vmatprep.subr.bf16.mxu0 0
        %298 = vmatpush1.bf16.xpose.msra.mxu0 0
        %299 = vmatprep.subr.bf16.mxu0 0
        %300 = vmatpush1.bf16.xpose.msra.mxu0 0
        %301 = vmatprep.mubr.bf16.mxu0 0
        %302 = vmatmul.mubr.bf16.gmra.mrb[0].mxu0 %v264
        %v303 = vpop.f32.mrb[0].mxu0
        %v304 = vadd.f32 0.0, %v303
        %v305 = vpop.f32.mrb[0].mxu0
        %v306 = vpop.f32.mrb[0].mxu0
        %v307 = vpop.f32.mrb[0].mxu0
        %308 = vdwg.mxu0
        %v310 = vsel %vm262, %v251, 0
        %v313 = vsel %vm262, %v255, 0
        %315 = vmatprep.subr.bf16.mxu0 0
        %316 = vmatpush1.bf16.xpose.msra.mxu0 %v313
        %317 = vmatprep.subr.bf16.mxu0 0
        %318 = vmatpush1.bf16.xpose.msra.mxu0 0
        %319 = vmatprep.subr.bf16.mxu0 0
        %320 = vmatpush1.bf16.xpose.msra.mxu0 0
        %321 = vmatprep.subr.bf16.mxu0 0
        %322 = vmatpush1.bf16.xpose.msra.mxu0 0
        %323 = vmatprep.subr.bf16.mxu0 0
        %324 = vmatpush1.bf16.xpose.msra.mxu0 0
        %325 = vmatprep.subr.bf16.mxu0 0
        %326 = vmatpush1.bf16.xpose.msra.mxu0 0
        %327 = vmatprep.subr.bf16.mxu0 0
        %328 = vmatpush1.bf16.xpose.msra.mxu0 0
        %329 = vmatprep.subr.bf16.mxu0 0
        %330 = vmatpush1.bf16.xpose.msra.mxu0 0
        %331 = vmatprep.subr.bf16.mxu0 0
        %332 = vmatpush1.bf16.xpose.msra.mxu0 0
        %333 = vmatprep.subr.bf16.mxu0 0
        %334 = vmatpush1.bf16.xpose.msra.mxu0 0
        %335 = vmatprep.subr.bf16.mxu0 0
        %336 = vmatpush1.bf16.xpose.msra.mxu0 0
        %337 = vmatprep.subr.bf16.mxu0 0
        %338 = vmatpush1.bf16.xpose.msra.mxu0 0
        %339 = vmatprep.subr.bf16.mxu0 0
        %340 = vmatpush1.bf16.xpose.msra.mxu0 0
        %341 = vmatprep.subr.bf16.mxu0 0
        %342 = vmatpush1.bf16.xpose.msra.mxu0 0
        %343 = vmatprep.subr.bf16.mxu0 0
        %344 = vmatpush1.bf16.xpose.msra.mxu0 0
        %345 = vmatprep.subr.bf16.mxu0 0
        %346 = vmatpush1.bf16.xpose.msra.mxu0 0
        %347 = vmatprep.mubr.bf16.mxu0 0
        %348 = vmatmul.mubr.bf16.gmra.mrb[0].mxu0 %v310
        %v349 = vpop.f32.mrb[0].mxu0
        %v350 = vadd.f32 0.0, %v349
        %v351 = vpop.f32.mrb[0].mxu0
        %v352 = vpop.f32.mrb[0].mxu0
        %v353 = vpop.f32.mrb[0].mxu0
        %354 = vdwg.mxu0
        %v356 = vsel %vm262, %v252, 0
        %v359 = vsel %vm262, %v256, 0
        %361 = vmatprep.subr.bf16.mxu0 0
        %362 = vmatpush1.bf16.xpose.msra.mxu0 %v359
        %363 = vmatprep.subr.bf16.mxu0 0
        %364 = vmatpush1.bf16.xpose.msra.mxu0 0
        %365 = vmatprep.subr.bf16.mxu0 0
        %366 = vmatpush1.bf16.xpose.msra.mxu0 0
        %367 = vmatprep.subr.bf16.mxu0 0
        %368 = vmatpush1.bf16.xpose.msra.mxu0 0
        %369 = vmatprep.subr.bf16.mxu0 0
        %370 = vmatpush1.bf16.xpose.msra.mxu0 0
        %371 = vmatprep.subr.bf16.mxu0 0
        %372 = vmatpush1.bf16.xpose.msra.mxu0 0
        %373 = vmatprep.subr.bf16.mxu0 0
        %374 = vmatpush1.bf16.xpose.msra.mxu0 0
        %375 = vmatprep.subr.bf16.mxu0 0
        %376 = vmatpush1.bf16.xpose.msra.mxu0 0
        %377 = vmatprep.subr.bf16.mxu0 0
        %378 = vmatpush1.bf16.xpose.msra.mxu0 0
        %379 = vmatprep.subr.bf16.mxu0 0
        %380 = vmatpush1.bf16.xpose.msra.mxu0 0
        %381 = vmatprep.subr.bf16.mxu0 0
        %382 = vmatpush1.bf16.xpose.msra.mxu0 0
        %383 = vmatprep.subr.bf16.mxu0 0
        %384 = vmatpush1.bf16.xpose.msra.mxu0 0
        %385 = vmatprep.subr.bf16.mxu0 0
        %386 = vmatpush1.bf16.xpose.msra.mxu0 0
        %387 = vmatprep.subr.bf16.mxu0 0
        %388 = vmatpush1.bf16.xpose.msra.mxu0 0
        %389 = vmatprep.subr.bf16.mxu0 0
        %390 = vmatpush1.bf16.xpose.msra.mxu0 0
        %391 = vmatprep.subr.bf16.mxu0 0
        %392 = vmatpush1.bf16.xpose.msra.mxu0 0
        %393 = vmatprep.mubr.bf16.mxu0 0
        %394 = vmatmul.mubr.bf16.gmra.mrb[0].mxu0 %v356
        %v395 = vpop.f32.mrb[0].mxu0
        %v396 = vadd.f32 0.0, %v395
        %v397 = vpop.f32.mrb[0].mxu0
        %v398 = vpop.f32.mrb[0].mxu0
        %v399 = vpop.f32.mrb[0].mxu0
        %400 = vdwg.mxu0
        %v402 = vsel %vm262, %v253, 0
        %v405 = vsel %vm262, %v257, 0
        %407 = vmatprep.subr.bf16.mxu0 0
        %408 = vmatpush1.bf16.xpose.msra.mxu0 %v405
        %409 = vmatprep.subr.bf16.mxu0 0
        %410 = vmatpush1.bf16.xpose.msra.mxu0 0
        %411 = vmatprep.subr.bf16.mxu0 0
        %412 = vmatpush1.bf16.xpose.msra.mxu0 0
        %413 = vmatprep.subr.bf16.mxu0 0
        %414 = vmatpush1.bf16.xpose.msra.mxu0 0
        %415 = vmatprep.subr.bf16.mxu0 0
        %416 = vmatpush1.bf16.xpose.msra.mxu0 0
        %417 = vmatprep.subr.bf16.mxu0 0
        %418 = vmatpush1.bf16.xpose.msra.mxu0 0
        %419 = vmatprep.subr.bf16.mxu0 0
        %420 = vmatpush1.bf16.xpose.msra.mxu0 0
        %421 = vmatprep.subr.bf16.mxu0 0
        %422 = vmatpush1.bf16.xpose.msra.mxu0 0
        %423 = vmatprep.subr.bf16.mxu0 0
        %424 = vmatpush1.bf16.xpose.msra.mxu0 0
        %425 = vmatprep.subr.bf16.mxu0 0
        %426 = vmatpush1.bf16.xpose.msra.mxu0 0
        %427 = vmatprep.subr.bf16.mxu0 0
        %428 = vmatpush1.bf16.xpose.msra.mxu0 0
        %429 = vmatprep.subr.bf16.mxu0 0
        %430 = vmatpush1.bf16.xpose.msra.mxu0 0
        %431 = vmatprep.subr.bf16.mxu0 0
        %432 = vmatpush1.bf16.xpose.msra.mxu0 0
        %433 = vmatprep.subr.bf16.mxu0 0
        %434 = vmatpush1.bf16.xpose.msra.mxu0 0
        %435 = vmatprep.subr.bf16.mxu0 0
        %436 = vmatpush1.bf16.xpose.msra.mxu0 0
        %437 = vmatprep.subr.bf16.mxu0 0
        %438 = vmatpush1.bf16.xpose.msra.mxu0 0
        %439 = vmatprep.mubr.bf16.mxu0 0
        %440 = vmatmul.mubr.bf16.gmra.mrb[0].mxu0 %v402
        %v441 = vpop.f32.mrb[0].mxu0
        %v442 = vadd.f32 0.0, %v441
        %v443 = vpop.f32.mrb[0].mxu0
        %v444 = vpop.f32.mrb[0].mxu0
        %v445 = vpop.f32.mrb[0].mxu0
        %446 = vdwg.mxu0
        %v447 = vmul.f32 %v304, 0.35355338
        %v448 = vmul.f32 %v350, 0.35355338
        %v449 = vmul.f32 %v396, 0.35355338
        %v450 = vmul.f32 %v442, 0.35355338
        %v451 = vsel %vm262, %v447, -inf
        %452 = vmax.xlane.f32.xlu0 %v451
        %v453 = vpop.xlane.xlu0 %452
        %v454 = vsel %vm262, %v448, -inf
        %455 = vmax.xlane.f32.xlu0 %v454
        %v456 = vpop.xlane.xlu0 %455
        %v457 = vsel %vm262, %v449, -inf
        %458 = vmax.xlane.f32.xlu0 %v457
        %v459 = vpop.xlane.xlu0 %458
        %v460 = vsel %vm262, %v450, -inf
        %461 = vmax.xlane.f32.xlu0 %v460
        %v462 = vpop.xlane.xlu0 %461
        %v463 = vsub.f32 %v447, %v453
        %v464 = vsub.f32 %v448, %v456
        %v465 = vsub.f32 %v449, %v459
        %v466 = vsub.f32 %v450, %v462
        %v467 = vmul.f32 %v463, 1.442695
        %v468 = vpow.pop %v467
        %v469 = vmul.f32 %v464, 1.442695
        %v470 = vpow.pop %v469
        %v471 = vmul.f32 %v465, 1.442695
        %v472 = vpow.pop %v471
        %v473 = vmul.f32 %v466, 1.442695
        %v474 = vpow.pop %v473
        %v475 = vsel %vm262, %v468, 0.0
        %476 = vadd.xlane.f32.xlu0 %v475
        %v477 = vpop.xlane.xlu0 %476
        %v478 = vsel %vm262, %v470, 0.0
        %479 = vadd.xlane.f32.xlu0 %v478
        %v480 = vpop.xlane.xlu0 %479
        %v481 = vsel %vm262, %v472, 0.0
        %482 = vadd.xlane.f32.xlu0 %v481
        %v483 = vpop.xlane.xlu0 %482
        %v484 = vsel %vm262, %v474, 0.0
        %485 = vadd.xlane.f32.xlu0 %v484
        %v486 = vpop.xlane.xlu0 %485
        %v487 = vrcp.pop %v477
        %v488 = vmul.f32 %v468, %v487
        %v489 = vrcp.pop %v480
        %v490 = vmul.f32 %v470, %v489
        %v491 = vrcp.pop %v483
        %v492 = vmul.f32 %v472, %v491
        %v493 = vrcp.pop %v486
        %v494 = vmul.f32 %v474, %v493
        %495 = vst.msk [vmem:[%s228] sm:$0xff] %vm262, %v488
        %496 = vst.msk [vmem:[%s228 + $0x8] sm:$0xff] %vm262, %v490
        %497 = vst.msk [vmem:[%s228 + $0x10] sm:$0xff] %vm262, %v492
        %498 = vst.msk [vmem:[%s228 + $0x18] sm:$0xff] %vm262, %v494
        %v499 = vpack.c.bf16 %v488, %v488
        %v500 = vpack.c.bf16 %v490, %v490
        %v501 = vpack.c.bf16 %v492, %v492
        %v502 = vpack.c.bf16 %v494, %v494
        %v504 = vsel %vm262, %v499, 0
        %vm506 = vcmask 1043456
        %v508 = vsel %vm506, %v258, 0
        %510 = vmatprep.subr.bf16.mxu0 0
        %511 = vmatpush1.bf16.msra.mxu0 %v508
        %512 = vmatprep.subr.bf16.mxu0 0
        %513 = vmatpush1.bf16.msra.mxu0 0
        %514 = vmatprep.subr.bf16.mxu0 0
        %515 = vmatpush1.bf16.msra.mxu0 0
        %516 = vmatprep.subr.bf16.mxu0 0
        %517 = vmatpush1.bf16.msra.mxu0 0
        %518 = vmatprep.subr.bf16.mxu0 0
        %519 = vmatpush1.bf16.msra.mxu0 0
        %520 = vmatprep.subr.bf16.mxu0 0
        %521 = vmatpush1.bf16.msra.mxu0 0
        %522 = vmatprep.subr.bf16.mxu0 0
        %523 = vmatpush1.bf16.msra.mxu0 0
        %524 = vmatprep.subr.bf16.mxu0 0
        %525 = vmatpush1.bf16.msra.mxu0 0
        %526 = vmatprep.subr.bf16.mxu0 0
        %527 = vmatpush1.bf16.msra.mxu0 0
        %528 = vmatprep.subr.bf16.mxu0 0
        %529 = vmatpush1.bf16.msra.mxu0 0
        %530 = vmatprep.subr.bf16.mxu0 0
        %531 = vmatpush1.bf16.msra.mxu0 0
        %532 = vmatprep.subr.bf16.mxu0 0
        %533 = vmatpush1.bf16.msra.mxu0 0
        %534 = vmatprep.subr.bf16.mxu0 0
        %535 = vmatpush1.bf16.msra.mxu0 0
        %536 = vmatprep.subr.bf16.mxu0 0
        %537 = vmatpush1.bf16.msra.mxu0 0
        %538 = vmatprep.subr.bf16.mxu0 0
        %539 = vmatpush1.bf16.msra.mxu0 0
        %540 = vmatprep.subr.bf16.mxu0 0
        %541 = vmatpush1.bf16.msra.mxu0 0
        %542 = vmatprep.mubr.bf16.mxu0 0
        %543 = vmatmul.mubr.bf16.gmra.mrb[0].mxu0 %v504
        %v544 = vpop.f32.mrb[0].mxu0
        %v545 = vadd.f32 0.0, %v544
        %v546 = vpop.f32.mrb[0].mxu0
        %v547 = vpop.f32.mrb[0].mxu0
        %v548 = vpop.f32.mrb[0].mxu0
        %549 = vdwg.mxu0
        %v551 = vsel %vm262, %v500, 0
        %v554 = vsel %vm506, %v259, 0
        %556 = vmatprep.subr.bf16.mxu0 0
        %557 = vmatpush1.bf16.msra.mxu0 %v554
        %558 = vmatprep.subr.bf16.mxu0 0
        %559 = vmatpush1.bf16.msra.mxu0 0
        %560 = vmatprep.subr.bf16.mxu0 0
        %561 = vmatpush1.bf16.msra.mxu0 0
        %562 = vmatprep.subr.bf16.mxu0 0
        %563 = vmatpush1.bf16.msra.mxu0 0
        %564 = vmatprep.subr.bf16.mxu0 0
        %565 = vmatpush1.bf16.msra.mxu0 0
        %566 = vmatprep.subr.bf16.mxu0 0
        %567 = vmatpush1.bf16.msra.mxu0 0
        %568 = vmatprep.subr.bf16.mxu0 0
        %569 = vmatpush1.bf16.msra.mxu0 0
        %570 = vmatprep.subr.bf16.mxu0 0
        %571 = vmatpush1.bf16.msra.mxu0 0
        %572 = vmatprep.subr.bf16.mxu0 0
        %573 = vmatpush1.bf16.msra.mxu0 0
        %574 = vmatprep.subr.bf16.mxu0 0
        %575 = vmatpush1.bf16.msra.mxu0 0
        %576 = vmatprep.subr.bf16.mxu0 0
        %577 = vmatpush1.bf16.msra.mxu0 0
        %578 = vmatprep.subr.bf16.mxu0 0
        %579 = vmatpush1.bf16.msra.mxu0 0
        %580 = vmatprep.subr.bf16.mxu0 0
        %581 = vmatpush1.bf16.msra.mxu0 0
        %582 = vmatprep.subr.bf16.mxu0 0
        %583 = vmatpush1.bf16.msra.mxu0 0
        %584 = vmatprep.subr.bf16.mxu0 0
        %585 = vmatpush1.bf16.msra.mxu0 0
        %586 = vmatprep.subr.bf16.mxu0 0
        %587 = vmatpush1.bf16.msra.mxu0 0
        %588 = vmatprep.mubr.bf16.mxu0 0
        %589 = vmatmul.mubr.bf16.gmra.mrb[0].mxu0 %v551
        %v590 = vpop.f32.mrb[0].mxu0
        %v591 = vadd.f32 0.0, %v590
        %v592 = vpop.f32.mrb[0].mxu0
        %v593 = vpop.f32.mrb[0].mxu0
        %v594 = vpop.f32.mrb[0].mxu0
        %595 = vdwg.mxu0
        %v597 = vsel %vm262, %v501, 0
        %v600 = vsel %vm506, %v260, 0
        %602 = vmatprep.subr.bf16.mxu0 0
        %603 = vmatpush1.bf16.msra.mxu0 %v600
        %604 = vmatprep.subr.bf16.mxu0 0
        %605 = vmatpush1.bf16.msra.mxu0 0
        %606 = vmatprep.subr.bf16.mxu0 0
        %607 = vmatpush1.bf16.msra.mxu0 0
        %608 = vmatprep.subr.bf16.mxu0 0
        %609 = vmatpush1.bf16.msra.mxu0 0
        %610 = vmatprep.subr.bf16.mxu0 0
        %611 = vmatpush1.bf16.msra.mxu0 0
        %612 = vmatprep.subr.bf16.mxu0 0
        %613 = vmatpush1.bf16.msra.mxu0 0
        %614 = vmatprep.subr.bf16.mxu0 0
        %615 = vmatpush1.bf16.msra.mxu0 0
        %616 = vmatprep.subr.bf16.mxu0 0
        %617 = vmatpush1.bf16.msra.mxu0 0
        %618 = vmatprep.subr.bf16.mxu0 0
        %619 = vmatpush1.bf16.msra.mxu0 0
        %620 = vmatprep.subr.bf16.mxu0 0
        %621 = vmatpush1.bf16.msra.mxu0 0
        %622 = vmatprep.subr.bf16.mxu0 0
        %623 = vmatpush1.bf16.msra.mxu0 0
        %624 = vmatprep.subr.bf16.mxu0 0
        %625 = vmatpush1.bf16.msra.mxu0 0
        %626 = vmatprep.subr.bf16.mxu0 0
        %627 = vmatpush1.bf16.msra.mxu0 0
        %628 = vmatprep.subr.bf16.mxu0 0
        %629 = vmatpush1.bf16.msra.mxu0 0
        %630 = vmatprep.subr.bf16.mxu0 0
        %631 = vmatpush1.bf16.msra.mxu0 0
        %632 = vmatprep.subr.bf16.mxu0 0
        %633 = vmatpush1.bf16.msra.mxu0 0
        %634 = vmatprep.mubr.bf16.mxu0 0
        %635 = vmatmul.mubr.bf16.gmra.mrb[0].mxu0 %v597
        %v636 = vpop.f32.mrb[0].mxu0
        %v637 = vadd.f32 0.0, %v636
        %v638 = vpop.f32.mrb[0].mxu0
        %v639 = vpop.f32.mrb[0].mxu0
        %v640 = vpop.f32.mrb[0].mxu0
        %641 = vdwg.mxu0
        %v643 = vsel %vm262, %v502, 0
        %v646 = vsel %vm506, %v261, 0
        %648 = vmatprep.subr.bf16.mxu0 0
        %649 = vmatpush1.bf16.msra.mxu0 %v646
        %650 = vmatprep.subr.bf16.mxu0 0
        %651 = vmatpush1.bf16.msra.mxu0 0
        %652 = vmatprep.subr.bf16.mxu0 0
        %653 = vmatpush1.bf16.msra.mxu0 0
        %654 = vmatprep.subr.bf16.mxu0 0
        %655 = vmatpush1.bf16.msra.mxu0 0
        %656 = vmatprep.subr.bf16.mxu0 0
        %657 = vmatpush1.bf16.msra.mxu0 0
        %658 = vmatprep.subr.bf16.mxu0 0
        %659 = vmatpush1.bf16.msra.mxu0 0
        %660 = vmatprep.subr.bf16.mxu0 0
        %661 = vmatpush1.bf16.msra.mxu0 0
        %662 = vmatprep.subr.bf16.mxu0 0
        %663 = vmatpush1.bf16.msra.mxu0 0
        %664 = vmatprep.subr.bf16.mxu0 0
        %665 = vmatpush1.bf16.msra.mxu0 0
        %666 = vmatprep.subr.bf16.mxu0 0
        %667 = vmatpush1.bf16.msra.mxu0 0
        %668 = vmatprep.subr.bf16.mxu0 0
        %669 = vmatpush1.bf16.msra.mxu0 0
        %670 = vmatprep.subr.bf16.mxu0 0
        %671 = vmatpush1.bf16.msra.mxu0 0
        %672 = vmatprep.subr.bf16.mxu0 0
        %673 = vmatpush1.bf16.msra.mxu0 0
        %674 = vmatprep.subr.bf16.mxu0 0
        %675 = vmatpush1.bf16.msra.mxu0 0
        %676 = vmatprep.subr.bf16.mxu0 0
        %677 = vmatpush1.bf16.msra.mxu0 0
        %678 = vmatprep.subr.bf16.mxu0 0
        %679 = vmatpush1.bf16.msra.mxu0 0
        %680 = vmatprep.mubr.bf16.mxu0 0
        %681 = vmatmul.mubr.bf16.gmra.mrb[0].mxu0 %v643
        %v682 = vpop.f32.mrb[0].mxu0
        %v683 = vadd.f32 0.0, %v682
        %v684 = vpop.f32.mrb[0].mxu0
        %v685 = vpop.f32.mrb[0].mxu0
        %v686 = vpop.f32.mrb[0].mxu0
        %687 = vdwg.mxu0
        %688 = vst.msk [vmem:[%s248] sm:$0xff] %vm262, %v545
        %689 = vst.msk [vmem:[%s248 + $0x8] sm:$0xff] %vm262, %v591
        %690 = vst.msk [vmem:[%s248 + $0x10] sm:$0xff] %vm262, %v637
        %691 = vst.msk [vmem:[%s248 + $0x18] sm:$0xff] %vm262, %v683
        %p692 = scmp.lt.s32.totalorder %s19, 1
        %s693 = scalar_select %p692, %s19, 1
        %s694 = smul.addr %s693, 4
        %s695 = smul.addr %s694, 8
        %s696 = scalar_lea.vmem %s3, %s695
        %s697 = sand.u32 %s131, 1
        %s698 = scalar_lea.sflag [#allocation3], %s697
        %s699 = sand.u32 %s131, 1
        %s700 = smul.addr %s699, 32
        %s701 = scalar_lea.vmem [#allocation2], %s700
        // Predicated region
        $region33: #{advanced_neural_core_fwd.75} parent=31 // pred_check
          %p702 = pneg %p115
        $region34: #{advanced_neural_core_fwd.75} parent=31 // pred_check_branch
          %704 = sbr.rel (%p702) target = $region36
        $region35: #{advanced_neural_core_fwd.75} parent=31 // pred_region
          _
        $region36: #{advanced_neural_core_fwd.75} parent=31 // pred_fallthru
          _
        // Predicated region
        $region37: #{advanced_neural_core_fwd.75} parent=31 // pred_check
          %p705 = pneg %p141
        $region38: #{advanced_neural_core_fwd.75} parent=31 // pred_check_branch
          %707 = sbr.rel (%p705) target = $region40
        $region39: #{advanced_neural_core_fwd.75} parent=31 // pred_region
          %s709 = ssub.s32 512, 512
          %710 = vsyncadd %s698, %s709
          %s711 = smul.addr %s19, 4
          %s712 = smul.addr %s711, 128
          %s713 = scalar_lea.hbm %s4, %s712
          %s714 = sshll.u32 %s701, 4
          %s715 = int_to_ptr.vmem [resolvable:$true] %s714
          %720 = dma.vmem_to_hbm [thread:$0]  %s715, 512, %s713, %s698, 128, 128, 8
        $region40: #{advanced_neural_core_fwd.75} parent=31 // pred_fallthru
          _
      $region32: #{advanced_neural_core_fwd.75} parent=5 // pred_fallthru
        _
      %p721 = scmp.le.s32.totalorder 2, %s14
      // Predicated region
      $region41: #{advanced_neural_core_fwd.75} parent=5 // pred_check
        %p722 = pneg %p721
      $region42: #{advanced_neural_core_fwd.75} parent=5 // pred_check_branch
        %724 = sbr.rel (%p722) target = $region44
      $region43: #{advanced_neural_core_fwd.75} parent=5 // pred_region
        %s725 = ssub.s32 %s14, 2
        // Predicated region
        $region45: #{advanced_neural_core_fwd.75} parent=43 // pred_check
          %p726 = pneg %p121
        $region46: #{advanced_neural_core_fwd.75} parent=43 // pred_check_branch
          %728 = sbr.rel (%p726) target = $region48
        $region47: #{advanced_neural_core_fwd.75} parent=43 // pred_region
          %p729 = scmp.lt.s32.totalorder %s20, 1
          %s730 = scalar_select %p729, %s20, 1
          %s731 = smul.addr %s730, 4
          %s732 = smul.addr %s731, 8
          %s733 = scalar_lea.vmem %s3, %s732
        $region48: #{advanced_neural_core_fwd.75} parent=43 // pred_fallthru
          _
        // Predicated region
        $region49: #{advanced_neural_core_fwd.75} parent=43 // pred_check
          %p734 = pneg %p147
        $region50: #{advanced_neural_core_fwd.75} parent=43 // pred_check_branch
          %736 = sbr.rel (%p734) target = $region52
        $region51: #{advanced_neural_core_fwd.75} parent=43 // pred_region
          %s737 = sand.u32 %s132, 1
          %s738 = scalar_lea.sflag [#allocation3], %s737
          %s739 = sand.u32 %s132, 1
          %s740 = smul.addr %s739, 32
          %s741 = scalar_lea.vmem [#allocation2], %s740
          %742 = dma.done %s738, 512
        $region52: #{advanced_neural_core_fwd.75} parent=43 // pred_fallthru
          _
      $region44: #{advanced_neural_core_fwd.75} parent=5 // pred_fallthru
        _
    $region6: #{advanced_neural_core_fwd.75} parent=1 // loop_footer
      %s18 = sadd.s32 1, %s14
    $region7: #{advanced_neural_core_fwd.75} parent=1 // loop_footer_branch
      %13 = sbr.rel target = $region3
    $region8: #{advanced_neural_core_fwd.75} parent=1 // loop_exit
      _
    %743 = vsyncpa [#allocation3], 1
    %s744 = scalar_lea.sflag [#allocation3], 1
    %745 = vsyncpa %s744, 1

// kernel: advanced_neural_core_fwd.71
$region0: #{advanced_neural_core_fwd.71}
  #allocation0 [shape = 'u32[]', space=smem, size = 0x4, offset = 0x4, fixed_abs, tag = 'smem constant byte address 0x4 - core index']
  #allocation1 [shape = 'u32[144,128]{1,0:T(1,128)}', space=vmem, size = 0x12000, scoped, tag = 'internal scratch']
  %s0 = inlined_call_operand.vmem [shape: bf16[16,32], index: 0, kind: input, shape index: {}]
  %s1 = inlined_call_operand.vmem [shape: bf16[32,64], index: 1, kind: input, shape index: {}]
  %s2 = inlined_call_operand.vmem [shape: f32[1,64], index: 2, kind: input, shape index: {}]
  %s3 = inlined_call_operand.vmem [shape: bf16[64,128], index: 3, kind: input, shape index: {}]
  %s4 = inlined_call_operand.vmem [shape: f32[1,128], index: 4, kind: input, shape index: {}]
  %s5 = inlined_call_operand.vmem [shape: bf16[128,32], index: 5, kind: input, shape index: {}]
  %s6 = inlined_call_operand.vmem [shape: f32[1,32], index: 6, kind: input, shape index: {}]
  %s7 = inlined_call_operand.hbm [shape: f32[16,32], index: 7, kind: output, shape index: {}]
  %s8 = sld [smem:[#allocation0]]
  $region38: #{advanced_neural_core_fwd.71} parent=0
    _
  %s10 = ssub.s32 1, %s8
  %s11 = scalar_select 0, %s10, %s8
  $region1: #{advanced_neural_core_fwd.71} parent=0
    #allocation2 [shape = 'u8[8192]{0}', space=vmem, size = 0x2000, scoped, tag = 'output window, operand 0, single buffered']
    #allocation3 [shape = 's32[1]{0}', space=sflag, size = 0x4, scoped, tag = 'scoped memory for advanced_neural_core_fwd.71']
    %12 = vsyncpa [#allocation3], 0
    // Predicated region
    $region2: #{advanced_neural_core_fwd.71} parent=1 // pred_check
      _
    $region3: #{advanced_neural_core_fwd.71} parent=1 // pred_check_branch
      %14 = sbr.rel (0) target = $region5
    $region4: #{advanced_neural_core_fwd.71} parent=1 // pred_region
      _
    $region5: #{advanced_neural_core_fwd.71} parent=1 // pred_fallthru
      _
    // Predicated region
    $region6: #{advanced_neural_core_fwd.71} parent=1 // pred_check
      _
    $region7: #{advanced_neural_core_fwd.71} parent=1 // pred_check_branch
      %16 = sbr.rel (0) target = $region9
    $region8: #{advanced_neural_core_fwd.71} parent=1 // pred_region
      _
    $region9: #{advanced_neural_core_fwd.71} parent=1 // pred_fallthru
      _
    // Predicated region
    $region10: #{advanced_neural_core_fwd.71} parent=1 // pred_check
      _
    $region11: #{advanced_neural_core_fwd.71} parent=1 // pred_check_branch
      %18 = sbr.rel (0) target = $region13
    $region12: #{advanced_neural_core_fwd.71} parent=1 // pred_region
      _
    $region13: #{advanced_neural_core_fwd.71} parent=1 // pred_fallthru
      _
    // Predicated region
    $region14: #{advanced_neural_core_fwd.71} parent=1 // pred_check
      _
    $region15: #{advanced_neural_core_fwd.71} parent=1 // pred_check_branch
      %20 = sbr.rel (0) target = $region17
    $region16: #{advanced_neural_core_fwd.71} parent=1 // pred_region
      _
    $region17: #{advanced_neural_core_fwd.71} parent=1 // pred_fallthru
      _
    // Predicated region
    $region18: #{advanced_neural_core_fwd.71} parent=1 // pred_check
      _
    $region19: #{advanced_neural_core_fwd.71} parent=1 // pred_check_branch
      %22 = sbr.rel (0) target = $region21
    $region20: #{advanced_neural_core_fwd.71} parent=1 // pred_region
      _
    $region21: #{advanced_neural_core_fwd.71} parent=1 // pred_fallthru
      _
    // Predicated region
    $region22: #{advanced_neural_core_fwd.71} parent=1 // pred_check
      _
    $region23: #{advanced_neural_core_fwd.71} parent=1 // pred_check_branch
      %24 = sbr.rel (0) target = $region25
    $region24: #{advanced_neural_core_fwd.71} parent=1 // pred_region
      _
    $region25: #{advanced_neural_core_fwd.71} parent=1 // pred_fallthru
      _
    // Predicated region
    $region26: #{advanced_neural_core_fwd.71} parent=1 // pred_check
      _
    $region27: #{advanced_neural_core_fwd.71} parent=1 // pred_check_branch
      %26 = sbr.rel (0) target = $region29
    $region28: #{advanced_neural_core_fwd.71} parent=1 // pred_region
      _
    $region29: #{advanced_neural_core_fwd.71} parent=1 // pred_fallthru
      _
    %v28 = vld [vmem:[%s0] sm:$0xf]
    %v29 = vld [vmem:[%s0 + $0x4] sm:$0xf]
    %v30 = vld [vmem:[%s1] sm:$0xf]
    %v31 = vld [vmem:[%s1 + $0x4] sm:$0xf]
    %v32 = vld [vmem:[%s1 + $0x8] sm:$0xf]
    %v33 = vld [vmem:[%s1 + $0xc] sm:$0xf]
    %v34 = vld [vmem:[%s2] sm:$0x1]
    %v36 = vlaneseq
    %v37 = vshrl.u32 %v36, 7
    %v38 = vsub.s32 0, %v37
    %v39 = vrot.slane %v34, %v38
    %v43 = vunpack.c.l.b16 %v28
    %v44 = vunpack.c.l.b16 %v29
    %v45 = vpack.c.b16 %v44, %v43
    %v50 = vunpack.c.l.b16 %v30
    %v51 = vunpack.c.l.b16 %v31
    %v52 = vunpack.c.l.b16 %v32
    %v53 = vunpack.c.l.b16 %v33
    %v54 = vpack.c.b16 %v51, %v50
    %v55 = vpack.c.b16 %v53, %v52
    %vm58 = vcmask 261120
    %v60 = vsel %vm58, %v45, 0
    %62 = vmatprep.subr.bf16.mxu0 0
    %63 = vmatpush1.bf16.msra.mxu0 %v54
    %64 = vmatprep.subr.bf16.mxu0 0
    %65 = vmatpush1.bf16.msra.mxu0 %v55
    %66 = vmatprep.subr.bf16.mxu0 0
    %67 = vmatpush1.bf16.msra.mxu0 0
    %68 = vmatprep.subr.bf16.mxu0 0
    %69 = vmatpush1.bf16.msra.mxu0 0
    %70 = vmatprep.subr.bf16.mxu0 0
    %71 = vmatpush1.bf16.msra.mxu0 0
    %72 = vmatprep.subr.bf16.mxu0 0
    %73 = vmatpush1.bf16.msra.mxu0 0
    %74 = vmatprep.subr.bf16.mxu0 0
    %75 = vmatpush1.bf16.msra.mxu0 0
    %76 = vmatprep.subr.bf16.mxu0 0
    %77 = vmatpush1.bf16.msra.mxu0 0
    %78 = vmatprep.subr.bf16.mxu0 0
    %79 = vmatpush1.bf16.msra.mxu0 0
    %80 = vmatprep.subr.bf16.mxu0 0
    %81 = vmatpush1.bf16.msra.mxu0 0
    %82 = vmatprep.subr.bf16.mxu0 0
    %83 = vmatpush1.bf16.msra.mxu0 0
    %84 = vmatprep.subr.bf16.mxu0 0
    %85 = vmatpush1.bf16.msra.mxu0 0
    %86 = vmatprep.subr.bf16.mxu0 0
    %87 = vmatpush1.bf16.msra.mxu0 0
    %88 = vmatprep.subr.bf16.mxu0 0
    %89 = vmatpush1.bf16.msra.mxu0 0
    %90 = vmatprep.subr.bf16.mxu0 0
    %91 = vmatpush1.bf16.msra.mxu0 0
    %92 = vmatprep.subr.bf16.mxu0 0
    %93 = vmatpush1.bf16.msra.mxu0 0
    %94 = vmatprep.mubr.bf16.mxu0 0
    %95 = vmatmul.mubr.bf16.gmra.mrb[0].mxu0 %v60
    %v96 = vpop.f32.mrb[0].mxu0
    %v97 = vadd.f32 %v39, %v96
    %v98 = vpop.f32.mrb[0].mxu0
    %v99 = vpop.f32.mrb[0].mxu0
    %v100 = vadd.f32 %v39, %v99
    %v101 = vpop.f32.mrb[0].mxu0
    %102 = vdwg.mxu0
    %v103 = vmax.f32 %v97, 0.0
    %v104 = vmax.f32 %v100, 0.0
    %v105 = vpack.c.bf16 %v104, %v103
    %v106 = vld [vmem:[%s3] sm:$0xf]
    %v107 = vld [vmem:[%s3 + $0x4] sm:$0xf]
    %v108 = vld [vmem:[%s3 + $0x8] sm:$0xf]
    %v109 = vld [vmem:[%s3 + $0xc] sm:$0xf]
    %v110 = vld [vmem:[%s3 + $0x10] sm:$0xf]
    %v111 = vld [vmem:[%s3 + $0x14] sm:$0xf]
    %v112 = vld [vmem:[%s3 + $0x18] sm:$0xf]
    %v113 = vld [vmem:[%s3 + $0x1c] sm:$0xf]
    %v114 = vld [vmem:[%s4] sm:$0x1]
    %v116 = vlaneseq
    %v117 = vshrl.u32 %v116, 7
    %v118 = vsub.s32 0, %v117
    %v119 = vrot.slane %v114, %v118
    %v129 = vunpack.c.l.b16 %v106
    %v130 = vunpack.c.l.b16 %v107
    %v131 = vunpack.c.l.b16 %v108
    %v132 = vunpack.c.l.b16 %v109
    %v133 = vunpack.c.l.b16 %v110
    %v134 = vunpack.c.l.b16 %v111
    %v135 = vunpack.c.l.b16 %v112
    %v136 = vunpack.c.l.b16 %v113
    %v137 = vpack.c.b16 %v130, %v129
    %v138 = vpack.c.b16 %v132, %v131
    %v139 = vpack.c.b16 %v134, %v133
    %v140 = vpack.c.b16 %v136, %v135
    %vm145 = vcmask 523264
    %v147 = vsel %vm145, %v105, 0
    %149 = vmatprep.subr.bf16.mxu0 0
    %150 = vmatpush1.bf16.msra.mxu0 %v137
    %151 = vmatprep.subr.bf16.mxu0 0
    %152 = vmatpush1.bf16.msra.mxu0 %v138
    %153 = vmatprep.subr.bf16.mxu0 0
    %154 = vmatpush1.bf16.msra.mxu0 %v139
    %155 = vmatprep.subr.bf16.mxu0 0
    %156 = vmatpush1.bf16.msra.mxu0 %v140
    %157 = vmatprep.subr.bf16.mxu0 0
    %158 = vmatpush1.bf16.msra.mxu0 0
    %159 = vmatprep.subr.bf16.mxu0 0
    %160 = vmatpush1.bf16.msra.mxu0 0
    %161 = vmatprep.subr.bf16.mxu0 0
    %162 = vmatpush1.bf16.msra.mxu0 0
    %163 = vmatprep.subr.bf16.mxu0 0
    %164 = vmatpush1.bf16.msra.mxu0 0
    %165 = vmatprep.subr.bf16.mxu0 0
    %166 = vmatpush1.bf16.msra.mxu0 0
    %167 = vmatprep.subr.bf16.mxu0 0
    %168 = vmatpush1.bf16.msra.mxu0 0
    %169 = vmatprep.subr.bf16.mxu0 0
    %170 = vmatpush1.bf16.msra.mxu0 0
    %171 = vmatprep.subr.bf16.mxu0 0
    %172 = vmatpush1.bf16.msra.mxu0 0
    %173 = vmatprep.subr.bf16.mxu0 0
    %174 = vmatpush1.bf16.msra.mxu0 0
    %175 = vmatprep.subr.bf16.mxu0 0
    %176 = vmatpush1.bf16.msra.mxu0 0
    %177 = vmatprep.subr.bf16.mxu0 0
    %178 = vmatpush1.bf16.msra.mxu0 0
    %179 = vmatprep.subr.bf16.mxu0 0
    %180 = vmatpush1.bf16.msra.mxu0 0
    %181 = vmatprep.mubr.bf16.mxu0 0
    %182 = vmatmul.mubr.bf16.gmra.mrb[0].mxu0 %v147
    %v183 = vpop.f32.mrb[0].mxu0
    %v184 = vadd.f32 %v119, %v183
    %v185 = vpop.f32.mrb[0].mxu0
    %v186 = vpop.f32.mrb[0].mxu0
    %v187 = vadd.f32 %v119, %v186
    %v188 = vpop.f32.mrb[0].mxu0
    %189 = vdwg.mxu0
    %v190 = vmax.f32 %v184, 0.0
    %v191 = vmax.f32 %v187, 0.0
    %v192 = vpack.c.bf16 %v191, %v190
    %v193 = vld [vmem:[%s5] sm:$0xf]
    %v194 = vld [vmem:[%s5 + $0x4] sm:$0xf]
    %v195 = vld [vmem:[%s5 + $0x8] sm:$0xf]
    %v196 = vld [vmem:[%s5 + $0xc] sm:$0xf]
    %v197 = vld [vmem:[%s5 + $0x10] sm:$0xf]
    %v198 = vld [vmem:[%s5 + $0x14] sm:$0xf]
    %v199 = vld [vmem:[%s5 + $0x18] sm:$0xf]
    %v200 = vld [vmem:[%s5 + $0x1c] sm:$0xf]
    %v201 = vld [vmem:[%s5 + $0x20] sm:$0xf]
    %v202 = vld [vmem:[%s5 + $0x24] sm:$0xf]
    %v203 = vld [vmem:[%s5 + $0x28] sm:$0xf]
    %v204 = vld [vmem:[%s5 + $0x2c] sm:$0xf]
    %v205 = vld [vmem:[%s5 + $0x30] sm:$0xf]
    %v206 = vld [vmem:[%s5 + $0x34] sm:$0xf]
    %v207 = vld [vmem:[%s5 + $0x38] sm:$0xf]
    %v208 = vld [vmem:[%s5 + $0x3c] sm:$0xf]
    %v209 = vld [vmem:[%s6] sm:$0x1]
    %v211 = vlaneseq
    %v212 = vshrl.u32 %v211, 7
    %v213 = vsub.s32 0, %v212
    %v214 = vrot.slane %v209, %v213
    %v232 = vunpack.c.l.b16 %v193
    %v233 = vunpack.c.l.b16 %v194
    %v234 = vunpack.c.l.b16 %v195
    %v235 = vunpack.c.l.b16 %v196
    %v236 = vunpack.c.l.b16 %v197
    %v237 = vunpack.c.l.b16 %v198
    %v238 = vunpack.c.l.b16 %v199
    %v239 = vunpack.c.l.b16 %v200
    %v240 = vunpack.c.l.b16 %v201
    %v241 = vunpack.c.l.b16 %v202
    %v242 = vunpack.c.l.b16 %v203
    %v243 = vunpack.c.l.b16 %v204
    %v244 = vunpack.c.l.b16 %v205
    %v245 = vunpack.c.l.b16 %v206
    %v246 = vunpack.c.l.b16 %v207
    %v247 = vunpack.c.l.b16 %v208
    %v248 = vpack.c.b16 %v233, %v232
    %v249 = vpack.c.b16 %v235, %v234
    %v250 = vpack.c.b16 %v237, %v236
    %v251 = vpack.c.b16 %v239, %v238
    %v252 = vpack.c.b16 %v241, %v240
    %v253 = vpack.c.b16 %v243, %v242
    %v254 = vpack.c.b16 %v245, %v244
    %v255 = vpack.c.b16 %v247, %v246
    %264 = vmatprep.subr.bf16.mxu0 0
    %265 = vmatpush1.bf16.msra.mxu0 %v248
    %266 = vmatprep.subr.bf16.mxu0 0
    %267 = vmatpush1.bf16.msra.mxu0 %v249
    %268 = vmatprep.subr.bf16.mxu0 0
    %269 = vmatpush1.bf16.msra.mxu0 %v250
    %270 = vmatprep.subr.bf16.mxu0 0
    %271 = vmatpush1.bf16.msra.mxu0 %v251
    %272 = vmatprep.subr.bf16.mxu0 0
    %273 = vmatpush1.bf16.msra.mxu0 %v252
    %274 = vmatprep.subr.bf16.mxu0 0
    %275 = vmatpush1.bf16.msra.mxu0 %v253
    %276 = vmatprep.subr.bf16.mxu0 0
    %277 = vmatpush1.bf16.msra.mxu0 %v254
    %278 = vmatprep.subr.bf16.mxu0 0
    %279 = vmatpush1.bf16.msra.mxu0 %v255
    %280 = vmatprep.subr.bf16.mxu0 0
    %281 = vmatpush1.bf16.msra.mxu0 0
    %282 = vmatprep.subr.bf16.mxu0 0
    %283 = vmatpush1.bf16.msra.mxu0 0
    %284 = vmatprep.subr.bf16.mxu0 0
    %285 = vmatpush1.bf16.msra.mxu0 0
    %286 = vmatprep.subr.bf16.mxu0 0
    %287 = vmatpush1.bf16.msra.mxu0 0
    %288 = vmatprep.subr.bf16.mxu0 0
    %289 = vmatpush1.bf16.msra.mxu0 0
    %290 = vmatprep.subr.bf16.mxu0 0
    %291 = vmatpush1.bf16.msra.mxu0 0
    %292 = vmatprep.subr.bf16.mxu0 0
    %293 = vmatpush1.bf16.msra.mxu0 0
    %294 = vmatprep.subr.bf16.mxu0 0
    %295 = vmatpush1.bf16.msra.mxu0 0
    %296 = vmatprep.mubr.bf16.mxu0 0
    %297 = vmatmul.mubr.bf16.gmra.mrb[0].mxu0 %v192
    %v298 = vpop.f32.mrb[0].mxu0
    %v299 = vadd.f32 %v214, %v298
    %v300 = vpop.f32.mrb[0].mxu0
    %v301 = vpop.f32.mrb[0].mxu0
    %v302 = vadd.f32 %v214, %v301
    %v303 = vpop.f32.mrb[0].mxu0
    %304 = vdwg.mxu0
    %305 = vst.msk [vmem:[#allocation2] sm:$0xff] %vm58, %v299
    %306 = vst.msk [vmem:[#allocation2 + $0x8] sm:$0xff] %vm58, %v302
    // Predicated region
    $region30: #{advanced_neural_core_fwd.71} parent=1 // pred_check
      _
    $region31: #{advanced_neural_core_fwd.71} parent=1 // pred_check_branch
      %308 = sbr.rel (0) target = $region33
    $region32: #{advanced_neural_core_fwd.71} parent=1 // pred_region
      %s310 = ssub.s32 256, 256
      %311 = vsyncadd [#allocation3], %s310
      %s312 = sshll.u32 [#allocation2], 4
      %s313 = int_to_ptr.vmem [resolvable:$true] %s312
      %318 = dma.vmem_to_hbm [thread:$0]  %s313, 256, %s7, [#allocation3], 128, 128, 8
    $region33: #{advanced_neural_core_fwd.71} parent=1 // pred_fallthru
      _
    // Predicated region
    $region34: #{advanced_neural_core_fwd.71} parent=1 // pred_check
      _
    $region35: #{advanced_neural_core_fwd.71} parent=1 // pred_check_branch
      %320 = sbr.rel (0) target = $region37
    $region36: #{advanced_neural_core_fwd.71} parent=1 // pred_region
      %321 = dma.done [#allocation3], 256
    $region37: #{advanced_neural_core_fwd.71} parent=1 // pred_fallthru
      _
    %322 = vsyncpa [#allocation3], 1

</llo_original>
